<compile_context>
chip_gen: v5e
topology: v5e:2x2
jax: 0.10.0
libtpu: 0.0.40
codegen_flags: <defaults>
</compile_context>

<pallas_src>
import functools

import jax
import jax.numpy as jnp
from jax import lax
from jax.experimental import pallas as pl
from jax.experimental.pallas import tpu as pltpu

H = 128  # LSTM hidden size (fixed by the module: nn.LSTM(embed_dim, 128, bidirectional=True))


def _text_lstm_kernel(x_ref,               # (T, BT, E_pad)   bf16, time-leading
                      wih_ref,              # (E_pad, 8H)      bf16  [fwd | bwd]
                      b_ref,                # (1, 8H)          f32   [fwd | bwd] (b_ih+b_hh)
                      whh_f_ref,            # (H, 4H)          bf16
                      whh_b_ref,            # (H, 4H)          bf16
                      num_ref,              # (BT, F_pad)      bf16
                      wfc_fb_ref,           # (2H, C_pad)      bf16  [fwd rows ; bwd rows]
                      wfc_num_ref,          # (F_pad, C_pad)   bf16
                      bfc_ref,              # (1, C_pad)       f32
                      o_ref,                # (BT, C_pad)      f32
                      gates_f_ref,          # scratch (T, BT, 4H) bf16
                      gates_b_ref,          # scratch (T, BT, 4H) bf16
                      acc_f_ref,            # scratch (BT, H)     f32
                      acc_b_ref,            # scratch (BT, H)     f32
                      *, proj_chunk, unroll):
    T, BT, E = x_ref.shape

    # ---- Phase 1: input projection (both directions), batched over `proj_chunk`
    # timesteps per MXU matmul.  Bias is NOT folded here (added in f32 in phase 2).
    n_chunks = T // proj_chunk

    @pl.loop(0, n_chunks)
    def _proj(c):
        t0 = pl.multiple_of(c * proj_chunk, proj_chunk)
        xc = x_ref[pl.ds(t0, proj_chunk)].reshape(proj_chunk * BT, E)
        g = jnp.dot(xc, wih_ref[...], preferred_element_type=jnp.float32)
        g = g.reshape(proj_chunk, BT, 8 * H).astype(jnp.bfloat16)
        gates_f_ref[pl.ds(t0, proj_chunk)] = g[:, :, :4 * H]
        gates_b_ref[pl.ds(t0, proj_chunk)] = g[:, :, 4 * H:]

    # ---- Phase 2: fused forward+backward recurrence (latency-bound part).
    # Hoist the broadcast f32 biases out of the loop (loop-invariant).
    bias_f = jnp.broadcast_to(b_ref[:, :4 * H], (BT, 4 * H))
    bias_b = jnp.broadcast_to(b_ref[:, 4 * H:], (BT, 4 * H))

    acc_f_ref[...] = jnp.zeros_like(acc_f_ref)
    acc_b_ref[...] = jnp.zeros_like(acc_b_ref)

    def gate_math(pre, c):
        i_g = jax.nn.sigmoid(pre[:, 0 * H:1 * H])
        f_g = jax.nn.sigmoid(pre[:, 1 * H:2 * H])
        g_g = jnp.tanh(pre[:, 2 * H:3 * H])
        o_g = jax.nn.sigmoid(pre[:, 3 * H:4 * H])
        c_new = f_g * c + i_g * g_g
        h_new = o_g * jnp.tanh(c_new)
        return h_new, c_new

    def step(t, carry):
        h_f, c_f, h_b, c_b = carry   # h carried bf16, c carried f32
        pre_f = (gates_f_ref[t].astype(jnp.float32)
                 + jnp.dot(h_f, whh_f_ref[...], preferred_element_type=jnp.float32)
                 + bias_f)
        pre_b = (gates_b_ref[T - 1 - t].astype(jnp.float32)
                 + jnp.dot(h_b, whh_b_ref[...], preferred_element_type=jnp.float32)
                 + bias_b)
        h_f32, c_f = gate_math(pre_f, c_f)
        h_b32, c_b = gate_math(pre_b, c_b)
        acc_f_ref[...] += h_f32
        acc_b_ref[...] += h_b32
        return (h_f32.astype(jnp.bfloat16), c_f,
                h_b32.astype(jnp.bfloat16), c_b)

    zh = jnp.zeros((BT, H), jnp.bfloat16)
    zc = jnp.zeros((BT, H), jnp.float32)
    lax.fori_loop(0, T, step, (zh, zc, zh, zc), unroll=unroll)
    # TODO(synk): fuse the two recurrent matmuls into one block-diagonal (2H, 8H)
    # matmul on v6e/v7x (256-wide MXU); keep them split on v5e.

    # ---- Phase 3: mean over time + FC (concat expressed as matmuls; fwd/bwd fused).
    inv_t = jnp.float32(1.0 / T)
    mean_f = (acc_f_ref[...] * inv_t).astype(jnp.bfloat16)
    mean_b = (acc_b_ref[...] * inv_t).astype(jnp.bfloat16)
    mean_fb = jnp.concatenate([mean_f, mean_b], axis=-1)               # (BT, 2H)
    logits = (jnp.dot(mean_fb, wfc_fb_ref[...], preferred_element_type=jnp.float32)
              + jnp.dot(num_ref[...], wfc_num_ref[...],
                        preferred_element_type=jnp.float32)
              + bfc_ref[...])
    o_ref[...] = logits.astype(o_ref.dtype)


def _round_up(x, m):
    return ((x + m - 1) // m) * m


def _vmem_cap_bytes():
    try:
        return int(pltpu.get_tpu_info().vmem_capacity_bytes)
    except Exception:
        return 64 * 1024 * 1024   # v7x-safe fallback


def text_lstm_forward(input_ids, attention_mask, numerical_features, params):
    """Forward pass mirroring TextLSTM.forward (eval mode: dropout is identity)."""
    del attention_mask  # unused by the PyTorch forward as well
    B, T = input_ids.shape
    emb = params["embedding"]
    E = emb.shape[1]
    F = numerical_features.shape[-1]
    C = params["fc_b"].shape[-1]

    # Lane-dense padding of minor dims to multiples of 128.
    E_pad = _round_up(max(E, 128), 128)
    F_pad = _round_up(max(F, 128), 128)
    C_pad = _round_up(max(C, 128), 128)

    # Batch tiling: 128-row tiles for big batches, one sublane-padded tile otherwise.
    # TODO(synk): on v7x pick BT so the grid has >=2 tiles to use both TensorCores.
    BT = 128 if B > 128 else _round_up(B, 8)
    B_pad = _round_up(B, BT)

    # Embedding gather stays in XLA (vocab-sized gather has no clean Pallas form);
    # produce the activation directly in bf16, time-leading, padded.
    x = jnp.transpose(emb[input_ids], (1, 0, 2))                       # (T, B, E)
    x = jnp.pad(x, ((0, 0), (0, B_pad - B), (0, E_pad - E)))

    wih = jnp.concatenate([params["wih_f"], params["wih_b"]], axis=1)  # (E, 8H)
    wih = jnp.pad(wih, ((0, E_pad - E), (0, 0)))
    b = jnp.concatenate([params["b_f"], params["b_b"]], axis=1)        # (1, 8H) f32

    num = jnp.pad(numerical_features.astype(jnp.bfloat16),
                  ((0, B_pad - B), (0, F_pad - F)))

    # FC expressed as a sum of matmuls over the concat pieces; fwd/bwd rows fused.
    wfc_fb = jnp.concatenate([params["fc_w_fwd"], params["fc_w_bwd"]], axis=0)
    wfc_fb = jnp.pad(wfc_fb, ((0, 0), (0, C_pad - C)))                 # (2H, C_pad)
    wfc_num = jnp.pad(params["fc_w_num"], ((0, F_pad - F), (0, C_pad - C)))
    bfc = jnp.pad(params["fc_b"], ((0, 0), (0, C_pad - C)))            # (1, C_pad) f32

    # Phase-1 time-chunking: largest divisor of T with a modest f32 intermediate.
    proj_chunk = 1
    for cand in range(1, min(T, 8) + 1):
        if T % cand == 0 and cand * BT <= 512:
            proj_chunk = cand

    # Recurrence unrolling: full unroll only for short sequences.
    unroll = True if T <= 32 else 2

    # Explicit scoped-VMEM budget: bf16 gates scratch + double-buffered x block + slack.
    gates_bytes = 2 * T * BT * 4 * H * 2
    x_bytes = 2 * T * BT * E_pad * 2
    est = gates_bytes + x_bytes + (8 << 20)
    vmem_limit = min(max(est, 32 << 20), int(0.85 * _vmem_cap_bytes()))
    # TODO(synk): for very long T, stream the gates over time (ring buffer /
    # pltpu.emit_pipeline) instead of keeping the full (T, BT, 4H) x2 scratch resident.

    grid = (B_pad // BT,)
    full = lambda shape: pl.BlockSpec(shape, lambda i, _n=len(shape): (0,) * _n)

    kernel = pl.pallas_call(
        functools.partial(_text_lstm_kernel, proj_chunk=proj_chunk, unroll=unroll),
        out_shape=jax.ShapeDtypeStruct((B_pad, C_pad), jnp.float32),
        grid=grid,
        in_specs=[
            pl.BlockSpec((T, BT, E_pad), lambda i: (0, i, 0)),   # x (time-leading)
            full((E_pad, 8 * H)),                                # wih  [fwd | bwd]
            full((1, 8 * H)),                                    # bias [fwd | bwd]
            full((H, 4 * H)),                                    # whh forward
            full((H, 4 * H)),                                    # whh backward
            pl.BlockSpec((BT, F_pad), lambda i: (i, 0)),         # numerical features
            full((2 * H, C_pad)),                                # fc rows [fwd ; bwd]
            full((F_pad, C_pad)),                                # fc rows numerical
            full((1, C_pad)),                                    # fc bias
        ],
        out_specs=pl.BlockSpec((BT, C_pad), lambda i: (i, 0)),
        scratch_shapes=[
            pltpu.VMEM((T, BT, 4 * H), jnp.bfloat16),   # forward gates
            pltpu.VMEM((T, BT, 4 * H), jnp.bfloat16),   # backward gates
            pltpu.VMEM((BT, H), jnp.float32),           # forward h-sum
            pltpu.VMEM((BT, H), jnp.float32),           # backward h-sum
        ],
        compiler_params=pltpu.CompilerParams(
            dimension_semantics=("parallel",),
            vmem_limit_bytes=vmem_limit),
    )
    out = kernel(x, wih, b, params["whh_f"], params["whh_b"], num,
                 wfc_fb, wfc_num, bfc)
    return out[:B, :C]


def init_params(key, vocab_size, embed_dim, num_classes, num_numerical_features):
    ks = jax.random.split(key, 11)
    s = 0.05
    bf = jnp.bfloat16
    return {
        # matmul operands stored in bf16 (MXU-native); biases stay f32.
        "embedding": (s * jax.random.normal(ks[0], (vocab_size, embed_dim))).astype(bf),
        # LSTM weights pre-transposed for x @ W: (E, 4H), (H, 4H)
        "wih_f": (s * jax.random.normal(ks[1], (embed_dim, 4 * H))).astype(bf),
        "whh_f": (s * jax.random.normal(ks[2], (H, 4 * H))).astype(bf),
        "b_f": s * jax.random.normal(ks[3], (1, 4 * H)),     # bias_ih + bias_hh combined
        "wih_b": (s * jax.random.normal(ks[4], (embed_dim, 4 * H))).astype(bf),
        "whh_b": (s * jax.random.normal(ks[5], (H, 4 * H))).astype(bf),
        "b_b": s * jax.random.normal(ks[6], (1, 4 * H)),
        # fc weight (256 + F, C) split row-wise into [forward H | backward H | numerical F]
        "fc_w_fwd": (s * jax.random.normal(ks[7], (H, num_classes))).astype(bf),
        "fc_w_bwd": (s * jax.random.normal(ks[8], (H, num_classes))).astype(bf),
        "fc_w_num": (s * jax.random.normal(ks[9], (num_numerical_features, num_classes))).astype(bf),
        "fc_b": s * jax.random.normal(ks[10], (1, num_classes)),
    }


if __name__ == "__main__":
    VOCAB = 30522
    B, T, E = 2, 8, 32
    F, C = 4, 3

    key = jax.random.PRNGKey(0)
    k_ids, k_num, k_params = jax.random.split(key, 3)

    input_ids = jax.random.randint(k_ids, (B, T), 0, VOCAB, dtype=jnp.int32)
    attention_mask = jnp.ones((B, T), dtype=jnp.int32)
    numerical_features = jax.random.normal(k_num, (B, F), dtype=jnp.float32)

    params = init_params(k_params, VOCAB, E, C, F)

    fwd = jax.jit(text_lstm_forward)
    out = fwd(input_ids, attention_mask, numerical_features, params)
    out = jax.block_until_ready(out)

    assert out.shape == (B, C), out.shape
    assert bool(jnp.all(jnp.isfinite(out)))
    print("KERNEL_OK")
</pallas_src>

<mosaic_0001>
module attributes {stable_mosaic.version = 11 : i64} {
  func.func @_text_lstm_kernel(%arg0: i32, %arg1: memref<8x8x128xbf16, #tpu.memory_space<vmem>>, %arg2: memref<128x1024xbf16, #tpu.memory_space<vmem>>, %arg3: memref<1x1024xf32, #tpu.memory_space<vmem>>, %arg4: memref<128x512xbf16, #tpu.memory_space<vmem>>, %arg5: memref<128x512xbf16, #tpu.memory_space<vmem>>, %arg6: memref<8x128xbf16, #tpu.memory_space<vmem>>, %arg7: memref<256x128xbf16, #tpu.memory_space<vmem>>, %arg8: memref<128x128xbf16, #tpu.memory_space<vmem>>, %arg9: memref<1x128xf32, #tpu.memory_space<vmem>>, %arg10: memref<8x128xf32, #tpu.memory_space<vmem>>, %arg11: memref<8x8x512xbf16, #tpu.memory_space<vmem>>, %arg12: memref<8x8x512xbf16, #tpu.memory_space<vmem>>, %arg13: memref<8x128xf32, #tpu.memory_space<vmem>>, %arg14: memref<8x128xf32, #tpu.memory_space<vmem>>) attributes {dimension_semantics = [#tpu.dimension_semantics<parallel>], iteration_bounds = array<i64: 1>, scalar_prefetch = 0 : i64, scratch_operands = 4 : i64, tpu.core_type = #tpu.core_type<tc>, window_params = [{transform_indices = @transform_0, window_bounds = array<i64: 8, 8, 128>}, {pipeline_mode = #tpu.pipeline_mode<synchronous>, transform_indices = @transform_1, window_bounds = array<i64: 128, 1024>}, {pipeline_mode = #tpu.pipeline_mode<synchronous>, transform_indices = @transform_2, window_bounds = array<i64: 1, 1024>}, {pipeline_mode = #tpu.pipeline_mode<synchronous>, transform_indices = @transform_3, window_bounds = array<i64: 128, 512>}, {pipeline_mode = #tpu.pipeline_mode<synchronous>, transform_indices = @transform_4, window_bounds = array<i64: 128, 512>}, {transform_indices = @transform_5, window_bounds = array<i64: 8, 128>}, {pipeline_mode = #tpu.pipeline_mode<synchronous>, transform_indices = @transform_6, window_bounds = array<i64: 256, 128>}, {pipeline_mode = #tpu.pipeline_mode<synchronous>, transform_indices = @transform_7, window_bounds = array<i64: 128, 128>}, {pipeline_mode = #tpu.pipeline_mode<synchronous>, transform_indices = @transform_8, window_bounds = array<i64: 1, 128>}, {transform_indices = @transform_9, window_bounds = array<i64: 8, 128>}]} {
    %c0_i32 = arith.constant 0 : i32
    %c1_i32 = arith.constant 1 : i32
    %0 = arith.muli %c0_i32, %c1_i32 : i32
    %c0_i32_0 = arith.constant 0 : i32
    %1 = arith.addi %c0_i32_0, %0 : i32
    %c8_i32 = arith.constant 8 : i32
    %2 = arith.muli %1, %c8_i32 : i32
    %3 = tpu.assume_multiple %2, 8 : i32
    %4 = arith.index_cast %3 : i32 to index
    %c0 = arith.constant 0 : index
    %c0_1 = arith.constant 0 : index
    %5 = vector.load %arg1[%4, %c0, %c0_1] : memref<8x8x128xbf16, #tpu.memory_space<vmem>>, vector<8x8x128xbf16>
    %6 = vector.shape_cast %5 : vector<8x8x128xbf16> to vector<64x128xbf16>
    %c0_2 = arith.constant 0 : index
    %c0_3 = arith.constant 0 : index
    %7 = vector.load %arg2[%c0_2, %c0_3] : memref<128x1024xbf16, #tpu.memory_space<vmem>>, vector<128x1024xbf16>
    %cst = arith.constant dense<0.000000e+00> : vector<64x1024xf32>
    %8 = tpu.matmul %6, %7, %cst {dimension_numbers = #tpu.dot_dimension_numbers<[1], [0], [0], [1], [0, 0, 1, 1], [], []>} : vector<64x128xbf16>, vector<128x1024xbf16>, vector<64x1024xf32> -> vector<64x1024xf32>
    %9 = vector.shape_cast %8 : vector<64x1024xf32> to vector<8x8x1024xf32>
    %10 = arith.truncf %9 : vector<8x8x1024xf32> to vector<8x8x1024xbf16>
    %11 = vector.extract_strided_slice %10 {offsets = [0, 0, 0], sizes = [8, 8, 512], strides = [1, 1, 1]} : vector<8x8x1024xbf16> to vector<8x8x512xbf16>
    %12 = arith.index_cast %3 : i32 to index
    %c0_4 = arith.constant 0 : index
    %c0_5 = arith.constant 0 : index
    %13 = vector.load %arg11[%12, %c0_4, %c0_5] : memref<8x8x512xbf16, #tpu.memory_space<vmem>>, vector<8x8x512xbf16>
    tpu.vector_store %arg11[%12, %c0_4, %c0_5], %11 {strides = array<i32>} : memref<8x8x512xbf16, #tpu.memory_space<vmem>>, vector<8x8x512xbf16>,
    %14 = vector.extract_strided_slice %10 {offsets = [0, 0, 512], sizes = [8, 8, 512], strides = [1, 1, 1]} : vector<8x8x1024xbf16> to vector<8x8x512xbf16>
    %15 = arith.index_cast %3 : i32 to index
    %c0_6 = arith.constant 0 : index
    %c0_7 = arith.constant 0 : index
    %16 = vector.load %arg12[%15, %c0_6, %c0_7] : memref<8x8x512xbf16, #tpu.memory_space<vmem>>, vector<8x8x512xbf16>
    tpu.vector_store %arg12[%15, %c0_6, %c0_7], %14 {strides = array<i32>} : memref<8x8x512xbf16, #tpu.memory_space<vmem>>, vector<8x8x512xbf16>,
    %c1_i32_8 = arith.constant 1 : i32
    %c0_9 = arith.constant 0 : index
    %c0_10 = arith.constant 0 : index
    %17 = vector.load %arg3[%c0_9, %c0_10] : memref<1x1024xf32, #tpu.memory_space<vmem>>, vector<1x512xf32>
    %18 = vector.shape_cast %17 : vector<1x512xf32> to vector<1x512xf32>
    %19 = vector.broadcast %18 : vector<1x512xf32> to vector<8x512xf32>
    %c0_11 = arith.constant 0 : index
    %c512 = arith.constant 512 : index
    %20 = vector.load %arg3[%c0_11, %c512] : memref<1x1024xf32, #tpu.memory_space<vmem>>, vector<1x512xf32>
    %21 = vector.shape_cast %20 : vector<1x512xf32> to vector<1x512xf32>
    %22 = vector.broadcast %21 : vector<1x512xf32> to vector<8x512xf32>
    %cst_12 = arith.constant 0.000000e+00 : f32
    %23 = vector.broadcast %cst_12 : f32 to vector<8x128xf32>
    %c0_13 = arith.constant 0 : index
    %c0_14 = arith.constant 0 : index
    %24 = vector.load %arg13[%c0_13, %c0_14] : memref<8x128xf32, #tpu.memory_space<vmem>>, vector<8x128xf32>
    tpu.vector_store %arg13[%c0_13, %c0_14], %23 {strides = array<i32>} : memref<8x128xf32, #tpu.memory_space<vmem>>, vector<8x128xf32>,
    %cst_15 = arith.constant 0.000000e+00 : f32
    %25 = vector.broadcast %cst_15 : f32 to vector<8x128xf32>
    %c0_16 = arith.constant 0 : index
    %c0_17 = arith.constant 0 : index
    %26 = vector.load %arg14[%c0_16, %c0_17] : memref<8x128xf32, #tpu.memory_space<vmem>>, vector<8x128xf32>
    tpu.vector_store %arg14[%c0_16, %c0_17], %25 {strides = array<i32>} : memref<8x128xf32, #tpu.memory_space<vmem>>, vector<8x128xf32>,
    %cst_18 = arith.constant 0.000000e+00 : bf16
    %27 = vector.broadcast %cst_18 : bf16 to vector<8x128xbf16>
    %cst_19 = arith.constant 0.000000e+00 : f32
    %28 = vector.broadcast %cst_19 : f32 to vector<8x128xf32>
    %c0_i32_20 = arith.constant 0 : i32
    %29 = arith.index_cast %c0_i32_20 : i32 to index
    %c0_21 = arith.constant 0 : index
    %c0_22 = arith.constant 0 : index
    %30 = vector.load %arg11[%29, %c0_21, %c0_22] : memref<8x8x512xbf16, #tpu.memory_space<vmem>>, vector<1x8x512xbf16>
    %31 = vector.shape_cast %30 : vector<1x8x512xbf16> to vector<8x512xbf16>
    %32 = arith.extf %31 : vector<8x512xbf16> to vector<8x512xf32>
    %c0_23 = arith.constant 0 : index
    %c0_24 = arith.constant 0 : index
    %33 = vector.load %arg4[%c0_23, %c0_24] : memref<128x512xbf16, #tpu.memory_space<vmem>>, vector<128x512xbf16>
    %cst_25 = arith.constant dense<0.000000e+00> : vector<8x512xf32>
    %34 = tpu.matmul %27, %33, %cst_25 {dimension_numbers = #tpu.dot_dimension_numbers<[1], [0], [0], [1], [0, 0, 1, 1], [], []>} : vector<8x128xbf16>, vector<128x512xbf16>, vector<8x512xf32> -> vector<8x512xf32>
    %35 = arith.addf %32, %34 : vector<8x512xf32>
    %36 = arith.addf %35, %19 : vector<8x512xf32>
    %c7_i32 = arith.constant 7 : i32
    %37 = arith.subi %c7_i32, %c0_i32_20 : i32
    %38 = arith.index_cast %37 : i32 to index
    %c0_26 = arith.constant 0 : index
    %c0_27 = arith.constant 0 : index
    %39 = vector.load %arg12[%38, %c0_26, %c0_27] : memref<8x8x512xbf16, #tpu.memory_space<vmem>>, vector<1x8x512xbf16>
    %40 = vector.shape_cast %39 : vector<1x8x512xbf16> to vector<8x512xbf16>
    %41 = arith.extf %40 : vector<8x512xbf16> to vector<8x512xf32>
    %c0_28 = arith.constant 0 : index
    %c0_29 = arith.constant 0 : index
    %42 = vector.load %arg5[%c0_28, %c0_29] : memref<128x512xbf16, #tpu.memory_space<vmem>>, vector<128x512xbf16>
    %cst_30 = arith.constant dense<0.000000e+00> : vector<8x512xf32>
    %43 = tpu.matmul %27, %42, %cst_30 {dimension_numbers = #tpu.dot_dimension_numbers<[1], [0], [0], [1], [0, 0, 1, 1], [], []>} : vector<8x128xbf16>, vector<128x512xbf16>, vector<8x512xf32> -> vector<8x512xf32>
    %44 = arith.addf %41, %43 : vector<8x512xf32>
    %45 = arith.addf %44, %22 : vector<8x512xf32>
    %46 = vector.extract_strided_slice %36 {offsets = [0, 0], sizes = [8, 128], strides = [1, 1]} : vector<8x512xf32> to vector<8x128xf32>
    %47 = arith.negf %46 : vector<8x128xf32>
    %48 = math.exp %47 : vector<8x128xf32>
    %cst_31 = arith.constant 1.000000e+00 : f32
    %49 = vector.broadcast %cst_31 : f32 to vector<8x128xf32>
    %50 = arith.addf %49, %48 : vector<8x128xf32>
    %51 = arith.divf %49, %50 : vector<8x128xf32>
    %52 = vector.extract_strided_slice %36 {offsets = [0, 128], sizes = [8, 128], strides = [1, 1]} : vector<8x512xf32> to vector<8x128xf32>
    %53 = arith.negf %52 : vector<8x128xf32>
    %54 = math.exp %53 : vector<8x128xf32>
    %cst_32 = arith.constant 1.000000e+00 : f32
    %55 = vector.broadcast %cst_32 : f32 to vector<8x128xf32>
    %56 = arith.addf %55, %54 : vector<8x128xf32>
    %57 = arith.divf %55, %56 : vector<8x128xf32>
    %58 = vector.extract_strided_slice %36 {offsets = [0, 256], sizes = [8, 128], strides = [1, 1]} : vector<8x512xf32> to vector<8x128xf32>
    %59 = math.tanh %58 : vector<8x128xf32>
    %60 = vector.extract_strided_slice %36 {offsets = [0, 384], sizes = [8, 128], strides = [1, 1]} : vector<8x512xf32> to vector<8x128xf32>
    %61 = arith.negf %60 : vector<8x128xf32>
    %62 = math.exp %61 : vector<8x128xf32>
    %cst_33 = arith.constant 1.000000e+00 : f32
    %63 = vector.broadcast %cst_33 : f32 to vector<8x128xf32>
    %64 = arith.addf %63, %62 : vector<8x128xf32>
    %65 = arith.divf %63, %64 : vector<8x128xf32>
    %66 = arith.mulf %57, %28 : vector<8x128xf32>
    %67 = arith.mulf %51, %59 : vector<8x128xf32>
    %68 = arith.addf %66, %67 : vector<8x128xf32>
    %69 = math.tanh %68 : vector<8x128xf32>
    %70 = arith.mulf %65, %69 : vector<8x128xf32>
    %71 = vector.extract_strided_slice %45 {offsets = [0, 0], sizes = [8, 128], strides = [1, 1]} : vector<8x512xf32> to vector<8x128xf32>
    %72 = arith.negf %71 : vector<8x128xf32>
    %73 = math.exp %72 : vector<8x128xf32>
    %cst_34 = arith.constant 1.000000e+00 : f32
    %74 = vector.broadcast %cst_34 : f32 to vector<8x128xf32>
    %75 = arith.addf %74, %73 : vector<8x128xf32>
    %76 = arith.divf %74, %75 : vector<8x128xf32>
    %77 = vector.extract_strided_slice %45 {offsets = [0, 128], sizes = [8, 128], strides = [1, 1]} : vector<8x512xf32> to vector<8x128xf32>
    %78 = arith.negf %77 : vector<8x128xf32>
    %79 = math.exp %78 : vector<8x128xf32>
    %cst_35 = arith.constant 1.000000e+00 : f32
    %80 = vector.broadcast %cst_35 : f32 to vector<8x128xf32>
    %81 = arith.addf %80, %79 : vector<8x128xf32>
    %82 = arith.divf %80, %81 : vector<8x128xf32>
    %83 = vector.extract_strided_slice %45 {offsets = [0, 256], sizes = [8, 128], strides = [1, 1]} : vector<8x512xf32> to vector<8x128xf32>
    %84 = math.tanh %83 : vector<8x128xf32>
    %85 = vector.extract_strided_slice %45 {offsets = [0, 384], sizes = [8, 128], strides = [1, 1]} : vector<8x512xf32> to vector<8x128xf32>
    %86 = arith.negf %85 : vector<8x128xf32>
    %87 = math.exp %86 : vector<8x128xf32>
    %cst_36 = arith.constant 1.000000e+00 : f32
    %88 = vector.broadcast %cst_36 : f32 to vector<8x128xf32>
    %89 = arith.addf %88, %87 : vector<8x128xf32>
    %90 = arith.divf %88, %89 : vector<8x128xf32>
    %91 = arith.mulf %82, %28 : vector<8x128xf32>
    %92 = arith.mulf %76, %84 : vector<8x128xf32>
    %93 = arith.addf %91, %92 : vector<8x128xf32>
    %94 = math.tanh %93 : vector<8x128xf32>
    %95 = arith.mulf %90, %94 : vector<8x128xf32>
    %c0_37 = arith.constant 0 : index
    %c0_38 = arith.constant 0 : index
    %96 = vector.load %arg13[%c0_37, %c0_38] : memref<8x128xf32, #tpu.memory_space<vmem>>, vector<8x128xf32>
    %97 = arith.addf %96, %70 : vector<8x128xf32>
    %c0_39 = arith.constant 0 : index
    %c0_40 = arith.constant 0 : index
    %98 = vector.load %arg13[%c0_39, %c0_40] : memref<8x128xf32, #tpu.memory_space<vmem>>, vector<8x128xf32>
    tpu.vector_store %arg13[%c0_39, %c0_40], %97 {strides = array<i32>} : memref<8x128xf32, #tpu.memory_space<vmem>>, vector<8x128xf32>,
    %c0_41 = arith.constant 0 : index
    %c0_42 = arith.constant 0 : index
    %99 = vector.load %arg14[%c0_41, %c0_42] : memref<8x128xf32, #tpu.memory_space<vmem>>, vector<8x128xf32>
    %100 = arith.addf %99, %95 : vector<8x128xf32>
    %c0_43 = arith.constant 0 : index
    %c0_44 = arith.constant 0 : index
    %101 = vector.load %arg14[%c0_43, %c0_44] : memref<8x128xf32, #tpu.memory_space<vmem>>, vector<8x128xf32>
    tpu.vector_store %arg14[%c0_43, %c0_44], %100 {strides = array<i32>} : memref<8x128xf32, #tpu.memory_space<vmem>>, vector<8x128xf32>,
    %102 = arith.truncf %70 : vector<8x128xf32> to vector<8x128xbf16>
    %103 = arith.truncf %95 : vector<8x128xf32> to vector<8x128xbf16>
    %c1_i32_45 = arith.constant 1 : i32
    %104 = arith.index_cast %c1_i32_45 : i32 to index
    %c0_46 = arith.constant 0 : index
    %c0_47 = arith.constant 0 : index
    %105 = vector.load %arg11[%104, %c0_46, %c0_47] : memref<8x8x512xbf16, #tpu.memory_space<vmem>>, vector<1x8x512xbf16>
    %106 = vector.shape_cast %105 : vector<1x8x512xbf16> to vector<8x512xbf16>
    %107 = arith.extf %106 : vector<8x512xbf16> to vector<8x512xf32>
    %c0_48 = arith.constant 0 : index
    %c0_49 = arith.constant 0 : index
    %108 = vector.load %arg4[%c0_48, %c0_49] : memref<128x512xbf16, #tpu.memory_space<vmem>>, vector<128x512xbf16>
    %cst_50 = arith.constant dense<0.000000e+00> : vector<8x512xf32>
    %109 = tpu.matmul %102, %108, %cst_50 {dimension_numbers = #tpu.dot_dimension_numbers<[1], [0], [0], [1], [0, 0, 1, 1], [], []>} : vector<8x128xbf16>, vector<128x512xbf16>, vector<8x512xf32> -> vector<8x512xf32>
    %110 = arith.addf %107, %109 : vector<8x512xf32>
    %111 = arith.addf %110, %19 : vector<8x512xf32>
    %c7_i32_51 = arith.constant 7 : i32
    %112 = arith.subi %c7_i32_51, %c1_i32_45 : i32
    %113 = arith.index_cast %112 : i32 to index
    %c0_52 = arith.constant 0 : index
    %c0_53 = arith.constant 0 : index
    %114 = vector.load %arg12[%113, %c0_52, %c0_53] : memref<8x8x512xbf16, #tpu.memory_space<vmem>>, vector<1x8x512xbf16>
    %115 = vector.shape_cast %114 : vector<1x8x512xbf16> to vector<8x512xbf16>
    %116 = arith.extf %115 : vector<8x512xbf16> to vector<8x512xf32>
    %c0_54 = arith.constant 0 : index
    %c0_55 = arith.constant 0 : index
    %117 = vector.load %arg5[%c0_54, %c0_55] : memref<128x512xbf16, #tpu.memory_space<vmem>>, vector<128x512xbf16>
    %cst_56 = arith.constant dense<0.000000e+00> : vector<8x512xf32>
    %118 = tpu.matmul %103, %117, %cst_56 {dimension_numbers = #tpu.dot_dimension_numbers<[1], [0], [0], [1], [0, 0, 1, 1], [], []>} : vector<8x128xbf16>, vector<128x512xbf16>, vector<8x512xf32> -> vector<8x512xf32>
    %119 = arith.addf %116, %118 : vector<8x512xf32>
    %120 = arith.addf %119, %22 : vector<8x512xf32>
    %121 = vector.extract_strided_slice %111 {offsets = [0, 0], sizes = [8, 128], strides = [1, 1]} : vector<8x512xf32> to vector<8x128xf32>
    %122 = arith.negf %121 : vector<8x128xf32>
    %123 = math.exp %122 : vector<8x128xf32>
    %cst_57 = arith.constant 1.000000e+00 : f32
    %124 = vector.broadcast %cst_57 : f32 to vector<8x128xf32>
    %125 = arith.addf %124, %123 : vector<8x128xf32>
    %126 = arith.divf %124, %125 : vector<8x128xf32>
    %127 = vector.extract_strided_slice %111 {offsets = [0, 128], sizes = [8, 128], strides = [1, 1]} : vector<8x512xf32> to vector<8x128xf32>
    %128 = arith.negf %127 : vector<8x128xf32>
    %129 = math.exp %128 : vector<8x128xf32>
    %cst_58 = arith.constant 1.000000e+00 : f32
    %130 = vector.broadcast %cst_58 : f32 to vector<8x128xf32>
    %131 = arith.addf %130, %129 : vector<8x128xf32>
    %132 = arith.divf %130, %131 : vector<8x128xf32>
    %133 = vector.extract_strided_slice %111 {offsets = [0, 256], sizes = [8, 128], strides = [1, 1]} : vector<8x512xf32> to vector<8x128xf32>
    %134 = math.tanh %133 : vector<8x128xf32>
    %135 = vector.extract_strided_slice %111 {offsets = [0, 384], sizes = [8, 128], strides = [1, 1]} : vector<8x512xf32> to vector<8x128xf32>
    %136 = arith.negf %135 : vector<8x128xf32>
    %137 = math.exp %136 : vector<8x128xf32>
    %cst_59 = arith.constant 1.000000e+00 : f32
    %138 = vector.broadcast %cst_59 : f32 to vector<8x128xf32>
    %139 = arith.addf %138, %137 : vector<8x128xf32>
    %140 = arith.divf %138, %139 : vector<8x128xf32>
    %141 = arith.mulf %132, %68 : vector<8x128xf32>
    %142 = arith.mulf %126, %134 : vector<8x128xf32>
    %143 = arith.addf %141, %142 : vector<8x128xf32>
    %144 = math.tanh %143 : vector<8x128xf32>
    %145 = arith.mulf %140, %144 : vector<8x128xf32>
    %146 = vector.extract_strided_slice %120 {offsets = [0, 0], sizes = [8, 128], strides = [1, 1]} : vector<8x512xf32> to vector<8x128xf32>
    %147 = arith.negf %146 : vector<8x128xf32>
    %148 = math.exp %147 : vector<8x128xf32>
    %cst_60 = arith.constant 1.000000e+00 : f32
    %149 = vector.broadcast %cst_60 : f32 to vector<8x128xf32>
    %150 = arith.addf %149, %148 : vector<8x128xf32>
    %151 = arith.divf %149, %150 : vector<8x128xf32>
    %152 = vector.extract_strided_slice %120 {offsets = [0, 128], sizes = [8, 128], strides = [1, 1]} : vector<8x512xf32> to vector<8x128xf32>
    %153 = arith.negf %152 : vector<8x128xf32>
    %154 = math.exp %153 : vector<8x128xf32>
    %cst_61 = arith.constant 1.000000e+00 : f32
    %155 = vector.broadcast %cst_61 : f32 to vector<8x128xf32>
    %156 = arith.addf %155, %154 : vector<8x128xf32>
    %157 = arith.divf %155, %156 : vector<8x128xf32>
    %158 = vector.extract_strided_slice %120 {offsets = [0, 256], sizes = [8, 128], strides = [1, 1]} : vector<8x512xf32> to vector<8x128xf32>
    %159 = math.tanh %158 : vector<8x128xf32>
    %160 = vector.extract_strided_slice %120 {offsets = [0, 384], sizes = [8, 128], strides = [1, 1]} : vector<8x512xf32> to vector<8x128xf32>
    %161 = arith.negf %160 : vector<8x128xf32>
    %162 = math.exp %161 : vector<8x128xf32>
    %cst_62 = arith.constant 1.000000e+00 : f32
    %163 = vector.broadcast %cst_62 : f32 to vector<8x128xf32>
    %164 = arith.addf %163, %162 : vector<8x128xf32>
    %165 = arith.divf %163, %164 : vector<8x128xf32>
    %166 = arith.mulf %157, %93 : vector<8x128xf32>
    %167 = arith.mulf %151, %159 : vector<8x128xf32>
    %168 = arith.addf %166, %167 : vector<8x128xf32>
    %169 = math.tanh %168 : vector<8x128xf32>
    %170 = arith.mulf %165, %169 : vector<8x128xf32>
    %c0_63 = arith.constant 0 : index
    %c0_64 = arith.constant 0 : index
    %171 = vector.load %arg13[%c0_63, %c0_64] : memref<8x128xf32, #tpu.memory_space<vmem>>, vector<8x128xf32>
    %172 = arith.addf %171, %145 : vector<8x128xf32>
    %c0_65 = arith.constant 0 : index
    %c0_66 = arith.constant 0 : index
    %173 = vector.load %arg13[%c0_65, %c0_66] : memref<8x128xf32, #tpu.memory_space<vmem>>, vector<8x128xf32>
    tpu.vector_store %arg13[%c0_65, %c0_66], %172 {strides = array<i32>} : memref<8x128xf32, #tpu.memory_space<vmem>>, vector<8x128xf32>,
    %c0_67 = arith.constant 0 : index
    %c0_68 = arith.constant 0 : index
    %174 = vector.load %arg14[%c0_67, %c0_68] : memref<8x128xf32, #tpu.memory_space<vmem>>, vector<8x128xf32>
    %175 = arith.addf %174, %170 : vector<8x128xf32>
    %c0_69 = arith.constant 0 : index
    %c0_70 = arith.constant 0 : index
    %176 = vector.load %arg14[%c0_69, %c0_70] : memref<8x128xf32, #tpu.memory_space<vmem>>, vector<8x128xf32>
    tpu.vector_store %arg14[%c0_69, %c0_70], %175 {strides = array<i32>} : memref<8x128xf32, #tpu.memory_space<vmem>>, vector<8x128xf32>,
    %177 = arith.truncf %145 : vector<8x128xf32> to vector<8x128xbf16>
    %178 = arith.truncf %170 : vector<8x128xf32> to vector<8x128xbf16>
    %c2_i32 = arith.constant 2 : i32
    %179 = arith.index_cast %c2_i32 : i32 to index
    %c0_71 = arith.constant 0 : index
    %c0_72 = arith.constant 0 : index
    %180 = vector.load %arg11[%179, %c0_71, %c0_72] : memref<8x8x512xbf16, #tpu.memory_space<vmem>>, vector<1x8x512xbf16>
    %181 = vector.shape_cast %180 : vector<1x8x512xbf16> to vector<8x512xbf16>
    %182 = arith.extf %181 : vector<8x512xbf16> to vector<8x512xf32>
    %c0_73 = arith.constant 0 : index
    %c0_74 = arith.constant 0 : index
    %183 = vector.load %arg4[%c0_73, %c0_74] : memref<128x512xbf16, #tpu.memory_space<vmem>>, vector<128x512xbf16>
    %cst_75 = arith.constant dense<0.000000e+00> : vector<8x512xf32>
    %184 = tpu.matmul %177, %183, %cst_75 {dimension_numbers = #tpu.dot_dimension_numbers<[1], [0], [0], [1], [0, 0, 1, 1], [], []>} : vector<8x128xbf16>, vector<128x512xbf16>, vector<8x512xf32> -> vector<8x512xf32>
    %185 = arith.addf %182, %184 : vector<8x512xf32>
    %186 = arith.addf %185, %19 : vector<8x512xf32>
    %c7_i32_76 = arith.constant 7 : i32
    %187 = arith.subi %c7_i32_76, %c2_i32 : i32
    %188 = arith.index_cast %187 : i32 to index
    %c0_77 = arith.constant 0 : index
    %c0_78 = arith.constant 0 : index
    %189 = vector.load %arg12[%188, %c0_77, %c0_78] : memref<8x8x512xbf16, #tpu.memory_space<vmem>>, vector<1x8x512xbf16>
    %190 = vector.shape_cast %189 : vector<1x8x512xbf16> to vector<8x512xbf16>
    %191 = arith.extf %190 : vector<8x512xbf16> to vector<8x512xf32>
    %c0_79 = arith.constant 0 : index
    %c0_80 = arith.constant 0 : index
    %192 = vector.load %arg5[%c0_79, %c0_80] : memref<128x512xbf16, #tpu.memory_space<vmem>>, vector<128x512xbf16>
    %cst_81 = arith.constant dense<0.000000e+00> : vector<8x512xf32>
    %193 = tpu.matmul %178, %192, %cst_81 {dimension_numbers = #tpu.dot_dimension_numbers<[1], [0], [0], [1], [0, 0, 1, 1], [], []>} : vector<8x128xbf16>, vector<128x512xbf16>, vector<8x512xf32> -> vector<8x512xf32>
    %194 = arith.addf %191, %193 : vector<8x512xf32>
    %195 = arith.addf %194, %22 : vector<8x512xf32>
    %196 = vector.extract_strided_slice %186 {offsets = [0, 0], sizes = [8, 128], strides = [1, 1]} : vector<8x512xf32> to vector<8x128xf32>
    %197 = arith.negf %196 : vector<8x128xf32>
    %198 = math.exp %197 : vector<8x128xf32>
    %cst_82 = arith.constant 1.000000e+00 : f32
    %199 = vector.broadcast %cst_82 : f32 to vector<8x128xf32>
    %200 = arith.addf %199, %198 : vector<8x128xf32>
    %201 = arith.divf %199, %200 : vector<8x128xf32>
    %202 = vector.extract_strided_slice %186 {offsets = [0, 128], sizes = [8, 128], strides = [1, 1]} : vector<8x512xf32> to vector<8x128xf32>
    %203 = arith.negf %202 : vector<8x128xf32>
    %204 = math.exp %203 : vector<8x128xf32>
    %cst_83 = arith.constant 1.000000e+00 : f32
    %205 = vector.broadcast %cst_83 : f32 to vector<8x128xf32>
    %206 = arith.addf %205, %204 : vector<8x128xf32>
    %207 = arith.divf %205, %206 : vector<8x128xf32>
    %208 = vector.extract_strided_slice %186 {offsets = [0, 256], sizes = [8, 128], strides = [1, 1]} : vector<8x512xf32> to vector<8x128xf32>
    %209 = math.tanh %208 : vector<8x128xf32>
    %210 = vector.extract_strided_slice %186 {offsets = [0, 384], sizes = [8, 128], strides = [1, 1]} : vector<8x512xf32> to vector<8x128xf32>
    %211 = arith.negf %210 : vector<8x128xf32>
    %212 = math.exp %211 : vector<8x128xf32>
    %cst_84 = arith.constant 1.000000e+00 : f32
    %213 = vector.broadcast %cst_84 : f32 to vector<8x128xf32>
    %214 = arith.addf %213, %212 : vector<8x128xf32>
    %215 = arith.divf %213, %214 : vector<8x128xf32>
    %216 = arith.mulf %207, %143 : vector<8x128xf32>
    %217 = arith.mulf %201, %209 : vector<8x128xf32>
    %218 = arith.addf %216, %217 : vector<8x128xf32>
    %219 = math.tanh %218 : vector<8x128xf32>
    %220 = arith.mulf %215, %219 : vector<8x128xf32>
    %221 = vector.extract_strided_slice %195 {offsets = [0, 0], sizes = [8, 128], strides = [1, 1]} : vector<8x512xf32> to vector<8x128xf32>
    %222 = arith.negf %221 : vector<8x128xf32>
    %223 = math.exp %222 : vector<8x128xf32>
    %cst_85 = arith.constant 1.000000e+00 : f32
    %224 = vector.broadcast %cst_85 : f32 to vector<8x128xf32>
    %225 = arith.addf %224, %223 : vector<8x128xf32>
    %226 = arith.divf %224, %225 : vector<8x128xf32>
    %227 = vector.extract_strided_slice %195 {offsets = [0, 128], sizes = [8, 128], strides = [1, 1]} : vector<8x512xf32> to vector<8x128xf32>
    %228 = arith.negf %227 : vector<8x128xf32>
    %229 = math.exp %228 : vector<8x128xf32>
    %cst_86 = arith.constant 1.000000e+00 : f32
    %230 = vector.broadcast %cst_86 : f32 to vector<8x128xf32>
    %231 = arith.addf %230, %229 : vector<8x128xf32>
    %232 = arith.divf %230, %231 : vector<8x128xf32>
    %233 = vector.extract_strided_slice %195 {offsets = [0, 256], sizes = [8, 128], strides = [1, 1]} : vector<8x512xf32> to vector<8x128xf32>
    %234 = math.tanh %233 : vector<8x128xf32>
    %235 = vector.extract_strided_slice %195 {offsets = [0, 384], sizes = [8, 128], strides = [1, 1]} : vector<8x512xf32> to vector<8x128xf32>
    %236 = arith.negf %235 : vector<8x128xf32>
    %237 = math.exp %236 : vector<8x128xf32>
    %cst_87 = arith.constant 1.000000e+00 : f32
    %238 = vector.broadcast %cst_87 : f32 to vector<8x128xf32>
    %239 = arith.addf %238, %237 : vector<8x128xf32>
    %240 = arith.divf %238, %239 : vector<8x128xf32>
    %241 = arith.mulf %232, %168 : vector<8x128xf32>
    %242 = arith.mulf %226, %234 : vector<8x128xf32>
    %243 = arith.addf %241, %242 : vector<8x128xf32>
    %244 = math.tanh %243 : vector<8x128xf32>
    %245 = arith.mulf %240, %244 : vector<8x128xf32>
    %c0_88 = arith.constant 0 : index
    %c0_89 = arith.constant 0 : index
    %246 = vector.load %arg13[%c0_88, %c0_89] : memref<8x128xf32, #tpu.memory_space<vmem>>, vector<8x128xf32>
    %247 = arith.addf %246, %220 : vector<8x128xf32>
    %c0_90 = arith.constant 0 : index
    %c0_91 = arith.constant 0 : index
    %248 = vector.load %arg13[%c0_90, %c0_91] : memref<8x128xf32, #tpu.memory_space<vmem>>, vector<8x128xf32>
    tpu.vector_store %arg13[%c0_90, %c0_91], %247 {strides = array<i32>} : memref<8x128xf32, #tpu.memory_space<vmem>>, vector<8x128xf32>,
    %c0_92 = arith.constant 0 : index
    %c0_93 = arith.constant 0 : index
    %249 = vector.load %arg14[%c0_92, %c0_93] : memref<8x128xf32, #tpu.memory_space<vmem>>, vector<8x128xf32>
    %250 = arith.addf %249, %245 : vector<8x128xf32>
    %c0_94 = arith.constant 0 : index
    %c0_95 = arith.constant 0 : index
    %251 = vector.load %arg14[%c0_94, %c0_95] : memref<8x128xf32, #tpu.memory_space<vmem>>, vector<8x128xf32>
    tpu.vector_store %arg14[%c0_94, %c0_95], %250 {strides = array<i32>} : memref<8x128xf32, #tpu.memory_space<vmem>>, vector<8x128xf32>,
    %252 = arith.truncf %220 : vector<8x128xf32> to vector<8x128xbf16>
    %253 = arith.truncf %245 : vector<8x128xf32> to vector<8x128xbf16>
    %c3_i32 = arith.constant 3 : i32
    %254 = arith.index_cast %c3_i32 : i32 to index
    %c0_96 = arith.constant 0 : index
    %c0_97 = arith.constant 0 : index
    %255 = vector.load %arg11[%254, %c0_96, %c0_97] : memref<8x8x512xbf16, #tpu.memory_space<vmem>>, vector<1x8x512xbf16>
    %256 = vector.shape_cast %255 : vector<1x8x512xbf16> to vector<8x512xbf16>
    %257 = arith.extf %256 : vector<8x512xbf16> to vector<8x512xf32>
    %c0_98 = arith.constant 0 : index
    %c0_99 = arith.constant 0 : index
    %258 = vector.load %arg4[%c0_98, %c0_99] : memref<128x512xbf16, #tpu.memory_space<vmem>>, vector<128x512xbf16>
    %cst_100 = arith.constant dense<0.000000e+00> : vector<8x512xf32>
    %259 = tpu.matmul %252, %258, %cst_100 {dimension_numbers = #tpu.dot_dimension_numbers<[1], [0], [0], [1], [0, 0, 1, 1], [], []>} : vector<8x128xbf16>, vector<128x512xbf16>, vector<8x512xf32> -> vector<8x512xf32>
    %260 = arith.addf %257, %259 : vector<8x512xf32>
    %261 = arith.addf %260, %19 : vector<8x512xf32>
    %c7_i32_101 = arith.constant 7 : i32
    %262 = arith.subi %c7_i32_101, %c3_i32 : i32
    %263 = arith.index_cast %262 : i32 to index
    %c0_102 = arith.constant 0 : index
    %c0_103 = arith.constant 0 : index
    %264 = vector.load %arg12[%263, %c0_102, %c0_103] : memref<8x8x512xbf16, #tpu.memory_space<vmem>>, vector<1x8x512xbf16>
    %265 = vector.shape_cast %264 : vector<1x8x512xbf16> to vector<8x512xbf16>
    %266 = arith.extf %265 : vector<8x512xbf16> to vector<8x512xf32>
    %c0_104 = arith.constant 0 : index
    %c0_105 = arith.constant 0 : index
    %267 = vector.load %arg5[%c0_104, %c0_105] : memref<128x512xbf16, #tpu.memory_space<vmem>>, vector<128x512xbf16>
    %cst_106 = arith.constant dense<0.000000e+00> : vector<8x512xf32>
    %268 = tpu.matmul %253, %267, %cst_106 {dimension_numbers = #tpu.dot_dimension_numbers<[1], [0], [0], [1], [0, 0, 1, 1], [], []>} : vector<8x128xbf16>, vector<128x512xbf16>, vector<8x512xf32> -> vector<8x512xf32>
    %269 = arith.addf %266, %268 : vector<8x512xf32>
    %270 = arith.addf %269, %22 : vector<8x512xf32>
    %271 = vector.extract_strided_slice %261 {offsets = [0, 0], sizes = [8, 128], strides = [1, 1]} : vector<8x512xf32> to vector<8x128xf32>
    %272 = arith.negf %271 : vector<8x128xf32>
    %273 = math.exp %272 : vector<8x128xf32>
    %cst_107 = arith.constant 1.000000e+00 : f32
    %274 = vector.broadcast %cst_107 : f32 to vector<8x128xf32>
    %275 = arith.addf %274, %273 : vector<8x128xf32>
    %276 = arith.divf %274, %275 : vector<8x128xf32>
    %277 = vector.extract_strided_slice %261 {offsets = [0, 128], sizes = [8, 128], strides = [1, 1]} : vector<8x512xf32> to vector<8x128xf32>
    %278 = arith.negf %277 : vector<8x128xf32>
    %279 = math.exp %278 : vector<8x128xf32>
    %cst_108 = arith.constant 1.000000e+00 : f32
    %280 = vector.broadcast %cst_108 : f32 to vector<8x128xf32>
    %281 = arith.addf %280, %279 : vector<8x128xf32>
    %282 = arith.divf %280, %281 : vector<8x128xf32>
    %283 = vector.extract_strided_slice %261 {offsets = [0, 256], sizes = [8, 128], strides = [1, 1]} : vector<8x512xf32> to vector<8x128xf32>
    %284 = math.tanh %283 : vector<8x128xf32>
    %285 = vector.extract_strided_slice %261 {offsets = [0, 384], sizes = [8, 128], strides = [1, 1]} : vector<8x512xf32> to vector<8x128xf32>
    %286 = arith.negf %285 : vector<8x128xf32>
    %287 = math.exp %286 : vector<8x128xf32>
    %cst_109 = arith.constant 1.000000e+00 : f32
    %288 = vector.broadcast %cst_109 : f32 to vector<8x128xf32>
    %289 = arith.addf %288, %287 : vector<8x128xf32>
    %290 = arith.divf %288, %289 : vector<8x128xf32>
    %291 = arith.mulf %282, %218 : vector<8x128xf32>
    %292 = arith.mulf %276, %284 : vector<8x128xf32>
    %293 = arith.addf %291, %292 : vector<8x128xf32>
    %294 = math.tanh %293 : vector<8x128xf32>
    %295 = arith.mulf %290, %294 : vector<8x128xf32>
    %296 = vector.extract_strided_slice %270 {offsets = [0, 0], sizes = [8, 128], strides = [1, 1]} : vector<8x512xf32> to vector<8x128xf32>
    %297 = arith.negf %296 : vector<8x128xf32>
    %298 = math.exp %297 : vector<8x128xf32>
    %cst_110 = arith.constant 1.000000e+00 : f32
    %299 = vector.broadcast %cst_110 : f32 to vector<8x128xf32>
    %300 = arith.addf %299, %298 : vector<8x128xf32>
    %301 = arith.divf %299, %300 : vector<8x128xf32>
    %302 = vector.extract_strided_slice %270 {offsets = [0, 128], sizes = [8, 128], strides = [1, 1]} : vector<8x512xf32> to vector<8x128xf32>
    %303 = arith.negf %302 : vector<8x128xf32>
    %304 = math.exp %303 : vector<8x128xf32>
    %cst_111 = arith.constant 1.000000e+00 : f32
    %305 = vector.broadcast %cst_111 : f32 to vector<8x128xf32>
    %306 = arith.addf %305, %304 : vector<8x128xf32>
    %307 = arith.divf %305, %306 : vector<8x128xf32>
    %308 = vector.extract_strided_slice %270 {offsets = [0, 256], sizes = [8, 128], strides = [1, 1]} : vector<8x512xf32> to vector<8x128xf32>
    %309 = math.tanh %308 : vector<8x128xf32>
    %310 = vector.extract_strided_slice %270 {offsets = [0, 384], sizes = [8, 128], strides = [1, 1]} : vector<8x512xf32> to vector<8x128xf32>
    %311 = arith.negf %310 : vector<8x128xf32>
    %312 = math.exp %311 : vector<8x128xf32>
    %cst_112 = arith.constant 1.000000e+00 : f32
    %313 = vector.broadcast %cst_112 : f32 to vector<8x128xf32>
    %314 = arith.addf %313, %312 : vector<8x128xf32>
    %315 = arith.divf %313, %314 : vector<8x128xf32>
    %316 = arith.mulf %307, %243 : vector<8x128xf32>
    %317 = arith.mulf %301, %309 : vector<8x128xf32>
    %318 = arith.addf %316, %317 : vector<8x128xf32>
    %319 = math.tanh %318 : vector<8x128xf32>
    %320 = arith.mulf %315, %319 : vector<8x128xf32>
    %c0_113 = arith.constant 0 : index
    %c0_114 = arith.constant 0 : index
    %321 = vector.load %arg13[%c0_113, %c0_114] : memref<8x128xf32, #tpu.memory_space<vmem>>, vector<8x128xf32>
    %322 = arith.addf %321, %295 : vector<8x128xf32>
    %c0_115 = arith.constant 0 : index
    %c0_116 = arith.constant 0 : index
    %323 = vector.load %arg13[%c0_115, %c0_116] : memref<8x128xf32, #tpu.memory_space<vmem>>, vector<8x128xf32>
    tpu.vector_store %arg13[%c0_115, %c0_116], %322 {strides = array<i32>} : memref<8x128xf32, #tpu.memory_space<vmem>>, vector<8x128xf32>,
    %c0_117 = arith.constant 0 : index
    %c0_118 = arith.constant 0 : index
    %324 = vector.load %arg14[%c0_117, %c0_118] : memref<8x128xf32, #tpu.memory_space<vmem>>, vector<8x128xf32>
    %325 = arith.addf %324, %320 : vector<8x128xf32>
    %c0_119 = arith.constant 0 : index
    %c0_120 = arith.constant 0 : index
    %326 = vector.load %arg14[%c0_119, %c0_120] : memref<8x128xf32, #tpu.memory_space<vmem>>, vector<8x128xf32>
    tpu.vector_store %arg14[%c0_119, %c0_120], %325 {strides = array<i32>} : memref<8x128xf32, #tpu.memory_space<vmem>>, vector<8x128xf32>,
    %327 = arith.truncf %295 : vector<8x128xf32> to vector<8x128xbf16>
    %328 = arith.truncf %320 : vector<8x128xf32> to vector<8x128xbf16>
    %c4_i32 = arith.constant 4 : i32
    %329 = arith.index_cast %c4_i32 : i32 to index
    %c0_121 = arith.constant 0 : index
    %c0_122 = arith.constant 0 : index
    %330 = vector.load %arg11[%329, %c0_121, %c0_122] : memref<8x8x512xbf16, #tpu.memory_space<vmem>>, vector<1x8x512xbf16>
    %331 = vector.shape_cast %330 : vector<1x8x512xbf16> to vector<8x512xbf16>
    %332 = arith.extf %331 : vector<8x512xbf16> to vector<8x512xf32>
    %c0_123 = arith.constant 0 : index
    %c0_124 = arith.constant 0 : index
    %333 = vector.load %arg4[%c0_123, %c0_124] : memref<128x512xbf16, #tpu.memory_space<vmem>>, vector<128x512xbf16>
    %cst_125 = arith.constant dense<0.000000e+00> : vector<8x512xf32>
    %334 = tpu.matmul %327, %333, %cst_125 {dimension_numbers = #tpu.dot_dimension_numbers<[1], [0], [0], [1], [0, 0, 1, 1], [], []>} : vector<8x128xbf16>, vector<128x512xbf16>, vector<8x512xf32> -> vector<8x512xf32>
    %335 = arith.addf %332, %334 : vector<8x512xf32>
    %336 = arith.addf %335, %19 : vector<8x512xf32>
    %c7_i32_126 = arith.constant 7 : i32
    %337 = arith.subi %c7_i32_126, %c4_i32 : i32
    %338 = arith.index_cast %337 : i32 to index
    %c0_127 = arith.constant 0 : index
    %c0_128 = arith.constant 0 : index
    %339 = vector.load %arg12[%338, %c0_127, %c0_128] : memref<8x8x512xbf16, #tpu.memory_space<vmem>>, vector<1x8x512xbf16>
    %340 = vector.shape_cast %339 : vector<1x8x512xbf16> to vector<8x512xbf16>
    %341 = arith.extf %340 : vector<8x512xbf16> to vector<8x512xf32>
    %c0_129 = arith.constant 0 : index
    %c0_130 = arith.constant 0 : index
    %342 = vector.load %arg5[%c0_129, %c0_130] : memref<128x512xbf16, #tpu.memory_space<vmem>>, vector<128x512xbf16>
    %cst_131 = arith.constant dense<0.000000e+00> : vector<8x512xf32>
    %343 = tpu.matmul %328, %342, %cst_131 {dimension_numbers = #tpu.dot_dimension_numbers<[1], [0], [0], [1], [0, 0, 1, 1], [], []>} : vector<8x128xbf16>, vector<128x512xbf16>, vector<8x512xf32> -> vector<8x512xf32>
    %344 = arith.addf %341, %343 : vector<8x512xf32>
    %345 = arith.addf %344, %22 : vector<8x512xf32>
    %346 = vector.extract_strided_slice %336 {offsets = [0, 0], sizes = [8, 128], strides = [1, 1]} : vector<8x512xf32> to vector<8x128xf32>
    %347 = arith.negf %346 : vector<8x128xf32>
    %348 = math.exp %347 : vector<8x128xf32>
    %cst_132 = arith.constant 1.000000e+00 : f32
    %349 = vector.broadcast %cst_132 : f32 to vector<8x128xf32>
    %350 = arith.addf %349, %348 : vector<8x128xf32>
    %351 = arith.divf %349, %350 : vector<8x128xf32>
    %352 = vector.extract_strided_slice %336 {offsets = [0, 128], sizes = [8, 128], strides = [1, 1]} : vector<8x512xf32> to vector<8x128xf32>
    %353 = arith.negf %352 : vector<8x128xf32>
    %354 = math.exp %353 : vector<8x128xf32>
    %cst_133 = arith.constant 1.000000e+00 : f32
    %355 = vector.broadcast %cst_133 : f32 to vector<8x128xf32>
    %356 = arith.addf %355, %354 : vector<8x128xf32>
    %357 = arith.divf %355, %356 : vector<8x128xf32>
    %358 = vector.extract_strided_slice %336 {offsets = [0, 256], sizes = [8, 128], strides = [1, 1]} : vector<8x512xf32> to vector<8x128xf32>
    %359 = math.tanh %358 : vector<8x128xf32>
    %360 = vector.extract_strided_slice %336 {offsets = [0, 384], sizes = [8, 128], strides = [1, 1]} : vector<8x512xf32> to vector<8x128xf32>
    %361 = arith.negf %360 : vector<8x128xf32>
    %362 = math.exp %361 : vector<8x128xf32>
    %cst_134 = arith.constant 1.000000e+00 : f32
    %363 = vector.broadcast %cst_134 : f32 to vector<8x128xf32>
    %364 = arith.addf %363, %362 : vector<8x128xf32>
    %365 = arith.divf %363, %364 : vector<8x128xf32>
    %366 = arith.mulf %357, %293 : vector<8x128xf32>
    %367 = arith.mulf %351, %359 : vector<8x128xf32>
    %368 = arith.addf %366, %367 : vector<8x128xf32>
    %369 = math.tanh %368 : vector<8x128xf32>
    %370 = arith.mulf %365, %369 : vector<8x128xf32>
    %371 = vector.extract_strided_slice %345 {offsets = [0, 0], sizes = [8, 128], strides = [1, 1]} : vector<8x512xf32> to vector<8x128xf32>
    %372 = arith.negf %371 : vector<8x128xf32>
    %373 = math.exp %372 : vector<8x128xf32>
    %cst_135 = arith.constant 1.000000e+00 : f32
    %374 = vector.broadcast %cst_135 : f32 to vector<8x128xf32>
    %375 = arith.addf %374, %373 : vector<8x128xf32>
    %376 = arith.divf %374, %375 : vector<8x128xf32>
    %377 = vector.extract_strided_slice %345 {offsets = [0, 128], sizes = [8, 128], strides = [1, 1]} : vector<8x512xf32> to vector<8x128xf32>
    %378 = arith.negf %377 : vector<8x128xf32>
    %379 = math.exp %378 : vector<8x128xf32>
    %cst_136 = arith.constant 1.000000e+00 : f32
    %380 = vector.broadcast %cst_136 : f32 to vector<8x128xf32>
    %381 = arith.addf %380, %379 : vector<8x128xf32>
    %382 = arith.divf %380, %381 : vector<8x128xf32>
    %383 = vector.extract_strided_slice %345 {offsets = [0, 256], sizes = [8, 128], strides = [1, 1]} : vector<8x512xf32> to vector<8x128xf32>
    %384 = math.tanh %383 : vector<8x128xf32>
    %385 = vector.extract_strided_slice %345 {offsets = [0, 384], sizes = [8, 128], strides = [1, 1]} : vector<8x512xf32> to vector<8x128xf32>
    %386 = arith.negf %385 : vector<8x128xf32>
    %387 = math.exp %386 : vector<8x128xf32>
    %cst_137 = arith.constant 1.000000e+00 : f32
    %388 = vector.broadcast %cst_137 : f32 to vector<8x128xf32>
    %389 = arith.addf %388, %387 : vector<8x128xf32>
    %390 = arith.divf %388, %389 : vector<8x128xf32>
    %391 = arith.mulf %382, %318 : vector<8x128xf32>
    %392 = arith.mulf %376, %384 : vector<8x128xf32>
    %393 = arith.addf %391, %392 : vector<8x128xf32>
    %394 = math.tanh %393 : vector<8x128xf32>
    %395 = arith.mulf %390, %394 : vector<8x128xf32>
    %c0_138 = arith.constant 0 : index
    %c0_139 = arith.constant 0 : index
    %396 = vector.load %arg13[%c0_138, %c0_139] : memref<8x128xf32, #tpu.memory_space<vmem>>, vector<8x128xf32>
    %397 = arith.addf %396, %370 : vector<8x128xf32>
    %c0_140 = arith.constant 0 : index
    %c0_141 = arith.constant 0 : index
    %398 = vector.load %arg13[%c0_140, %c0_141] : memref<8x128xf32, #tpu.memory_space<vmem>>, vector<8x128xf32>
    tpu.vector_store %arg13[%c0_140, %c0_141], %397 {strides = array<i32>} : memref<8x128xf32, #tpu.memory_space<vmem>>, vector<8x128xf32>,
    %c0_142 = arith.constant 0 : index
    %c0_143 = arith.constant 0 : index
    %399 = vector.load %arg14[%c0_142, %c0_143] : memref<8x128xf32, #tpu.memory_space<vmem>>, vector<8x128xf32>
    %400 = arith.addf %399, %395 : vector<8x128xf32>
    %c0_144 = arith.constant 0 : index
    %c0_145 = arith.constant 0 : index
    %401 = vector.load %arg14[%c0_144, %c0_145] : memref<8x128xf32, #tpu.memory_space<vmem>>, vector<8x128xf32>
    tpu.vector_store %arg14[%c0_144, %c0_145], %400 {strides = array<i32>} : memref<8x128xf32, #tpu.memory_space<vmem>>, vector<8x128xf32>,
    %402 = arith.truncf %370 : vector<8x128xf32> to vector<8x128xbf16>
    %403 = arith.truncf %395 : vector<8x128xf32> to vector<8x128xbf16>
    %c5_i32 = arith.constant 5 : i32
    %404 = arith.index_cast %c5_i32 : i32 to index
    %c0_146 = arith.constant 0 : index
    %c0_147 = arith.constant 0 : index
    %405 = vector.load %arg11[%404, %c0_146, %c0_147] : memref<8x8x512xbf16, #tpu.memory_space<vmem>>, vector<1x8x512xbf16>
    %406 = vector.shape_cast %405 : vector<1x8x512xbf16> to vector<8x512xbf16>
    %407 = arith.extf %406 : vector<8x512xbf16> to vector<8x512xf32>
    %c0_148 = arith.constant 0 : index
    %c0_149 = arith.constant 0 : index
    %408 = vector.load %arg4[%c0_148, %c0_149] : memref<128x512xbf16, #tpu.memory_space<vmem>>, vector<128x512xbf16>
    %cst_150 = arith.constant dense<0.000000e+00> : vector<8x512xf32>
    %409 = tpu.matmul %402, %408, %cst_150 {dimension_numbers = #tpu.dot_dimension_numbers<[1], [0], [0], [1], [0, 0, 1, 1], [], []>} : vector<8x128xbf16>, vector<128x512xbf16>, vector<8x512xf32> -> vector<8x512xf32>
    %410 = arith.addf %407, %409 : vector<8x512xf32>
    %411 = arith.addf %410, %19 : vector<8x512xf32>
    %c7_i32_151 = arith.constant 7 : i32
    %412 = arith.subi %c7_i32_151, %c5_i32 : i32
    %413 = arith.index_cast %412 : i32 to index
    %c0_152 = arith.constant 0 : index
    %c0_153 = arith.constant 0 : index
    %414 = vector.load %arg12[%413, %c0_152, %c0_153] : memref<8x8x512xbf16, #tpu.memory_space<vmem>>, vector<1x8x512xbf16>
    %415 = vector.shape_cast %414 : vector<1x8x512xbf16> to vector<8x512xbf16>
    %416 = arith.extf %415 : vector<8x512xbf16> to vector<8x512xf32>
    %c0_154 = arith.constant 0 : index
    %c0_155 = arith.constant 0 : index
    %417 = vector.load %arg5[%c0_154, %c0_155] : memref<128x512xbf16, #tpu.memory_space<vmem>>, vector<128x512xbf16>
    %cst_156 = arith.constant dense<0.000000e+00> : vector<8x512xf32>
    %418 = tpu.matmul %403, %417, %cst_156 {dimension_numbers = #tpu.dot_dimension_numbers<[1], [0], [0], [1], [0, 0, 1, 1], [], []>} : vector<8x128xbf16>, vector<128x512xbf16>, vector<8x512xf32> -> vector<8x512xf32>
    %419 = arith.addf %416, %418 : vector<8x512xf32>
    %420 = arith.addf %419, %22 : vector<8x512xf32>
    %421 = vector.extract_strided_slice %411 {offsets = [0, 0], sizes = [8, 128], strides = [1, 1]} : vector<8x512xf32> to vector<8x128xf32>
    %422 = arith.negf %421 : vector<8x128xf32>
    %423 = math.exp %422 : vector<8x128xf32>
    %cst_157 = arith.constant 1.000000e+00 : f32
    %424 = vector.broadcast %cst_157 : f32 to vector<8x128xf32>
    %425 = arith.addf %424, %423 : vector<8x128xf32>
    %426 = arith.divf %424, %425 : vector<8x128xf32>
    %427 = vector.extract_strided_slice %411 {offsets = [0, 128], sizes = [8, 128], strides = [1, 1]} : vector<8x512xf32> to vector<8x128xf32>
    %428 = arith.negf %427 : vector<8x128xf32>
    %429 = math.exp %428 : vector<8x128xf32>
    %cst_158 = arith.constant 1.000000e+00 : f32
    %430 = vector.broadcast %cst_158 : f32 to vector<8x128xf32>
    %431 = arith.addf %430, %429 : vector<8x128xf32>
    %432 = arith.divf %430, %431 : vector<8x128xf32>
    %433 = vector.extract_strided_slice %411 {offsets = [0, 256], sizes = [8, 128], strides = [1, 1]} : vector<8x512xf32> to vector<8x128xf32>
    %434 = math.tanh %433 : vector<8x128xf32>
    %435 = vector.extract_strided_slice %411 {offsets = [0, 384], sizes = [8, 128], strides = [1, 1]} : vector<8x512xf32> to vector<8x128xf32>
    %436 = arith.negf %435 : vector<8x128xf32>
    %437 = math.exp %436 : vector<8x128xf32>
    %cst_159 = arith.constant 1.000000e+00 : f32
    %438 = vector.broadcast %cst_159 : f32 to vector<8x128xf32>
    %439 = arith.addf %438, %437 : vector<8x128xf32>
    %440 = arith.divf %438, %439 : vector<8x128xf32>
    %441 = arith.mulf %432, %368 : vector<8x128xf32>
    %442 = arith.mulf %426, %434 : vector<8x128xf32>
    %443 = arith.addf %441, %442 : vector<8x128xf32>
    %444 = math.tanh %443 : vector<8x128xf32>
    %445 = arith.mulf %440, %444 : vector<8x128xf32>
    %446 = vector.extract_strided_slice %420 {offsets = [0, 0], sizes = [8, 128], strides = [1, 1]} : vector<8x512xf32> to vector<8x128xf32>
    %447 = arith.negf %446 : vector<8x128xf32>
    %448 = math.exp %447 : vector<8x128xf32>
    %cst_160 = arith.constant 1.000000e+00 : f32
    %449 = vector.broadcast %cst_160 : f32 to vector<8x128xf32>
    %450 = arith.addf %449, %448 : vector<8x128xf32>
    %451 = arith.divf %449, %450 : vector<8x128xf32>
    %452 = vector.extract_strided_slice %420 {offsets = [0, 128], sizes = [8, 128], strides = [1, 1]} : vector<8x512xf32> to vector<8x128xf32>
    %453 = arith.negf %452 : vector<8x128xf32>
    %454 = math.exp %453 : vector<8x128xf32>
    %cst_161 = arith.constant 1.000000e+00 : f32
    %455 = vector.broadcast %cst_161 : f32 to vector<8x128xf32>
    %456 = arith.addf %455, %454 : vector<8x128xf32>
    %457 = arith.divf %455, %456 : vector<8x128xf32>
    %458 = vector.extract_strided_slice %420 {offsets = [0, 256], sizes = [8, 128], strides = [1, 1]} : vector<8x512xf32> to vector<8x128xf32>
    %459 = math.tanh %458 : vector<8x128xf32>
    %460 = vector.extract_strided_slice %420 {offsets = [0, 384], sizes = [8, 128], strides = [1, 1]} : vector<8x512xf32> to vector<8x128xf32>
    %461 = arith.negf %460 : vector<8x128xf32>
    %462 = math.exp %461 : vector<8x128xf32>
    %cst_162 = arith.constant 1.000000e+00 : f32
    %463 = vector.broadcast %cst_162 : f32 to vector<8x128xf32>
    %464 = arith.addf %463, %462 : vector<8x128xf32>
    %465 = arith.divf %463, %464 : vector<8x128xf32>
    %466 = arith.mulf %457, %393 : vector<8x128xf32>
    %467 = arith.mulf %451, %459 : vector<8x128xf32>
    %468 = arith.addf %466, %467 : vector<8x128xf32>
    %469 = math.tanh %468 : vector<8x128xf32>
    %470 = arith.mulf %465, %469 : vector<8x128xf32>
    %c0_163 = arith.constant 0 : index
    %c0_164 = arith.constant 0 : index
    %471 = vector.load %arg13[%c0_163, %c0_164] : memref<8x128xf32, #tpu.memory_space<vmem>>, vector<8x128xf32>
    %472 = arith.addf %471, %445 : vector<8x128xf32>
    %c0_165 = arith.constant 0 : index
    %c0_166 = arith.constant 0 : index
    %473 = vector.load %arg13[%c0_165, %c0_166] : memref<8x128xf32, #tpu.memory_space<vmem>>, vector<8x128xf32>
    tpu.vector_store %arg13[%c0_165, %c0_166], %472 {strides = array<i32>} : memref<8x128xf32, #tpu.memory_space<vmem>>, vector<8x128xf32>,
    %c0_167 = arith.constant 0 : index
    %c0_168 = arith.constant 0 : index
    %474 = vector.load %arg14[%c0_167, %c0_168] : memref<8x128xf32, #tpu.memory_space<vmem>>, vector<8x128xf32>
    %475 = arith.addf %474, %470 : vector<8x128xf32>
    %c0_169 = arith.constant 0 : index
    %c0_170 = arith.constant 0 : index
    %476 = vector.load %arg14[%c0_169, %c0_170] : memref<8x128xf32, #tpu.memory_space<vmem>>, vector<8x128xf32>
    tpu.vector_store %arg14[%c0_169, %c0_170], %475 {strides = array<i32>} : memref<8x128xf32, #tpu.memory_space<vmem>>, vector<8x128xf32>,
    %477 = arith.truncf %445 : vector<8x128xf32> to vector<8x128xbf16>
    %478 = arith.truncf %470 : vector<8x128xf32> to vector<8x128xbf16>
    %c6_i32 = arith.constant 6 : i32
    %479 = arith.index_cast %c6_i32 : i32 to index
    %c0_171 = arith.constant 0 : index
    %c0_172 = arith.constant 0 : index
    %480 = vector.load %arg11[%479, %c0_171, %c0_172] : memref<8x8x512xbf16, #tpu.memory_space<vmem>>, vector<1x8x512xbf16>
    %481 = vector.shape_cast %480 : vector<1x8x512xbf16> to vector<8x512xbf16>
    %482 = arith.extf %481 : vector<8x512xbf16> to vector<8x512xf32>
    %c0_173 = arith.constant 0 : index
    %c0_174 = arith.constant 0 : index
    %483 = vector.load %arg4[%c0_173, %c0_174] : memref<128x512xbf16, #tpu.memory_space<vmem>>, vector<128x512xbf16>
    %cst_175 = arith.constant dense<0.000000e+00> : vector<8x512xf32>
    %484 = tpu.matmul %477, %483, %cst_175 {dimension_numbers = #tpu.dot_dimension_numbers<[1], [0], [0], [1], [0, 0, 1, 1], [], []>} : vector<8x128xbf16>, vector<128x512xbf16>, vector<8x512xf32> -> vector<8x512xf32>
    %485 = arith.addf %482, %484 : vector<8x512xf32>
    %486 = arith.addf %485, %19 : vector<8x512xf32>
    %c7_i32_176 = arith.constant 7 : i32
    %487 = arith.subi %c7_i32_176, %c6_i32 : i32
    %488 = arith.index_cast %487 : i32 to index
    %c0_177 = arith.constant 0 : index
    %c0_178 = arith.constant 0 : index
    %489 = vector.load %arg12[%488, %c0_177, %c0_178] : memref<8x8x512xbf16, #tpu.memory_space<vmem>>, vector<1x8x512xbf16>
    %490 = vector.shape_cast %489 : vector<1x8x512xbf16> to vector<8x512xbf16>
    %491 = arith.extf %490 : vector<8x512xbf16> to vector<8x512xf32>
    %c0_179 = arith.constant 0 : index
    %c0_180 = arith.constant 0 : index
    %492 = vector.load %arg5[%c0_179, %c0_180] : memref<128x512xbf16, #tpu.memory_space<vmem>>, vector<128x512xbf16>
    %cst_181 = arith.constant dense<0.000000e+00> : vector<8x512xf32>
    %493 = tpu.matmul %478, %492, %cst_181 {dimension_numbers = #tpu.dot_dimension_numbers<[1], [0], [0], [1], [0, 0, 1, 1], [], []>} : vector<8x128xbf16>, vector<128x512xbf16>, vector<8x512xf32> -> vector<8x512xf32>
    %494 = arith.addf %491, %493 : vector<8x512xf32>
    %495 = arith.addf %494, %22 : vector<8x512xf32>
    %496 = vector.extract_strided_slice %486 {offsets = [0, 0], sizes = [8, 128], strides = [1, 1]} : vector<8x512xf32> to vector<8x128xf32>
    %497 = arith.negf %496 : vector<8x128xf32>
    %498 = math.exp %497 : vector<8x128xf32>
    %cst_182 = arith.constant 1.000000e+00 : f32
    %499 = vector.broadcast %cst_182 : f32 to vector<8x128xf32>
    %500 = arith.addf %499, %498 : vector<8x128xf32>
    %501 = arith.divf %499, %500 : vector<8x128xf32>
    %502 = vector.extract_strided_slice %486 {offsets = [0, 128], sizes = [8, 128], strides = [1, 1]} : vector<8x512xf32> to vector<8x128xf32>
    %503 = arith.negf %502 : vector<8x128xf32>
    %504 = math.exp %503 : vector<8x128xf32>
    %cst_183 = arith.constant 1.000000e+00 : f32
    %505 = vector.broadcast %cst_183 : f32 to vector<8x128xf32>
    %506 = arith.addf %505, %504 : vector<8x128xf32>
    %507 = arith.divf %505, %506 : vector<8x128xf32>
    %508 = vector.extract_strided_slice %486 {offsets = [0, 256], sizes = [8, 128], strides = [1, 1]} : vector<8x512xf32> to vector<8x128xf32>
    %509 = math.tanh %508 : vector<8x128xf32>
    %510 = vector.extract_strided_slice %486 {offsets = [0, 384], sizes = [8, 128], strides = [1, 1]} : vector<8x512xf32> to vector<8x128xf32>
    %511 = arith.negf %510 : vector<8x128xf32>
    %512 = math.exp %511 : vector<8x128xf32>
    %cst_184 = arith.constant 1.000000e+00 : f32
    %513 = vector.broadcast %cst_184 : f32 to vector<8x128xf32>
    %514 = arith.addf %513, %512 : vector<8x128xf32>
    %515 = arith.divf %513, %514 : vector<8x128xf32>
    %516 = arith.mulf %507, %443 : vector<8x128xf32>
    %517 = arith.mulf %501, %509 : vector<8x128xf32>
    %518 = arith.addf %516, %517 : vector<8x128xf32>
    %519 = math.tanh %518 : vector<8x128xf32>
    %520 = arith.mulf %515, %519 : vector<8x128xf32>
    %521 = vector.extract_strided_slice %495 {offsets = [0, 0], sizes = [8, 128], strides = [1, 1]} : vector<8x512xf32> to vector<8x128xf32>
    %522 = arith.negf %521 : vector<8x128xf32>
    %523 = math.exp %522 : vector<8x128xf32>
    %cst_185 = arith.constant 1.000000e+00 : f32
    %524 = vector.broadcast %cst_185 : f32 to vector<8x128xf32>
    %525 = arith.addf %524, %523 : vector<8x128xf32>
    %526 = arith.divf %524, %525 : vector<8x128xf32>
    %527 = vector.extract_strided_slice %495 {offsets = [0, 128], sizes = [8, 128], strides = [1, 1]} : vector<8x512xf32> to vector<8x128xf32>
    %528 = arith.negf %527 : vector<8x128xf32>
    %529 = math.exp %528 : vector<8x128xf32>
    %cst_186 = arith.constant 1.000000e+00 : f32
    %530 = vector.broadcast %cst_186 : f32 to vector<8x128xf32>
    %531 = arith.addf %530, %529 : vector<8x128xf32>
    %532 = arith.divf %530, %531 : vector<8x128xf32>
    %533 = vector.extract_strided_slice %495 {offsets = [0, 256], sizes = [8, 128], strides = [1, 1]} : vector<8x512xf32> to vector<8x128xf32>
    %534 = math.tanh %533 : vector<8x128xf32>
    %535 = vector.extract_strided_slice %495 {offsets = [0, 384], sizes = [8, 128], strides = [1, 1]} : vector<8x512xf32> to vector<8x128xf32>
    %536 = arith.negf %535 : vector<8x128xf32>
    %537 = math.exp %536 : vector<8x128xf32>
    %cst_187 = arith.constant 1.000000e+00 : f32
    %538 = vector.broadcast %cst_187 : f32 to vector<8x128xf32>
    %539 = arith.addf %538, %537 : vector<8x128xf32>
    %540 = arith.divf %538, %539 : vector<8x128xf32>
    %541 = arith.mulf %532, %468 : vector<8x128xf32>
    %542 = arith.mulf %526, %534 : vector<8x128xf32>
    %543 = arith.addf %541, %542 : vector<8x128xf32>
    %544 = math.tanh %543 : vector<8x128xf32>
    %545 = arith.mulf %540, %544 : vector<8x128xf32>
    %c0_188 = arith.constant 0 : index
    %c0_189 = arith.constant 0 : index
    %546 = vector.load %arg13[%c0_188, %c0_189] : memref<8x128xf32, #tpu.memory_space<vmem>>, vector<8x128xf32>
    %547 = arith.addf %546, %520 : vector<8x128xf32>
    %c0_190 = arith.constant 0 : index
    %c0_191 = arith.constant 0 : index
    %548 = vector.load %arg13[%c0_190, %c0_191] : memref<8x128xf32, #tpu.memory_space<vmem>>, vector<8x128xf32>
    tpu.vector_store %arg13[%c0_190, %c0_191], %547 {strides = array<i32>} : memref<8x128xf32, #tpu.memory_space<vmem>>, vector<8x128xf32>,
    %c0_192 = arith.constant 0 : index
    %c0_193 = arith.constant 0 : index
    %549 = vector.load %arg14[%c0_192, %c0_193] : memref<8x128xf32, #tpu.memory_space<vmem>>, vector<8x128xf32>
    %550 = arith.addf %549, %545 : vector<8x128xf32>
    %c0_194 = arith.constant 0 : index
    %c0_195 = arith.constant 0 : index
    %551 = vector.load %arg14[%c0_194, %c0_195] : memref<8x128xf32, #tpu.memory_space<vmem>>, vector<8x128xf32>
    tpu.vector_store %arg14[%c0_194, %c0_195], %550 {strides = array<i32>} : memref<8x128xf32, #tpu.memory_space<vmem>>, vector<8x128xf32>,
    %552 = arith.truncf %520 : vector<8x128xf32> to vector<8x128xbf16>
    %553 = arith.truncf %545 : vector<8x128xf32> to vector<8x128xbf16>
    %c7_i32_196 = arith.constant 7 : i32
    %554 = arith.index_cast %c7_i32_196 : i32 to index
    %c0_197 = arith.constant 0 : index
    %c0_198 = arith.constant 0 : index
    %555 = vector.load %arg11[%554, %c0_197, %c0_198] : memref<8x8x512xbf16, #tpu.memory_space<vmem>>, vector<1x8x512xbf16>
    %556 = vector.shape_cast %555 : vector<1x8x512xbf16> to vector<8x512xbf16>
    %557 = arith.extf %556 : vector<8x512xbf16> to vector<8x512xf32>
    %c0_199 = arith.constant 0 : index
    %c0_200 = arith.constant 0 : index
    %558 = vector.load %arg4[%c0_199, %c0_200] : memref<128x512xbf16, #tpu.memory_space<vmem>>, vector<128x512xbf16>
    %cst_201 = arith.constant dense<0.000000e+00> : vector<8x512xf32>
    %559 = tpu.matmul %552, %558, %cst_201 {dimension_numbers = #tpu.dot_dimension_numbers<[1], [0], [0], [1], [0, 0, 1, 1], [], []>} : vector<8x128xbf16>, vector<128x512xbf16>, vector<8x512xf32> -> vector<8x512xf32>
    %560 = arith.addf %557, %559 : vector<8x512xf32>
    %561 = arith.addf %560, %19 : vector<8x512xf32>
    %c7_i32_202 = arith.constant 7 : i32
    %562 = arith.subi %c7_i32_202, %c7_i32_196 : i32
    %563 = arith.index_cast %562 : i32 to index
    %c0_203 = arith.constant 0 : index
    %c0_204 = arith.constant 0 : index
    %564 = vector.load %arg12[%563, %c0_203, %c0_204] : memref<8x8x512xbf16, #tpu.memory_space<vmem>>, vector<1x8x512xbf16>
    %565 = vector.shape_cast %564 : vector<1x8x512xbf16> to vector<8x512xbf16>
    %566 = arith.extf %565 : vector<8x512xbf16> to vector<8x512xf32>
    %c0_205 = arith.constant 0 : index
    %c0_206 = arith.constant 0 : index
    %567 = vector.load %arg5[%c0_205, %c0_206] : memref<128x512xbf16, #tpu.memory_space<vmem>>, vector<128x512xbf16>
    %cst_207 = arith.constant dense<0.000000e+00> : vector<8x512xf32>
    %568 = tpu.matmul %553, %567, %cst_207 {dimension_numbers = #tpu.dot_dimension_numbers<[1], [0], [0], [1], [0, 0, 1, 1], [], []>} : vector<8x128xbf16>, vector<128x512xbf16>, vector<8x512xf32> -> vector<8x512xf32>
    %569 = arith.addf %566, %568 : vector<8x512xf32>
    %570 = arith.addf %569, %22 : vector<8x512xf32>
    %571 = vector.extract_strided_slice %561 {offsets = [0, 0], sizes = [8, 128], strides = [1, 1]} : vector<8x512xf32> to vector<8x128xf32>
    %572 = arith.negf %571 : vector<8x128xf32>
    %573 = math.exp %572 : vector<8x128xf32>
    %cst_208 = arith.constant 1.000000e+00 : f32
    %574 = vector.broadcast %cst_208 : f32 to vector<8x128xf32>
    %575 = arith.addf %574, %573 : vector<8x128xf32>
    %576 = arith.divf %574, %575 : vector<8x128xf32>
    %577 = vector.extract_strided_slice %561 {offsets = [0, 128], sizes = [8, 128], strides = [1, 1]} : vector<8x512xf32> to vector<8x128xf32>
    %578 = arith.negf %577 : vector<8x128xf32>
    %579 = math.exp %578 : vector<8x128xf32>
    %cst_209 = arith.constant 1.000000e+00 : f32
    %580 = vector.broadcast %cst_209 : f32 to vector<8x128xf32>
    %581 = arith.addf %580, %579 : vector<8x128xf32>
    %582 = arith.divf %580, %581 : vector<8x128xf32>
    %583 = vector.extract_strided_slice %561 {offsets = [0, 256], sizes = [8, 128], strides = [1, 1]} : vector<8x512xf32> to vector<8x128xf32>
    %584 = math.tanh %583 : vector<8x128xf32>
    %585 = vector.extract_strided_slice %561 {offsets = [0, 384], sizes = [8, 128], strides = [1, 1]} : vector<8x512xf32> to vector<8x128xf32>
    %586 = arith.negf %585 : vector<8x128xf32>
    %587 = math.exp %586 : vector<8x128xf32>
    %cst_210 = arith.constant 1.000000e+00 : f32
    %588 = vector.broadcast %cst_210 : f32 to vector<8x128xf32>
    %589 = arith.addf %588, %587 : vector<8x128xf32>
    %590 = arith.divf %588, %589 : vector<8x128xf32>
    %591 = arith.mulf %582, %518 : vector<8x128xf32>
    %592 = arith.mulf %576, %584 : vector<8x128xf32>
    %593 = arith.addf %591, %592 : vector<8x128xf32>
    %594 = math.tanh %593 : vector<8x128xf32>
    %595 = arith.mulf %590, %594 : vector<8x128xf32>
    %596 = vector.extract_strided_slice %570 {offsets = [0, 0], sizes = [8, 128], strides = [1, 1]} : vector<8x512xf32> to vector<8x128xf32>
    %597 = arith.negf %596 : vector<8x128xf32>
    %598 = math.exp %597 : vector<8x128xf32>
    %cst_211 = arith.constant 1.000000e+00 : f32
    %599 = vector.broadcast %cst_211 : f32 to vector<8x128xf32>
    %600 = arith.addf %599, %598 : vector<8x128xf32>
    %601 = arith.divf %599, %600 : vector<8x128xf32>
    %602 = vector.extract_strided_slice %570 {offsets = [0, 128], sizes = [8, 128], strides = [1, 1]} : vector<8x512xf32> to vector<8x128xf32>
    %603 = arith.negf %602 : vector<8x128xf32>
    %604 = math.exp %603 : vector<8x128xf32>
    %cst_212 = arith.constant 1.000000e+00 : f32
    %605 = vector.broadcast %cst_212 : f32 to vector<8x128xf32>
    %606 = arith.addf %605, %604 : vector<8x128xf32>
    %607 = arith.divf %605, %606 : vector<8x128xf32>
    %608 = vector.extract_strided_slice %570 {offsets = [0, 256], sizes = [8, 128], strides = [1, 1]} : vector<8x512xf32> to vector<8x128xf32>
    %609 = math.tanh %608 : vector<8x128xf32>
    %610 = vector.extract_strided_slice %570 {offsets = [0, 384], sizes = [8, 128], strides = [1, 1]} : vector<8x512xf32> to vector<8x128xf32>
    %611 = arith.negf %610 : vector<8x128xf32>
    %612 = math.exp %611 : vector<8x128xf32>
    %cst_213 = arith.constant 1.000000e+00 : f32
    %613 = vector.broadcast %cst_213 : f32 to vector<8x128xf32>
    %614 = arith.addf %613, %612 : vector<8x128xf32>
    %615 = arith.divf %613, %614 : vector<8x128xf32>
    %616 = arith.mulf %607, %543 : vector<8x128xf32>
    %617 = arith.mulf %601, %609 : vector<8x128xf32>
    %618 = arith.addf %616, %617 : vector<8x128xf32>
    %619 = math.tanh %618 : vector<8x128xf32>
    %620 = arith.mulf %615, %619 : vector<8x128xf32>
    %c0_214 = arith.constant 0 : index
    %c0_215 = arith.constant 0 : index
    %621 = vector.load %arg13[%c0_214, %c0_215] : memref<8x128xf32, #tpu.memory_space<vmem>>, vector<8x128xf32>
    %622 = arith.addf %621, %595 : vector<8x128xf32>
    %c0_216 = arith.constant 0 : index
    %c0_217 = arith.constant 0 : index
    %623 = vector.load %arg13[%c0_216, %c0_217] : memref<8x128xf32, #tpu.memory_space<vmem>>, vector<8x128xf32>
    tpu.vector_store %arg13[%c0_216, %c0_217], %622 {strides = array<i32>} : memref<8x128xf32, #tpu.memory_space<vmem>>, vector<8x128xf32>,
    %c0_218 = arith.constant 0 : index
    %c0_219 = arith.constant 0 : index
    %624 = vector.load %arg14[%c0_218, %c0_219] : memref<8x128xf32, #tpu.memory_space<vmem>>, vector<8x128xf32>
    %625 = arith.addf %624, %620 : vector<8x128xf32>
    %c0_220 = arith.constant 0 : index
    %c0_221 = arith.constant 0 : index
    %626 = vector.load %arg14[%c0_220, %c0_221] : memref<8x128xf32, #tpu.memory_space<vmem>>, vector<8x128xf32>
    tpu.vector_store %arg14[%c0_220, %c0_221], %625 {strides = array<i32>} : memref<8x128xf32, #tpu.memory_space<vmem>>, vector<8x128xf32>,
    %627 = arith.truncf %595 : vector<8x128xf32> to vector<8x128xbf16>
    %628 = arith.truncf %620 : vector<8x128xf32> to vector<8x128xbf16>
    %c8_i32_222 = arith.constant 8 : i32
    %c0_223 = arith.constant 0 : index
    %c0_224 = arith.constant 0 : index
    %629 = vector.load %arg13[%c0_223, %c0_224] : memref<8x128xf32, #tpu.memory_space<vmem>>, vector<8x128xf32>
    %cst_225 = arith.constant 1.250000e-01 : f32
    %630 = vector.broadcast %cst_225 : f32 to vector<8x128xf32>
    %631 = arith.mulf %629, %630 : vector<8x128xf32>
    %632 = arith.truncf %631 : vector<8x128xf32> to vector<8x128xbf16>
    %c0_226 = arith.constant 0 : index
    %c0_227 = arith.constant 0 : index
    %633 = vector.load %arg14[%c0_226, %c0_227] : memref<8x128xf32, #tpu.memory_space<vmem>>, vector<8x128xf32>
    %cst_228 = arith.constant 1.250000e-01 : f32
    %634 = vector.broadcast %cst_228 : f32 to vector<8x128xf32>
    %635 = arith.mulf %633, %634 : vector<8x128xf32>
    %636 = arith.truncf %635 : vector<8x128xf32> to vector<8x128xbf16>
    %637 = tpu.concatenate %632, %636 in 1 : vector<8x128xbf16>, vector<8x128xbf16> -> vector<8x256xbf16>
    %c0_229 = arith.constant 0 : index
    %c0_230 = arith.constant 0 : index
    %638 = vector.load %arg7[%c0_229, %c0_230] : memref<256x128xbf16, #tpu.memory_space<vmem>>, vector<256x128xbf16>
    %cst_231 = arith.constant dense<0.000000e+00> : vector<8x128xf32>
    %639 = tpu.matmul %637, %638, %cst_231 {dimension_numbers = #tpu.dot_dimension_numbers<[1], [0], [0], [1], [0, 0, 1, 1], [], []>} : vector<8x256xbf16>, vector<256x128xbf16>, vector<8x128xf32> -> vector<8x128xf32>
    %c0_232 = arith.constant 0 : index
    %c0_233 = arith.constant 0 : index
    %640 = vector.load %arg6[%c0_232, %c0_233] : memref<8x128xbf16, #tpu.memory_space<vmem>>, vector<8x128xbf16>
    %c0_234 = arith.constant 0 : index
    %c0_235 = arith.constant 0 : index
    %641 = vector.load %arg8[%c0_234, %c0_235] : memref<128x128xbf16, #tpu.memory_space<vmem>>, vector<128x128xbf16>
    %cst_236 = arith.constant dense<0.000000e+00> : vector<8x128xf32>
    %642 = tpu.matmul %640, %641, %cst_236 {dimension_numbers = #tpu.dot_dimension_numbers<[1], [0], [0], [1], [0, 0, 1, 1], [], []>} : vector<8x128xbf16>, vector<128x128xbf16>, vector<8x128xf32> -> vector<8x128xf32>
    %643 = arith.addf %639, %642 : vector<8x128xf32>
    %c0_237 = arith.constant 0 : index
    %c0_238 = arith.constant 0 : index
    %644 = vector.load %arg9[%c0_237, %c0_238] : memref<1x128xf32, #tpu.memory_space<vmem>>, vector<1x128xf32>
    %645 = vector.broadcast %644 : vector<1x128xf32> to vector<8x128xf32>
    %646 = arith.addf %643, %645 : vector<8x128xf32>
    %c0_239 = arith.constant 0 : index
    %c0_240 = arith.constant 0 : index
    %647 = vector.load %arg10[%c0_239, %c0_240] : memref<8x128xf32, #tpu.memory_space<vmem>>, vector<8x128xf32>
    tpu.vector_store %arg10[%c0_239, %c0_240], %646 {strides = array<i32>} : memref<8x128xf32, #tpu.memory_space<vmem>>, vector<8x128xf32>,
    return
  }
  func.func @transform_0(%arg0: i32) -> (i32, i32, i32) {
    %c0_i32 = arith.constant 0 : i32
    %c0_i32_0 = arith.constant 0 : i32
    %c0_i32_1 = arith.constant 0 : i32
    return %c0_i32, %arg0, %c0_i32_0 : i32, i32, i32
  }
  func.func @transform_1(%arg0: i32) -> (i32, i32) {
    %c0_i32 = arith.constant 0 : i32
    %c0_i32_0 = arith.constant 0 : i32
    %c0_i32_1 = arith.constant 0 : i32
    return %c0_i32, %c0_i32_0 : i32, i32
  }
  func.func @transform_2(%arg0: i32) -> (i32, i32) {
    %c0_i32 = arith.constant 0 : i32
    %c0_i32_0 = arith.constant 0 : i32
    %c0_i32_1 = arith.constant 0 : i32
    return %c0_i32, %c0_i32_0 : i32, i32
  }
  func.func @transform_3(%arg0: i32) -> (i32, i32) {
    %c0_i32 = arith.constant 0 : i32
    %c0_i32_0 = arith.constant 0 : i32
    %c0_i32_1 = arith.constant 0 : i32
    return %c0_i32, %c0_i32_0 : i32, i32
  }
  func.func @transform_4(%arg0: i32) -> (i32, i32) {
    %c0_i32 = arith.constant 0 : i32
    %c0_i32_0 = arith.constant 0 : i32
    %c0_i32_1 = arith.constant 0 : i32
    return %c0_i32, %c0_i32_0 : i32, i32
  }
  func.func @transform_5(%arg0: i32) -> (i32, i32) {
    %c0_i32 = arith.constant 0 : i32
    %c0_i32_0 = arith.constant 0 : i32
    return %arg0, %c0_i32 : i32, i32
  }
  func.func @transform_6(%arg0: i32) -> (i32, i32) {
    %c0_i32 = arith.constant 0 : i32
    %c0_i32_0 = arith.constant 0 : i32
    %c0_i32_1 = arith.constant 0 : i32
    return %c0_i32, %c0_i32_0 : i32, i32
  }
  func.func @transform_7(%arg0: i32) -> (i32, i32) {
    %c0_i32 = arith.constant 0 : i32
    %c0_i32_0 = arith.constant 0 : i32
    %c0_i32_1 = arith.constant 0 : i32
    return %c0_i32, %c0_i32_0 : i32, i32
  }
  func.func @transform_8(%arg0: i32) -> (i32, i32) {
    %c0_i32 = arith.constant 0 : i32
    %c0_i32_0 = arith.constant 0 : i32
    %c0_i32_1 = arith.constant 0 : i32
    return %c0_i32, %c0_i32_0 : i32, i32
  }
  func.func @transform_9(%arg0: i32) -> (i32, i32) {
    %c0_i32 = arith.constant 0 : i32
    %c0_i32_0 = arith.constant 0 : i32
    return %arg0, %c0_i32 : i32, i32
  }
}

</mosaic_0001>

<llo_original>
// kernel: text_lstm_forward.1
$region0: #{text_lstm_forward.1}
  #allocation0 [shape = 'u32[]', space=smem, size = 0x4, offset = 0x4, fixed_abs, tag = 'smem constant byte address 0x4 - core index']
  #allocation1 [shape = 'u32[72,128]{1,0:T(1,128)}', space=vmem, size = 0x9000, scoped, tag = 'internal scratch']
  #allocation2 [shape = 'bf16[8,8,512]{2,1,0:T(8,128)(2,1)}', space=vmem, size = 0x10000, scoped, tag = 'scratch operand']
  #allocation3 [shape = 'bf16[8,8,512]{2,1,0:T(8,128)(2,1)}', space=vmem, size = 0x10000, scoped, tag = 'scratch operand']
  #allocation4 [shape = 'f32[8,128]{1,0:T(8,128)}', space=vmem, size = 0x1000, scoped, tag = 'scratch operand']
  #allocation5 [shape = 'f32[8,128]{1,0:T(8,128)}', space=vmem, size = 0x1000, scoped, tag = 'scratch operand']
  %s0 = inlined_call_operand.vmem [shape: bf16[8,8,128], index: 0, kind: input, shape index: {}]
  %s1 = inlined_call_operand.vmem [shape: bf16[128,1024], index: 1, kind: input, shape index: {}]
  %s2 = inlined_call_operand.vmem [shape: f32[1,1024], index: 2, kind: input, shape index: {}]
  %s3 = inlined_call_operand.vmem [shape: bf16[128,512], index: 3, kind: input, shape index: {}]
  %s4 = inlined_call_operand.vmem [shape: bf16[128,512], index: 4, kind: input, shape index: {}]
  %s5 = inlined_call_operand.vmem [shape: bf16[8,128], index: 5, kind: input, shape index: {}]
  %s6 = inlined_call_operand.vmem [shape: bf16[256,128], index: 6, kind: input, shape index: {}]
  %s7 = inlined_call_operand.vmem [shape: bf16[128,128], index: 7, kind: input, shape index: {}]
  %s8 = inlined_call_operand.vmem [shape: f32[1,128], index: 8, kind: input, shape index: {}]
  %s9 = inlined_call_operand.vmem [shape: f32[8,128], index: 9, kind: output, shape index: {}]
  %s10 = sld [smem:[#allocation0]]
  $region46: #{text_lstm_forward.1} parent=0
    _
  %s12 = ssub.s32 1, %s10
  %s13 = scalar_select 0, %s12, %s10
  // Predicated region
  $region2: #{text_lstm_forward.1} parent=0 // pred_check
    _
  $region3: #{text_lstm_forward.1} parent=0 // pred_check_branch
    %15 = sbr.rel (0) target = $region5
  $region4: #{text_lstm_forward.1} parent=0 // pred_region
    _
  $region5: #{text_lstm_forward.1} parent=0 // pred_fallthru
    _
  // Predicated region
  $region6: #{text_lstm_forward.1} parent=0 // pred_check
    _
  $region7: #{text_lstm_forward.1} parent=0 // pred_check_branch
    %17 = sbr.rel (0) target = $region9
  $region8: #{text_lstm_forward.1} parent=0 // pred_region
    _
  $region9: #{text_lstm_forward.1} parent=0 // pred_fallthru
    _
  // Predicated region
  $region10: #{text_lstm_forward.1} parent=0 // pred_check
    _
  $region11: #{text_lstm_forward.1} parent=0 // pred_check_branch
    %19 = sbr.rel (0) target = $region13
  $region12: #{text_lstm_forward.1} parent=0 // pred_region
    _
  $region13: #{text_lstm_forward.1} parent=0 // pred_fallthru
    _
  // Predicated region
  $region14: #{text_lstm_forward.1} parent=0 // pred_check
    _
  $region15: #{text_lstm_forward.1} parent=0 // pred_check_branch
    %21 = sbr.rel (0) target = $region17
  $region16: #{text_lstm_forward.1} parent=0 // pred_region
    _
  $region17: #{text_lstm_forward.1} parent=0 // pred_fallthru
    _
  // Predicated region
  $region18: #{text_lstm_forward.1} parent=0 // pred_check
    _
  $region19: #{text_lstm_forward.1} parent=0 // pred_check_branch
    %23 = sbr.rel (0) target = $region21
  $region20: #{text_lstm_forward.1} parent=0 // pred_region
    _
  $region21: #{text_lstm_forward.1} parent=0 // pred_fallthru
    _
  // Predicated region
  $region22: #{text_lstm_forward.1} parent=0 // pred_check
    _
  $region23: #{text_lstm_forward.1} parent=0 // pred_check_branch
    %25 = sbr.rel (0) target = $region25
  $region24: #{text_lstm_forward.1} parent=0 // pred_region
    _
  $region25: #{text_lstm_forward.1} parent=0 // pred_fallthru
    _
  // Predicated region
  $region26: #{text_lstm_forward.1} parent=0 // pred_check
    _
  $region27: #{text_lstm_forward.1} parent=0 // pred_check_branch
    %27 = sbr.rel (0) target = $region29
  $region28: #{text_lstm_forward.1} parent=0 // pred_region
    _
  $region29: #{text_lstm_forward.1} parent=0 // pred_fallthru
    _
  // Predicated region
  $region30: #{text_lstm_forward.1} parent=0 // pred_check
    _
  $region31: #{text_lstm_forward.1} parent=0 // pred_check_branch
    %29 = sbr.rel (0) target = $region33
  $region32: #{text_lstm_forward.1} parent=0 // pred_region
    _
  $region33: #{text_lstm_forward.1} parent=0 // pred_fallthru
    _
  // Predicated region
  $region34: #{text_lstm_forward.1} parent=0 // pred_check
    _
  $region35: #{text_lstm_forward.1} parent=0 // pred_check_branch
    %31 = sbr.rel (0) target = $region37
  $region36: #{text_lstm_forward.1} parent=0 // pred_region
    _
  $region37: #{text_lstm_forward.1} parent=0 // pred_fallthru
    _
  %v33 = vld [vmem:[%s0] sm:$0xf]
  %v34 = vld [vmem:[%s0 + $0x4] sm:$0xf]
  %v35 = vld [vmem:[%s0 + $0x8] sm:$0xf]
  %v36 = vld [vmem:[%s0 + $0xc] sm:$0xf]
  %v37 = vld [vmem:[%s0 + $0x10] sm:$0xf]
  %v38 = vld [vmem:[%s0 + $0x14] sm:$0xf]
  %v39 = vld [vmem:[%s0 + $0x18] sm:$0xf]
  %v40 = vld [vmem:[%s0 + $0x1c] sm:$0xf]
  %v41 = vld [vmem:[%s1] sm:$0xff]
  %v42 = vld [vmem:[%s1 + $0x8] sm:$0xff]
  %v43 = vld [vmem:[%s1 + $0x10] sm:$0xff]
  %v44 = vld [vmem:[%s1 + $0x18] sm:$0xff]
  %v45 = vld [vmem:[%s1 + $0x20] sm:$0xff]
  %v46 = vld [vmem:[%s1 + $0x28] sm:$0xff]
  %v47 = vld [vmem:[%s1 + $0x30] sm:$0xff]
  %v48 = vld [vmem:[%s1 + $0x38] sm:$0xff]
  %v49 = vld [vmem:[%s1 + $0x40] sm:$0xff]
  %v50 = vld [vmem:[%s1 + $0x48] sm:$0xff]
  %v51 = vld [vmem:[%s1 + $0x50] sm:$0xff]
  %v52 = vld [vmem:[%s1 + $0x58] sm:$0xff]
  %v53 = vld [vmem:[%s1 + $0x60] sm:$0xff]
  %v54 = vld [vmem:[%s1 + $0x68] sm:$0xff]
  %v55 = vld [vmem:[%s1 + $0x70] sm:$0xff]
  %v56 = vld [vmem:[%s1 + $0x78] sm:$0xff]
  %v57 = vld [vmem:[%s1 + $0x80] sm:$0xff]
  %v58 = vld [vmem:[%s1 + $0x88] sm:$0xff]
  %v59 = vld [vmem:[%s1 + $0x90] sm:$0xff]
  %v60 = vld [vmem:[%s1 + $0x98] sm:$0xff]
  %v61 = vld [vmem:[%s1 + $0xa0] sm:$0xff]
  %v62 = vld [vmem:[%s1 + $0xa8] sm:$0xff]
  %v63 = vld [vmem:[%s1 + $0xb0] sm:$0xff]
  %v64 = vld [vmem:[%s1 + $0xb8] sm:$0xff]
  %v65 = vld [vmem:[%s1 + $0xc0] sm:$0xff]
  %v66 = vld [vmem:[%s1 + $0xc8] sm:$0xff]
  %v67 = vld [vmem:[%s1 + $0xd0] sm:$0xff]
  %v68 = vld [vmem:[%s1 + $0xd8] sm:$0xff]
  %v69 = vld [vmem:[%s1 + $0xe0] sm:$0xff]
  %v70 = vld [vmem:[%s1 + $0xe8] sm:$0xff]
  %v71 = vld [vmem:[%s1 + $0xf0] sm:$0xff]
  %v72 = vld [vmem:[%s1 + $0xf8] sm:$0xff]
  %v73 = vld [vmem:[%s1 + $0x100] sm:$0xff]
  %v74 = vld [vmem:[%s1 + $0x108] sm:$0xff]
  %v75 = vld [vmem:[%s1 + $0x110] sm:$0xff]
  %v76 = vld [vmem:[%s1 + $0x118] sm:$0xff]
  %v77 = vld [vmem:[%s1 + $0x120] sm:$0xff]
  %v78 = vld [vmem:[%s1 + $0x128] sm:$0xff]
  %v79 = vld [vmem:[%s1 + $0x130] sm:$0xff]
  %v80 = vld [vmem:[%s1 + $0x138] sm:$0xff]
  %v81 = vld [vmem:[%s1 + $0x140] sm:$0xff]
  %v82 = vld [vmem:[%s1 + $0x148] sm:$0xff]
  %v83 = vld [vmem:[%s1 + $0x150] sm:$0xff]
  %v84 = vld [vmem:[%s1 + $0x158] sm:$0xff]
  %v85 = vld [vmem:[%s1 + $0x160] sm:$0xff]
  %v86 = vld [vmem:[%s1 + $0x168] sm:$0xff]
  %v87 = vld [vmem:[%s1 + $0x170] sm:$0xff]
  %v88 = vld [vmem:[%s1 + $0x178] sm:$0xff]
  %v89 = vld [vmem:[%s1 + $0x180] sm:$0xff]
  %v90 = vld [vmem:[%s1 + $0x188] sm:$0xff]
  %v91 = vld [vmem:[%s1 + $0x190] sm:$0xff]
  %v92 = vld [vmem:[%s1 + $0x198] sm:$0xff]
  %v93 = vld [vmem:[%s1 + $0x1a0] sm:$0xff]
  %v94 = vld [vmem:[%s1 + $0x1a8] sm:$0xff]
  %v95 = vld [vmem:[%s1 + $0x1b0] sm:$0xff]
  %v96 = vld [vmem:[%s1 + $0x1b8] sm:$0xff]
  %v97 = vld [vmem:[%s1 + $0x1c0] sm:$0xff]
  %v98 = vld [vmem:[%s1 + $0x1c8] sm:$0xff]
  %v99 = vld [vmem:[%s1 + $0x1d0] sm:$0xff]
  %v100 = vld [vmem:[%s1 + $0x1d8] sm:$0xff]
  %v101 = vld [vmem:[%s1 + $0x1e0] sm:$0xff]
  %v102 = vld [vmem:[%s1 + $0x1e8] sm:$0xff]
  %v103 = vld [vmem:[%s1 + $0x1f0] sm:$0xff]
  %v104 = vld [vmem:[%s1 + $0x1f8] sm:$0xff]
  %v113 = vunpack.c.l.b16 %v33
  %v114 = vunpack.c.l.b16 %v34
  %v115 = vunpack.c.l.b16 %v35
  %v116 = vunpack.c.l.b16 %v36
  %v117 = vunpack.c.l.b16 %v37
  %v118 = vunpack.c.l.b16 %v38
  %v119 = vunpack.c.l.b16 %v39
  %v120 = vunpack.c.l.b16 %v40
  %v121 = vpack.c.b16 %v114, %v113
  %v122 = vpack.c.b16 %v116, %v115
  %v123 = vpack.c.b16 %v118, %v117
  %v124 = vpack.c.b16 %v120, %v119
  %v193 = vunpack.c.l.b16 %v41
  %v194 = vunpack.c.h.b16 %v41
  %v195 = vunpack.c.l.b16 %v42
  %v196 = vunpack.c.h.b16 %v42
  %v197 = vunpack.c.l.b16 %v43
  %v198 = vunpack.c.h.b16 %v43
  %v199 = vunpack.c.l.b16 %v44
  %v200 = vunpack.c.h.b16 %v44
  %v201 = vunpack.c.l.b16 %v45
  %v202 = vunpack.c.h.b16 %v45
  %v203 = vunpack.c.l.b16 %v46
  %v204 = vunpack.c.h.b16 %v46
  %v205 = vunpack.c.l.b16 %v47
  %v206 = vunpack.c.h.b16 %v47
  %v207 = vunpack.c.l.b16 %v48
  %v208 = vunpack.c.h.b16 %v48
  %v209 = vunpack.c.l.b16 %v49
  %v210 = vunpack.c.h.b16 %v49
  %v211 = vunpack.c.l.b16 %v50
  %v212 = vunpack.c.h.b16 %v50
  %v213 = vunpack.c.l.b16 %v51
  %v214 = vunpack.c.h.b16 %v51
  %v215 = vunpack.c.l.b16 %v52
  %v216 = vunpack.c.h.b16 %v52
  %v217 = vunpack.c.l.b16 %v53
  %v218 = vunpack.c.h.b16 %v53
  %v219 = vunpack.c.l.b16 %v54
  %v220 = vunpack.c.h.b16 %v54
  %v221 = vunpack.c.l.b16 %v55
  %v222 = vunpack.c.h.b16 %v55
  %v223 = vunpack.c.l.b16 %v56
  %v224 = vunpack.c.h.b16 %v56
  %v225 = vunpack.c.l.b16 %v57
  %v226 = vunpack.c.h.b16 %v57
  %v227 = vunpack.c.l.b16 %v58
  %v228 = vunpack.c.h.b16 %v58
  %v229 = vunpack.c.l.b16 %v59
  %v230 = vunpack.c.h.b16 %v59
  %v231 = vunpack.c.l.b16 %v60
  %v232 = vunpack.c.h.b16 %v60
  %v233 = vunpack.c.l.b16 %v61
  %v234 = vunpack.c.h.b16 %v61
  %v235 = vunpack.c.l.b16 %v62
  %v236 = vunpack.c.h.b16 %v62
  %v237 = vunpack.c.l.b16 %v63
  %v238 = vunpack.c.h.b16 %v63
  %v239 = vunpack.c.l.b16 %v64
  %v240 = vunpack.c.h.b16 %v64
  %v241 = vunpack.c.l.b16 %v65
  %v242 = vunpack.c.h.b16 %v65
  %v243 = vunpack.c.l.b16 %v66
  %v244 = vunpack.c.h.b16 %v66
  %v245 = vunpack.c.l.b16 %v67
  %v246 = vunpack.c.h.b16 %v67
  %v247 = vunpack.c.l.b16 %v68
  %v248 = vunpack.c.h.b16 %v68
  %v249 = vunpack.c.l.b16 %v69
  %v250 = vunpack.c.h.b16 %v69
  %v251 = vunpack.c.l.b16 %v70
  %v252 = vunpack.c.h.b16 %v70
  %v253 = vunpack.c.l.b16 %v71
  %v254 = vunpack.c.h.b16 %v71
  %v255 = vunpack.c.l.b16 %v72
  %v256 = vunpack.c.h.b16 %v72
  %v257 = vunpack.c.l.b16 %v73
  %v258 = vunpack.c.h.b16 %v73
  %v259 = vunpack.c.l.b16 %v74
  %v260 = vunpack.c.h.b16 %v74
  %v261 = vunpack.c.l.b16 %v75
  %v262 = vunpack.c.h.b16 %v75
  %v263 = vunpack.c.l.b16 %v76
  %v264 = vunpack.c.h.b16 %v76
  %v265 = vunpack.c.l.b16 %v77
  %v266 = vunpack.c.h.b16 %v77
  %v267 = vunpack.c.l.b16 %v78
  %v268 = vunpack.c.h.b16 %v78
  %v269 = vunpack.c.l.b16 %v79
  %v270 = vunpack.c.h.b16 %v79
  %v271 = vunpack.c.l.b16 %v80
  %v272 = vunpack.c.h.b16 %v80
  %v273 = vunpack.c.l.b16 %v81
  %v274 = vunpack.c.h.b16 %v81
  %v275 = vunpack.c.l.b16 %v82
  %v276 = vunpack.c.h.b16 %v82
  %v277 = vunpack.c.l.b16 %v83
  %v278 = vunpack.c.h.b16 %v83
  %v279 = vunpack.c.l.b16 %v84
  %v280 = vunpack.c.h.b16 %v84
  %v281 = vunpack.c.l.b16 %v85
  %v282 = vunpack.c.h.b16 %v85
  %v283 = vunpack.c.l.b16 %v86
  %v284 = vunpack.c.h.b16 %v86
  %v285 = vunpack.c.l.b16 %v87
  %v286 = vunpack.c.h.b16 %v87
  %v287 = vunpack.c.l.b16 %v88
  %v288 = vunpack.c.h.b16 %v88
  %v289 = vunpack.c.l.b16 %v89
  %v290 = vunpack.c.h.b16 %v89
  %v291 = vunpack.c.l.b16 %v90
  %v292 = vunpack.c.h.b16 %v90
  %v293 = vunpack.c.l.b16 %v91
  %v294 = vunpack.c.h.b16 %v91
  %v295 = vunpack.c.l.b16 %v92
  %v296 = vunpack.c.h.b16 %v92
  %v297 = vunpack.c.l.b16 %v93
  %v298 = vunpack.c.h.b16 %v93
  %v299 = vunpack.c.l.b16 %v94
  %v300 = vunpack.c.h.b16 %v94
  %v301 = vunpack.c.l.b16 %v95
  %v302 = vunpack.c.h.b16 %v95
  %v303 = vunpack.c.l.b16 %v96
  %v304 = vunpack.c.h.b16 %v96
  %v305 = vunpack.c.l.b16 %v97
  %v306 = vunpack.c.h.b16 %v97
  %v307 = vunpack.c.l.b16 %v98
  %v308 = vunpack.c.h.b16 %v98
  %v309 = vunpack.c.l.b16 %v99
  %v310 = vunpack.c.h.b16 %v99
  %v311 = vunpack.c.l.b16 %v100
  %v312 = vunpack.c.h.b16 %v100
  %v313 = vunpack.c.l.b16 %v101
  %v314 = vunpack.c.h.b16 %v101
  %v315 = vunpack.c.l.b16 %v102
  %v316 = vunpack.c.h.b16 %v102
  %v317 = vunpack.c.l.b16 %v103
  %v318 = vunpack.c.h.b16 %v103
  %v319 = vunpack.c.l.b16 %v104
  %v320 = vunpack.c.h.b16 %v104
  %v321 = vpack.c.b16 %v201, %v193
  %v322 = vpack.c.b16 %v202, %v194
  %v323 = vpack.c.b16 %v203, %v195
  %v324 = vpack.c.b16 %v204, %v196
  %v325 = vpack.c.b16 %v205, %v197
  %v326 = vpack.c.b16 %v206, %v198
  %v327 = vpack.c.b16 %v207, %v199
  %v328 = vpack.c.b16 %v208, %v200
  %v329 = vpack.c.b16 %v217, %v209
  %v330 = vpack.c.b16 %v218, %v210
  %v331 = vpack.c.b16 %v219, %v211
  %v332 = vpack.c.b16 %v220, %v212
  %v333 = vpack.c.b16 %v221, %v213
  %v334 = vpack.c.b16 %v222, %v214
  %v335 = vpack.c.b16 %v223, %v215
  %v336 = vpack.c.b16 %v224, %v216
  %v337 = vpack.c.b16 %v233, %v225
  %v338 = vpack.c.b16 %v234, %v226
  %v339 = vpack.c.b16 %v235, %v227
  %v340 = vpack.c.b16 %v236, %v228
  %v341 = vpack.c.b16 %v237, %v229
  %v342 = vpack.c.b16 %v238, %v230
  %v343 = vpack.c.b16 %v239, %v231
  %v344 = vpack.c.b16 %v240, %v232
  %v345 = vpack.c.b16 %v249, %v241
  %v346 = vpack.c.b16 %v250, %v242
  %v347 = vpack.c.b16 %v251, %v243
  %v348 = vpack.c.b16 %v252, %v244
  %v349 = vpack.c.b16 %v253, %v245
  %v350 = vpack.c.b16 %v254, %v246
  %v351 = vpack.c.b16 %v255, %v247
  %v352 = vpack.c.b16 %v256, %v248
  %v353 = vpack.c.b16 %v265, %v257
  %v354 = vpack.c.b16 %v266, %v258
  %v355 = vpack.c.b16 %v267, %v259
  %v356 = vpack.c.b16 %v268, %v260
  %v357 = vpack.c.b16 %v269, %v261
  %v358 = vpack.c.b16 %v270, %v262
  %v359 = vpack.c.b16 %v271, %v263
  %v360 = vpack.c.b16 %v272, %v264
  %v361 = vpack.c.b16 %v281, %v273
  %v362 = vpack.c.b16 %v282, %v274
  %v363 = vpack.c.b16 %v283, %v275
  %v364 = vpack.c.b16 %v284, %v276
  %v365 = vpack.c.b16 %v285, %v277
  %v366 = vpack.c.b16 %v286, %v278
  %v367 = vpack.c.b16 %v287, %v279
  %v368 = vpack.c.b16 %v288, %v280
  %v369 = vpack.c.b16 %v297, %v289
  %v370 = vpack.c.b16 %v298, %v290
  %v371 = vpack.c.b16 %v299, %v291
  %v372 = vpack.c.b16 %v300, %v292
  %v373 = vpack.c.b16 %v301, %v293
  %v374 = vpack.c.b16 %v302, %v294
  %v375 = vpack.c.b16 %v303, %v295
  %v376 = vpack.c.b16 %v304, %v296
  %v377 = vpack.c.b16 %v313, %v305
  %v378 = vpack.c.b16 %v314, %v306
  %v379 = vpack.c.b16 %v315, %v307
  %v380 = vpack.c.b16 %v316, %v308
  %v381 = vpack.c.b16 %v317, %v309
  %v382 = vpack.c.b16 %v318, %v310
  %v383 = vpack.c.b16 %v319, %v311
  %v384 = vpack.c.b16 %v320, %v312
  %449 = vmatpush.bf16.msra.mxu0 %v377
  %450 = vmatpush.bf16.msra.mxu0 %v369
  %451 = vmatpush.bf16.msra.mxu0 %v361
  %452 = vmatpush.bf16.msra.mxu0 %v353
  %453 = vmatpush.bf16.msra.mxu0 %v345
  %454 = vmatpush.bf16.msra.mxu0 %v337
  %455 = vmatpush.bf16.msra.mxu0 %v329
  %456 = vmatpush.bf16.msra.mxu0 %v321
  %457 = vmatmul.bf16.gmra.mxu0 %v121
  %v458 = vpop.f32.mrf.mxu0
  %v459 = vadd.f32 0.0, %v458
  %v460 = vpop.f32.mrf.mxu0
  %v461 = vadd.f32 0.0, %v460
  %462 = vmatmul.bf16.gmra.mxu0 %v122
  %v463 = vpop.f32.mrf.mxu0
  %v464 = vadd.f32 0.0, %v463
  %v465 = vpop.f32.mrf.mxu0
  %v466 = vadd.f32 0.0, %v465
  %467 = vmatmul.bf16.gmra.mxu0 %v123
  %v468 = vpop.f32.mrf.mxu0
  %v469 = vadd.f32 0.0, %v468
  %v470 = vpop.f32.mrf.mxu0
  %v471 = vadd.f32 0.0, %v470
  %472 = vmatmul.bf16.gmra.mxu0 %v124
  %v473 = vpop.f32.mrf.mxu0
  %v474 = vadd.f32 0.0, %v473
  %v475 = vpop.f32.mrf.mxu0
  %v476 = vadd.f32 0.0, %v475
  %477 = vdwg.mxu0
  %478 = vmatpush.bf16.msra.mxu0 %v378
  %479 = vmatpush.bf16.msra.mxu0 %v370
  %480 = vmatpush.bf16.msra.mxu0 %v362
  %481 = vmatpush.bf16.msra.mxu0 %v354
  %482 = vmatpush.bf16.msra.mxu0 %v346
  %483 = vmatpush.bf16.msra.mxu0 %v338
  %484 = vmatpush.bf16.msra.mxu0 %v330
  %485 = vmatpush.bf16.msra.mxu0 %v322
  %486 = vmatmul.bf16.gmra.mxu0 %v121
  %v487 = vpop.f32.mrf.mxu0
  %v488 = vadd.f32 0.0, %v487
  %v489 = vpop.f32.mrf.mxu0
  %v490 = vadd.f32 0.0, %v489
  %491 = vmatmul.bf16.gmra.mxu0 %v122
  %v492 = vpop.f32.mrf.mxu0
  %v493 = vadd.f32 0.0, %v492
  %v494 = vpop.f32.mrf.mxu0
  %v495 = vadd.f32 0.0, %v494
  %496 = vmatmul.bf16.gmra.mxu0 %v123
  %v497 = vpop.f32.mrf.mxu0
  %v498 = vadd.f32 0.0, %v497
  %v499 = vpop.f32.mrf.mxu0
  %v500 = vadd.f32 0.0, %v499
  %501 = vmatmul.bf16.gmra.mxu0 %v124
  %v502 = vpop.f32.mrf.mxu0
  %v503 = vadd.f32 0.0, %v502
  %v504 = vpop.f32.mrf.mxu0
  %v505 = vadd.f32 0.0, %v504
  %506 = vdwg.mxu0
  %507 = vmatpush.bf16.msra.mxu0 %v379
  %508 = vmatpush.bf16.msra.mxu0 %v371
  %509 = vmatpush.bf16.msra.mxu0 %v363
  %510 = vmatpush.bf16.msra.mxu0 %v355
  %511 = vmatpush.bf16.msra.mxu0 %v347
  %512 = vmatpush.bf16.msra.mxu0 %v339
  %513 = vmatpush.bf16.msra.mxu0 %v331
  %514 = vmatpush.bf16.msra.mxu0 %v323
  %515 = vmatmul.bf16.gmra.mxu0 %v121
  %v516 = vpop.f32.mrf.mxu0
  %v517 = vadd.f32 0.0, %v516
  %v518 = vpop.f32.mrf.mxu0
  %v519 = vadd.f32 0.0, %v518
  %520 = vmatmul.bf16.gmra.mxu0 %v122
  %v521 = vpop.f32.mrf.mxu0
  %v522 = vadd.f32 0.0, %v521
  %v523 = vpop.f32.mrf.mxu0
  %v524 = vadd.f32 0.0, %v523
  %525 = vmatmul.bf16.gmra.mxu0 %v123
  %v526 = vpop.f32.mrf.mxu0
  %v527 = vadd.f32 0.0, %v526
  %v528 = vpop.f32.mrf.mxu0
  %v529 = vadd.f32 0.0, %v528
  %530 = vmatmul.bf16.gmra.mxu0 %v124
  %v531 = vpop.f32.mrf.mxu0
  %v532 = vadd.f32 0.0, %v531
  %v533 = vpop.f32.mrf.mxu0
  %v534 = vadd.f32 0.0, %v533
  %535 = vdwg.mxu0
  %536 = vmatpush.bf16.msra.mxu0 %v380
  %537 = vmatpush.bf16.msra.mxu0 %v372
  %538 = vmatpush.bf16.msra.mxu0 %v364
  %539 = vmatpush.bf16.msra.mxu0 %v356
  %540 = vmatpush.bf16.msra.mxu0 %v348
  %541 = vmatpush.bf16.msra.mxu0 %v340
  %542 = vmatpush.bf16.msra.mxu0 %v332
  %543 = vmatpush.bf16.msra.mxu0 %v324
  %544 = vmatmul.bf16.gmra.mxu0 %v121
  %v545 = vpop.f32.mrf.mxu0
  %v546 = vadd.f32 0.0, %v545
  %v547 = vpop.f32.mrf.mxu0
  %v548 = vadd.f32 0.0, %v547
  %549 = vmatmul.bf16.gmra.mxu0 %v122
  %v550 = vpop.f32.mrf.mxu0
  %v551 = vadd.f32 0.0, %v550
  %v552 = vpop.f32.mrf.mxu0
  %v553 = vadd.f32 0.0, %v552
  %554 = vmatmul.bf16.gmra.mxu0 %v123
  %v555 = vpop.f32.mrf.mxu0
  %v556 = vadd.f32 0.0, %v555
  %v557 = vpop.f32.mrf.mxu0
  %v558 = vadd.f32 0.0, %v557
  %559 = vmatmul.bf16.gmra.mxu0 %v124
  %v560 = vpop.f32.mrf.mxu0
  %v561 = vadd.f32 0.0, %v560
  %v562 = vpop.f32.mrf.mxu0
  %v563 = vadd.f32 0.0, %v562
  %564 = vdwg.mxu0
  %565 = vmatpush.bf16.msra.mxu0 %v381
  %566 = vmatpush.bf16.msra.mxu0 %v373
  %567 = vmatpush.bf16.msra.mxu0 %v365
  %568 = vmatpush.bf16.msra.mxu0 %v357
  %569 = vmatpush.bf16.msra.mxu0 %v349
  %570 = vmatpush.bf16.msra.mxu0 %v341
  %571 = vmatpush.bf16.msra.mxu0 %v333
  %572 = vmatpush.bf16.msra.mxu0 %v325
  %573 = vmatmul.bf16.gmra.mxu0 %v121
  %v574 = vpop.f32.mrf.mxu0
  %v575 = vadd.f32 0.0, %v574
  %v576 = vpop.f32.mrf.mxu0
  %v577 = vadd.f32 0.0, %v576
  %578 = vmatmul.bf16.gmra.mxu0 %v122
  %v579 = vpop.f32.mrf.mxu0
  %v580 = vadd.f32 0.0, %v579
  %v581 = vpop.f32.mrf.mxu0
  %v582 = vadd.f32 0.0, %v581
  %583 = vmatmul.bf16.gmra.mxu0 %v123
  %v584 = vpop.f32.mrf.mxu0
  %v585 = vadd.f32 0.0, %v584
  %v586 = vpop.f32.mrf.mxu0
  %v587 = vadd.f32 0.0, %v586
  %588 = vmatmul.bf16.gmra.mxu0 %v124
  %v589 = vpop.f32.mrf.mxu0
  %v590 = vadd.f32 0.0, %v589
  %v591 = vpop.f32.mrf.mxu0
  %v592 = vadd.f32 0.0, %v591
  %593 = vdwg.mxu0
  %594 = vmatpush.bf16.msra.mxu0 %v382
  %595 = vmatpush.bf16.msra.mxu0 %v374
  %596 = vmatpush.bf16.msra.mxu0 %v366
  %597 = vmatpush.bf16.msra.mxu0 %v358
  %598 = vmatpush.bf16.msra.mxu0 %v350
  %599 = vmatpush.bf16.msra.mxu0 %v342
  %600 = vmatpush.bf16.msra.mxu0 %v334
  %601 = vmatpush.bf16.msra.mxu0 %v326
  %602 = vmatmul.bf16.gmra.mxu0 %v121
  %v603 = vpop.f32.mrf.mxu0
  %v604 = vadd.f32 0.0, %v603
  %v605 = vpop.f32.mrf.mxu0
  %v606 = vadd.f32 0.0, %v605
  %607 = vmatmul.bf16.gmra.mxu0 %v122
  %v608 = vpop.f32.mrf.mxu0
  %v609 = vadd.f32 0.0, %v608
  %v610 = vpop.f32.mrf.mxu0
  %v611 = vadd.f32 0.0, %v610
  %612 = vmatmul.bf16.gmra.mxu0 %v123
  %v613 = vpop.f32.mrf.mxu0
  %v614 = vadd.f32 0.0, %v613
  %v615 = vpop.f32.mrf.mxu0
  %v616 = vadd.f32 0.0, %v615
  %617 = vmatmul.bf16.gmra.mxu0 %v124
  %v618 = vpop.f32.mrf.mxu0
  %v619 = vadd.f32 0.0, %v618
  %v620 = vpop.f32.mrf.mxu0
  %v621 = vadd.f32 0.0, %v620
  %622 = vdwg.mxu0
  %623 = vmatpush.bf16.msra.mxu0 %v383
  %624 = vmatpush.bf16.msra.mxu0 %v375
  %625 = vmatpush.bf16.msra.mxu0 %v367
  %626 = vmatpush.bf16.msra.mxu0 %v359
  %627 = vmatpush.bf16.msra.mxu0 %v351
  %628 = vmatpush.bf16.msra.mxu0 %v343
  %629 = vmatpush.bf16.msra.mxu0 %v335
  %630 = vmatpush.bf16.msra.mxu0 %v327
  %631 = vmatmul.bf16.gmra.mxu0 %v121
  %v632 = vpop.f32.mrf.mxu0
  %v633 = vadd.f32 0.0, %v632
  %v634 = vpop.f32.mrf.mxu0
  %v635 = vadd.f32 0.0, %v634
  %636 = vmatmul.bf16.gmra.mxu0 %v122
  %v637 = vpop.f32.mrf.mxu0
  %v638 = vadd.f32 0.0, %v637
  %v639 = vpop.f32.mrf.mxu0
  %v640 = vadd.f32 0.0, %v639
  %641 = vmatmul.bf16.gmra.mxu0 %v123
  %v642 = vpop.f32.mrf.mxu0
  %v643 = vadd.f32 0.0, %v642
  %v644 = vpop.f32.mrf.mxu0
  %v645 = vadd.f32 0.0, %v644
  %646 = vmatmul.bf16.gmra.mxu0 %v124
  %v647 = vpop.f32.mrf.mxu0
  %v648 = vadd.f32 0.0, %v647
  %v649 = vpop.f32.mrf.mxu0
  %v650 = vadd.f32 0.0, %v649
  %651 = vdwg.mxu0
  %652 = vmatpush.bf16.msra.mxu0 %v384
  %653 = vmatpush.bf16.msra.mxu0 %v376
  %654 = vmatpush.bf16.msra.mxu0 %v368
  %655 = vmatpush.bf16.msra.mxu0 %v360
  %656 = vmatpush.bf16.msra.mxu0 %v352
  %657 = vmatpush.bf16.msra.mxu0 %v344
  %658 = vmatpush.bf16.msra.mxu0 %v336
  %659 = vmatpush.bf16.msra.mxu0 %v328
  %660 = vmatmul.bf16.gmra.mxu0 %v121
  %v661 = vpop.f32.mrf.mxu0
  %v662 = vadd.f32 0.0, %v661
  %v663 = vpop.f32.mrf.mxu0
  %v664 = vadd.f32 0.0, %v663
  %665 = vmatmul.bf16.gmra.mxu0 %v122
  %v666 = vpop.f32.mrf.mxu0
  %v667 = vadd.f32 0.0, %v666
  %v668 = vpop.f32.mrf.mxu0
  %v669 = vadd.f32 0.0, %v668
  %670 = vmatmul.bf16.gmra.mxu0 %v123
  %v671 = vpop.f32.mrf.mxu0
  %v672 = vadd.f32 0.0, %v671
  %v673 = vpop.f32.mrf.mxu0
  %v674 = vadd.f32 0.0, %v673
  %675 = vmatmul.bf16.gmra.mxu0 %v124
  %v676 = vpop.f32.mrf.mxu0
  %v677 = vadd.f32 0.0, %v676
  %v678 = vpop.f32.mrf.mxu0
  %v679 = vadd.f32 0.0, %v678
  %680 = vdwg.mxu0
  %v681 = vpack.c.bf16 %v488, %v459
  %v682 = vpack.c.bf16 %v546, %v517
  %v683 = vpack.c.bf16 %v604, %v575
  %v684 = vpack.c.bf16 %v662, %v633
  %v685 = vpack.c.bf16 %v490, %v461
  %v686 = vpack.c.bf16 %v548, %v519
  %v687 = vpack.c.bf16 %v606, %v577
  %v688 = vpack.c.bf16 %v664, %v635
  %v689 = vpack.c.bf16 %v493, %v464
  %v690 = vpack.c.bf16 %v551, %v522
  %v691 = vpack.c.bf16 %v609, %v580
  %v692 = vpack.c.bf16 %v667, %v638
  %v693 = vpack.c.bf16 %v495, %v466
  %v694 = vpack.c.bf16 %v553, %v524
  %v695 = vpack.c.bf16 %v611, %v582
  %v696 = vpack.c.bf16 %v669, %v640
  %v697 = vpack.c.bf16 %v498, %v469
  %v698 = vpack.c.bf16 %v556, %v527
  %v699 = vpack.c.bf16 %v614, %v585
  %v700 = vpack.c.bf16 %v672, %v643
  %v701 = vpack.c.bf16 %v500, %v471
  %v702 = vpack.c.bf16 %v558, %v529
  %v703 = vpack.c.bf16 %v616, %v587
  %v704 = vpack.c.bf16 %v674, %v645
  %v705 = vpack.c.bf16 %v503, %v474
  %v706 = vpack.c.bf16 %v561, %v532
  %v707 = vpack.c.bf16 %v619, %v590
  %v708 = vpack.c.bf16 %v677, %v648
  %v709 = vpack.c.bf16 %v505, %v476
  %v710 = vpack.c.bf16 %v563, %v534
  %v711 = vpack.c.bf16 %v621, %v592
  %v712 = vpack.c.bf16 %v679, %v650
  %s713 = smul.u32 0, 4
  %s714 = smul.addr %s713, 4
  %s715 = scalar_lea.vmem [#allocation2], %s714
  %716 = vst [vmem:[%s715] sm:$0xff] %v681
  %717 = vst [vmem:[%s715 + $0x8] sm:$0xff] %v682
  %718 = vst [vmem:[%s715 + $0x10] sm:$0xff] %v685
  %719 = vst [vmem:[%s715 + $0x18] sm:$0xff] %v686
  %720 = vst [vmem:[%s715 + $0x20] sm:$0xff] %v689
  %721 = vst [vmem:[%s715 + $0x28] sm:$0xff] %v690
  %722 = vst [vmem:[%s715 + $0x30] sm:$0xff] %v693
  %723 = vst [vmem:[%s715 + $0x38] sm:$0xff] %v694
  %724 = vst [vmem:[%s715 + $0x40] sm:$0xff] %v697
  %725 = vst [vmem:[%s715 + $0x48] sm:$0xff] %v698
  %726 = vst [vmem:[%s715 + $0x50] sm:$0xff] %v701
  %727 = vst [vmem:[%s715 + $0x58] sm:$0xff] %v702
  %728 = vst [vmem:[%s715 + $0x60] sm:$0xff] %v705
  %729 = vst [vmem:[%s715 + $0x68] sm:$0xff] %v706
  %730 = vst [vmem:[%s715 + $0x70] sm:$0xff] %v709
  %731 = vst [vmem:[%s715 + $0x78] sm:$0xff] %v710
  %s732 = smul.addr %s713, 4
  %s733 = scalar_lea.vmem [#allocation3], %s732
  %734 = vst [vmem:[%s733] sm:$0xff] %v683
  %735 = vst [vmem:[%s733 + $0x8] sm:$0xff] %v684
  %736 = vst [vmem:[%s733 + $0x10] sm:$0xff] %v687
  %737 = vst [vmem:[%s733 + $0x18] sm:$0xff] %v688
  %738 = vst [vmem:[%s733 + $0x20] sm:$0xff] %v691
  %739 = vst [vmem:[%s733 + $0x28] sm:$0xff] %v692
  %740 = vst [vmem:[%s733 + $0x30] sm:$0xff] %v695
  %741 = vst [vmem:[%s733 + $0x38] sm:$0xff] %v696
  %742 = vst [vmem:[%s733 + $0x40] sm:$0xff] %v699
  %743 = vst [vmem:[%s733 + $0x48] sm:$0xff] %v700
  %744 = vst [vmem:[%s733 + $0x50] sm:$0xff] %v703
  %745 = vst [vmem:[%s733 + $0x58] sm:$0xff] %v704
  %746 = vst [vmem:[%s733 + $0x60] sm:$0xff] %v707
  %747 = vst [vmem:[%s733 + $0x68] sm:$0xff] %v708
  %748 = vst [vmem:[%s733 + $0x70] sm:$0xff] %v711
  %749 = vst [vmem:[%s733 + $0x78] sm:$0xff] %v712
  %v750 = vld [vmem:[%s2] sm:$0xf]
  %v752 = vperm.slane %v750, 0
  %v753 = vperm.slane %v750, 1
  %v754 = vperm.slane %v750, 2
  %v755 = vperm.slane %v750, 3
  %v760 = vld [vmem:[%s2 + $0x4] sm:$0xf]
  %v762 = vperm.slane %v760, 0
  %v763 = vperm.slane %v760, 1
  %v764 = vperm.slane %v760, 2
  %v765 = vperm.slane %v760, 3
  %770 = vst [vmem:[#allocation4] sm:$0xff] 0.0
  %771 = vst [vmem:[#allocation5] sm:$0xff] 0.0
  %v772 = vld [vmem:[#allocation2] sm:$0xff]
  %v773 = vld [vmem:[#allocation2 + $0x8] sm:$0xff]
  %v774 = vunpack.c.l.bf16 %v772
  %v775 = vunpack.c.h.bf16 %v772
  %v776 = vunpack.c.l.bf16 %v773
  %v777 = vunpack.c.h.bf16 %v773
  %v778 = vld [vmem:[%s3] sm:$0xff]
  %v779 = vld [vmem:[%s3 + $0x8] sm:$0xff]
  %v780 = vld [vmem:[%s3 + $0x10] sm:$0xff]
  %v781 = vld [vmem:[%s3 + $0x18] sm:$0xff]
  %v782 = vld [vmem:[%s3 + $0x20] sm:$0xff]
  %v783 = vld [vmem:[%s3 + $0x28] sm:$0xff]
  %v784 = vld [vmem:[%s3 + $0x30] sm:$0xff]
  %v785 = vld [vmem:[%s3 + $0x38] sm:$0xff]
  %v786 = vld [vmem:[%s3 + $0x40] sm:$0xff]
  %v787 = vld [vmem:[%s3 + $0x48] sm:$0xff]
  %v788 = vld [vmem:[%s3 + $0x50] sm:$0xff]
  %v789 = vld [vmem:[%s3 + $0x58] sm:$0xff]
  %v790 = vld [vmem:[%s3 + $0x60] sm:$0xff]
  %v791 = vld [vmem:[%s3 + $0x68] sm:$0xff]
  %v792 = vld [vmem:[%s3 + $0x70] sm:$0xff]
  %v793 = vld [vmem:[%s3 + $0x78] sm:$0xff]
  %v794 = vld [vmem:[%s3 + $0x80] sm:$0xff]
  %v795 = vld [vmem:[%s3 + $0x88] sm:$0xff]
  %v796 = vld [vmem:[%s3 + $0x90] sm:$0xff]
  %v797 = vld [vmem:[%s3 + $0x98] sm:$0xff]
  %v798 = vld [vmem:[%s3 + $0xa0] sm:$0xff]
  %v799 = vld [vmem:[%s3 + $0xa8] sm:$0xff]
  %v800 = vld [vmem:[%s3 + $0xb0] sm:$0xff]
  %v801 = vld [vmem:[%s3 + $0xb8] sm:$0xff]
  %v802 = vld [vmem:[%s3 + $0xc0] sm:$0xff]
  %v803 = vld [vmem:[%s3 + $0xc8] sm:$0xff]
  %v804 = vld [vmem:[%s3 + $0xd0] sm:$0xff]
  %v805 = vld [vmem:[%s3 + $0xd8] sm:$0xff]
  %v806 = vld [vmem:[%s3 + $0xe0] sm:$0xff]
  %v807 = vld [vmem:[%s3 + $0xe8] sm:$0xff]
  %v808 = vld [vmem:[%s3 + $0xf0] sm:$0xff]
  %v809 = vld [vmem:[%s3 + $0xf8] sm:$0xff]
  %v842 = vunpack.c.l.b16 %v778
  %v843 = vunpack.c.h.b16 %v778
  %v844 = vunpack.c.l.b16 %v779
  %v845 = vunpack.c.h.b16 %v779
  %v846 = vunpack.c.l.b16 %v780
  %v847 = vunpack.c.h.b16 %v780
  %v848 = vunpack.c.l.b16 %v781
  %v849 = vunpack.c.h.b16 %v781
  %v850 = vunpack.c.l.b16 %v782
  %v851 = vunpack.c.h.b16 %v782
  %v852 = vunpack.c.l.b16 %v783
  %v853 = vunpack.c.h.b16 %v783
  %v854 = vunpack.c.l.b16 %v784
  %v855 = vunpack.c.h.b16 %v784
  %v856 = vunpack.c.l.b16 %v785
  %v857 = vunpack.c.h.b16 %v785
  %v858 = vunpack.c.l.b16 %v786
  %v859 = vunpack.c.h.b16 %v786
  %v860 = vunpack.c.l.b16 %v787
  %v861 = vunpack.c.h.b16 %v787
  %v862 = vunpack.c.l.b16 %v788
  %v863 = vunpack.c.h.b16 %v788
  %v864 = vunpack.c.l.b16 %v789
  %v865 = vunpack.c.h.b16 %v789
  %v866 = vunpack.c.l.b16 %v790
  %v867 = vunpack.c.h.b16 %v790
  %v868 = vunpack.c.l.b16 %v791
  %v869 = vunpack.c.h.b16 %v791
  %v870 = vunpack.c.l.b16 %v792
  %v871 = vunpack.c.h.b16 %v792
  %v872 = vunpack.c.l.b16 %v793
  %v873 = vunpack.c.h.b16 %v793
  %v874 = vunpack.c.l.b16 %v794
  %v875 = vunpack.c.h.b16 %v794
  %v876 = vunpack.c.l.b16 %v795
  %v877 = vunpack.c.h.b16 %v795
  %v878 = vunpack.c.l.b16 %v796
  %v879 = vunpack.c.h.b16 %v796
  %v880 = vunpack.c.l.b16 %v797
  %v881 = vunpack.c.h.b16 %v797
  %v882 = vunpack.c.l.b16 %v798
  %v883 = vunpack.c.h.b16 %v798
  %v884 = vunpack.c.l.b16 %v799
  %v885 = vunpack.c.h.b16 %v799
  %v886 = vunpack.c.l.b16 %v800
  %v887 = vunpack.c.h.b16 %v800
  %v888 = vunpack.c.l.b16 %v801
  %v889 = vunpack.c.h.b16 %v801
  %v890 = vunpack.c.l.b16 %v802
  %v891 = vunpack.c.h.b16 %v802
  %v892 = vunpack.c.l.b16 %v803
  %v893 = vunpack.c.h.b16 %v803
  %v894 = vunpack.c.l.b16 %v804
  %v895 = vunpack.c.h.b16 %v804
  %v896 = vunpack.c.l.b16 %v805
  %v897 = vunpack.c.h.b16 %v805
  %v898 = vunpack.c.l.b16 %v806
  %v899 = vunpack.c.h.b16 %v806
  %v900 = vunpack.c.l.b16 %v807
  %v901 = vunpack.c.h.b16 %v807
  %v902 = vunpack.c.l.b16 %v808
  %v903 = vunpack.c.h.b16 %v808
  %v904 = vunpack.c.l.b16 %v809
  %v905 = vunpack.c.h.b16 %v809
  %v906 = vpack.c.b16 %v846, %v842
  %v907 = vpack.c.b16 %v847, %v843
  %v908 = vpack.c.b16 %v848, %v844
  %v909 = vpack.c.b16 %v849, %v845
  %v910 = vpack.c.b16 %v854, %v850
  %v911 = vpack.c.b16 %v855, %v851
  %v912 = vpack.c.b16 %v856, %v852
  %v913 = vpack.c.b16 %v857, %v853
  %v914 = vpack.c.b16 %v862, %v858
  %v915 = vpack.c.b16 %v863, %v859
  %v916 = vpack.c.b16 %v864, %v860
  %v917 = vpack.c.b16 %v865, %v861
  %v918 = vpack.c.b16 %v870, %v866
  %v919 = vpack.c.b16 %v871, %v867
  %v920 = vpack.c.b16 %v872, %v868
  %v921 = vpack.c.b16 %v873, %v869
  %v922 = vpack.c.b16 %v878, %v874
  %v923 = vpack.c.b16 %v879, %v875
  %v924 = vpack.c.b16 %v880, %v876
  %v925 = vpack.c.b16 %v881, %v877
  %v926 = vpack.c.b16 %v886, %v882
  %v927 = vpack.c.b16 %v887, %v883
  %v928 = vpack.c.b16 %v888, %v884
  %v929 = vpack.c.b16 %v889, %v885
  %v930 = vpack.c.b16 %v894, %v890
  %v931 = vpack.c.b16 %v895, %v891
  %v932 = vpack.c.b16 %v896, %v892
  %v933 = vpack.c.b16 %v897, %v893
  %v934 = vpack.c.b16 %v902, %v898
  %v935 = vpack.c.b16 %v903, %v899
  %v936 = vpack.c.b16 %v904, %v900
  %v937 = vpack.c.b16 %v905, %v901
  %970 = vmatpush.bf16.msra.mxu0 %v934
  %971 = vmatpush.bf16.msra.mxu0 %v930
  %972 = vmatpush.bf16.msra.mxu0 %v926
  %973 = vmatpush.bf16.msra.mxu0 %v922
  %974 = vmatpush.bf16.msra.mxu0 %v918
  %975 = vmatpush.bf16.msra.mxu0 %v914
  %976 = vmatpush.bf16.msra.mxu0 %v910
  %977 = vmatpush.bf16.msra.mxu0 %v906
  %978 = vmatmul.bf16.gmra.mxu0 0
  %v979 = vpop.f32.mrf.mxu0
  %v980 = vadd.f32 0.0, %v979
  %v981 = vpop.f32.mrf.mxu0
  %982 = vdwg.mxu0
  %983 = vmatpush.bf16.msra.mxu0 %v935
  %984 = vmatpush.bf16.msra.mxu0 %v931
  %985 = vmatpush.bf16.msra.mxu0 %v927
  %986 = vmatpush.bf16.msra.mxu0 %v923
  %987 = vmatpush.bf16.msra.mxu0 %v919
  %988 = vmatpush.bf16.msra.mxu0 %v915
  %989 = vmatpush.bf16.msra.mxu0 %v911
  %990 = vmatpush.bf16.msra.mxu0 %v907
  %991 = vmatmul.bf16.gmra.mxu0 0
  %v992 = vpop.f32.mrf.mxu0
  %v993 = vadd.f32 0.0, %v992
  %v994 = vpop.f32.mrf.mxu0
  %995 = vdwg.mxu0
  %996 = vmatpush.bf16.msra.mxu0 %v936
  %997 = vmatpush.bf16.msra.mxu0 %v932
  %998 = vmatpush.bf16.msra.mxu0 %v928
  %999 = vmatpush.bf16.msra.mxu0 %v924
  %1000 = vmatpush.bf16.msra.mxu0 %v920
  %1001 = vmatpush.bf16.msra.mxu0 %v916
  %1002 = vmatpush.bf16.msra.mxu0 %v912
  %1003 = vmatpush.bf16.msra.mxu0 %v908
  %1004 = vmatmul.bf16.gmra.mxu0 0
  %v1005 = vpop.f32.mrf.mxu0
  %v1006 = vadd.f32 0.0, %v1005
  %v1007 = vpop.f32.mrf.mxu0
  %1008 = vdwg.mxu0
  %1009 = vmatpush.bf16.msra.mxu0 %v937
  %1010 = vmatpush.bf16.msra.mxu0 %v933
  %1011 = vmatpush.bf16.msra.mxu0 %v929
  %1012 = vmatpush.bf16.msra.mxu0 %v925
  %1013 = vmatpush.bf16.msra.mxu0 %v921
  %1014 = vmatpush.bf16.msra.mxu0 %v917
  %1015 = vmatpush.bf16.msra.mxu0 %v913
  %1016 = vmatpush.bf16.msra.mxu0 %v909
  %1017 = vmatmul.bf16.gmra.mxu0 0
  %v1018 = vpop.f32.mrf.mxu0
  %v1019 = vadd.f32 0.0, %v1018
  %v1020 = vpop.f32.mrf.mxu0
  %1021 = vdwg.mxu0
  %v1022 = vadd.f32 %v774, %v980
  %v1023 = vadd.f32 %v775, %v993
  %v1024 = vadd.f32 %v776, %v1006
  %v1025 = vadd.f32 %v777, %v1019
  %v1026 = vadd.f32 %v1022, %v752
  %v1027 = vadd.f32 %v1023, %v753
  %v1028 = vadd.f32 %v1024, %v754
  %v1029 = vadd.f32 %v1025, %v755
  %s1030 = scalar_lea.vmem [#allocation3], 112
  %v1031 = vld [vmem:[%s1030] sm:$0xff]
  %v1032 = vld [vmem:[%s1030 + $0x8] sm:$0xff]
  %v1033 = vunpack.c.l.bf16 %v1031
  %v1034 = vunpack.c.h.bf16 %v1031
  %v1035 = vunpack.c.l.bf16 %v1032
  %v1036 = vunpack.c.h.bf16 %v1032
  %v1037 = vld [vmem:[%s4] sm:$0xff]
  %v1038 = vld [vmem:[%s4 + $0x8] sm:$0xff]
  %v1039 = vld [vmem:[%s4 + $0x10] sm:$0xff]
  %v1040 = vld [vmem:[%s4 + $0x18] sm:$0xff]
  %v1041 = vld [vmem:[%s4 + $0x20] sm:$0xff]
  %v1042 = vld [vmem:[%s4 + $0x28] sm:$0xff]
  %v1043 = vld [vmem:[%s4 + $0x30] sm:$0xff]
  %v1044 = vld [vmem:[%s4 + $0x38] sm:$0xff]
  %v1045 = vld [vmem:[%s4 + $0x40] sm:$0xff]
  %v1046 = vld [vmem:[%s4 + $0x48] sm:$0xff]
  %v1047 = vld [vmem:[%s4 + $0x50] sm:$0xff]
  %v1048 = vld [vmem:[%s4 + $0x58] sm:$0xff]
  %v1049 = vld [vmem:[%s4 + $0x60] sm:$0xff]
  %v1050 = vld [vmem:[%s4 + $0x68] sm:$0xff]
  %v1051 = vld [vmem:[%s4 + $0x70] sm:$0xff]
  %v1052 = vld [vmem:[%s4 + $0x78] sm:$0xff]
  %v1053 = vld [vmem:[%s4 + $0x80] sm:$0xff]
  %v1054 = vld [vmem:[%s4 + $0x88] sm:$0xff]
  %v1055 = vld [vmem:[%s4 + $0x90] sm:$0xff]
  %v1056 = vld [vmem:[%s4 + $0x98] sm:$0xff]
  %v1057 = vld [vmem:[%s4 + $0xa0] sm:$0xff]
  %v1058 = vld [vmem:[%s4 + $0xa8] sm:$0xff]
  %v1059 = vld [vmem:[%s4 + $0xb0] sm:$0xff]
  %v1060 = vld [vmem:[%s4 + $0xb8] sm:$0xff]
  %v1061 = vld [vmem:[%s4 + $0xc0] sm:$0xff]
  %v1062 = vld [vmem:[%s4 + $0xc8] sm:$0xff]
  %v1063 = vld [vmem:[%s4 + $0xd0] sm:$0xff]
  %v1064 = vld [vmem:[%s4 + $0xd8] sm:$0xff]
  %v1065 = vld [vmem:[%s4 + $0xe0] sm:$0xff]
  %v1066 = vld [vmem:[%s4 + $0xe8] sm:$0xff]
  %v1067 = vld [vmem:[%s4 + $0xf0] sm:$0xff]
  %v1068 = vld [vmem:[%s4 + $0xf8] sm:$0xff]
  %v1101 = vunpack.c.l.b16 %v1037
  %v1102 = vunpack.c.h.b16 %v1037
  %v1103 = vunpack.c.l.b16 %v1038
  %v1104 = vunpack.c.h.b16 %v1038
  %v1105 = vunpack.c.l.b16 %v1039
  %v1106 = vunpack.c.h.b16 %v1039
  %v1107 = vunpack.c.l.b16 %v1040
  %v1108 = vunpack.c.h.b16 %v1040
  %v1109 = vunpack.c.l.b16 %v1041
  %v1110 = vunpack.c.h.b16 %v1041
  %v1111 = vunpack.c.l.b16 %v1042
  %v1112 = vunpack.c.h.b16 %v1042
  %v1113 = vunpack.c.l.b16 %v1043
  %v1114 = vunpack.c.h.b16 %v1043
  %v1115 = vunpack.c.l.b16 %v1044
  %v1116 = vunpack.c.h.b16 %v1044
  %v1117 = vunpack.c.l.b16 %v1045
  %v1118 = vunpack.c.h.b16 %v1045
  %v1119 = vunpack.c.l.b16 %v1046
  %v1120 = vunpack.c.h.b16 %v1046
  %v1121 = vunpack.c.l.b16 %v1047
  %v1122 = vunpack.c.h.b16 %v1047
  %v1123 = vunpack.c.l.b16 %v1048
  %v1124 = vunpack.c.h.b16 %v1048
  %v1125 = vunpack.c.l.b16 %v1049
  %v1126 = vunpack.c.h.b16 %v1049
  %v1127 = vunpack.c.l.b16 %v1050
  %v1128 = vunpack.c.h.b16 %v1050
  %v1129 = vunpack.c.l.b16 %v1051
  %v1130 = vunpack.c.h.b16 %v1051
  %v1131 = vunpack.c.l.b16 %v1052
  %v1132 = vunpack.c.h.b16 %v1052
  %v1133 = vunpack.c.l.b16 %v1053
  %v1134 = vunpack.c.h.b16 %v1053
  %v1135 = vunpack.c.l.b16 %v1054
  %v1136 = vunpack.c.h.b16 %v1054
  %v1137 = vunpack.c.l.b16 %v1055
  %v1138 = vunpack.c.h.b16 %v1055
  %v1139 = vunpack.c.l.b16 %v1056
  %v1140 = vunpack.c.h.b16 %v1056
  %v1141 = vunpack.c.l.b16 %v1057
  %v1142 = vunpack.c.h.b16 %v1057
  %v1143 = vunpack.c.l.b16 %v1058
  %v1144 = vunpack.c.h.b16 %v1058
  %v1145 = vunpack.c.l.b16 %v1059
  %v1146 = vunpack.c.h.b16 %v1059
  %v1147 = vunpack.c.l.b16 %v1060
  %v1148 = vunpack.c.h.b16 %v1060
  %v1149 = vunpack.c.l.b16 %v1061
  %v1150 = vunpack.c.h.b16 %v1061
  %v1151 = vunpack.c.l.b16 %v1062
  %v1152 = vunpack.c.h.b16 %v1062
  %v1153 = vunpack.c.l.b16 %v1063
  %v1154 = vunpack.c.h.b16 %v1063
  %v1155 = vunpack.c.l.b16 %v1064
  %v1156 = vunpack.c.h.b16 %v1064
  %v1157 = vunpack.c.l.b16 %v1065
  %v1158 = vunpack.c.h.b16 %v1065
  %v1159 = vunpack.c.l.b16 %v1066
  %v1160 = vunpack.c.h.b16 %v1066
  %v1161 = vunpack.c.l.b16 %v1067
  %v1162 = vunpack.c.h.b16 %v1067
  %v1163 = vunpack.c.l.b16 %v1068
  %v1164 = vunpack.c.h.b16 %v1068
  %v1165 = vpack.c.b16 %v1105, %v1101
  %v1166 = vpack.c.b16 %v1106, %v1102
  %v1167 = vpack.c.b16 %v1107, %v1103
  %v1168 = vpack.c.b16 %v1108, %v1104
  %v1169 = vpack.c.b16 %v1113, %v1109
  %v1170 = vpack.c.b16 %v1114, %v1110
  %v1171 = vpack.c.b16 %v1115, %v1111
  %v1172 = vpack.c.b16 %v1116, %v1112
  %v1173 = vpack.c.b16 %v1121, %v1117
  %v1174 = vpack.c.b16 %v1122, %v1118
  %v1175 = vpack.c.b16 %v1123, %v1119
  %v1176 = vpack.c.b16 %v1124, %v1120
  %v1177 = vpack.c.b16 %v1129, %v1125
  %v1178 = vpack.c.b16 %v1130, %v1126
  %v1179 = vpack.c.b16 %v1131, %v1127
  %v1180 = vpack.c.b16 %v1132, %v1128
  %v1181 = vpack.c.b16 %v1137, %v1133
  %v1182 = vpack.c.b16 %v1138, %v1134
  %v1183 = vpack.c.b16 %v1139, %v1135
  %v1184 = vpack.c.b16 %v1140, %v1136
  %v1185 = vpack.c.b16 %v1145, %v1141
  %v1186 = vpack.c.b16 %v1146, %v1142
  %v1187 = vpack.c.b16 %v1147, %v1143
  %v1188 = vpack.c.b16 %v1148, %v1144
  %v1189 = vpack.c.b16 %v1153, %v1149
  %v1190 = vpack.c.b16 %v1154, %v1150
  %v1191 = vpack.c.b16 %v1155, %v1151
  %v1192 = vpack.c.b16 %v1156, %v1152
  %v1193 = vpack.c.b16 %v1161, %v1157
  %v1194 = vpack.c.b16 %v1162, %v1158
  %v1195 = vpack.c.b16 %v1163, %v1159
  %v1196 = vpack.c.b16 %v1164, %v1160
  %1229 = vmatpush.bf16.msra.mxu0 %v1193
  %1230 = vmatpush.bf16.msra.mxu0 %v1189
  %1231 = vmatpush.bf16.msra.mxu0 %v1185
  %1232 = vmatpush.bf16.msra.mxu0 %v1181
  %1233 = vmatpush.bf16.msra.mxu0 %v1177
  %1234 = vmatpush.bf16.msra.mxu0 %v1173
  %1235 = vmatpush.bf16.msra.mxu0 %v1169
  %1236 = vmatpush.bf16.msra.mxu0 %v1165
  %1237 = vmatmul.bf16.gmra.mxu0 0
  %v1238 = vpop.f32.mrf.mxu0
  %v1239 = vadd.f32 0.0, %v1238
  %v1240 = vpop.f32.mrf.mxu0
  %1241 = vdwg.mxu0
  %1242 = vmatpush.bf16.msra.mxu0 %v1194
  %1243 = vmatpush.bf16.msra.mxu0 %v1190
  %1244 = vmatpush.bf16.msra.mxu0 %v1186
  %1245 = vmatpush.bf16.msra.mxu0 %v1182
  %1246 = vmatpush.bf16.msra.mxu0 %v1178
  %1247 = vmatpush.bf16.msra.mxu0 %v1174
  %1248 = vmatpush.bf16.msra.mxu0 %v1170
  %1249 = vmatpush.bf16.msra.mxu0 %v1166
  %1250 = vmatmul.bf16.gmra.mxu0 0
  %v1251 = vpop.f32.mrf.mxu0
  %v1252 = vadd.f32 0.0, %v1251
  %v1253 = vpop.f32.mrf.mxu0
  %1254 = vdwg.mxu0
  %1255 = vmatpush.bf16.msra.mxu0 %v1195
  %1256 = vmatpush.bf16.msra.mxu0 %v1191
  %1257 = vmatpush.bf16.msra.mxu0 %v1187
  %1258 = vmatpush.bf16.msra.mxu0 %v1183
  %1259 = vmatpush.bf16.msra.mxu0 %v1179
  %1260 = vmatpush.bf16.msra.mxu0 %v1175
  %1261 = vmatpush.bf16.msra.mxu0 %v1171
  %1262 = vmatpush.bf16.msra.mxu0 %v1167
  %1263 = vmatmul.bf16.gmra.mxu0 0
  %v1264 = vpop.f32.mrf.mxu0
  %v1265 = vadd.f32 0.0, %v1264
  %v1266 = vpop.f32.mrf.mxu0
  %1267 = vdwg.mxu0
  %1268 = vmatpush.bf16.msra.mxu0 %v1196
  %1269 = vmatpush.bf16.msra.mxu0 %v1192
  %1270 = vmatpush.bf16.msra.mxu0 %v1188
  %1271 = vmatpush.bf16.msra.mxu0 %v1184
  %1272 = vmatpush.bf16.msra.mxu0 %v1180
  %1273 = vmatpush.bf16.msra.mxu0 %v1176
  %1274 = vmatpush.bf16.msra.mxu0 %v1172
  %1275 = vmatpush.bf16.msra.mxu0 %v1168
  %1276 = vmatmul.bf16.gmra.mxu0 0
  %v1277 = vpop.f32.mrf.mxu0
  %v1278 = vadd.f32 0.0, %v1277
  %v1279 = vpop.f32.mrf.mxu0
  %1280 = vdwg.mxu0
  %v1281 = vadd.f32 %v1033, %v1239
  %v1282 = vadd.f32 %v1034, %v1252
  %v1283 = vadd.f32 %v1035, %v1265
  %v1284 = vadd.f32 %v1036, %v1278
  %v1285 = vadd.f32 %v1281, %v762
  %v1286 = vadd.f32 %v1282, %v763
  %v1287 = vadd.f32 %v1283, %v764
  %v1288 = vadd.f32 %v1284, %v765
  %v1289 = vxor.u32 %v1026, 2147483648
  %v1290 = vmul.f32 %v1289, 1.442695
  %v1291 = vpow.pop %v1290
  %v1292 = vadd.f32 %v1291, 1.0
  %v1293 = vrcp.pop %v1292
  %v1294 = vmul.f32 %v1292, %v1293
  %v1295 = vsub.f32 1.0, %v1294
  %v1296 = vmul.f32 %v1293, %v1295
  %v1297 = vadd.f32 %v1293, %v1296
  %vm1298 = vweird.f32 %v1292
  %vm1299 = vweird.f32 %v1293
  %vm1300 = vmor %vm1298, %vm1299
  %v1301 = vsel %vm1300, %v1293, %v1297
  %v1302 = vand.u32 2147483647, %v1292
  %vm1303 = vcmp.eq.f32.partialorder %v1302, 8.507059e+37
  %v1304 = vand.u32 %v1292, 2147483648
  %v1305 = vor.u32 1.1754944e-38, %v1304
  %v1306 = vsel %vm1303, %v1305, %v1301
  %v1307 = vmul.f32 1.0, %v1306
  %v1308 = vxor.u32 %v1027, 2147483648
  %v1309 = vmul.f32 %v1308, 1.442695
  %v1310 = vpow.pop %v1309
  %v1311 = vadd.f32 %v1310, 1.0
  %v1312 = vrcp.pop %v1311
  %v1313 = vmul.f32 %v1311, %v1312
  %v1314 = vsub.f32 1.0, %v1313
  %v1315 = vmul.f32 %v1312, %v1314
  %v1316 = vadd.f32 %v1312, %v1315
  %vm1317 = vweird.f32 %v1311
  %vm1318 = vweird.f32 %v1312
  %vm1319 = vmor %vm1317, %vm1318
  %v1320 = vsel %vm1319, %v1312, %v1316
  %v1321 = vand.u32 2147483647, %v1311
  %vm1322 = vcmp.eq.f32.partialorder %v1321, 8.507059e+37
  %v1323 = vand.u32 %v1311, 2147483648
  %v1324 = vor.u32 1.1754944e-38, %v1323
  %v1325 = vsel %vm1322, %v1324, %v1320
  %v1326 = vmul.f32 1.0, %v1325
  %v1327 = vtanh.pop %v1028
  %v1328 = vxor.u32 %v1029, 2147483648
  %v1329 = vmul.f32 %v1328, 1.442695
  %v1330 = vpow.pop %v1329
  %v1331 = vadd.f32 %v1330, 1.0
  %v1332 = vrcp.pop %v1331
  %v1333 = vmul.f32 %v1331, %v1332
  %v1334 = vsub.f32 1.0, %v1333
  %v1335 = vmul.f32 %v1332, %v1334
  %v1336 = vadd.f32 %v1332, %v1335
  %vm1337 = vweird.f32 %v1331
  %vm1338 = vweird.f32 %v1332
  %vm1339 = vmor %vm1337, %vm1338
  %v1340 = vsel %vm1339, %v1332, %v1336
  %v1341 = vand.u32 2147483647, %v1331
  %vm1342 = vcmp.eq.f32.partialorder %v1341, 8.507059e+37
  %v1343 = vand.u32 %v1331, 2147483648
  %v1344 = vor.u32 1.1754944e-38, %v1343
  %v1345 = vsel %vm1342, %v1344, %v1340
  %v1346 = vmul.f32 1.0, %v1345
  %v1347 = vmul.f32 %v1326, 0.0
  %v1348 = vmul.f32 %v1307, %v1327
  %v1349 = vadd.f32 %v1347, %v1348
  %v1350 = vtanh.pop %v1349
  %v1351 = vmul.f32 %v1346, %v1350
  %v1352 = vxor.u32 %v1285, 2147483648
  %v1353 = vmul.f32 %v1352, 1.442695
  %v1354 = vpow.pop %v1353
  %v1355 = vadd.f32 %v1354, 1.0
  %v1356 = vrcp.pop %v1355
  %v1357 = vmul.f32 %v1355, %v1356
  %v1358 = vsub.f32 1.0, %v1357
  %v1359 = vmul.f32 %v1356, %v1358
  %v1360 = vadd.f32 %v1356, %v1359
  %vm1361 = vweird.f32 %v1355
  %vm1362 = vweird.f32 %v1356
  %vm1363 = vmor %vm1361, %vm1362
  %v1364 = vsel %vm1363, %v1356, %v1360
  %v1365 = vand.u32 2147483647, %v1355
  %vm1366 = vcmp.eq.f32.partialorder %v1365, 8.507059e+37
  %v1367 = vand.u32 %v1355, 2147483648
  %v1368 = vor.u32 1.1754944e-38, %v1367
  %v1369 = vsel %vm1366, %v1368, %v1364
  %v1370 = vmul.f32 1.0, %v1369
  %v1371 = vxor.u32 %v1286, 2147483648
  %v1372 = vmul.f32 %v1371, 1.442695
  %v1373 = vpow.pop %v1372
  %v1374 = vadd.f32 %v1373, 1.0
  %v1375 = vrcp.pop %v1374
  %v1376 = vmul.f32 %v1374, %v1375
  %v1377 = vsub.f32 1.0, %v1376
  %v1378 = vmul.f32 %v1375, %v1377
  %v1379 = vadd.f32 %v1375, %v1378
  %vm1380 = vweird.f32 %v1374
  %vm1381 = vweird.f32 %v1375
  %vm1382 = vmor %vm1380, %vm1381
  %v1383 = vsel %vm1382, %v1375, %v1379
  %v1384 = vand.u32 2147483647, %v1374
  %vm1385 = vcmp.eq.f32.partialorder %v1384, 8.507059e+37
  %v1386 = vand.u32 %v1374, 2147483648
  %v1387 = vor.u32 1.1754944e-38, %v1386
  %v1388 = vsel %vm1385, %v1387, %v1383
  %v1389 = vmul.f32 1.0, %v1388
  %v1390 = vtanh.pop %v1287
  %v1391 = vxor.u32 %v1288, 2147483648
  %v1392 = vmul.f32 %v1391, 1.442695
  %v1393 = vpow.pop %v1392
  %v1394 = vadd.f32 %v1393, 1.0
  %v1395 = vrcp.pop %v1394
  %v1396 = vmul.f32 %v1394, %v1395
  %v1397 = vsub.f32 1.0, %v1396
  %v1398 = vmul.f32 %v1395, %v1397
  %v1399 = vadd.f32 %v1395, %v1398
  %vm1400 = vweird.f32 %v1394
  %vm1401 = vweird.f32 %v1395
  %vm1402 = vmor %vm1400, %vm1401
  %v1403 = vsel %vm1402, %v1395, %v1399
  %v1404 = vand.u32 2147483647, %v1394
  %vm1405 = vcmp.eq.f32.partialorder %v1404, 8.507059e+37
  %v1406 = vand.u32 %v1394, 2147483648
  %v1407 = vor.u32 1.1754944e-38, %v1406
  %v1408 = vsel %vm1405, %v1407, %v1403
  %v1409 = vmul.f32 1.0, %v1408
  %v1410 = vmul.f32 %v1389, 0.0
  %v1411 = vmul.f32 %v1370, %v1390
  %v1412 = vadd.f32 %v1410, %v1411
  %v1413 = vtanh.pop %v1412
  %v1414 = vmul.f32 %v1409, %v1413
  %v1415 = vld [vmem:[#allocation4] sm:$0xff]
  %v1416 = vadd.f32 %v1415, %v1351
  %1417 = vst [vmem:[#allocation4] sm:$0xff] %v1416
  %v1418 = vld [vmem:[#allocation5] sm:$0xff]
  %v1419 = vadd.f32 %v1418, %v1414
  %1420 = vst [vmem:[#allocation5] sm:$0xff] %v1419
  %v1421 = vpack.c.bf16 %v1351, %v1351
  %v1422 = vpack.c.bf16 %v1414, %v1414
  %s1423 = scalar_lea.vmem [#allocation2], 16
  %v1424 = vld [vmem:[%s1423] sm:$0xff]
  %v1425 = vld [vmem:[%s1423 + $0x8] sm:$0xff]
  %v1426 = vunpack.c.l.bf16 %v1424
  %v1427 = vunpack.c.h.bf16 %v1424
  %v1428 = vunpack.c.l.bf16 %v1425
  %v1429 = vunpack.c.h.bf16 %v1425
  %v1430 = vld [vmem:[%s3] sm:$0xff]
  %v1431 = vld [vmem:[%s3 + $0x8] sm:$0xff]
  %v1432 = vld [vmem:[%s3 + $0x10] sm:$0xff]
  %v1433 = vld [vmem:[%s3 + $0x18] sm:$0xff]
  %v1434 = vld [vmem:[%s3 + $0x20] sm:$0xff]
  %v1435 = vld [vmem:[%s3 + $0x28] sm:$0xff]
  %v1436 = vld [vmem:[%s3 + $0x30] sm:$0xff]
  %v1437 = vld [vmem:[%s3 + $0x38] sm:$0xff]
  %v1438 = vld [vmem:[%s3 + $0x40] sm:$0xff]
  %v1439 = vld [vmem:[%s3 + $0x48] sm:$0xff]
  %v1440 = vld [vmem:[%s3 + $0x50] sm:$0xff]
  %v1441 = vld [vmem:[%s3 + $0x58] sm:$0xff]
  %v1442 = vld [vmem:[%s3 + $0x60] sm:$0xff]
  %v1443 = vld [vmem:[%s3 + $0x68] sm:$0xff]
  %v1444 = vld [vmem:[%s3 + $0x70] sm:$0xff]
  %v1445 = vld [vmem:[%s3 + $0x78] sm:$0xff]
  %v1446 = vld [vmem:[%s3 + $0x80] sm:$0xff]
  %v1447 = vld [vmem:[%s3 + $0x88] sm:$0xff]
  %v1448 = vld [vmem:[%s3 + $0x90] sm:$0xff]
  %v1449 = vld [vmem:[%s3 + $0x98] sm:$0xff]
  %v1450 = vld [vmem:[%s3 + $0xa0] sm:$0xff]
  %v1451 = vld [vmem:[%s3 + $0xa8] sm:$0xff]
  %v1452 = vld [vmem:[%s3 + $0xb0] sm:$0xff]
  %v1453 = vld [vmem:[%s3 + $0xb8] sm:$0xff]
  %v1454 = vld [vmem:[%s3 + $0xc0] sm:$0xff]
  %v1455 = vld [vmem:[%s3 + $0xc8] sm:$0xff]
  %v1456 = vld [vmem:[%s3 + $0xd0] sm:$0xff]
  %v1457 = vld [vmem:[%s3 + $0xd8] sm:$0xff]
  %v1458 = vld [vmem:[%s3 + $0xe0] sm:$0xff]
  %v1459 = vld [vmem:[%s3 + $0xe8] sm:$0xff]
  %v1460 = vld [vmem:[%s3 + $0xf0] sm:$0xff]
  %v1461 = vld [vmem:[%s3 + $0xf8] sm:$0xff]
  %v1494 = vunpack.c.l.b16 %v1430
  %v1495 = vunpack.c.h.b16 %v1430
  %v1496 = vunpack.c.l.b16 %v1431
  %v1497 = vunpack.c.h.b16 %v1431
  %v1498 = vunpack.c.l.b16 %v1432
  %v1499 = vunpack.c.h.b16 %v1432
  %v1500 = vunpack.c.l.b16 %v1433
  %v1501 = vunpack.c.h.b16 %v1433
  %v1502 = vunpack.c.l.b16 %v1434
  %v1503 = vunpack.c.h.b16 %v1434
  %v1504 = vunpack.c.l.b16 %v1435
  %v1505 = vunpack.c.h.b16 %v1435
  %v1506 = vunpack.c.l.b16 %v1436
  %v1507 = vunpack.c.h.b16 %v1436
  %v1508 = vunpack.c.l.b16 %v1437
  %v1509 = vunpack.c.h.b16 %v1437
  %v1510 = vunpack.c.l.b16 %v1438
  %v1511 = vunpack.c.h.b16 %v1438
  %v1512 = vunpack.c.l.b16 %v1439
  %v1513 = vunpack.c.h.b16 %v1439
  %v1514 = vunpack.c.l.b16 %v1440
  %v1515 = vunpack.c.h.b16 %v1440
  %v1516 = vunpack.c.l.b16 %v1441
  %v1517 = vunpack.c.h.b16 %v1441
  %v1518 = vunpack.c.l.b16 %v1442
  %v1519 = vunpack.c.h.b16 %v1442
  %v1520 = vunpack.c.l.b16 %v1443
  %v1521 = vunpack.c.h.b16 %v1443
  %v1522 = vunpack.c.l.b16 %v1444
  %v1523 = vunpack.c.h.b16 %v1444
  %v1524 = vunpack.c.l.b16 %v1445
  %v1525 = vunpack.c.h.b16 %v1445
  %v1526 = vunpack.c.l.b16 %v1446
  %v1527 = vunpack.c.h.b16 %v1446
  %v1528 = vunpack.c.l.b16 %v1447
  %v1529 = vunpack.c.h.b16 %v1447
  %v1530 = vunpack.c.l.b16 %v1448
  %v1531 = vunpack.c.h.b16 %v1448
  %v1532 = vunpack.c.l.b16 %v1449
  %v1533 = vunpack.c.h.b16 %v1449
  %v1534 = vunpack.c.l.b16 %v1450
  %v1535 = vunpack.c.h.b16 %v1450
  %v1536 = vunpack.c.l.b16 %v1451
  %v1537 = vunpack.c.h.b16 %v1451
  %v1538 = vunpack.c.l.b16 %v1452
  %v1539 = vunpack.c.h.b16 %v1452
  %v1540 = vunpack.c.l.b16 %v1453
  %v1541 = vunpack.c.h.b16 %v1453
  %v1542 = vunpack.c.l.b16 %v1454
  %v1543 = vunpack.c.h.b16 %v1454
  %v1544 = vunpack.c.l.b16 %v1455
  %v1545 = vunpack.c.h.b16 %v1455
  %v1546 = vunpack.c.l.b16 %v1456
  %v1547 = vunpack.c.h.b16 %v1456
  %v1548 = vunpack.c.l.b16 %v1457
  %v1549 = vunpack.c.h.b16 %v1457
  %v1550 = vunpack.c.l.b16 %v1458
  %v1551 = vunpack.c.h.b16 %v1458
  %v1552 = vunpack.c.l.b16 %v1459
  %v1553 = vunpack.c.h.b16 %v1459
  %v1554 = vunpack.c.l.b16 %v1460
  %v1555 = vunpack.c.h.b16 %v1460
  %v1556 = vunpack.c.l.b16 %v1461
  %v1557 = vunpack.c.h.b16 %v1461
  %v1558 = vpack.c.b16 %v1498, %v1494
  %v1559 = vpack.c.b16 %v1499, %v1495
  %v1560 = vpack.c.b16 %v1500, %v1496
  %v1561 = vpack.c.b16 %v1501, %v1497
  %v1562 = vpack.c.b16 %v1506, %v1502
  %v1563 = vpack.c.b16 %v1507, %v1503
  %v1564 = vpack.c.b16 %v1508, %v1504
  %v1565 = vpack.c.b16 %v1509, %v1505
  %v1566 = vpack.c.b16 %v1514, %v1510
  %v1567 = vpack.c.b16 %v1515, %v1511
  %v1568 = vpack.c.b16 %v1516, %v1512
  %v1569 = vpack.c.b16 %v1517, %v1513
  %v1570 = vpack.c.b16 %v1522, %v1518
  %v1571 = vpack.c.b16 %v1523, %v1519
  %v1572 = vpack.c.b16 %v1524, %v1520
  %v1573 = vpack.c.b16 %v1525, %v1521
  %v1574 = vpack.c.b16 %v1530, %v1526
  %v1575 = vpack.c.b16 %v1531, %v1527
  %v1576 = vpack.c.b16 %v1532, %v1528
  %v1577 = vpack.c.b16 %v1533, %v1529
  %v1578 = vpack.c.b16 %v1538, %v1534
  %v1579 = vpack.c.b16 %v1539, %v1535
  %v1580 = vpack.c.b16 %v1540, %v1536
  %v1581 = vpack.c.b16 %v1541, %v1537
  %v1582 = vpack.c.b16 %v1546, %v1542
  %v1583 = vpack.c.b16 %v1547, %v1543
  %v1584 = vpack.c.b16 %v1548, %v1544
  %v1585 = vpack.c.b16 %v1549, %v1545
  %v1586 = vpack.c.b16 %v1554, %v1550
  %v1587 = vpack.c.b16 %v1555, %v1551
  %v1588 = vpack.c.b16 %v1556, %v1552
  %v1589 = vpack.c.b16 %v1557, %v1553
  %1622 = vmatpush.bf16.msra.mxu0 %v1586
  %1623 = vmatpush.bf16.msra.mxu0 %v1582
  %1624 = vmatpush.bf16.msra.mxu0 %v1578
  %1625 = vmatpush.bf16.msra.mxu0 %v1574
  %1626 = vmatpush.bf16.msra.mxu0 %v1570
  %1627 = vmatpush.bf16.msra.mxu0 %v1566
  %1628 = vmatpush.bf16.msra.mxu0 %v1562
  %1629 = vmatpush.bf16.msra.mxu0 %v1558
  %1630 = vmatmul.bf16.gmra.mxu0 %v1421
  %v1631 = vpop.f32.mrf.mxu0
  %v1632 = vadd.f32 0.0, %v1631
  %v1633 = vpop.f32.mrf.mxu0
  %1634 = vdwg.mxu0
  %1635 = vmatpush.bf16.msra.mxu0 %v1587
  %1636 = vmatpush.bf16.msra.mxu0 %v1583
  %1637 = vmatpush.bf16.msra.mxu0 %v1579
  %1638 = vmatpush.bf16.msra.mxu0 %v1575
  %1639 = vmatpush.bf16.msra.mxu0 %v1571
  %1640 = vmatpush.bf16.msra.mxu0 %v1567
  %1641 = vmatpush.bf16.msra.mxu0 %v1563
  %1642 = vmatpush.bf16.msra.mxu0 %v1559
  %1643 = vmatmul.bf16.gmra.mxu0 %v1421
  %v1644 = vpop.f32.mrf.mxu0
  %v1645 = vadd.f32 0.0, %v1644
  %v1646 = vpop.f32.mrf.mxu0
  %1647 = vdwg.mxu0
  %1648 = vmatpush.bf16.msra.mxu0 %v1588
  %1649 = vmatpush.bf16.msra.mxu0 %v1584
  %1650 = vmatpush.bf16.msra.mxu0 %v1580
  %1651 = vmatpush.bf16.msra.mxu0 %v1576
  %1652 = vmatpush.bf16.msra.mxu0 %v1572
  %1653 = vmatpush.bf16.msra.mxu0 %v1568
  %1654 = vmatpush.bf16.msra.mxu0 %v1564
  %1655 = vmatpush.bf16.msra.mxu0 %v1560
  %1656 = vmatmul.bf16.gmra.mxu0 %v1421
  %v1657 = vpop.f32.mrf.mxu0
  %v1658 = vadd.f32 0.0, %v1657
  %v1659 = vpop.f32.mrf.mxu0
  %1660 = vdwg.mxu0
  %1661 = vmatpush.bf16.msra.mxu0 %v1589
  %1662 = vmatpush.bf16.msra.mxu0 %v1585
  %1663 = vmatpush.bf16.msra.mxu0 %v1581
  %1664 = vmatpush.bf16.msra.mxu0 %v1577
  %1665 = vmatpush.bf16.msra.mxu0 %v1573
  %1666 = vmatpush.bf16.msra.mxu0 %v1569
  %1667 = vmatpush.bf16.msra.mxu0 %v1565
  %1668 = vmatpush.bf16.msra.mxu0 %v1561
  %1669 = vmatmul.bf16.gmra.mxu0 %v1421
  %v1670 = vpop.f32.mrf.mxu0
  %v1671 = vadd.f32 0.0, %v1670
  %v1672 = vpop.f32.mrf.mxu0
  %1673 = vdwg.mxu0
  %v1674 = vadd.f32 %v1426, %v1632
  %v1675 = vadd.f32 %v1427, %v1645
  %v1676 = vadd.f32 %v1428, %v1658
  %v1677 = vadd.f32 %v1429, %v1671
  %v1678 = vadd.f32 %v1674, %v752
  %v1679 = vadd.f32 %v1675, %v753
  %v1680 = vadd.f32 %v1676, %v754
  %v1681 = vadd.f32 %v1677, %v755
  %s1682 = scalar_lea.vmem [#allocation3], 96
  %v1683 = vld [vmem:[%s1682] sm:$0xff]
  %v1684 = vld [vmem:[%s1682 + $0x8] sm:$0xff]
  %v1685 = vunpack.c.l.bf16 %v1683
  %v1686 = vunpack.c.h.bf16 %v1683
  %v1687 = vunpack.c.l.bf16 %v1684
  %v1688 = vunpack.c.h.bf16 %v1684
  %v1689 = vld [vmem:[%s4] sm:$0xff]
  %v1690 = vld [vmem:[%s4 + $0x8] sm:$0xff]
  %v1691 = vld [vmem:[%s4 + $0x10] sm:$0xff]
  %v1692 = vld [vmem:[%s4 + $0x18] sm:$0xff]
  %v1693 = vld [vmem:[%s4 + $0x20] sm:$0xff]
  %v1694 = vld [vmem:[%s4 + $0x28] sm:$0xff]
  %v1695 = vld [vmem:[%s4 + $0x30] sm:$0xff]
  %v1696 = vld [vmem:[%s4 + $0x38] sm:$0xff]
  %v1697 = vld [vmem:[%s4 + $0x40] sm:$0xff]
  %v1698 = vld [vmem:[%s4 + $0x48] sm:$0xff]
  %v1699 = vld [vmem:[%s4 + $0x50] sm:$0xff]
  %v1700 = vld [vmem:[%s4 + $0x58] sm:$0xff]
  %v1701 = vld [vmem:[%s4 + $0x60] sm:$0xff]
  %v1702 = vld [vmem:[%s4 + $0x68] sm:$0xff]
  %v1703 = vld [vmem:[%s4 + $0x70] sm:$0xff]
  %v1704 = vld [vmem:[%s4 + $0x78] sm:$0xff]
  %v1705 = vld [vmem:[%s4 + $0x80] sm:$0xff]
  %v1706 = vld [vmem:[%s4 + $0x88] sm:$0xff]
  %v1707 = vld [vmem:[%s4 + $0x90] sm:$0xff]
  %v1708 = vld [vmem:[%s4 + $0x98] sm:$0xff]
  %v1709 = vld [vmem:[%s4 + $0xa0] sm:$0xff]
  %v1710 = vld [vmem:[%s4 + $0xa8] sm:$0xff]
  %v1711 = vld [vmem:[%s4 + $0xb0] sm:$0xff]
  %v1712 = vld [vmem:[%s4 + $0xb8] sm:$0xff]
  %v1713 = vld [vmem:[%s4 + $0xc0] sm:$0xff]
  %v1714 = vld [vmem:[%s4 + $0xc8] sm:$0xff]
  %v1715 = vld [vmem:[%s4 + $0xd0] sm:$0xff]
  %v1716 = vld [vmem:[%s4 + $0xd8] sm:$0xff]
  %v1717 = vld [vmem:[%s4 + $0xe0] sm:$0xff]
  %v1718 = vld [vmem:[%s4 + $0xe8] sm:$0xff]
  %v1719 = vld [vmem:[%s4 + $0xf0] sm:$0xff]
  %v1720 = vld [vmem:[%s4 + $0xf8] sm:$0xff]
  %v1753 = vunpack.c.l.b16 %v1689
  %v1754 = vunpack.c.h.b16 %v1689
  %v1755 = vunpack.c.l.b16 %v1690
  %v1756 = vunpack.c.h.b16 %v1690
  %v1757 = vunpack.c.l.b16 %v1691
  %v1758 = vunpack.c.h.b16 %v1691
  %v1759 = vunpack.c.l.b16 %v1692
  %v1760 = vunpack.c.h.b16 %v1692
  %v1761 = vunpack.c.l.b16 %v1693
  %v1762 = vunpack.c.h.b16 %v1693
  %v1763 = vunpack.c.l.b16 %v1694
  %v1764 = vunpack.c.h.b16 %v1694
  %v1765 = vunpack.c.l.b16 %v1695
  %v1766 = vunpack.c.h.b16 %v1695
  %v1767 = vunpack.c.l.b16 %v1696
  %v1768 = vunpack.c.h.b16 %v1696
  %v1769 = vunpack.c.l.b16 %v1697
  %v1770 = vunpack.c.h.b16 %v1697
  %v1771 = vunpack.c.l.b16 %v1698
  %v1772 = vunpack.c.h.b16 %v1698
  %v1773 = vunpack.c.l.b16 %v1699
  %v1774 = vunpack.c.h.b16 %v1699
  %v1775 = vunpack.c.l.b16 %v1700
  %v1776 = vunpack.c.h.b16 %v1700
  %v1777 = vunpack.c.l.b16 %v1701
  %v1778 = vunpack.c.h.b16 %v1701
  %v1779 = vunpack.c.l.b16 %v1702
  %v1780 = vunpack.c.h.b16 %v1702
  %v1781 = vunpack.c.l.b16 %v1703
  %v1782 = vunpack.c.h.b16 %v1703
  %v1783 = vunpack.c.l.b16 %v1704
  %v1784 = vunpack.c.h.b16 %v1704
  %v1785 = vunpack.c.l.b16 %v1705
  %v1786 = vunpack.c.h.b16 %v1705
  %v1787 = vunpack.c.l.b16 %v1706
  %v1788 = vunpack.c.h.b16 %v1706
  %v1789 = vunpack.c.l.b16 %v1707
  %v1790 = vunpack.c.h.b16 %v1707
  %v1791 = vunpack.c.l.b16 %v1708
  %v1792 = vunpack.c.h.b16 %v1708
  %v1793 = vunpack.c.l.b16 %v1709
  %v1794 = vunpack.c.h.b16 %v1709
  %v1795 = vunpack.c.l.b16 %v1710
  %v1796 = vunpack.c.h.b16 %v1710
  %v1797 = vunpack.c.l.b16 %v1711
  %v1798 = vunpack.c.h.b16 %v1711
  %v1799 = vunpack.c.l.b16 %v1712
  %v1800 = vunpack.c.h.b16 %v1712
  %v1801 = vunpack.c.l.b16 %v1713
  %v1802 = vunpack.c.h.b16 %v1713
  %v1803 = vunpack.c.l.b16 %v1714
  %v1804 = vunpack.c.h.b16 %v1714
  %v1805 = vunpack.c.l.b16 %v1715
  %v1806 = vunpack.c.h.b16 %v1715
  %v1807 = vunpack.c.l.b16 %v1716
  %v1808 = vunpack.c.h.b16 %v1716
  %v1809 = vunpack.c.l.b16 %v1717
  %v1810 = vunpack.c.h.b16 %v1717
  %v1811 = vunpack.c.l.b16 %v1718
  %v1812 = vunpack.c.h.b16 %v1718
  %v1813 = vunpack.c.l.b16 %v1719
  %v1814 = vunpack.c.h.b16 %v1719
  %v1815 = vunpack.c.l.b16 %v1720
  %v1816 = vunpack.c.h.b16 %v1720
  %v1817 = vpack.c.b16 %v1757, %v1753
  %v1818 = vpack.c.b16 %v1758, %v1754
  %v1819 = vpack.c.b16 %v1759, %v1755
  %v1820 = vpack.c.b16 %v1760, %v1756
  %v1821 = vpack.c.b16 %v1765, %v1761
  %v1822 = vpack.c.b16 %v1766, %v1762
  %v1823 = vpack.c.b16 %v1767, %v1763
  %v1824 = vpack.c.b16 %v1768, %v1764
  %v1825 = vpack.c.b16 %v1773, %v1769
  %v1826 = vpack.c.b16 %v1774, %v1770
  %v1827 = vpack.c.b16 %v1775, %v1771
  %v1828 = vpack.c.b16 %v1776, %v1772
  %v1829 = vpack.c.b16 %v1781, %v1777
  %v1830 = vpack.c.b16 %v1782, %v1778
  %v1831 = vpack.c.b16 %v1783, %v1779
  %v1832 = vpack.c.b16 %v1784, %v1780
  %v1833 = vpack.c.b16 %v1789, %v1785
  %v1834 = vpack.c.b16 %v1790, %v1786
  %v1835 = vpack.c.b16 %v1791, %v1787
  %v1836 = vpack.c.b16 %v1792, %v1788
  %v1837 = vpack.c.b16 %v1797, %v1793
  %v1838 = vpack.c.b16 %v1798, %v1794
  %v1839 = vpack.c.b16 %v1799, %v1795
  %v1840 = vpack.c.b16 %v1800, %v1796
  %v1841 = vpack.c.b16 %v1805, %v1801
  %v1842 = vpack.c.b16 %v1806, %v1802
  %v1843 = vpack.c.b16 %v1807, %v1803
  %v1844 = vpack.c.b16 %v1808, %v1804
  %v1845 = vpack.c.b16 %v1813, %v1809
  %v1846 = vpack.c.b16 %v1814, %v1810
  %v1847 = vpack.c.b16 %v1815, %v1811
  %v1848 = vpack.c.b16 %v1816, %v1812
  %1881 = vmatpush.bf16.msra.mxu0 %v1845
  %1882 = vmatpush.bf16.msra.mxu0 %v1841
  %1883 = vmatpush.bf16.msra.mxu0 %v1837
  %1884 = vmatpush.bf16.msra.mxu0 %v1833
  %1885 = vmatpush.bf16.msra.mxu0 %v1829
  %1886 = vmatpush.bf16.msra.mxu0 %v1825
  %1887 = vmatpush.bf16.msra.mxu0 %v1821
  %1888 = vmatpush.bf16.msra.mxu0 %v1817
  %1889 = vmatmul.bf16.gmra.mxu0 %v1422
  %v1890 = vpop.f32.mrf.mxu0
  %v1891 = vadd.f32 0.0, %v1890
  %v1892 = vpop.f32.mrf.mxu0
  %1893 = vdwg.mxu0
  %1894 = vmatpush.bf16.msra.mxu0 %v1846
  %1895 = vmatpush.bf16.msra.mxu0 %v1842
  %1896 = vmatpush.bf16.msra.mxu0 %v1838
  %1897 = vmatpush.bf16.msra.mxu0 %v1834
  %1898 = vmatpush.bf16.msra.mxu0 %v1830
  %1899 = vmatpush.bf16.msra.mxu0 %v1826
  %1900 = vmatpush.bf16.msra.mxu0 %v1822
  %1901 = vmatpush.bf16.msra.mxu0 %v1818
  %1902 = vmatmul.bf16.gmra.mxu0 %v1422
  %v1903 = vpop.f32.mrf.mxu0
  %v1904 = vadd.f32 0.0, %v1903
  %v1905 = vpop.f32.mrf.mxu0
  %1906 = vdwg.mxu0
  %1907 = vmatpush.bf16.msra.mxu0 %v1847
  %1908 = vmatpush.bf16.msra.mxu0 %v1843
  %1909 = vmatpush.bf16.msra.mxu0 %v1839
  %1910 = vmatpush.bf16.msra.mxu0 %v1835
  %1911 = vmatpush.bf16.msra.mxu0 %v1831
  %1912 = vmatpush.bf16.msra.mxu0 %v1827
  %1913 = vmatpush.bf16.msra.mxu0 %v1823
  %1914 = vmatpush.bf16.msra.mxu0 %v1819
  %1915 = vmatmul.bf16.gmra.mxu0 %v1422
  %v1916 = vpop.f32.mrf.mxu0
  %v1917 = vadd.f32 0.0, %v1916
  %v1918 = vpop.f32.mrf.mxu0
  %1919 = vdwg.mxu0
  %1920 = vmatpush.bf16.msra.mxu0 %v1848
  %1921 = vmatpush.bf16.msra.mxu0 %v1844
  %1922 = vmatpush.bf16.msra.mxu0 %v1840
  %1923 = vmatpush.bf16.msra.mxu0 %v1836
  %1924 = vmatpush.bf16.msra.mxu0 %v1832
  %1925 = vmatpush.bf16.msra.mxu0 %v1828
  %1926 = vmatpush.bf16.msra.mxu0 %v1824
  %1927 = vmatpush.bf16.msra.mxu0 %v1820
  %1928 = vmatmul.bf16.gmra.mxu0 %v1422
  %v1929 = vpop.f32.mrf.mxu0
  %v1930 = vadd.f32 0.0, %v1929
  %v1931 = vpop.f32.mrf.mxu0
  %1932 = vdwg.mxu0
  %v1933 = vadd.f32 %v1685, %v1891
  %v1934 = vadd.f32 %v1686, %v1904
  %v1935 = vadd.f32 %v1687, %v1917
  %v1936 = vadd.f32 %v1688, %v1930
  %v1937 = vadd.f32 %v1933, %v762
  %v1938 = vadd.f32 %v1934, %v763
  %v1939 = vadd.f32 %v1935, %v764
  %v1940 = vadd.f32 %v1936, %v765
  %v1941 = vxor.u32 %v1678, 2147483648
  %v1942 = vmul.f32 %v1941, 1.442695
  %v1943 = vpow.pop %v1942
  %v1944 = vadd.f32 %v1943, 1.0
  %v1945 = vrcp.pop %v1944
  %v1946 = vmul.f32 %v1944, %v1945
  %v1947 = vsub.f32 1.0, %v1946
  %v1948 = vmul.f32 %v1945, %v1947
  %v1949 = vadd.f32 %v1945, %v1948
  %vm1950 = vweird.f32 %v1944
  %vm1951 = vweird.f32 %v1945
  %vm1952 = vmor %vm1950, %vm1951
  %v1953 = vsel %vm1952, %v1945, %v1949
  %v1954 = vand.u32 2147483647, %v1944
  %vm1955 = vcmp.eq.f32.partialorder %v1954, 8.507059e+37
  %v1956 = vand.u32 %v1944, 2147483648
  %v1957 = vor.u32 1.1754944e-38, %v1956
  %v1958 = vsel %vm1955, %v1957, %v1953
  %v1959 = vmul.f32 1.0, %v1958
  %v1960 = vxor.u32 %v1679, 2147483648
  %v1961 = vmul.f32 %v1960, 1.442695
  %v1962 = vpow.pop %v1961
  %v1963 = vadd.f32 %v1962, 1.0
  %v1964 = vrcp.pop %v1963
  %v1965 = vmul.f32 %v1963, %v1964
  %v1966 = vsub.f32 1.0, %v1965
  %v1967 = vmul.f32 %v1964, %v1966
  %v1968 = vadd.f32 %v1964, %v1967
  %vm1969 = vweird.f32 %v1963
  %vm1970 = vweird.f32 %v1964
  %vm1971 = vmor %vm1969, %vm1970
  %v1972 = vsel %vm1971, %v1964, %v1968
  %v1973 = vand.u32 2147483647, %v1963
  %vm1974 = vcmp.eq.f32.partialorder %v1973, 8.507059e+37
  %v1975 = vand.u32 %v1963, 2147483648
  %v1976 = vor.u32 1.1754944e-38, %v1975
  %v1977 = vsel %vm1974, %v1976, %v1972
  %v1978 = vmul.f32 1.0, %v1977
  %v1979 = vtanh.pop %v1680
  %v1980 = vxor.u32 %v1681, 2147483648
  %v1981 = vmul.f32 %v1980, 1.442695
  %v1982 = vpow.pop %v1981
  %v1983 = vadd.f32 %v1982, 1.0
  %v1984 = vrcp.pop %v1983
  %v1985 = vmul.f32 %v1983, %v1984
  %v1986 = vsub.f32 1.0, %v1985
  %v1987 = vmul.f32 %v1984, %v1986
  %v1988 = vadd.f32 %v1984, %v1987
  %vm1989 = vweird.f32 %v1983
  %vm1990 = vweird.f32 %v1984
  %vm1991 = vmor %vm1989, %vm1990
  %v1992 = vsel %vm1991, %v1984, %v1988
  %v1993 = vand.u32 2147483647, %v1983
  %vm1994 = vcmp.eq.f32.partialorder %v1993, 8.507059e+37
  %v1995 = vand.u32 %v1983, 2147483648
  %v1996 = vor.u32 1.1754944e-38, %v1995
  %v1997 = vsel %vm1994, %v1996, %v1992
  %v1998 = vmul.f32 1.0, %v1997
  %v1999 = vmul.f32 %v1978, %v1349
  %v2000 = vmul.f32 %v1959, %v1979
  %v2001 = vadd.f32 %v1999, %v2000
  %v2002 = vtanh.pop %v2001
  %v2003 = vmul.f32 %v1998, %v2002
  %v2004 = vxor.u32 %v1937, 2147483648
  %v2005 = vmul.f32 %v2004, 1.442695
  %v2006 = vpow.pop %v2005
  %v2007 = vadd.f32 %v2006, 1.0
  %v2008 = vrcp.pop %v2007
  %v2009 = vmul.f32 %v2007, %v2008
  %v2010 = vsub.f32 1.0, %v2009
  %v2011 = vmul.f32 %v2008, %v2010
  %v2012 = vadd.f32 %v2008, %v2011
  %vm2013 = vweird.f32 %v2007
  %vm2014 = vweird.f32 %v2008
  %vm2015 = vmor %vm2013, %vm2014
  %v2016 = vsel %vm2015, %v2008, %v2012
  %v2017 = vand.u32 2147483647, %v2007
  %vm2018 = vcmp.eq.f32.partialorder %v2017, 8.507059e+37
  %v2019 = vand.u32 %v2007, 2147483648
  %v2020 = vor.u32 1.1754944e-38, %v2019
  %v2021 = vsel %vm2018, %v2020, %v2016
  %v2022 = vmul.f32 1.0, %v2021
  %v2023 = vxor.u32 %v1938, 2147483648
  %v2024 = vmul.f32 %v2023, 1.442695
  %v2025 = vpow.pop %v2024
  %v2026 = vadd.f32 %v2025, 1.0
  %v2027 = vrcp.pop %v2026
  %v2028 = vmul.f32 %v2026, %v2027
  %v2029 = vsub.f32 1.0, %v2028
  %v2030 = vmul.f32 %v2027, %v2029
  %v2031 = vadd.f32 %v2027, %v2030
  %vm2032 = vweird.f32 %v2026
  %vm2033 = vweird.f32 %v2027
  %vm2034 = vmor %vm2032, %vm2033
  %v2035 = vsel %vm2034, %v2027, %v2031
  %v2036 = vand.u32 2147483647, %v2026
  %vm2037 = vcmp.eq.f32.partialorder %v2036, 8.507059e+37
  %v2038 = vand.u32 %v2026, 2147483648
  %v2039 = vor.u32 1.1754944e-38, %v2038
  %v2040 = vsel %vm2037, %v2039, %v2035
  %v2041 = vmul.f32 1.0, %v2040
  %v2042 = vtanh.pop %v1939
  %v2043 = vxor.u32 %v1940, 2147483648
  %v2044 = vmul.f32 %v2043, 1.442695
  %v2045 = vpow.pop %v2044
  %v2046 = vadd.f32 %v2045, 1.0
  %v2047 = vrcp.pop %v2046
  %v2048 = vmul.f32 %v2046, %v2047
  %v2049 = vsub.f32 1.0, %v2048
  %v2050 = vmul.f32 %v2047, %v2049
  %v2051 = vadd.f32 %v2047, %v2050
  %vm2052 = vweird.f32 %v2046
  %vm2053 = vweird.f32 %v2047
  %vm2054 = vmor %vm2052, %vm2053
  %v2055 = vsel %vm2054, %v2047, %v2051
  %v2056 = vand.u32 2147483647, %v2046
  %vm2057 = vcmp.eq.f32.partialorder %v2056, 8.507059e+37
  %v2058 = vand.u32 %v2046, 2147483648
  %v2059 = vor.u32 1.1754944e-38, %v2058
  %v2060 = vsel %vm2057, %v2059, %v2055
  %v2061 = vmul.f32 1.0, %v2060
  %v2062 = vmul.f32 %v2041, %v1412
  %v2063 = vmul.f32 %v2022, %v2042
  %v2064 = vadd.f32 %v2062, %v2063
  %v2065 = vtanh.pop %v2064
  %v2066 = vmul.f32 %v2061, %v2065
  %v2067 = vld [vmem:[#allocation4] sm:$0xff]
  %v2068 = vadd.f32 %v2067, %v2003
  %2069 = vst [vmem:[#allocation4] sm:$0xff] %v2068
  %v2070 = vld [vmem:[#allocation5] sm:$0xff]
  %v2071 = vadd.f32 %v2070, %v2066
  %2072 = vst [vmem:[#allocation5] sm:$0xff] %v2071
  %v2073 = vpack.c.bf16 %v2003, %v2003
  %v2074 = vpack.c.bf16 %v2066, %v2066
  %s2075 = scalar_lea.vmem [#allocation2], 32
  %v2076 = vld [vmem:[%s2075] sm:$0xff]
  %v2077 = vld [vmem:[%s2075 + $0x8] sm:$0xff]
  %v2078 = vunpack.c.l.bf16 %v2076
  %v2079 = vunpack.c.h.bf16 %v2076
  %v2080 = vunpack.c.l.bf16 %v2077
  %v2081 = vunpack.c.h.bf16 %v2077
  %v2082 = vld [vmem:[%s3] sm:$0xff]
  %v2083 = vld [vmem:[%s3 + $0x8] sm:$0xff]
  %v2084 = vld [vmem:[%s3 + $0x10] sm:$0xff]
  %v2085 = vld [vmem:[%s3 + $0x18] sm:$0xff]
  %v2086 = vld [vmem:[%s3 + $0x20] sm:$0xff]
  %v2087 = vld [vmem:[%s3 + $0x28] sm:$0xff]
  %v2088 = vld [vmem:[%s3 + $0x30] sm:$0xff]
  %v2089 = vld [vmem:[%s3 + $0x38] sm:$0xff]
  %v2090 = vld [vmem:[%s3 + $0x40] sm:$0xff]
  %v2091 = vld [vmem:[%s3 + $0x48] sm:$0xff]
  %v2092 = vld [vmem:[%s3 + $0x50] sm:$0xff]
  %v2093 = vld [vmem:[%s3 + $0x58] sm:$0xff]
  %v2094 = vld [vmem:[%s3 + $0x60] sm:$0xff]
  %v2095 = vld [vmem:[%s3 + $0x68] sm:$0xff]
  %v2096 = vld [vmem:[%s3 + $0x70] sm:$0xff]
  %v2097 = vld [vmem:[%s3 + $0x78] sm:$0xff]
  %v2098 = vld [vmem:[%s3 + $0x80] sm:$0xff]
  %v2099 = vld [vmem:[%s3 + $0x88] sm:$0xff]
  %v2100 = vld [vmem:[%s3 + $0x90] sm:$0xff]
  %v2101 = vld [vmem:[%s3 + $0x98] sm:$0xff]
  %v2102 = vld [vmem:[%s3 + $0xa0] sm:$0xff]
  %v2103 = vld [vmem:[%s3 + $0xa8] sm:$0xff]
  %v2104 = vld [vmem:[%s3 + $0xb0] sm:$0xff]
  %v2105 = vld [vmem:[%s3 + $0xb8] sm:$0xff]
  %v2106 = vld [vmem:[%s3 + $0xc0] sm:$0xff]
  %v2107 = vld [vmem:[%s3 + $0xc8] sm:$0xff]
  %v2108 = vld [vmem:[%s3 + $0xd0] sm:$0xff]
  %v2109 = vld [vmem:[%s3 + $0xd8] sm:$0xff]
  %v2110 = vld [vmem:[%s3 + $0xe0] sm:$0xff]
  %v2111 = vld [vmem:[%s3 + $0xe8] sm:$0xff]
  %v2112 = vld [vmem:[%s3 + $0xf0] sm:$0xff]
  %v2113 = vld [vmem:[%s3 + $0xf8] sm:$0xff]
  %v2146 = vunpack.c.l.b16 %v2082
  %v2147 = vunpack.c.h.b16 %v2082
  %v2148 = vunpack.c.l.b16 %v2083
  %v2149 = vunpack.c.h.b16 %v2083
  %v2150 = vunpack.c.l.b16 %v2084
  %v2151 = vunpack.c.h.b16 %v2084
  %v2152 = vunpack.c.l.b16 %v2085
  %v2153 = vunpack.c.h.b16 %v2085
  %v2154 = vunpack.c.l.b16 %v2086
  %v2155 = vunpack.c.h.b16 %v2086
  %v2156 = vunpack.c.l.b16 %v2087
  %v2157 = vunpack.c.h.b16 %v2087
  %v2158 = vunpack.c.l.b16 %v2088
  %v2159 = vunpack.c.h.b16 %v2088
  %v2160 = vunpack.c.l.b16 %v2089
  %v2161 = vunpack.c.h.b16 %v2089
  %v2162 = vunpack.c.l.b16 %v2090
  %v2163 = vunpack.c.h.b16 %v2090
  %v2164 = vunpack.c.l.b16 %v2091
  %v2165 = vunpack.c.h.b16 %v2091
  %v2166 = vunpack.c.l.b16 %v2092
  %v2167 = vunpack.c.h.b16 %v2092
  %v2168 = vunpack.c.l.b16 %v2093
  %v2169 = vunpack.c.h.b16 %v2093
  %v2170 = vunpack.c.l.b16 %v2094
  %v2171 = vunpack.c.h.b16 %v2094
  %v2172 = vunpack.c.l.b16 %v2095
  %v2173 = vunpack.c.h.b16 %v2095
  %v2174 = vunpack.c.l.b16 %v2096
  %v2175 = vunpack.c.h.b16 %v2096
  %v2176 = vunpack.c.l.b16 %v2097
  %v2177 = vunpack.c.h.b16 %v2097
  %v2178 = vunpack.c.l.b16 %v2098
  %v2179 = vunpack.c.h.b16 %v2098
  %v2180 = vunpack.c.l.b16 %v2099
  %v2181 = vunpack.c.h.b16 %v2099
  %v2182 = vunpack.c.l.b16 %v2100
  %v2183 = vunpack.c.h.b16 %v2100
  %v2184 = vunpack.c.l.b16 %v2101
  %v2185 = vunpack.c.h.b16 %v2101
  %v2186 = vunpack.c.l.b16 %v2102
  %v2187 = vunpack.c.h.b16 %v2102
  %v2188 = vunpack.c.l.b16 %v2103
  %v2189 = vunpack.c.h.b16 %v2103
  %v2190 = vunpack.c.l.b16 %v2104
  %v2191 = vunpack.c.h.b16 %v2104
  %v2192 = vunpack.c.l.b16 %v2105
  %v2193 = vunpack.c.h.b16 %v2105
  %v2194 = vunpack.c.l.b16 %v2106
  %v2195 = vunpack.c.h.b16 %v2106
  %v2196 = vunpack.c.l.b16 %v2107
  %v2197 = vunpack.c.h.b16 %v2107
  %v2198 = vunpack.c.l.b16 %v2108
  %v2199 = vunpack.c.h.b16 %v2108
  %v2200 = vunpack.c.l.b16 %v2109
  %v2201 = vunpack.c.h.b16 %v2109
  %v2202 = vunpack.c.l.b16 %v2110
  %v2203 = vunpack.c.h.b16 %v2110
  %v2204 = vunpack.c.l.b16 %v2111
  %v2205 = vunpack.c.h.b16 %v2111
  %v2206 = vunpack.c.l.b16 %v2112
  %v2207 = vunpack.c.h.b16 %v2112
  %v2208 = vunpack.c.l.b16 %v2113
  %v2209 = vunpack.c.h.b16 %v2113
  %v2210 = vpack.c.b16 %v2150, %v2146
  %v2211 = vpack.c.b16 %v2151, %v2147
  %v2212 = vpack.c.b16 %v2152, %v2148
  %v2213 = vpack.c.b16 %v2153, %v2149
  %v2214 = vpack.c.b16 %v2158, %v2154
  %v2215 = vpack.c.b16 %v2159, %v2155
  %v2216 = vpack.c.b16 %v2160, %v2156
  %v2217 = vpack.c.b16 %v2161, %v2157
  %v2218 = vpack.c.b16 %v2166, %v2162
  %v2219 = vpack.c.b16 %v2167, %v2163
  %v2220 = vpack.c.b16 %v2168, %v2164
  %v2221 = vpack.c.b16 %v2169, %v2165
  %v2222 = vpack.c.b16 %v2174, %v2170
  %v2223 = vpack.c.b16 %v2175, %v2171
  %v2224 = vpack.c.b16 %v2176, %v2172
  %v2225 = vpack.c.b16 %v2177, %v2173
  %v2226 = vpack.c.b16 %v2182, %v2178
  %v2227 = vpack.c.b16 %v2183, %v2179
  %v2228 = vpack.c.b16 %v2184, %v2180
  %v2229 = vpack.c.b16 %v2185, %v2181
  %v2230 = vpack.c.b16 %v2190, %v2186
  %v2231 = vpack.c.b16 %v2191, %v2187
  %v2232 = vpack.c.b16 %v2192, %v2188
  %v2233 = vpack.c.b16 %v2193, %v2189
  %v2234 = vpack.c.b16 %v2198, %v2194
  %v2235 = vpack.c.b16 %v2199, %v2195
  %v2236 = vpack.c.b16 %v2200, %v2196
  %v2237 = vpack.c.b16 %v2201, %v2197
  %v2238 = vpack.c.b16 %v2206, %v2202
  %v2239 = vpack.c.b16 %v2207, %v2203
  %v2240 = vpack.c.b16 %v2208, %v2204
  %v2241 = vpack.c.b16 %v2209, %v2205
  %2274 = vmatpush.bf16.msra.mxu0 %v2238
  %2275 = vmatpush.bf16.msra.mxu0 %v2234
  %2276 = vmatpush.bf16.msra.mxu0 %v2230
  %2277 = vmatpush.bf16.msra.mxu0 %v2226
  %2278 = vmatpush.bf16.msra.mxu0 %v2222
  %2279 = vmatpush.bf16.msra.mxu0 %v2218
  %2280 = vmatpush.bf16.msra.mxu0 %v2214
  %2281 = vmatpush.bf16.msra.mxu0 %v2210
  %2282 = vmatmul.bf16.gmra.mxu0 %v2073
  %v2283 = vpop.f32.mrf.mxu0
  %v2284 = vadd.f32 0.0, %v2283
  %v2285 = vpop.f32.mrf.mxu0
  %2286 = vdwg.mxu0
  %2287 = vmatpush.bf16.msra.mxu0 %v2239
  %2288 = vmatpush.bf16.msra.mxu0 %v2235
  %2289 = vmatpush.bf16.msra.mxu0 %v2231
  %2290 = vmatpush.bf16.msra.mxu0 %v2227
  %2291 = vmatpush.bf16.msra.mxu0 %v2223
  %2292 = vmatpush.bf16.msra.mxu0 %v2219
  %2293 = vmatpush.bf16.msra.mxu0 %v2215
  %2294 = vmatpush.bf16.msra.mxu0 %v2211
  %2295 = vmatmul.bf16.gmra.mxu0 %v2073
  %v2296 = vpop.f32.mrf.mxu0
  %v2297 = vadd.f32 0.0, %v2296
  %v2298 = vpop.f32.mrf.mxu0
  %2299 = vdwg.mxu0
  %2300 = vmatpush.bf16.msra.mxu0 %v2240
  %2301 = vmatpush.bf16.msra.mxu0 %v2236
  %2302 = vmatpush.bf16.msra.mxu0 %v2232
  %2303 = vmatpush.bf16.msra.mxu0 %v2228
  %2304 = vmatpush.bf16.msra.mxu0 %v2224
  %2305 = vmatpush.bf16.msra.mxu0 %v2220
  %2306 = vmatpush.bf16.msra.mxu0 %v2216
  %2307 = vmatpush.bf16.msra.mxu0 %v2212
  %2308 = vmatmul.bf16.gmra.mxu0 %v2073
  %v2309 = vpop.f32.mrf.mxu0
  %v2310 = vadd.f32 0.0, %v2309
  %v2311 = vpop.f32.mrf.mxu0
  %2312 = vdwg.mxu0
  %2313 = vmatpush.bf16.msra.mxu0 %v2241
  %2314 = vmatpush.bf16.msra.mxu0 %v2237
  %2315 = vmatpush.bf16.msra.mxu0 %v2233
  %2316 = vmatpush.bf16.msra.mxu0 %v2229
  %2317 = vmatpush.bf16.msra.mxu0 %v2225
  %2318 = vmatpush.bf16.msra.mxu0 %v2221
  %2319 = vmatpush.bf16.msra.mxu0 %v2217
  %2320 = vmatpush.bf16.msra.mxu0 %v2213
  %2321 = vmatmul.bf16.gmra.mxu0 %v2073
  %v2322 = vpop.f32.mrf.mxu0
  %v2323 = vadd.f32 0.0, %v2322
  %v2324 = vpop.f32.mrf.mxu0
  %2325 = vdwg.mxu0
  %v2326 = vadd.f32 %v2078, %v2284
  %v2327 = vadd.f32 %v2079, %v2297
  %v2328 = vadd.f32 %v2080, %v2310
  %v2329 = vadd.f32 %v2081, %v2323
  %v2330 = vadd.f32 %v2326, %v752
  %v2331 = vadd.f32 %v2327, %v753
  %v2332 = vadd.f32 %v2328, %v754
  %v2333 = vadd.f32 %v2329, %v755
  %s2334 = scalar_lea.vmem [#allocation3], 80
  %v2335 = vld [vmem:[%s2334] sm:$0xff]
  %v2336 = vld [vmem:[%s2334 + $0x8] sm:$0xff]
  %v2337 = vunpack.c.l.bf16 %v2335
  %v2338 = vunpack.c.h.bf16 %v2335
  %v2339 = vunpack.c.l.bf16 %v2336
  %v2340 = vunpack.c.h.bf16 %v2336
  %v2341 = vld [vmem:[%s4] sm:$0xff]
  %v2342 = vld [vmem:[%s4 + $0x8] sm:$0xff]
  %v2343 = vld [vmem:[%s4 + $0x10] sm:$0xff]
  %v2344 = vld [vmem:[%s4 + $0x18] sm:$0xff]
  %v2345 = vld [vmem:[%s4 + $0x20] sm:$0xff]
  %v2346 = vld [vmem:[%s4 + $0x28] sm:$0xff]
  %v2347 = vld [vmem:[%s4 + $0x30] sm:$0xff]
  %v2348 = vld [vmem:[%s4 + $0x38] sm:$0xff]
  %v2349 = vld [vmem:[%s4 + $0x40] sm:$0xff]
  %v2350 = vld [vmem:[%s4 + $0x48] sm:$0xff]
  %v2351 = vld [vmem:[%s4 + $0x50] sm:$0xff]
  %v2352 = vld [vmem:[%s4 + $0x58] sm:$0xff]
  %v2353 = vld [vmem:[%s4 + $0x60] sm:$0xff]
  %v2354 = vld [vmem:[%s4 + $0x68] sm:$0xff]
  %v2355 = vld [vmem:[%s4 + $0x70] sm:$0xff]
  %v2356 = vld [vmem:[%s4 + $0x78] sm:$0xff]
  %v2357 = vld [vmem:[%s4 + $0x80] sm:$0xff]
  %v2358 = vld [vmem:[%s4 + $0x88] sm:$0xff]
  %v2359 = vld [vmem:[%s4 + $0x90] sm:$0xff]
  %v2360 = vld [vmem:[%s4 + $0x98] sm:$0xff]
  %v2361 = vld [vmem:[%s4 + $0xa0] sm:$0xff]
  %v2362 = vld [vmem:[%s4 + $0xa8] sm:$0xff]
  %v2363 = vld [vmem:[%s4 + $0xb0] sm:$0xff]
  %v2364 = vld [vmem:[%s4 + $0xb8] sm:$0xff]
  %v2365 = vld [vmem:[%s4 + $0xc0] sm:$0xff]
  %v2366 = vld [vmem:[%s4 + $0xc8] sm:$0xff]
  %v2367 = vld [vmem:[%s4 + $0xd0] sm:$0xff]
  %v2368 = vld [vmem:[%s4 + $0xd8] sm:$0xff]
  %v2369 = vld [vmem:[%s4 + $0xe0] sm:$0xff]
  %v2370 = vld [vmem:[%s4 + $0xe8] sm:$0xff]
  %v2371 = vld [vmem:[%s4 + $0xf0] sm:$0xff]
  %v2372 = vld [vmem:[%s4 + $0xf8] sm:$0xff]
  %v2405 = vunpack.c.l.b16 %v2341
  %v2406 = vunpack.c.h.b16 %v2341
  %v2407 = vunpack.c.l.b16 %v2342
  %v2408 = vunpack.c.h.b16 %v2342
  %v2409 = vunpack.c.l.b16 %v2343
  %v2410 = vunpack.c.h.b16 %v2343
  %v2411 = vunpack.c.l.b16 %v2344
  %v2412 = vunpack.c.h.b16 %v2344
  %v2413 = vunpack.c.l.b16 %v2345
  %v2414 = vunpack.c.h.b16 %v2345
  %v2415 = vunpack.c.l.b16 %v2346
  %v2416 = vunpack.c.h.b16 %v2346
  %v2417 = vunpack.c.l.b16 %v2347
  %v2418 = vunpack.c.h.b16 %v2347
  %v2419 = vunpack.c.l.b16 %v2348
  %v2420 = vunpack.c.h.b16 %v2348
  %v2421 = vunpack.c.l.b16 %v2349
  %v2422 = vunpack.c.h.b16 %v2349
  %v2423 = vunpack.c.l.b16 %v2350
  %v2424 = vunpack.c.h.b16 %v2350
  %v2425 = vunpack.c.l.b16 %v2351
  %v2426 = vunpack.c.h.b16 %v2351
  %v2427 = vunpack.c.l.b16 %v2352
  %v2428 = vunpack.c.h.b16 %v2352
  %v2429 = vunpack.c.l.b16 %v2353
  %v2430 = vunpack.c.h.b16 %v2353
  %v2431 = vunpack.c.l.b16 %v2354
  %v2432 = vunpack.c.h.b16 %v2354
  %v2433 = vunpack.c.l.b16 %v2355
  %v2434 = vunpack.c.h.b16 %v2355
  %v2435 = vunpack.c.l.b16 %v2356
  %v2436 = vunpack.c.h.b16 %v2356
  %v2437 = vunpack.c.l.b16 %v2357
  %v2438 = vunpack.c.h.b16 %v2357
  %v2439 = vunpack.c.l.b16 %v2358
  %v2440 = vunpack.c.h.b16 %v2358
  %v2441 = vunpack.c.l.b16 %v2359
  %v2442 = vunpack.c.h.b16 %v2359
  %v2443 = vunpack.c.l.b16 %v2360
  %v2444 = vunpack.c.h.b16 %v2360
  %v2445 = vunpack.c.l.b16 %v2361
  %v2446 = vunpack.c.h.b16 %v2361
  %v2447 = vunpack.c.l.b16 %v2362
  %v2448 = vunpack.c.h.b16 %v2362
  %v2449 = vunpack.c.l.b16 %v2363
  %v2450 = vunpack.c.h.b16 %v2363
  %v2451 = vunpack.c.l.b16 %v2364
  %v2452 = vunpack.c.h.b16 %v2364
  %v2453 = vunpack.c.l.b16 %v2365
  %v2454 = vunpack.c.h.b16 %v2365
  %v2455 = vunpack.c.l.b16 %v2366
  %v2456 = vunpack.c.h.b16 %v2366
  %v2457 = vunpack.c.l.b16 %v2367
  %v2458 = vunpack.c.h.b16 %v2367
  %v2459 = vunpack.c.l.b16 %v2368
  %v2460 = vunpack.c.h.b16 %v2368
  %v2461 = vunpack.c.l.b16 %v2369
  %v2462 = vunpack.c.h.b16 %v2369
  %v2463 = vunpack.c.l.b16 %v2370
  %v2464 = vunpack.c.h.b16 %v2370
  %v2465 = vunpack.c.l.b16 %v2371
  %v2466 = vunpack.c.h.b16 %v2371
  %v2467 = vunpack.c.l.b16 %v2372
  %v2468 = vunpack.c.h.b16 %v2372
  %v2469 = vpack.c.b16 %v2409, %v2405
  %v2470 = vpack.c.b16 %v2410, %v2406
  %v2471 = vpack.c.b16 %v2411, %v2407
  %v2472 = vpack.c.b16 %v2412, %v2408
  %v2473 = vpack.c.b16 %v2417, %v2413
  %v2474 = vpack.c.b16 %v2418, %v2414
  %v2475 = vpack.c.b16 %v2419, %v2415
  %v2476 = vpack.c.b16 %v2420, %v2416
  %v2477 = vpack.c.b16 %v2425, %v2421
  %v2478 = vpack.c.b16 %v2426, %v2422
  %v2479 = vpack.c.b16 %v2427, %v2423
  %v2480 = vpack.c.b16 %v2428, %v2424
  %v2481 = vpack.c.b16 %v2433, %v2429
  %v2482 = vpack.c.b16 %v2434, %v2430
  %v2483 = vpack.c.b16 %v2435, %v2431
  %v2484 = vpack.c.b16 %v2436, %v2432
  %v2485 = vpack.c.b16 %v2441, %v2437
  %v2486 = vpack.c.b16 %v2442, %v2438
  %v2487 = vpack.c.b16 %v2443, %v2439
  %v2488 = vpack.c.b16 %v2444, %v2440
  %v2489 = vpack.c.b16 %v2449, %v2445
  %v2490 = vpack.c.b16 %v2450, %v2446
  %v2491 = vpack.c.b16 %v2451, %v2447
  %v2492 = vpack.c.b16 %v2452, %v2448
  %v2493 = vpack.c.b16 %v2457, %v2453
  %v2494 = vpack.c.b16 %v2458, %v2454
  %v2495 = vpack.c.b16 %v2459, %v2455
  %v2496 = vpack.c.b16 %v2460, %v2456
  %v2497 = vpack.c.b16 %v2465, %v2461
  %v2498 = vpack.c.b16 %v2466, %v2462
  %v2499 = vpack.c.b16 %v2467, %v2463
  %v2500 = vpack.c.b16 %v2468, %v2464
  %2533 = vmatpush.bf16.msra.mxu0 %v2497
  %2534 = vmatpush.bf16.msra.mxu0 %v2493
  %2535 = vmatpush.bf16.msra.mxu0 %v2489
  %2536 = vmatpush.bf16.msra.mxu0 %v2485
  %2537 = vmatpush.bf16.msra.mxu0 %v2481
  %2538 = vmatpush.bf16.msra.mxu0 %v2477
  %2539 = vmatpush.bf16.msra.mxu0 %v2473
  %2540 = vmatpush.bf16.msra.mxu0 %v2469
  %2541 = vmatmul.bf16.gmra.mxu0 %v2074
  %v2542 = vpop.f32.mrf.mxu0
  %v2543 = vadd.f32 0.0, %v2542
  %v2544 = vpop.f32.mrf.mxu0
  %2545 = vdwg.mxu0
  %2546 = vmatpush.bf16.msra.mxu0 %v2498
  %2547 = vmatpush.bf16.msra.mxu0 %v2494
  %2548 = vmatpush.bf16.msra.mxu0 %v2490
  %2549 = vmatpush.bf16.msra.mxu0 %v2486
  %2550 = vmatpush.bf16.msra.mxu0 %v2482
  %2551 = vmatpush.bf16.msra.mxu0 %v2478
  %2552 = vmatpush.bf16.msra.mxu0 %v2474
  %2553 = vmatpush.bf16.msra.mxu0 %v2470
  %2554 = vmatmul.bf16.gmra.mxu0 %v2074
  %v2555 = vpop.f32.mrf.mxu0
  %v2556 = vadd.f32 0.0, %v2555
  %v2557 = vpop.f32.mrf.mxu0
  %2558 = vdwg.mxu0
  %2559 = vmatpush.bf16.msra.mxu0 %v2499
  %2560 = vmatpush.bf16.msra.mxu0 %v2495
  %2561 = vmatpush.bf16.msra.mxu0 %v2491
  %2562 = vmatpush.bf16.msra.mxu0 %v2487
  %2563 = vmatpush.bf16.msra.mxu0 %v2483
  %2564 = vmatpush.bf16.msra.mxu0 %v2479
  %2565 = vmatpush.bf16.msra.mxu0 %v2475
  %2566 = vmatpush.bf16.msra.mxu0 %v2471
  %2567 = vmatmul.bf16.gmra.mxu0 %v2074
  %v2568 = vpop.f32.mrf.mxu0
  %v2569 = vadd.f32 0.0, %v2568
  %v2570 = vpop.f32.mrf.mxu0
  %2571 = vdwg.mxu0
  %2572 = vmatpush.bf16.msra.mxu0 %v2500
  %2573 = vmatpush.bf16.msra.mxu0 %v2496
  %2574 = vmatpush.bf16.msra.mxu0 %v2492
  %2575 = vmatpush.bf16.msra.mxu0 %v2488
  %2576 = vmatpush.bf16.msra.mxu0 %v2484
  %2577 = vmatpush.bf16.msra.mxu0 %v2480
  %2578 = vmatpush.bf16.msra.mxu0 %v2476
  %2579 = vmatpush.bf16.msra.mxu0 %v2472
  %2580 = vmatmul.bf16.gmra.mxu0 %v2074
  %v2581 = vpop.f32.mrf.mxu0
  %v2582 = vadd.f32 0.0, %v2581
  %v2583 = vpop.f32.mrf.mxu0
  %2584 = vdwg.mxu0
  %v2585 = vadd.f32 %v2337, %v2543
  %v2586 = vadd.f32 %v2338, %v2556
  %v2587 = vadd.f32 %v2339, %v2569
  %v2588 = vadd.f32 %v2340, %v2582
  %v2589 = vadd.f32 %v2585, %v762
  %v2590 = vadd.f32 %v2586, %v763
  %v2591 = vadd.f32 %v2587, %v764
  %v2592 = vadd.f32 %v2588, %v765
  %v2593 = vxor.u32 %v2330, 2147483648
  %v2594 = vmul.f32 %v2593, 1.442695
  %v2595 = vpow.pop %v2594
  %v2596 = vadd.f32 %v2595, 1.0
  %v2597 = vrcp.pop %v2596
  %v2598 = vmul.f32 %v2596, %v2597
  %v2599 = vsub.f32 1.0, %v2598
  %v2600 = vmul.f32 %v2597, %v2599
  %v2601 = vadd.f32 %v2597, %v2600
  %vm2602 = vweird.f32 %v2596
  %vm2603 = vweird.f32 %v2597
  %vm2604 = vmor %vm2602, %vm2603
  %v2605 = vsel %vm2604, %v2597, %v2601
  %v2606 = vand.u32 2147483647, %v2596
  %vm2607 = vcmp.eq.f32.partialorder %v2606, 8.507059e+37
  %v2608 = vand.u32 %v2596, 2147483648
  %v2609 = vor.u32 1.1754944e-38, %v2608
  %v2610 = vsel %vm2607, %v2609, %v2605
  %v2611 = vmul.f32 1.0, %v2610
  %v2612 = vxor.u32 %v2331, 2147483648
  %v2613 = vmul.f32 %v2612, 1.442695
  %v2614 = vpow.pop %v2613
  %v2615 = vadd.f32 %v2614, 1.0
  %v2616 = vrcp.pop %v2615
  %v2617 = vmul.f32 %v2615, %v2616
  %v2618 = vsub.f32 1.0, %v2617
  %v2619 = vmul.f32 %v2616, %v2618
  %v2620 = vadd.f32 %v2616, %v2619
  %vm2621 = vweird.f32 %v2615
  %vm2622 = vweird.f32 %v2616
  %vm2623 = vmor %vm2621, %vm2622
  %v2624 = vsel %vm2623, %v2616, %v2620
  %v2625 = vand.u32 2147483647, %v2615
  %vm2626 = vcmp.eq.f32.partialorder %v2625, 8.507059e+37
  %v2627 = vand.u32 %v2615, 2147483648
  %v2628 = vor.u32 1.1754944e-38, %v2627
  %v2629 = vsel %vm2626, %v2628, %v2624
  %v2630 = vmul.f32 1.0, %v2629
  %v2631 = vtanh.pop %v2332
  %v2632 = vxor.u32 %v2333, 2147483648
  %v2633 = vmul.f32 %v2632, 1.442695
  %v2634 = vpow.pop %v2633
  %v2635 = vadd.f32 %v2634, 1.0
  %v2636 = vrcp.pop %v2635
  %v2637 = vmul.f32 %v2635, %v2636
  %v2638 = vsub.f32 1.0, %v2637
  %v2639 = vmul.f32 %v2636, %v2638
  %v2640 = vadd.f32 %v2636, %v2639
  %vm2641 = vweird.f32 %v2635
  %vm2642 = vweird.f32 %v2636
  %vm2643 = vmor %vm2641, %vm2642
  %v2644 = vsel %vm2643, %v2636, %v2640
  %v2645 = vand.u32 2147483647, %v2635
  %vm2646 = vcmp.eq.f32.partialorder %v2645, 8.507059e+37
  %v2647 = vand.u32 %v2635, 2147483648
  %v2648 = vor.u32 1.1754944e-38, %v2647
  %v2649 = vsel %vm2646, %v2648, %v2644
  %v2650 = vmul.f32 1.0, %v2649
  %v2651 = vmul.f32 %v2630, %v2001
  %v2652 = vmul.f32 %v2611, %v2631
  %v2653 = vadd.f32 %v2651, %v2652
  %v2654 = vtanh.pop %v2653
  %v2655 = vmul.f32 %v2650, %v2654
  %v2656 = vxor.u32 %v2589, 2147483648
  %v2657 = vmul.f32 %v2656, 1.442695
  %v2658 = vpow.pop %v2657
  %v2659 = vadd.f32 %v2658, 1.0
  %v2660 = vrcp.pop %v2659
  %v2661 = vmul.f32 %v2659, %v2660
  %v2662 = vsub.f32 1.0, %v2661
  %v2663 = vmul.f32 %v2660, %v2662
  %v2664 = vadd.f32 %v2660, %v2663
  %vm2665 = vweird.f32 %v2659
  %vm2666 = vweird.f32 %v2660
  %vm2667 = vmor %vm2665, %vm2666
  %v2668 = vsel %vm2667, %v2660, %v2664
  %v2669 = vand.u32 2147483647, %v2659
  %vm2670 = vcmp.eq.f32.partialorder %v2669, 8.507059e+37
  %v2671 = vand.u32 %v2659, 2147483648
  %v2672 = vor.u32 1.1754944e-38, %v2671
  %v2673 = vsel %vm2670, %v2672, %v2668
  %v2674 = vmul.f32 1.0, %v2673
  %v2675 = vxor.u32 %v2590, 2147483648
  %v2676 = vmul.f32 %v2675, 1.442695
  %v2677 = vpow.pop %v2676
  %v2678 = vadd.f32 %v2677, 1.0
  %v2679 = vrcp.pop %v2678
  %v2680 = vmul.f32 %v2678, %v2679
  %v2681 = vsub.f32 1.0, %v2680
  %v2682 = vmul.f32 %v2679, %v2681
  %v2683 = vadd.f32 %v2679, %v2682
  %vm2684 = vweird.f32 %v2678
  %vm2685 = vweird.f32 %v2679
  %vm2686 = vmor %vm2684, %vm2685
  %v2687 = vsel %vm2686, %v2679, %v2683
  %v2688 = vand.u32 2147483647, %v2678
  %vm2689 = vcmp.eq.f32.partialorder %v2688, 8.507059e+37
  %v2690 = vand.u32 %v2678, 2147483648
  %v2691 = vor.u32 1.1754944e-38, %v2690
  %v2692 = vsel %vm2689, %v2691, %v2687
  %v2693 = vmul.f32 1.0, %v2692
  %v2694 = vtanh.pop %v2591
  %v2695 = vxor.u32 %v2592, 2147483648
  %v2696 = vmul.f32 %v2695, 1.442695
  %v2697 = vpow.pop %v2696
  %v2698 = vadd.f32 %v2697, 1.0
  %v2699 = vrcp.pop %v2698
  %v2700 = vmul.f32 %v2698, %v2699
  %v2701 = vsub.f32 1.0, %v2700
  %v2702 = vmul.f32 %v2699, %v2701
  %v2703 = vadd.f32 %v2699, %v2702
  %vm2704 = vweird.f32 %v2698
  %vm2705 = vweird.f32 %v2699
  %vm2706 = vmor %vm2704, %vm2705
  %v2707 = vsel %vm2706, %v2699, %v2703
  %v2708 = vand.u32 2147483647, %v2698
  %vm2709 = vcmp.eq.f32.partialorder %v2708, 8.507059e+37
  %v2710 = vand.u32 %v2698, 2147483648
  %v2711 = vor.u32 1.1754944e-38, %v2710
  %v2712 = vsel %vm2709, %v2711, %v2707
  %v2713 = vmul.f32 1.0, %v2712
  %v2714 = vmul.f32 %v2693, %v2064
  %v2715 = vmul.f32 %v2674, %v2694
  %v2716 = vadd.f32 %v2714, %v2715
  %v2717 = vtanh.pop %v2716
  %v2718 = vmul.f32 %v2713, %v2717
  %v2719 = vld [vmem:[#allocation4] sm:$0xff]
  %v2720 = vadd.f32 %v2719, %v2655
  %2721 = vst [vmem:[#allocation4] sm:$0xff] %v2720
  %v2722 = vld [vmem:[#allocation5] sm:$0xff]
  %v2723 = vadd.f32 %v2722, %v2718
  %2724 = vst [vmem:[#allocation5] sm:$0xff] %v2723
  %v2725 = vpack.c.bf16 %v2655, %v2655
  %v2726 = vpack.c.bf16 %v2718, %v2718
  %s2727 = scalar_lea.vmem [#allocation2], 48
  %v2728 = vld [vmem:[%s2727] sm:$0xff]
  %v2729 = vld [vmem:[%s2727 + $0x8] sm:$0xff]
  %v2730 = vunpack.c.l.bf16 %v2728
  %v2731 = vunpack.c.h.bf16 %v2728
  %v2732 = vunpack.c.l.bf16 %v2729
  %v2733 = vunpack.c.h.bf16 %v2729
  %v2734 = vld [vmem:[%s3] sm:$0xff]
  %v2735 = vld [vmem:[%s3 + $0x8] sm:$0xff]
  %v2736 = vld [vmem:[%s3 + $0x10] sm:$0xff]
  %v2737 = vld [vmem:[%s3 + $0x18] sm:$0xff]
  %v2738 = vld [vmem:[%s3 + $0x20] sm:$0xff]
  %v2739 = vld [vmem:[%s3 + $0x28] sm:$0xff]
  %v2740 = vld [vmem:[%s3 + $0x30] sm:$0xff]
  %v2741 = vld [vmem:[%s3 + $0x38] sm:$0xff]
  %v2742 = vld [vmem:[%s3 + $0x40] sm:$0xff]
  %v2743 = vld [vmem:[%s3 + $0x48] sm:$0xff]
  %v2744 = vld [vmem:[%s3 + $0x50] sm:$0xff]
  %v2745 = vld [vmem:[%s3 + $0x58] sm:$0xff]
  %v2746 = vld [vmem:[%s3 + $0x60] sm:$0xff]
  %v2747 = vld [vmem:[%s3 + $0x68] sm:$0xff]
  %v2748 = vld [vmem:[%s3 + $0x70] sm:$0xff]
  %v2749 = vld [vmem:[%s3 + $0x78] sm:$0xff]
  %v2750 = vld [vmem:[%s3 + $0x80] sm:$0xff]
  %v2751 = vld [vmem:[%s3 + $0x88] sm:$0xff]
  %v2752 = vld [vmem:[%s3 + $0x90] sm:$0xff]
  %v2753 = vld [vmem:[%s3 + $0x98] sm:$0xff]
  %v2754 = vld [vmem:[%s3 + $0xa0] sm:$0xff]
  %v2755 = vld [vmem:[%s3 + $0xa8] sm:$0xff]
  %v2756 = vld [vmem:[%s3 + $0xb0] sm:$0xff]
  %v2757 = vld [vmem:[%s3 + $0xb8] sm:$0xff]
  %v2758 = vld [vmem:[%s3 + $0xc0] sm:$0xff]
  %v2759 = vld [vmem:[%s3 + $0xc8] sm:$0xff]
  %v2760 = vld [vmem:[%s3 + $0xd0] sm:$0xff]
  %v2761 = vld [vmem:[%s3 + $0xd8] sm:$0xff]
  %v2762 = vld [vmem:[%s3 + $0xe0] sm:$0xff]
  %v2763 = vld [vmem:[%s3 + $0xe8] sm:$0xff]
  %v2764 = vld [vmem:[%s3 + $0xf0] sm:$0xff]
  %v2765 = vld [vmem:[%s3 + $0xf8] sm:$0xff]
  %v2798 = vunpack.c.l.b16 %v2734
  %v2799 = vunpack.c.h.b16 %v2734
  %v2800 = vunpack.c.l.b16 %v2735
  %v2801 = vunpack.c.h.b16 %v2735
  %v2802 = vunpack.c.l.b16 %v2736
  %v2803 = vunpack.c.h.b16 %v2736
  %v2804 = vunpack.c.l.b16 %v2737
  %v2805 = vunpack.c.h.b16 %v2737
  %v2806 = vunpack.c.l.b16 %v2738
  %v2807 = vunpack.c.h.b16 %v2738
  %v2808 = vunpack.c.l.b16 %v2739
  %v2809 = vunpack.c.h.b16 %v2739
  %v2810 = vunpack.c.l.b16 %v2740
  %v2811 = vunpack.c.h.b16 %v2740
  %v2812 = vunpack.c.l.b16 %v2741
  %v2813 = vunpack.c.h.b16 %v2741
  %v2814 = vunpack.c.l.b16 %v2742
  %v2815 = vunpack.c.h.b16 %v2742
  %v2816 = vunpack.c.l.b16 %v2743
  %v2817 = vunpack.c.h.b16 %v2743
  %v2818 = vunpack.c.l.b16 %v2744
  %v2819 = vunpack.c.h.b16 %v2744
  %v2820 = vunpack.c.l.b16 %v2745
  %v2821 = vunpack.c.h.b16 %v2745
  %v2822 = vunpack.c.l.b16 %v2746
  %v2823 = vunpack.c.h.b16 %v2746
  %v2824 = vunpack.c.l.b16 %v2747
  %v2825 = vunpack.c.h.b16 %v2747
  %v2826 = vunpack.c.l.b16 %v2748
  %v2827 = vunpack.c.h.b16 %v2748
  %v2828 = vunpack.c.l.b16 %v2749
  %v2829 = vunpack.c.h.b16 %v2749
  %v2830 = vunpack.c.l.b16 %v2750
  %v2831 = vunpack.c.h.b16 %v2750
  %v2832 = vunpack.c.l.b16 %v2751
  %v2833 = vunpack.c.h.b16 %v2751
  %v2834 = vunpack.c.l.b16 %v2752
  %v2835 = vunpack.c.h.b16 %v2752
  %v2836 = vunpack.c.l.b16 %v2753
  %v2837 = vunpack.c.h.b16 %v2753
  %v2838 = vunpack.c.l.b16 %v2754
  %v2839 = vunpack.c.h.b16 %v2754
  %v2840 = vunpack.c.l.b16 %v2755
  %v2841 = vunpack.c.h.b16 %v2755
  %v2842 = vunpack.c.l.b16 %v2756
  %v2843 = vunpack.c.h.b16 %v2756
  %v2844 = vunpack.c.l.b16 %v2757
  %v2845 = vunpack.c.h.b16 %v2757
  %v2846 = vunpack.c.l.b16 %v2758
  %v2847 = vunpack.c.h.b16 %v2758
  %v2848 = vunpack.c.l.b16 %v2759
  %v2849 = vunpack.c.h.b16 %v2759
  %v2850 = vunpack.c.l.b16 %v2760
  %v2851 = vunpack.c.h.b16 %v2760
  %v2852 = vunpack.c.l.b16 %v2761
  %v2853 = vunpack.c.h.b16 %v2761
  %v2854 = vunpack.c.l.b16 %v2762
  %v2855 = vunpack.c.h.b16 %v2762
  %v2856 = vunpack.c.l.b16 %v2763
  %v2857 = vunpack.c.h.b16 %v2763
  %v2858 = vunpack.c.l.b16 %v2764
  %v2859 = vunpack.c.h.b16 %v2764
  %v2860 = vunpack.c.l.b16 %v2765
  %v2861 = vunpack.c.h.b16 %v2765
  %v2862 = vpack.c.b16 %v2802, %v2798
  %v2863 = vpack.c.b16 %v2803, %v2799
  %v2864 = vpack.c.b16 %v2804, %v2800
  %v2865 = vpack.c.b16 %v2805, %v2801
  %v2866 = vpack.c.b16 %v2810, %v2806
  %v2867 = vpack.c.b16 %v2811, %v2807
  %v2868 = vpack.c.b16 %v2812, %v2808
  %v2869 = vpack.c.b16 %v2813, %v2809
  %v2870 = vpack.c.b16 %v2818, %v2814
  %v2871 = vpack.c.b16 %v2819, %v2815
  %v2872 = vpack.c.b16 %v2820, %v2816
  %v2873 = vpack.c.b16 %v2821, %v2817
  %v2874 = vpack.c.b16 %v2826, %v2822
  %v2875 = vpack.c.b16 %v2827, %v2823
  %v2876 = vpack.c.b16 %v2828, %v2824
  %v2877 = vpack.c.b16 %v2829, %v2825
  %v2878 = vpack.c.b16 %v2834, %v2830
  %v2879 = vpack.c.b16 %v2835, %v2831
  %v2880 = vpack.c.b16 %v2836, %v2832
  %v2881 = vpack.c.b16 %v2837, %v2833
  %v2882 = vpack.c.b16 %v2842, %v2838
  %v2883 = vpack.c.b16 %v2843, %v2839
  %v2884 = vpack.c.b16 %v2844, %v2840
  %v2885 = vpack.c.b16 %v2845, %v2841
  %v2886 = vpack.c.b16 %v2850, %v2846
  %v2887 = vpack.c.b16 %v2851, %v2847
  %v2888 = vpack.c.b16 %v2852, %v2848
  %v2889 = vpack.c.b16 %v2853, %v2849
  %v2890 = vpack.c.b16 %v2858, %v2854
  %v2891 = vpack.c.b16 %v2859, %v2855
  %v2892 = vpack.c.b16 %v2860, %v2856
  %v2893 = vpack.c.b16 %v2861, %v2857
  %2926 = vmatpush.bf16.msra.mxu0 %v2890
  %2927 = vmatpush.bf16.msra.mxu0 %v2886
  %2928 = vmatpush.bf16.msra.mxu0 %v2882
  %2929 = vmatpush.bf16.msra.mxu0 %v2878
  %2930 = vmatpush.bf16.msra.mxu0 %v2874
  %2931 = vmatpush.bf16.msra.mxu0 %v2870
  %2932 = vmatpush.bf16.msra.mxu0 %v2866
  %2933 = vmatpush.bf16.msra.mxu0 %v2862
  %2934 = vmatmul.bf16.gmra.mxu0 %v2725
  %v2935 = vpop.f32.mrf.mxu0
  %v2936 = vadd.f32 0.0, %v2935
  %v2937 = vpop.f32.mrf.mxu0
  %2938 = vdwg.mxu0
  %2939 = vmatpush.bf16.msra.mxu0 %v2891
  %2940 = vmatpush.bf16.msra.mxu0 %v2887
  %2941 = vmatpush.bf16.msra.mxu0 %v2883
  %2942 = vmatpush.bf16.msra.mxu0 %v2879
  %2943 = vmatpush.bf16.msra.mxu0 %v2875
  %2944 = vmatpush.bf16.msra.mxu0 %v2871
  %2945 = vmatpush.bf16.msra.mxu0 %v2867
  %2946 = vmatpush.bf16.msra.mxu0 %v2863
  %2947 = vmatmul.bf16.gmra.mxu0 %v2725
  %v2948 = vpop.f32.mrf.mxu0
  %v2949 = vadd.f32 0.0, %v2948
  %v2950 = vpop.f32.mrf.mxu0
  %2951 = vdwg.mxu0
  %2952 = vmatpush.bf16.msra.mxu0 %v2892
  %2953 = vmatpush.bf16.msra.mxu0 %v2888
  %2954 = vmatpush.bf16.msra.mxu0 %v2884
  %2955 = vmatpush.bf16.msra.mxu0 %v2880
  %2956 = vmatpush.bf16.msra.mxu0 %v2876
  %2957 = vmatpush.bf16.msra.mxu0 %v2872
  %2958 = vmatpush.bf16.msra.mxu0 %v2868
  %2959 = vmatpush.bf16.msra.mxu0 %v2864
  %2960 = vmatmul.bf16.gmra.mxu0 %v2725
  %v2961 = vpop.f32.mrf.mxu0
  %v2962 = vadd.f32 0.0, %v2961
  %v2963 = vpop.f32.mrf.mxu0
  %2964 = vdwg.mxu0
  %2965 = vmatpush.bf16.msra.mxu0 %v2893
  %2966 = vmatpush.bf16.msra.mxu0 %v2889
  %2967 = vmatpush.bf16.msra.mxu0 %v2885
  %2968 = vmatpush.bf16.msra.mxu0 %v2881
  %2969 = vmatpush.bf16.msra.mxu0 %v2877
  %2970 = vmatpush.bf16.msra.mxu0 %v2873
  %2971 = vmatpush.bf16.msra.mxu0 %v2869
  %2972 = vmatpush.bf16.msra.mxu0 %v2865
  %2973 = vmatmul.bf16.gmra.mxu0 %v2725
  %v2974 = vpop.f32.mrf.mxu0
  %v2975 = vadd.f32 0.0, %v2974
  %v2976 = vpop.f32.mrf.mxu0
  %2977 = vdwg.mxu0
  %v2978 = vadd.f32 %v2730, %v2936
  %v2979 = vadd.f32 %v2731, %v2949
  %v2980 = vadd.f32 %v2732, %v2962
  %v2981 = vadd.f32 %v2733, %v2975
  %v2982 = vadd.f32 %v2978, %v752
  %v2983 = vadd.f32 %v2979, %v753
  %v2984 = vadd.f32 %v2980, %v754
  %v2985 = vadd.f32 %v2981, %v755
  %s2986 = scalar_lea.vmem [#allocation3], 64
  %v2987 = vld [vmem:[%s2986] sm:$0xff]
  %v2988 = vld [vmem:[%s2986 + $0x8] sm:$0xff]
  %v2989 = vunpack.c.l.bf16 %v2987
  %v2990 = vunpack.c.h.bf16 %v2987
  %v2991 = vunpack.c.l.bf16 %v2988
  %v2992 = vunpack.c.h.bf16 %v2988
  %v2993 = vld [vmem:[%s4] sm:$0xff]
  %v2994 = vld [vmem:[%s4 + $0x8] sm:$0xff]
  %v2995 = vld [vmem:[%s4 + $0x10] sm:$0xff]
  %v2996 = vld [vmem:[%s4 + $0x18] sm:$0xff]
  %v2997 = vld [vmem:[%s4 + $0x20] sm:$0xff]
  %v2998 = vld [vmem:[%s4 + $0x28] sm:$0xff]
  %v2999 = vld [vmem:[%s4 + $0x30] sm:$0xff]
  %v3000 = vld [vmem:[%s4 + $0x38] sm:$0xff]
  %v3001 = vld [vmem:[%s4 + $0x40] sm:$0xff]
  %v3002 = vld [vmem:[%s4 + $0x48] sm:$0xff]
  %v3003 = vld [vmem:[%s4 + $0x50] sm:$0xff]
  %v3004 = vld [vmem:[%s4 + $0x58] sm:$0xff]
  %v3005 = vld [vmem:[%s4 + $0x60] sm:$0xff]
  %v3006 = vld [vmem:[%s4 + $0x68] sm:$0xff]
  %v3007 = vld [vmem:[%s4 + $0x70] sm:$0xff]
  %v3008 = vld [vmem:[%s4 + $0x78] sm:$0xff]
  %v3009 = vld [vmem:[%s4 + $0x80] sm:$0xff]
  %v3010 = vld [vmem:[%s4 + $0x88] sm:$0xff]
  %v3011 = vld [vmem:[%s4 + $0x90] sm:$0xff]
  %v3012 = vld [vmem:[%s4 + $0x98] sm:$0xff]
  %v3013 = vld [vmem:[%s4 + $0xa0] sm:$0xff]
  %v3014 = vld [vmem:[%s4 + $0xa8] sm:$0xff]
  %v3015 = vld [vmem:[%s4 + $0xb0] sm:$0xff]
  %v3016 = vld [vmem:[%s4 + $0xb8] sm:$0xff]
  %v3017 = vld [vmem:[%s4 + $0xc0] sm:$0xff]
  %v3018 = vld [vmem:[%s4 + $0xc8] sm:$0xff]
  %v3019 = vld [vmem:[%s4 + $0xd0] sm:$0xff]
  %v3020 = vld [vmem:[%s4 + $0xd8] sm:$0xff]
  %v3021 = vld [vmem:[%s4 + $0xe0] sm:$0xff]
  %v3022 = vld [vmem:[%s4 + $0xe8] sm:$0xff]
  %v3023 = vld [vmem:[%s4 + $0xf0] sm:$0xff]
  %v3024 = vld [vmem:[%s4 + $0xf8] sm:$0xff]
  %v3057 = vunpack.c.l.b16 %v2993
  %v3058 = vunpack.c.h.b16 %v2993
  %v3059 = vunpack.c.l.b16 %v2994
  %v3060 = vunpack.c.h.b16 %v2994
  %v3061 = vunpack.c.l.b16 %v2995
  %v3062 = vunpack.c.h.b16 %v2995
  %v3063 = vunpack.c.l.b16 %v2996
  %v3064 = vunpack.c.h.b16 %v2996
  %v3065 = vunpack.c.l.b16 %v2997
  %v3066 = vunpack.c.h.b16 %v2997
  %v3067 = vunpack.c.l.b16 %v2998
  %v3068 = vunpack.c.h.b16 %v2998
  %v3069 = vunpack.c.l.b16 %v2999
  %v3070 = vunpack.c.h.b16 %v2999
  %v3071 = vunpack.c.l.b16 %v3000
  %v3072 = vunpack.c.h.b16 %v3000
  %v3073 = vunpack.c.l.b16 %v3001
  %v3074 = vunpack.c.h.b16 %v3001
  %v3075 = vunpack.c.l.b16 %v3002
  %v3076 = vunpack.c.h.b16 %v3002
  %v3077 = vunpack.c.l.b16 %v3003
  %v3078 = vunpack.c.h.b16 %v3003
  %v3079 = vunpack.c.l.b16 %v3004
  %v3080 = vunpack.c.h.b16 %v3004
  %v3081 = vunpack.c.l.b16 %v3005
  %v3082 = vunpack.c.h.b16 %v3005
  %v3083 = vunpack.c.l.b16 %v3006
  %v3084 = vunpack.c.h.b16 %v3006
  %v3085 = vunpack.c.l.b16 %v3007
  %v3086 = vunpack.c.h.b16 %v3007
  %v3087 = vunpack.c.l.b16 %v3008
  %v3088 = vunpack.c.h.b16 %v3008
  %v3089 = vunpack.c.l.b16 %v3009
  %v3090 = vunpack.c.h.b16 %v3009
  %v3091 = vunpack.c.l.b16 %v3010
  %v3092 = vunpack.c.h.b16 %v3010
  %v3093 = vunpack.c.l.b16 %v3011
  %v3094 = vunpack.c.h.b16 %v3011
  %v3095 = vunpack.c.l.b16 %v3012
  %v3096 = vunpack.c.h.b16 %v3012
  %v3097 = vunpack.c.l.b16 %v3013
  %v3098 = vunpack.c.h.b16 %v3013
  %v3099 = vunpack.c.l.b16 %v3014
  %v3100 = vunpack.c.h.b16 %v3014
  %v3101 = vunpack.c.l.b16 %v3015
  %v3102 = vunpack.c.h.b16 %v3015
  %v3103 = vunpack.c.l.b16 %v3016
  %v3104 = vunpack.c.h.b16 %v3016
  %v3105 = vunpack.c.l.b16 %v3017
  %v3106 = vunpack.c.h.b16 %v3017
  %v3107 = vunpack.c.l.b16 %v3018
  %v3108 = vunpack.c.h.b16 %v3018
  %v3109 = vunpack.c.l.b16 %v3019
  %v3110 = vunpack.c.h.b16 %v3019
  %v3111 = vunpack.c.l.b16 %v3020
  %v3112 = vunpack.c.h.b16 %v3020
  %v3113 = vunpack.c.l.b16 %v3021
  %v3114 = vunpack.c.h.b16 %v3021
  %v3115 = vunpack.c.l.b16 %v3022
  %v3116 = vunpack.c.h.b16 %v3022
  %v3117 = vunpack.c.l.b16 %v3023
  %v3118 = vunpack.c.h.b16 %v3023
  %v3119 = vunpack.c.l.b16 %v3024
  %v3120 = vunpack.c.h.b16 %v3024
  %v3121 = vpack.c.b16 %v3061, %v3057
  %v3122 = vpack.c.b16 %v3062, %v3058
  %v3123 = vpack.c.b16 %v3063, %v3059
  %v3124 = vpack.c.b16 %v3064, %v3060
  %v3125 = vpack.c.b16 %v3069, %v3065
  %v3126 = vpack.c.b16 %v3070, %v3066
  %v3127 = vpack.c.b16 %v3071, %v3067
  %v3128 = vpack.c.b16 %v3072, %v3068
  %v3129 = vpack.c.b16 %v3077, %v3073
  %v3130 = vpack.c.b16 %v3078, %v3074
  %v3131 = vpack.c.b16 %v3079, %v3075
  %v3132 = vpack.c.b16 %v3080, %v3076
  %v3133 = vpack.c.b16 %v3085, %v3081
  %v3134 = vpack.c.b16 %v3086, %v3082
  %v3135 = vpack.c.b16 %v3087, %v3083
  %v3136 = vpack.c.b16 %v3088, %v3084
  %v3137 = vpack.c.b16 %v3093, %v3089
  %v3138 = vpack.c.b16 %v3094, %v3090
  %v3139 = vpack.c.b16 %v3095, %v3091
  %v3140 = vpack.c.b16 %v3096, %v3092
  %v3141 = vpack.c.b16 %v3101, %v3097
  %v3142 = vpack.c.b16 %v3102, %v3098
  %v3143 = vpack.c.b16 %v3103, %v3099
  %v3144 = vpack.c.b16 %v3104, %v3100
  %v3145 = vpack.c.b16 %v3109, %v3105
  %v3146 = vpack.c.b16 %v3110, %v3106
  %v3147 = vpack.c.b16 %v3111, %v3107
  %v3148 = vpack.c.b16 %v3112, %v3108
  %v3149 = vpack.c.b16 %v3117, %v3113
  %v3150 = vpack.c.b16 %v3118, %v3114
  %v3151 = vpack.c.b16 %v3119, %v3115
  %v3152 = vpack.c.b16 %v3120, %v3116
  %3185 = vmatpush.bf16.msra.mxu0 %v3149
  %3186 = vmatpush.bf16.msra.mxu0 %v3145
  %3187 = vmatpush.bf16.msra.mxu0 %v3141
  %3188 = vmatpush.bf16.msra.mxu0 %v3137
  %3189 = vmatpush.bf16.msra.mxu0 %v3133
  %3190 = vmatpush.bf16.msra.mxu0 %v3129
  %3191 = vmatpush.bf16.msra.mxu0 %v3125
  %3192 = vmatpush.bf16.msra.mxu0 %v3121
  %3193 = vmatmul.bf16.gmra.mxu0 %v2726
  %v3194 = vpop.f32.mrf.mxu0
  %v3195 = vadd.f32 0.0, %v3194
  %v3196 = vpop.f32.mrf.mxu0
  %3197 = vdwg.mxu0
  %3198 = vmatpush.bf16.msra.mxu0 %v3150
  %3199 = vmatpush.bf16.msra.mxu0 %v3146
  %3200 = vmatpush.bf16.msra.mxu0 %v3142
  %3201 = vmatpush.bf16.msra.mxu0 %v3138
  %3202 = vmatpush.bf16.msra.mxu0 %v3134
  %3203 = vmatpush.bf16.msra.mxu0 %v3130
  %3204 = vmatpush.bf16.msra.mxu0 %v3126
  %3205 = vmatpush.bf16.msra.mxu0 %v3122
  %3206 = vmatmul.bf16.gmra.mxu0 %v2726
  %v3207 = vpop.f32.mrf.mxu0
  %v3208 = vadd.f32 0.0, %v3207
  %v3209 = vpop.f32.mrf.mxu0
  %3210 = vdwg.mxu0
  %3211 = vmatpush.bf16.msra.mxu0 %v3151
  %3212 = vmatpush.bf16.msra.mxu0 %v3147
  %3213 = vmatpush.bf16.msra.mxu0 %v3143
  %3214 = vmatpush.bf16.msra.mxu0 %v3139
  %3215 = vmatpush.bf16.msra.mxu0 %v3135
  %3216 = vmatpush.bf16.msra.mxu0 %v3131
  %3217 = vmatpush.bf16.msra.mxu0 %v3127
  %3218 = vmatpush.bf16.msra.mxu0 %v3123
  %3219 = vmatmul.bf16.gmra.mxu0 %v2726
  %v3220 = vpop.f32.mrf.mxu0
  %v3221 = vadd.f32 0.0, %v3220
  %v3222 = vpop.f32.mrf.mxu0
  %3223 = vdwg.mxu0
  %3224 = vmatpush.bf16.msra.mxu0 %v3152
  %3225 = vmatpush.bf16.msra.mxu0 %v3148
  %3226 = vmatpush.bf16.msra.mxu0 %v3144
  %3227 = vmatpush.bf16.msra.mxu0 %v3140
  %3228 = vmatpush.bf16.msra.mxu0 %v3136
  %3229 = vmatpush.bf16.msra.mxu0 %v3132
  %3230 = vmatpush.bf16.msra.mxu0 %v3128
  %3231 = vmatpush.bf16.msra.mxu0 %v3124
  %3232 = vmatmul.bf16.gmra.mxu0 %v2726
  %v3233 = vpop.f32.mrf.mxu0
  %v3234 = vadd.f32 0.0, %v3233
  %v3235 = vpop.f32.mrf.mxu0
  %3236 = vdwg.mxu0
  %v3237 = vadd.f32 %v2989, %v3195
  %v3238 = vadd.f32 %v2990, %v3208
  %v3239 = vadd.f32 %v2991, %v3221
  %v3240 = vadd.f32 %v2992, %v3234
  %v3241 = vadd.f32 %v3237, %v762
  %v3242 = vadd.f32 %v3238, %v763
  %v3243 = vadd.f32 %v3239, %v764
  %v3244 = vadd.f32 %v3240, %v765
  %v3245 = vxor.u32 %v2982, 2147483648
  %v3246 = vmul.f32 %v3245, 1.442695
  %v3247 = vpow.pop %v3246
  %v3248 = vadd.f32 %v3247, 1.0
  %v3249 = vrcp.pop %v3248
  %v3250 = vmul.f32 %v3248, %v3249
  %v3251 = vsub.f32 1.0, %v3250
  %v3252 = vmul.f32 %v3249, %v3251
  %v3253 = vadd.f32 %v3249, %v3252
  %vm3254 = vweird.f32 %v3248
  %vm3255 = vweird.f32 %v3249
  %vm3256 = vmor %vm3254, %vm3255
  %v3257 = vsel %vm3256, %v3249, %v3253
  %v3258 = vand.u32 2147483647, %v3248
  %vm3259 = vcmp.eq.f32.partialorder %v3258, 8.507059e+37
  %v3260 = vand.u32 %v3248, 2147483648
  %v3261 = vor.u32 1.1754944e-38, %v3260
  %v3262 = vsel %vm3259, %v3261, %v3257
  %v3263 = vmul.f32 1.0, %v3262
  %v3264 = vxor.u32 %v2983, 2147483648
  %v3265 = vmul.f32 %v3264, 1.442695
  %v3266 = vpow.pop %v3265
  %v3267 = vadd.f32 %v3266, 1.0
  %v3268 = vrcp.pop %v3267
  %v3269 = vmul.f32 %v3267, %v3268
  %v3270 = vsub.f32 1.0, %v3269
  %v3271 = vmul.f32 %v3268, %v3270
  %v3272 = vadd.f32 %v3268, %v3271
  %vm3273 = vweird.f32 %v3267
  %vm3274 = vweird.f32 %v3268
  %vm3275 = vmor %vm3273, %vm3274
  %v3276 = vsel %vm3275, %v3268, %v3272
  %v3277 = vand.u32 2147483647, %v3267
  %vm3278 = vcmp.eq.f32.partialorder %v3277, 8.507059e+37
  %v3279 = vand.u32 %v3267, 2147483648
  %v3280 = vor.u32 1.1754944e-38, %v3279
  %v3281 = vsel %vm3278, %v3280, %v3276
  %v3282 = vmul.f32 1.0, %v3281
  %v3283 = vtanh.pop %v2984
  %v3284 = vxor.u32 %v2985, 2147483648
  %v3285 = vmul.f32 %v3284, 1.442695
  %v3286 = vpow.pop %v3285
  %v3287 = vadd.f32 %v3286, 1.0
  %v3288 = vrcp.pop %v3287
  %v3289 = vmul.f32 %v3287, %v3288
  %v3290 = vsub.f32 1.0, %v3289
  %v3291 = vmul.f32 %v3288, %v3290
  %v3292 = vadd.f32 %v3288, %v3291
  %vm3293 = vweird.f32 %v3287
  %vm3294 = vweird.f32 %v3288
  %vm3295 = vmor %vm3293, %vm3294
  %v3296 = vsel %vm3295, %v3288, %v3292
  %v3297 = vand.u32 2147483647, %v3287
  %vm3298 = vcmp.eq.f32.partialorder %v3297, 8.507059e+37
  %v3299 = vand.u32 %v3287, 2147483648
  %v3300 = vor.u32 1.1754944e-38, %v3299
  %v3301 = vsel %vm3298, %v3300, %v3296
  %v3302 = vmul.f32 1.0, %v3301
  %v3303 = vmul.f32 %v3282, %v2653
  %v3304 = vmul.f32 %v3263, %v3283
  %v3305 = vadd.f32 %v3303, %v3304
  %v3306 = vtanh.pop %v3305
  %v3307 = vmul.f32 %v3302, %v3306
  %v3308 = vxor.u32 %v3241, 2147483648
  %v3309 = vmul.f32 %v3308, 1.442695
  %v3310 = vpow.pop %v3309
  %v3311 = vadd.f32 %v3310, 1.0
  %v3312 = vrcp.pop %v3311
  %v3313 = vmul.f32 %v3311, %v3312
  %v3314 = vsub.f32 1.0, %v3313
  %v3315 = vmul.f32 %v3312, %v3314
  %v3316 = vadd.f32 %v3312, %v3315
  %vm3317 = vweird.f32 %v3311
  %vm3318 = vweird.f32 %v3312
  %vm3319 = vmor %vm3317, %vm3318
  %v3320 = vsel %vm3319, %v3312, %v3316
  %v3321 = vand.u32 2147483647, %v3311
  %vm3322 = vcmp.eq.f32.partialorder %v3321, 8.507059e+37
  %v3323 = vand.u32 %v3311, 2147483648
  %v3324 = vor.u32 1.1754944e-38, %v3323
  %v3325 = vsel %vm3322, %v3324, %v3320
  %v3326 = vmul.f32 1.0, %v3325
  %v3327 = vxor.u32 %v3242, 2147483648
  %v3328 = vmul.f32 %v3327, 1.442695
  %v3329 = vpow.pop %v3328
  %v3330 = vadd.f32 %v3329, 1.0
  %v3331 = vrcp.pop %v3330
  %v3332 = vmul.f32 %v3330, %v3331
  %v3333 = vsub.f32 1.0, %v3332
  %v3334 = vmul.f32 %v3331, %v3333
  %v3335 = vadd.f32 %v3331, %v3334
  %vm3336 = vweird.f32 %v3330
  %vm3337 = vweird.f32 %v3331
  %vm3338 = vmor %vm3336, %vm3337
  %v3339 = vsel %vm3338, %v3331, %v3335
  %v3340 = vand.u32 2147483647, %v3330
  %vm3341 = vcmp.eq.f32.partialorder %v3340, 8.507059e+37
  %v3342 = vand.u32 %v3330, 2147483648
  %v3343 = vor.u32 1.1754944e-38, %v3342
  %v3344 = vsel %vm3341, %v3343, %v3339
  %v3345 = vmul.f32 1.0, %v3344
  %v3346 = vtanh.pop %v3243
  %v3347 = vxor.u32 %v3244, 2147483648
  %v3348 = vmul.f32 %v3347, 1.442695
  %v3349 = vpow.pop %v3348
  %v3350 = vadd.f32 %v3349, 1.0
  %v3351 = vrcp.pop %v3350
  %v3352 = vmul.f32 %v3350, %v3351
  %v3353 = vsub.f32 1.0, %v3352
  %v3354 = vmul.f32 %v3351, %v3353
  %v3355 = vadd.f32 %v3351, %v3354
  %vm3356 = vweird.f32 %v3350
  %vm3357 = vweird.f32 %v3351
  %vm3358 = vmor %vm3356, %vm3357
  %v3359 = vsel %vm3358, %v3351, %v3355
  %v3360 = vand.u32 2147483647, %v3350
  %vm3361 = vcmp.eq.f32.partialorder %v3360, 8.507059e+37
  %v3362 = vand.u32 %v3350, 2147483648
  %v3363 = vor.u32 1.1754944e-38, %v3362
  %v3364 = vsel %vm3361, %v3363, %v3359
  %v3365 = vmul.f32 1.0, %v3364
  %v3366 = vmul.f32 %v3345, %v2716
  %v3367 = vmul.f32 %v3326, %v3346
  %v3368 = vadd.f32 %v3366, %v3367
  %v3369 = vtanh.pop %v3368
  %v3370 = vmul.f32 %v3365, %v3369
  %v3371 = vld [vmem:[#allocation4] sm:$0xff]
  %v3372 = vadd.f32 %v3371, %v3307
  %3373 = vst [vmem:[#allocation4] sm:$0xff] %v3372
  %v3374 = vld [vmem:[#allocation5] sm:$0xff]
  %v3375 = vadd.f32 %v3374, %v3370
  %3376 = vst [vmem:[#allocation5] sm:$0xff] %v3375
  %v3377 = vpack.c.bf16 %v3307, %v3307
  %v3378 = vpack.c.bf16 %v3370, %v3370
  %s3379 = scalar_lea.vmem [#allocation2], 64
  %v3380 = vld [vmem:[%s3379] sm:$0xff]
  %v3381 = vld [vmem:[%s3379 + $0x8] sm:$0xff]
  %v3382 = vunpack.c.l.bf16 %v3380
  %v3383 = vunpack.c.h.bf16 %v3380
  %v3384 = vunpack.c.l.bf16 %v3381
  %v3385 = vunpack.c.h.bf16 %v3381
  %v3386 = vld [vmem:[%s3] sm:$0xff]
  %v3387 = vld [vmem:[%s3 + $0x8] sm:$0xff]
  %v3388 = vld [vmem:[%s3 + $0x10] sm:$0xff]
  %v3389 = vld [vmem:[%s3 + $0x18] sm:$0xff]
  %v3390 = vld [vmem:[%s3 + $0x20] sm:$0xff]
  %v3391 = vld [vmem:[%s3 + $0x28] sm:$0xff]
  %v3392 = vld [vmem:[%s3 + $0x30] sm:$0xff]
  %v3393 = vld [vmem:[%s3 + $0x38] sm:$0xff]
  %v3394 = vld [vmem:[%s3 + $0x40] sm:$0xff]
  %v3395 = vld [vmem:[%s3 + $0x48] sm:$0xff]
  %v3396 = vld [vmem:[%s3 + $0x50] sm:$0xff]
  %v3397 = vld [vmem:[%s3 + $0x58] sm:$0xff]
  %v3398 = vld [vmem:[%s3 + $0x60] sm:$0xff]
  %v3399 = vld [vmem:[%s3 + $0x68] sm:$0xff]
  %v3400 = vld [vmem:[%s3 + $0x70] sm:$0xff]
  %v3401 = vld [vmem:[%s3 + $0x78] sm:$0xff]
  %v3402 = vld [vmem:[%s3 + $0x80] sm:$0xff]
  %v3403 = vld [vmem:[%s3 + $0x88] sm:$0xff]
  %v3404 = vld [vmem:[%s3 + $0x90] sm:$0xff]
  %v3405 = vld [vmem:[%s3 + $0x98] sm:$0xff]
  %v3406 = vld [vmem:[%s3 + $0xa0] sm:$0xff]
  %v3407 = vld [vmem:[%s3 + $0xa8] sm:$0xff]
  %v3408 = vld [vmem:[%s3 + $0xb0] sm:$0xff]
  %v3409 = vld [vmem:[%s3 + $0xb8] sm:$0xff]
  %v3410 = vld [vmem:[%s3 + $0xc0] sm:$0xff]
  %v3411 = vld [vmem:[%s3 + $0xc8] sm:$0xff]
  %v3412 = vld [vmem:[%s3 + $0xd0] sm:$0xff]
  %v3413 = vld [vmem:[%s3 + $0xd8] sm:$0xff]
  %v3414 = vld [vmem:[%s3 + $0xe0] sm:$0xff]
  %v3415 = vld [vmem:[%s3 + $0xe8] sm:$0xff]
  %v3416 = vld [vmem:[%s3 + $0xf0] sm:$0xff]
  %v3417 = vld [vmem:[%s3 + $0xf8] sm:$0xff]
  %v3450 = vunpack.c.l.b16 %v3386
  %v3451 = vunpack.c.h.b16 %v3386
  %v3452 = vunpack.c.l.b16 %v3387
  %v3453 = vunpack.c.h.b16 %v3387
  %v3454 = vunpack.c.l.b16 %v3388
  %v3455 = vunpack.c.h.b16 %v3388
  %v3456 = vunpack.c.l.b16 %v3389
  %v3457 = vunpack.c.h.b16 %v3389
  %v3458 = vunpack.c.l.b16 %v3390
  %v3459 = vunpack.c.h.b16 %v3390
  %v3460 = vunpack.c.l.b16 %v3391
  %v3461 = vunpack.c.h.b16 %v3391
  %v3462 = vunpack.c.l.b16 %v3392
  %v3463 = vunpack.c.h.b16 %v3392
  %v3464 = vunpack.c.l.b16 %v3393
  %v3465 = vunpack.c.h.b16 %v3393
  %v3466 = vunpack.c.l.b16 %v3394
  %v3467 = vunpack.c.h.b16 %v3394
  %v3468 = vunpack.c.l.b16 %v3395
  %v3469 = vunpack.c.h.b16 %v3395
  %v3470 = vunpack.c.l.b16 %v3396
  %v3471 = vunpack.c.h.b16 %v3396
  %v3472 = vunpack.c.l.b16 %v3397
  %v3473 = vunpack.c.h.b16 %v3397
  %v3474 = vunpack.c.l.b16 %v3398
  %v3475 = vunpack.c.h.b16 %v3398
  %v3476 = vunpack.c.l.b16 %v3399
  %v3477 = vunpack.c.h.b16 %v3399
  %v3478 = vunpack.c.l.b16 %v3400
  %v3479 = vunpack.c.h.b16 %v3400
  %v3480 = vunpack.c.l.b16 %v3401
  %v3481 = vunpack.c.h.b16 %v3401
  %v3482 = vunpack.c.l.b16 %v3402
  %v3483 = vunpack.c.h.b16 %v3402
  %v3484 = vunpack.c.l.b16 %v3403
  %v3485 = vunpack.c.h.b16 %v3403
  %v3486 = vunpack.c.l.b16 %v3404
  %v3487 = vunpack.c.h.b16 %v3404
  %v3488 = vunpack.c.l.b16 %v3405
  %v3489 = vunpack.c.h.b16 %v3405
  %v3490 = vunpack.c.l.b16 %v3406
  %v3491 = vunpack.c.h.b16 %v3406
  %v3492 = vunpack.c.l.b16 %v3407
  %v3493 = vunpack.c.h.b16 %v3407
  %v3494 = vunpack.c.l.b16 %v3408
  %v3495 = vunpack.c.h.b16 %v3408
  %v3496 = vunpack.c.l.b16 %v3409
  %v3497 = vunpack.c.h.b16 %v3409
  %v3498 = vunpack.c.l.b16 %v3410
  %v3499 = vunpack.c.h.b16 %v3410
  %v3500 = vunpack.c.l.b16 %v3411
  %v3501 = vunpack.c.h.b16 %v3411
  %v3502 = vunpack.c.l.b16 %v3412
  %v3503 = vunpack.c.h.b16 %v3412
  %v3504 = vunpack.c.l.b16 %v3413
  %v3505 = vunpack.c.h.b16 %v3413
  %v3506 = vunpack.c.l.b16 %v3414
  %v3507 = vunpack.c.h.b16 %v3414
  %v3508 = vunpack.c.l.b16 %v3415
  %v3509 = vunpack.c.h.b16 %v3415
  %v3510 = vunpack.c.l.b16 %v3416
  %v3511 = vunpack.c.h.b16 %v3416
  %v3512 = vunpack.c.l.b16 %v3417
  %v3513 = vunpack.c.h.b16 %v3417
  %v3514 = vpack.c.b16 %v3454, %v3450
  %v3515 = vpack.c.b16 %v3455, %v3451
  %v3516 = vpack.c.b16 %v3456, %v3452
  %v3517 = vpack.c.b16 %v3457, %v3453
  %v3518 = vpack.c.b16 %v3462, %v3458
  %v3519 = vpack.c.b16 %v3463, %v3459
  %v3520 = vpack.c.b16 %v3464, %v3460
  %v3521 = vpack.c.b16 %v3465, %v3461
  %v3522 = vpack.c.b16 %v3470, %v3466
  %v3523 = vpack.c.b16 %v3471, %v3467
  %v3524 = vpack.c.b16 %v3472, %v3468
  %v3525 = vpack.c.b16 %v3473, %v3469
  %v3526 = vpack.c.b16 %v3478, %v3474
  %v3527 = vpack.c.b16 %v3479, %v3475
  %v3528 = vpack.c.b16 %v3480, %v3476
  %v3529 = vpack.c.b16 %v3481, %v3477
  %v3530 = vpack.c.b16 %v3486, %v3482
  %v3531 = vpack.c.b16 %v3487, %v3483
  %v3532 = vpack.c.b16 %v3488, %v3484
  %v3533 = vpack.c.b16 %v3489, %v3485
  %v3534 = vpack.c.b16 %v3494, %v3490
  %v3535 = vpack.c.b16 %v3495, %v3491
  %v3536 = vpack.c.b16 %v3496, %v3492
  %v3537 = vpack.c.b16 %v3497, %v3493
  %v3538 = vpack.c.b16 %v3502, %v3498
  %v3539 = vpack.c.b16 %v3503, %v3499
  %v3540 = vpack.c.b16 %v3504, %v3500
  %v3541 = vpack.c.b16 %v3505, %v3501
  %v3542 = vpack.c.b16 %v3510, %v3506
  %v3543 = vpack.c.b16 %v3511, %v3507
  %v3544 = vpack.c.b16 %v3512, %v3508
  %v3545 = vpack.c.b16 %v3513, %v3509
  %3578 = vmatpush.bf16.msra.mxu0 %v3542
  %3579 = vmatpush.bf16.msra.mxu0 %v3538
  %3580 = vmatpush.bf16.msra.mxu0 %v3534
  %3581 = vmatpush.bf16.msra.mxu0 %v3530
  %3582 = vmatpush.bf16.msra.mxu0 %v3526
  %3583 = vmatpush.bf16.msra.mxu0 %v3522
  %3584 = vmatpush.bf16.msra.mxu0 %v3518
  %3585 = vmatpush.bf16.msra.mxu0 %v3514
  %3586 = vmatmul.bf16.gmra.mxu0 %v3377
  %v3587 = vpop.f32.mrf.mxu0
  %v3588 = vadd.f32 0.0, %v3587
  %v3589 = vpop.f32.mrf.mxu0
  %3590 = vdwg.mxu0
  %3591 = vmatpush.bf16.msra.mxu0 %v3543
  %3592 = vmatpush.bf16.msra.mxu0 %v3539
  %3593 = vmatpush.bf16.msra.mxu0 %v3535
  %3594 = vmatpush.bf16.msra.mxu0 %v3531
  %3595 = vmatpush.bf16.msra.mxu0 %v3527
  %3596 = vmatpush.bf16.msra.mxu0 %v3523
  %3597 = vmatpush.bf16.msra.mxu0 %v3519
  %3598 = vmatpush.bf16.msra.mxu0 %v3515
  %3599 = vmatmul.bf16.gmra.mxu0 %v3377
  %v3600 = vpop.f32.mrf.mxu0
  %v3601 = vadd.f32 0.0, %v3600
  %v3602 = vpop.f32.mrf.mxu0
  %3603 = vdwg.mxu0
  %3604 = vmatpush.bf16.msra.mxu0 %v3544
  %3605 = vmatpush.bf16.msra.mxu0 %v3540
  %3606 = vmatpush.bf16.msra.mxu0 %v3536
  %3607 = vmatpush.bf16.msra.mxu0 %v3532
  %3608 = vmatpush.bf16.msra.mxu0 %v3528
  %3609 = vmatpush.bf16.msra.mxu0 %v3524
  %3610 = vmatpush.bf16.msra.mxu0 %v3520
  %3611 = vmatpush.bf16.msra.mxu0 %v3516
  %3612 = vmatmul.bf16.gmra.mxu0 %v3377
  %v3613 = vpop.f32.mrf.mxu0
  %v3614 = vadd.f32 0.0, %v3613
  %v3615 = vpop.f32.mrf.mxu0
  %3616 = vdwg.mxu0
  %3617 = vmatpush.bf16.msra.mxu0 %v3545
  %3618 = vmatpush.bf16.msra.mxu0 %v3541
  %3619 = vmatpush.bf16.msra.mxu0 %v3537
  %3620 = vmatpush.bf16.msra.mxu0 %v3533
  %3621 = vmatpush.bf16.msra.mxu0 %v3529
  %3622 = vmatpush.bf16.msra.mxu0 %v3525
  %3623 = vmatpush.bf16.msra.mxu0 %v3521
  %3624 = vmatpush.bf16.msra.mxu0 %v3517
  %3625 = vmatmul.bf16.gmra.mxu0 %v3377
  %v3626 = vpop.f32.mrf.mxu0
  %v3627 = vadd.f32 0.0, %v3626
  %v3628 = vpop.f32.mrf.mxu0
  %3629 = vdwg.mxu0
  %v3630 = vadd.f32 %v3382, %v3588
  %v3631 = vadd.f32 %v3383, %v3601
  %v3632 = vadd.f32 %v3384, %v3614
  %v3633 = vadd.f32 %v3385, %v3627
  %v3634 = vadd.f32 %v3630, %v752
  %v3635 = vadd.f32 %v3631, %v753
  %v3636 = vadd.f32 %v3632, %v754
  %v3637 = vadd.f32 %v3633, %v755
  %s3638 = scalar_lea.vmem [#allocation3], 48
  %v3639 = vld [vmem:[%s3638] sm:$0xff]
  %v3640 = vld [vmem:[%s3638 + $0x8] sm:$0xff]
  %v3641 = vunpack.c.l.bf16 %v3639
  %v3642 = vunpack.c.h.bf16 %v3639
  %v3643 = vunpack.c.l.bf16 %v3640
  %v3644 = vunpack.c.h.bf16 %v3640
  %v3645 = vld [vmem:[%s4] sm:$0xff]
  %v3646 = vld [vmem:[%s4 + $0x8] sm:$0xff]
  %v3647 = vld [vmem:[%s4 + $0x10] sm:$0xff]
  %v3648 = vld [vmem:[%s4 + $0x18] sm:$0xff]
  %v3649 = vld [vmem:[%s4 + $0x20] sm:$0xff]
  %v3650 = vld [vmem:[%s4 + $0x28] sm:$0xff]
  %v3651 = vld [vmem:[%s4 + $0x30] sm:$0xff]
  %v3652 = vld [vmem:[%s4 + $0x38] sm:$0xff]
  %v3653 = vld [vmem:[%s4 + $0x40] sm:$0xff]
  %v3654 = vld [vmem:[%s4 + $0x48] sm:$0xff]
  %v3655 = vld [vmem:[%s4 + $0x50] sm:$0xff]
  %v3656 = vld [vmem:[%s4 + $0x58] sm:$0xff]
  %v3657 = vld [vmem:[%s4 + $0x60] sm:$0xff]
  %v3658 = vld [vmem:[%s4 + $0x68] sm:$0xff]
  %v3659 = vld [vmem:[%s4 + $0x70] sm:$0xff]
  %v3660 = vld [vmem:[%s4 + $0x78] sm:$0xff]
  %v3661 = vld [vmem:[%s4 + $0x80] sm:$0xff]
  %v3662 = vld [vmem:[%s4 + $0x88] sm:$0xff]
  %v3663 = vld [vmem:[%s4 + $0x90] sm:$0xff]
  %v3664 = vld [vmem:[%s4 + $0x98] sm:$0xff]
  %v3665 = vld [vmem:[%s4 + $0xa0] sm:$0xff]
  %v3666 = vld [vmem:[%s4 + $0xa8] sm:$0xff]
  %v3667 = vld [vmem:[%s4 + $0xb0] sm:$0xff]
  %v3668 = vld [vmem:[%s4 + $0xb8] sm:$0xff]
  %v3669 = vld [vmem:[%s4 + $0xc0] sm:$0xff]
  %v3670 = vld [vmem:[%s4 + $0xc8] sm:$0xff]
  %v3671 = vld [vmem:[%s4 + $0xd0] sm:$0xff]
  %v3672 = vld [vmem:[%s4 + $0xd8] sm:$0xff]
  %v3673 = vld [vmem:[%s4 + $0xe0] sm:$0xff]
  %v3674 = vld [vmem:[%s4 + $0xe8] sm:$0xff]
  %v3675 = vld [vmem:[%s4 + $0xf0] sm:$0xff]
  %v3676 = vld [vmem:[%s4 + $0xf8] sm:$0xff]
  %v3709 = vunpack.c.l.b16 %v3645
  %v3710 = vunpack.c.h.b16 %v3645
  %v3711 = vunpack.c.l.b16 %v3646
  %v3712 = vunpack.c.h.b16 %v3646
  %v3713 = vunpack.c.l.b16 %v3647
  %v3714 = vunpack.c.h.b16 %v3647
  %v3715 = vunpack.c.l.b16 %v3648
  %v3716 = vunpack.c.h.b16 %v3648
  %v3717 = vunpack.c.l.b16 %v3649
  %v3718 = vunpack.c.h.b16 %v3649
  %v3719 = vunpack.c.l.b16 %v3650
  %v3720 = vunpack.c.h.b16 %v3650
  %v3721 = vunpack.c.l.b16 %v3651
  %v3722 = vunpack.c.h.b16 %v3651
  %v3723 = vunpack.c.l.b16 %v3652
  %v3724 = vunpack.c.h.b16 %v3652
  %v3725 = vunpack.c.l.b16 %v3653
  %v3726 = vunpack.c.h.b16 %v3653
  %v3727 = vunpack.c.l.b16 %v3654
  %v3728 = vunpack.c.h.b16 %v3654
  %v3729 = vunpack.c.l.b16 %v3655
  %v3730 = vunpack.c.h.b16 %v3655
  %v3731 = vunpack.c.l.b16 %v3656
  %v3732 = vunpack.c.h.b16 %v3656
  %v3733 = vunpack.c.l.b16 %v3657
  %v3734 = vunpack.c.h.b16 %v3657
  %v3735 = vunpack.c.l.b16 %v3658
  %v3736 = vunpack.c.h.b16 %v3658
  %v3737 = vunpack.c.l.b16 %v3659
  %v3738 = vunpack.c.h.b16 %v3659
  %v3739 = vunpack.c.l.b16 %v3660
  %v3740 = vunpack.c.h.b16 %v3660
  %v3741 = vunpack.c.l.b16 %v3661
  %v3742 = vunpack.c.h.b16 %v3661
  %v3743 = vunpack.c.l.b16 %v3662
  %v3744 = vunpack.c.h.b16 %v3662
  %v3745 = vunpack.c.l.b16 %v3663
  %v3746 = vunpack.c.h.b16 %v3663
  %v3747 = vunpack.c.l.b16 %v3664
  %v3748 = vunpack.c.h.b16 %v3664
  %v3749 = vunpack.c.l.b16 %v3665
  %v3750 = vunpack.c.h.b16 %v3665
  %v3751 = vunpack.c.l.b16 %v3666
  %v3752 = vunpack.c.h.b16 %v3666
  %v3753 = vunpack.c.l.b16 %v3667
  %v3754 = vunpack.c.h.b16 %v3667
  %v3755 = vunpack.c.l.b16 %v3668
  %v3756 = vunpack.c.h.b16 %v3668
  %v3757 = vunpack.c.l.b16 %v3669
  %v3758 = vunpack.c.h.b16 %v3669
  %v3759 = vunpack.c.l.b16 %v3670
  %v3760 = vunpack.c.h.b16 %v3670
  %v3761 = vunpack.c.l.b16 %v3671
  %v3762 = vunpack.c.h.b16 %v3671
  %v3763 = vunpack.c.l.b16 %v3672
  %v3764 = vunpack.c.h.b16 %v3672
  %v3765 = vunpack.c.l.b16 %v3673
  %v3766 = vunpack.c.h.b16 %v3673
  %v3767 = vunpack.c.l.b16 %v3674
  %v3768 = vunpack.c.h.b16 %v3674
  %v3769 = vunpack.c.l.b16 %v3675
  %v3770 = vunpack.c.h.b16 %v3675
  %v3771 = vunpack.c.l.b16 %v3676
  %v3772 = vunpack.c.h.b16 %v3676
  %v3773 = vpack.c.b16 %v3713, %v3709
  %v3774 = vpack.c.b16 %v3714, %v3710
  %v3775 = vpack.c.b16 %v3715, %v3711
  %v3776 = vpack.c.b16 %v3716, %v3712
  %v3777 = vpack.c.b16 %v3721, %v3717
  %v3778 = vpack.c.b16 %v3722, %v3718
  %v3779 = vpack.c.b16 %v3723, %v3719
  %v3780 = vpack.c.b16 %v3724, %v3720
  %v3781 = vpack.c.b16 %v3729, %v3725
  %v3782 = vpack.c.b16 %v3730, %v3726
  %v3783 = vpack.c.b16 %v3731, %v3727
  %v3784 = vpack.c.b16 %v3732, %v3728
  %v3785 = vpack.c.b16 %v3737, %v3733
  %v3786 = vpack.c.b16 %v3738, %v3734
  %v3787 = vpack.c.b16 %v3739, %v3735
  %v3788 = vpack.c.b16 %v3740, %v3736
  %v3789 = vpack.c.b16 %v3745, %v3741
  %v3790 = vpack.c.b16 %v3746, %v3742
  %v3791 = vpack.c.b16 %v3747, %v3743
  %v3792 = vpack.c.b16 %v3748, %v3744
  %v3793 = vpack.c.b16 %v3753, %v3749
  %v3794 = vpack.c.b16 %v3754, %v3750
  %v3795 = vpack.c.b16 %v3755, %v3751
  %v3796 = vpack.c.b16 %v3756, %v3752
  %v3797 = vpack.c.b16 %v3761, %v3757
  %v3798 = vpack.c.b16 %v3762, %v3758
  %v3799 = vpack.c.b16 %v3763, %v3759
  %v3800 = vpack.c.b16 %v3764, %v3760
  %v3801 = vpack.c.b16 %v3769, %v3765
  %v3802 = vpack.c.b16 %v3770, %v3766
  %v3803 = vpack.c.b16 %v3771, %v3767
  %v3804 = vpack.c.b16 %v3772, %v3768
  %3837 = vmatpush.bf16.msra.mxu0 %v3801
  %3838 = vmatpush.bf16.msra.mxu0 %v3797
  %3839 = vmatpush.bf16.msra.mxu0 %v3793
  %3840 = vmatpush.bf16.msra.mxu0 %v3789
  %3841 = vmatpush.bf16.msra.mxu0 %v3785
  %3842 = vmatpush.bf16.msra.mxu0 %v3781
  %3843 = vmatpush.bf16.msra.mxu0 %v3777
  %3844 = vmatpush.bf16.msra.mxu0 %v3773
  %3845 = vmatmul.bf16.gmra.mxu0 %v3378
  %v3846 = vpop.f32.mrf.mxu0
  %v3847 = vadd.f32 0.0, %v3846
  %v3848 = vpop.f32.mrf.mxu0
  %3849 = vdwg.mxu0
  %3850 = vmatpush.bf16.msra.mxu0 %v3802
  %3851 = vmatpush.bf16.msra.mxu0 %v3798
  %3852 = vmatpush.bf16.msra.mxu0 %v3794
  %3853 = vmatpush.bf16.msra.mxu0 %v3790
  %3854 = vmatpush.bf16.msra.mxu0 %v3786
  %3855 = vmatpush.bf16.msra.mxu0 %v3782
  %3856 = vmatpush.bf16.msra.mxu0 %v3778
  %3857 = vmatpush.bf16.msra.mxu0 %v3774
  %3858 = vmatmul.bf16.gmra.mxu0 %v3378
  %v3859 = vpop.f32.mrf.mxu0
  %v3860 = vadd.f32 0.0, %v3859
  %v3861 = vpop.f32.mrf.mxu0
  %3862 = vdwg.mxu0
  %3863 = vmatpush.bf16.msra.mxu0 %v3803
  %3864 = vmatpush.bf16.msra.mxu0 %v3799
  %3865 = vmatpush.bf16.msra.mxu0 %v3795
  %3866 = vmatpush.bf16.msra.mxu0 %v3791
  %3867 = vmatpush.bf16.msra.mxu0 %v3787
  %3868 = vmatpush.bf16.msra.mxu0 %v3783
  %3869 = vmatpush.bf16.msra.mxu0 %v3779
  %3870 = vmatpush.bf16.msra.mxu0 %v3775
  %3871 = vmatmul.bf16.gmra.mxu0 %v3378
  %v3872 = vpop.f32.mrf.mxu0
  %v3873 = vadd.f32 0.0, %v3872
  %v3874 = vpop.f32.mrf.mxu0
  %3875 = vdwg.mxu0
  %3876 = vmatpush.bf16.msra.mxu0 %v3804
  %3877 = vmatpush.bf16.msra.mxu0 %v3800
  %3878 = vmatpush.bf16.msra.mxu0 %v3796
  %3879 = vmatpush.bf16.msra.mxu0 %v3792
  %3880 = vmatpush.bf16.msra.mxu0 %v3788
  %3881 = vmatpush.bf16.msra.mxu0 %v3784
  %3882 = vmatpush.bf16.msra.mxu0 %v3780
  %3883 = vmatpush.bf16.msra.mxu0 %v3776
  %3884 = vmatmul.bf16.gmra.mxu0 %v3378
  %v3885 = vpop.f32.mrf.mxu0
  %v3886 = vadd.f32 0.0, %v3885
  %v3887 = vpop.f32.mrf.mxu0
  %3888 = vdwg.mxu0
  %v3889 = vadd.f32 %v3641, %v3847
  %v3890 = vadd.f32 %v3642, %v3860
  %v3891 = vadd.f32 %v3643, %v3873
  %v3892 = vadd.f32 %v3644, %v3886
  %v3893 = vadd.f32 %v3889, %v762
  %v3894 = vadd.f32 %v3890, %v763
  %v3895 = vadd.f32 %v3891, %v764
  %v3896 = vadd.f32 %v3892, %v765
  %v3897 = vxor.u32 %v3634, 2147483648
  %v3898 = vmul.f32 %v3897, 1.442695
  %v3899 = vpow.pop %v3898
  %v3900 = vadd.f32 %v3899, 1.0
  %v3901 = vrcp.pop %v3900
  %v3902 = vmul.f32 %v3900, %v3901
  %v3903 = vsub.f32 1.0, %v3902
  %v3904 = vmul.f32 %v3901, %v3903
  %v3905 = vadd.f32 %v3901, %v3904
  %vm3906 = vweird.f32 %v3900
  %vm3907 = vweird.f32 %v3901
  %vm3908 = vmor %vm3906, %vm3907
  %v3909 = vsel %vm3908, %v3901, %v3905
  %v3910 = vand.u32 2147483647, %v3900
  %vm3911 = vcmp.eq.f32.partialorder %v3910, 8.507059e+37
  %v3912 = vand.u32 %v3900, 2147483648
  %v3913 = vor.u32 1.1754944e-38, %v3912
  %v3914 = vsel %vm3911, %v3913, %v3909
  %v3915 = vmul.f32 1.0, %v3914
  %v3916 = vxor.u32 %v3635, 2147483648
  %v3917 = vmul.f32 %v3916, 1.442695
  %v3918 = vpow.pop %v3917
  %v3919 = vadd.f32 %v3918, 1.0
  %v3920 = vrcp.pop %v3919
  %v3921 = vmul.f32 %v3919, %v3920
  %v3922 = vsub.f32 1.0, %v3921
  %v3923 = vmul.f32 %v3920, %v3922
  %v3924 = vadd.f32 %v3920, %v3923
  %vm3925 = vweird.f32 %v3919
  %vm3926 = vweird.f32 %v3920
  %vm3927 = vmor %vm3925, %vm3926
  %v3928 = vsel %vm3927, %v3920, %v3924
  %v3929 = vand.u32 2147483647, %v3919
  %vm3930 = vcmp.eq.f32.partialorder %v3929, 8.507059e+37
  %v3931 = vand.u32 %v3919, 2147483648
  %v3932 = vor.u32 1.1754944e-38, %v3931
  %v3933 = vsel %vm3930, %v3932, %v3928
  %v3934 = vmul.f32 1.0, %v3933
  %v3935 = vtanh.pop %v3636
  %v3936 = vxor.u32 %v3637, 2147483648
  %v3937 = vmul.f32 %v3936, 1.442695
  %v3938 = vpow.pop %v3937
  %v3939 = vadd.f32 %v3938, 1.0
  %v3940 = vrcp.pop %v3939
  %v3941 = vmul.f32 %v3939, %v3940
  %v3942 = vsub.f32 1.0, %v3941
  %v3943 = vmul.f32 %v3940, %v3942
  %v3944 = vadd.f32 %v3940, %v3943
  %vm3945 = vweird.f32 %v3939
  %vm3946 = vweird.f32 %v3940
  %vm3947 = vmor %vm3945, %vm3946
  %v3948 = vsel %vm3947, %v3940, %v3944
  %v3949 = vand.u32 2147483647, %v3939
  %vm3950 = vcmp.eq.f32.partialorder %v3949, 8.507059e+37
  %v3951 = vand.u32 %v3939, 2147483648
  %v3952 = vor.u32 1.1754944e-38, %v3951
  %v3953 = vsel %vm3950, %v3952, %v3948
  %v3954 = vmul.f32 1.0, %v3953
  %v3955 = vmul.f32 %v3934, %v3305
  %v3956 = vmul.f32 %v3915, %v3935
  %v3957 = vadd.f32 %v3955, %v3956
  %v3958 = vtanh.pop %v3957
  %v3959 = vmul.f32 %v3954, %v3958
  %v3960 = vxor.u32 %v3893, 2147483648
  %v3961 = vmul.f32 %v3960, 1.442695
  %v3962 = vpow.pop %v3961
  %v3963 = vadd.f32 %v3962, 1.0
  %v3964 = vrcp.pop %v3963
  %v3965 = vmul.f32 %v3963, %v3964
  %v3966 = vsub.f32 1.0, %v3965
  %v3967 = vmul.f32 %v3964, %v3966
  %v3968 = vadd.f32 %v3964, %v3967
  %vm3969 = vweird.f32 %v3963
  %vm3970 = vweird.f32 %v3964
  %vm3971 = vmor %vm3969, %vm3970
  %v3972 = vsel %vm3971, %v3964, %v3968
  %v3973 = vand.u32 2147483647, %v3963
  %vm3974 = vcmp.eq.f32.partialorder %v3973, 8.507059e+37
  %v3975 = vand.u32 %v3963, 2147483648
  %v3976 = vor.u32 1.1754944e-38, %v3975
  %v3977 = vsel %vm3974, %v3976, %v3972
  %v3978 = vmul.f32 1.0, %v3977
  %v3979 = vxor.u32 %v3894, 2147483648
  %v3980 = vmul.f32 %v3979, 1.442695
  %v3981 = vpow.pop %v3980
  %v3982 = vadd.f32 %v3981, 1.0
  %v3983 = vrcp.pop %v3982
  %v3984 = vmul.f32 %v3982, %v3983
  %v3985 = vsub.f32 1.0, %v3984
  %v3986 = vmul.f32 %v3983, %v3985
  %v3987 = vadd.f32 %v3983, %v3986
  %vm3988 = vweird.f32 %v3982
  %vm3989 = vweird.f32 %v3983
  %vm3990 = vmor %vm3988, %vm3989
  %v3991 = vsel %vm3990, %v3983, %v3987
  %v3992 = vand.u32 2147483647, %v3982
  %vm3993 = vcmp.eq.f32.partialorder %v3992, 8.507059e+37
  %v3994 = vand.u32 %v3982, 2147483648
  %v3995 = vor.u32 1.1754944e-38, %v3994
  %v3996 = vsel %vm3993, %v3995, %v3991
  %v3997 = vmul.f32 1.0, %v3996
  %v3998 = vtanh.pop %v3895
  %v3999 = vxor.u32 %v3896, 2147483648
  %v4000 = vmul.f32 %v3999, 1.442695
  %v4001 = vpow.pop %v4000
  %v4002 = vadd.f32 %v4001, 1.0
  %v4003 = vrcp.pop %v4002
  %v4004 = vmul.f32 %v4002, %v4003
  %v4005 = vsub.f32 1.0, %v4004
  %v4006 = vmul.f32 %v4003, %v4005
  %v4007 = vadd.f32 %v4003, %v4006
  %vm4008 = vweird.f32 %v4002
  %vm4009 = vweird.f32 %v4003
  %vm4010 = vmor %vm4008, %vm4009
  %v4011 = vsel %vm4010, %v4003, %v4007
  %v4012 = vand.u32 2147483647, %v4002
  %vm4013 = vcmp.eq.f32.partialorder %v4012, 8.507059e+37
  %v4014 = vand.u32 %v4002, 2147483648
  %v4015 = vor.u32 1.1754944e-38, %v4014
  %v4016 = vsel %vm4013, %v4015, %v4011
  %v4017 = vmul.f32 1.0, %v4016
  %v4018 = vmul.f32 %v3997, %v3368
  %v4019 = vmul.f32 %v3978, %v3998
  %v4020 = vadd.f32 %v4018, %v4019
  %v4021 = vtanh.pop %v4020
  %v4022 = vmul.f32 %v4017, %v4021
  %v4023 = vld [vmem:[#allocation4] sm:$0xff]
  %v4024 = vadd.f32 %v4023, %v3959
  %4025 = vst [vmem:[#allocation4] sm:$0xff] %v4024
  %v4026 = vld [vmem:[#allocation5] sm:$0xff]
  %v4027 = vadd.f32 %v4026, %v4022
  %4028 = vst [vmem:[#allocation5] sm:$0xff] %v4027
  %v4029 = vpack.c.bf16 %v3959, %v3959
  %v4030 = vpack.c.bf16 %v4022, %v4022
  %s4031 = scalar_lea.vmem [#allocation2], 80
  %v4032 = vld [vmem:[%s4031] sm:$0xff]
  %v4033 = vld [vmem:[%s4031 + $0x8] sm:$0xff]
  %v4034 = vunpack.c.l.bf16 %v4032
  %v4035 = vunpack.c.h.bf16 %v4032
  %v4036 = vunpack.c.l.bf16 %v4033
  %v4037 = vunpack.c.h.bf16 %v4033
  %v4038 = vld [vmem:[%s3] sm:$0xff]
  %v4039 = vld [vmem:[%s3 + $0x8] sm:$0xff]
  %v4040 = vld [vmem:[%s3 + $0x10] sm:$0xff]
  %v4041 = vld [vmem:[%s3 + $0x18] sm:$0xff]
  %v4042 = vld [vmem:[%s3 + $0x20] sm:$0xff]
  %v4043 = vld [vmem:[%s3 + $0x28] sm:$0xff]
  %v4044 = vld [vmem:[%s3 + $0x30] sm:$0xff]
  %v4045 = vld [vmem:[%s3 + $0x38] sm:$0xff]
  %v4046 = vld [vmem:[%s3 + $0x40] sm:$0xff]
  %v4047 = vld [vmem:[%s3 + $0x48] sm:$0xff]
  %v4048 = vld [vmem:[%s3 + $0x50] sm:$0xff]
  %v4049 = vld [vmem:[%s3 + $0x58] sm:$0xff]
  %v4050 = vld [vmem:[%s3 + $0x60] sm:$0xff]
  %v4051 = vld [vmem:[%s3 + $0x68] sm:$0xff]
  %v4052 = vld [vmem:[%s3 + $0x70] sm:$0xff]
  %v4053 = vld [vmem:[%s3 + $0x78] sm:$0xff]
  %v4054 = vld [vmem:[%s3 + $0x80] sm:$0xff]
  %v4055 = vld [vmem:[%s3 + $0x88] sm:$0xff]
  %v4056 = vld [vmem:[%s3 + $0x90] sm:$0xff]
  %v4057 = vld [vmem:[%s3 + $0x98] sm:$0xff]
  %v4058 = vld [vmem:[%s3 + $0xa0] sm:$0xff]
  %v4059 = vld [vmem:[%s3 + $0xa8] sm:$0xff]
  %v4060 = vld [vmem:[%s3 + $0xb0] sm:$0xff]
  %v4061 = vld [vmem:[%s3 + $0xb8] sm:$0xff]
  %v4062 = vld [vmem:[%s3 + $0xc0] sm:$0xff]
  %v4063 = vld [vmem:[%s3 + $0xc8] sm:$0xff]
  %v4064 = vld [vmem:[%s3 + $0xd0] sm:$0xff]
  %v4065 = vld [vmem:[%s3 + $0xd8] sm:$0xff]
  %v4066 = vld [vmem:[%s3 + $0xe0] sm:$0xff]
  %v4067 = vld [vmem:[%s3 + $0xe8] sm:$0xff]
  %v4068 = vld [vmem:[%s3 + $0xf0] sm:$0xff]
  %v4069 = vld [vmem:[%s3 + $0xf8] sm:$0xff]
  %v4102 = vunpack.c.l.b16 %v4038
  %v4103 = vunpack.c.h.b16 %v4038
  %v4104 = vunpack.c.l.b16 %v4039
  %v4105 = vunpack.c.h.b16 %v4039
  %v4106 = vunpack.c.l.b16 %v4040
  %v4107 = vunpack.c.h.b16 %v4040
  %v4108 = vunpack.c.l.b16 %v4041
  %v4109 = vunpack.c.h.b16 %v4041
  %v4110 = vunpack.c.l.b16 %v4042
  %v4111 = vunpack.c.h.b16 %v4042
  %v4112 = vunpack.c.l.b16 %v4043
  %v4113 = vunpack.c.h.b16 %v4043
  %v4114 = vunpack.c.l.b16 %v4044
  %v4115 = vunpack.c.h.b16 %v4044
  %v4116 = vunpack.c.l.b16 %v4045
  %v4117 = vunpack.c.h.b16 %v4045
  %v4118 = vunpack.c.l.b16 %v4046
  %v4119 = vunpack.c.h.b16 %v4046
  %v4120 = vunpack.c.l.b16 %v4047
  %v4121 = vunpack.c.h.b16 %v4047
  %v4122 = vunpack.c.l.b16 %v4048
  %v4123 = vunpack.c.h.b16 %v4048
  %v4124 = vunpack.c.l.b16 %v4049
  %v4125 = vunpack.c.h.b16 %v4049
  %v4126 = vunpack.c.l.b16 %v4050
  %v4127 = vunpack.c.h.b16 %v4050
  %v4128 = vunpack.c.l.b16 %v4051
  %v4129 = vunpack.c.h.b16 %v4051
  %v4130 = vunpack.c.l.b16 %v4052
  %v4131 = vunpack.c.h.b16 %v4052
  %v4132 = vunpack.c.l.b16 %v4053
  %v4133 = vunpack.c.h.b16 %v4053
  %v4134 = vunpack.c.l.b16 %v4054
  %v4135 = vunpack.c.h.b16 %v4054
  %v4136 = vunpack.c.l.b16 %v4055
  %v4137 = vunpack.c.h.b16 %v4055
  %v4138 = vunpack.c.l.b16 %v4056
  %v4139 = vunpack.c.h.b16 %v4056
  %v4140 = vunpack.c.l.b16 %v4057
  %v4141 = vunpack.c.h.b16 %v4057
  %v4142 = vunpack.c.l.b16 %v4058
  %v4143 = vunpack.c.h.b16 %v4058
  %v4144 = vunpack.c.l.b16 %v4059
  %v4145 = vunpack.c.h.b16 %v4059
  %v4146 = vunpack.c.l.b16 %v4060
  %v4147 = vunpack.c.h.b16 %v4060
  %v4148 = vunpack.c.l.b16 %v4061
  %v4149 = vunpack.c.h.b16 %v4061
  %v4150 = vunpack.c.l.b16 %v4062
  %v4151 = vunpack.c.h.b16 %v4062
  %v4152 = vunpack.c.l.b16 %v4063
  %v4153 = vunpack.c.h.b16 %v4063
  %v4154 = vunpack.c.l.b16 %v4064
  %v4155 = vunpack.c.h.b16 %v4064
  %v4156 = vunpack.c.l.b16 %v4065
  %v4157 = vunpack.c.h.b16 %v4065
  %v4158 = vunpack.c.l.b16 %v4066
  %v4159 = vunpack.c.h.b16 %v4066
  %v4160 = vunpack.c.l.b16 %v4067
  %v4161 = vunpack.c.h.b16 %v4067
  %v4162 = vunpack.c.l.b16 %v4068
  %v4163 = vunpack.c.h.b16 %v4068
  %v4164 = vunpack.c.l.b16 %v4069
  %v4165 = vunpack.c.h.b16 %v4069
  %v4166 = vpack.c.b16 %v4106, %v4102
  %v4167 = vpack.c.b16 %v4107, %v4103
  %v4168 = vpack.c.b16 %v4108, %v4104
  %v4169 = vpack.c.b16 %v4109, %v4105
  %v4170 = vpack.c.b16 %v4114, %v4110
  %v4171 = vpack.c.b16 %v4115, %v4111
  %v4172 = vpack.c.b16 %v4116, %v4112
  %v4173 = vpack.c.b16 %v4117, %v4113
  %v4174 = vpack.c.b16 %v4122, %v4118
  %v4175 = vpack.c.b16 %v4123, %v4119
  %v4176 = vpack.c.b16 %v4124, %v4120
  %v4177 = vpack.c.b16 %v4125, %v4121
  %v4178 = vpack.c.b16 %v4130, %v4126
  %v4179 = vpack.c.b16 %v4131, %v4127
  %v4180 = vpack.c.b16 %v4132, %v4128
  %v4181 = vpack.c.b16 %v4133, %v4129
  %v4182 = vpack.c.b16 %v4138, %v4134
  %v4183 = vpack.c.b16 %v4139, %v4135
  %v4184 = vpack.c.b16 %v4140, %v4136
  %v4185 = vpack.c.b16 %v4141, %v4137
  %v4186 = vpack.c.b16 %v4146, %v4142
  %v4187 = vpack.c.b16 %v4147, %v4143
  %v4188 = vpack.c.b16 %v4148, %v4144
  %v4189 = vpack.c.b16 %v4149, %v4145
  %v4190 = vpack.c.b16 %v4154, %v4150
  %v4191 = vpack.c.b16 %v4155, %v4151
  %v4192 = vpack.c.b16 %v4156, %v4152
  %v4193 = vpack.c.b16 %v4157, %v4153
  %v4194 = vpack.c.b16 %v4162, %v4158
  %v4195 = vpack.c.b16 %v4163, %v4159
  %v4196 = vpack.c.b16 %v4164, %v4160
  %v4197 = vpack.c.b16 %v4165, %v4161
  %4230 = vmatpush.bf16.msra.mxu0 %v4194
  %4231 = vmatpush.bf16.msra.mxu0 %v4190
  %4232 = vmatpush.bf16.msra.mxu0 %v4186
  %4233 = vmatpush.bf16.msra.mxu0 %v4182
  %4234 = vmatpush.bf16.msra.mxu0 %v4178
  %4235 = vmatpush.bf16.msra.mxu0 %v4174
  %4236 = vmatpush.bf16.msra.mxu0 %v4170
  %4237 = vmatpush.bf16.msra.mxu0 %v4166
  %4238 = vmatmul.bf16.gmra.mxu0 %v4029
  %v4239 = vpop.f32.mrf.mxu0
  %v4240 = vadd.f32 0.0, %v4239
  %v4241 = vpop.f32.mrf.mxu0
  %4242 = vdwg.mxu0
  %4243 = vmatpush.bf16.msra.mxu0 %v4195
  %4244 = vmatpush.bf16.msra.mxu0 %v4191
  %4245 = vmatpush.bf16.msra.mxu0 %v4187
  %4246 = vmatpush.bf16.msra.mxu0 %v4183
  %4247 = vmatpush.bf16.msra.mxu0 %v4179
  %4248 = vmatpush.bf16.msra.mxu0 %v4175
  %4249 = vmatpush.bf16.msra.mxu0 %v4171
  %4250 = vmatpush.bf16.msra.mxu0 %v4167
  %4251 = vmatmul.bf16.gmra.mxu0 %v4029
  %v4252 = vpop.f32.mrf.mxu0
  %v4253 = vadd.f32 0.0, %v4252
  %v4254 = vpop.f32.mrf.mxu0
  %4255 = vdwg.mxu0
  %4256 = vmatpush.bf16.msra.mxu0 %v4196
  %4257 = vmatpush.bf16.msra.mxu0 %v4192
  %4258 = vmatpush.bf16.msra.mxu0 %v4188
  %4259 = vmatpush.bf16.msra.mxu0 %v4184
  %4260 = vmatpush.bf16.msra.mxu0 %v4180
  %4261 = vmatpush.bf16.msra.mxu0 %v4176
  %4262 = vmatpush.bf16.msra.mxu0 %v4172
  %4263 = vmatpush.bf16.msra.mxu0 %v4168
  %4264 = vmatmul.bf16.gmra.mxu0 %v4029
  %v4265 = vpop.f32.mrf.mxu0
  %v4266 = vadd.f32 0.0, %v4265
  %v4267 = vpop.f32.mrf.mxu0
  %4268 = vdwg.mxu0
  %4269 = vmatpush.bf16.msra.mxu0 %v4197
  %4270 = vmatpush.bf16.msra.mxu0 %v4193
  %4271 = vmatpush.bf16.msra.mxu0 %v4189
  %4272 = vmatpush.bf16.msra.mxu0 %v4185
  %4273 = vmatpush.bf16.msra.mxu0 %v4181
  %4274 = vmatpush.bf16.msra.mxu0 %v4177
  %4275 = vmatpush.bf16.msra.mxu0 %v4173
  %4276 = vmatpush.bf16.msra.mxu0 %v4169
  %4277 = vmatmul.bf16.gmra.mxu0 %v4029
  %v4278 = vpop.f32.mrf.mxu0
  %v4279 = vadd.f32 0.0, %v4278
  %v4280 = vpop.f32.mrf.mxu0
  %4281 = vdwg.mxu0
  %v4282 = vadd.f32 %v4034, %v4240
  %v4283 = vadd.f32 %v4035, %v4253
  %v4284 = vadd.f32 %v4036, %v4266
  %v4285 = vadd.f32 %v4037, %v4279
  %v4286 = vadd.f32 %v4282, %v752
  %v4287 = vadd.f32 %v4283, %v753
  %v4288 = vadd.f32 %v4284, %v754
  %v4289 = vadd.f32 %v4285, %v755
  %s4290 = scalar_lea.vmem [#allocation3], 32
  %v4291 = vld [vmem:[%s4290] sm:$0xff]
  %v4292 = vld [vmem:[%s4290 + $0x8] sm:$0xff]
  %v4293 = vunpack.c.l.bf16 %v4291
  %v4294 = vunpack.c.h.bf16 %v4291
  %v4295 = vunpack.c.l.bf16 %v4292
  %v4296 = vunpack.c.h.bf16 %v4292
  %v4297 = vld [vmem:[%s4] sm:$0xff]
  %v4298 = vld [vmem:[%s4 + $0x8] sm:$0xff]
  %v4299 = vld [vmem:[%s4 + $0x10] sm:$0xff]
  %v4300 = vld [vmem:[%s4 + $0x18] sm:$0xff]
  %v4301 = vld [vmem:[%s4 + $0x20] sm:$0xff]
  %v4302 = vld [vmem:[%s4 + $0x28] sm:$0xff]
  %v4303 = vld [vmem:[%s4 + $0x30] sm:$0xff]
  %v4304 = vld [vmem:[%s4 + $0x38] sm:$0xff]
  %v4305 = vld [vmem:[%s4 + $0x40] sm:$0xff]
  %v4306 = vld [vmem:[%s4 + $0x48] sm:$0xff]
  %v4307 = vld [vmem:[%s4 + $0x50] sm:$0xff]
  %v4308 = vld [vmem:[%s4 + $0x58] sm:$0xff]
  %v4309 = vld [vmem:[%s4 + $0x60] sm:$0xff]
  %v4310 = vld [vmem:[%s4 + $0x68] sm:$0xff]
  %v4311 = vld [vmem:[%s4 + $0x70] sm:$0xff]
  %v4312 = vld [vmem:[%s4 + $0x78] sm:$0xff]
  %v4313 = vld [vmem:[%s4 + $0x80] sm:$0xff]
  %v4314 = vld [vmem:[%s4 + $0x88] sm:$0xff]
  %v4315 = vld [vmem:[%s4 + $0x90] sm:$0xff]
  %v4316 = vld [vmem:[%s4 + $0x98] sm:$0xff]
  %v4317 = vld [vmem:[%s4 + $0xa0] sm:$0xff]
  %v4318 = vld [vmem:[%s4 + $0xa8] sm:$0xff]
  %v4319 = vld [vmem:[%s4 + $0xb0] sm:$0xff]
  %v4320 = vld [vmem:[%s4 + $0xb8] sm:$0xff]
  %v4321 = vld [vmem:[%s4 + $0xc0] sm:$0xff]
  %v4322 = vld [vmem:[%s4 + $0xc8] sm:$0xff]
  %v4323 = vld [vmem:[%s4 + $0xd0] sm:$0xff]
  %v4324 = vld [vmem:[%s4 + $0xd8] sm:$0xff]
  %v4325 = vld [vmem:[%s4 + $0xe0] sm:$0xff]
  %v4326 = vld [vmem:[%s4 + $0xe8] sm:$0xff]
  %v4327 = vld [vmem:[%s4 + $0xf0] sm:$0xff]
  %v4328 = vld [vmem:[%s4 + $0xf8] sm:$0xff]
  %v4361 = vunpack.c.l.b16 %v4297
  %v4362 = vunpack.c.h.b16 %v4297
  %v4363 = vunpack.c.l.b16 %v4298
  %v4364 = vunpack.c.h.b16 %v4298
  %v4365 = vunpack.c.l.b16 %v4299
  %v4366 = vunpack.c.h.b16 %v4299
  %v4367 = vunpack.c.l.b16 %v4300
  %v4368 = vunpack.c.h.b16 %v4300
  %v4369 = vunpack.c.l.b16 %v4301
  %v4370 = vunpack.c.h.b16 %v4301
  %v4371 = vunpack.c.l.b16 %v4302
  %v4372 = vunpack.c.h.b16 %v4302
  %v4373 = vunpack.c.l.b16 %v4303
  %v4374 = vunpack.c.h.b16 %v4303
  %v4375 = vunpack.c.l.b16 %v4304
  %v4376 = vunpack.c.h.b16 %v4304
  %v4377 = vunpack.c.l.b16 %v4305
  %v4378 = vunpack.c.h.b16 %v4305
  %v4379 = vunpack.c.l.b16 %v4306
  %v4380 = vunpack.c.h.b16 %v4306
  %v4381 = vunpack.c.l.b16 %v4307
  %v4382 = vunpack.c.h.b16 %v4307
  %v4383 = vunpack.c.l.b16 %v4308
  %v4384 = vunpack.c.h.b16 %v4308
  %v4385 = vunpack.c.l.b16 %v4309
  %v4386 = vunpack.c.h.b16 %v4309
  %v4387 = vunpack.c.l.b16 %v4310
  %v4388 = vunpack.c.h.b16 %v4310
  %v4389 = vunpack.c.l.b16 %v4311
  %v4390 = vunpack.c.h.b16 %v4311
  %v4391 = vunpack.c.l.b16 %v4312
  %v4392 = vunpack.c.h.b16 %v4312
  %v4393 = vunpack.c.l.b16 %v4313
  %v4394 = vunpack.c.h.b16 %v4313
  %v4395 = vunpack.c.l.b16 %v4314
  %v4396 = vunpack.c.h.b16 %v4314
  %v4397 = vunpack.c.l.b16 %v4315
  %v4398 = vunpack.c.h.b16 %v4315
  %v4399 = vunpack.c.l.b16 %v4316
  %v4400 = vunpack.c.h.b16 %v4316
  %v4401 = vunpack.c.l.b16 %v4317
  %v4402 = vunpack.c.h.b16 %v4317
  %v4403 = vunpack.c.l.b16 %v4318
  %v4404 = vunpack.c.h.b16 %v4318
  %v4405 = vunpack.c.l.b16 %v4319
  %v4406 = vunpack.c.h.b16 %v4319
  %v4407 = vunpack.c.l.b16 %v4320
  %v4408 = vunpack.c.h.b16 %v4320
  %v4409 = vunpack.c.l.b16 %v4321
  %v4410 = vunpack.c.h.b16 %v4321
  %v4411 = vunpack.c.l.b16 %v4322
  %v4412 = vunpack.c.h.b16 %v4322
  %v4413 = vunpack.c.l.b16 %v4323
  %v4414 = vunpack.c.h.b16 %v4323
  %v4415 = vunpack.c.l.b16 %v4324
  %v4416 = vunpack.c.h.b16 %v4324
  %v4417 = vunpack.c.l.b16 %v4325
  %v4418 = vunpack.c.h.b16 %v4325
  %v4419 = vunpack.c.l.b16 %v4326
  %v4420 = vunpack.c.h.b16 %v4326
  %v4421 = vunpack.c.l.b16 %v4327
  %v4422 = vunpack.c.h.b16 %v4327
  %v4423 = vunpack.c.l.b16 %v4328
  %v4424 = vunpack.c.h.b16 %v4328
  %v4425 = vpack.c.b16 %v4365, %v4361
  %v4426 = vpack.c.b16 %v4366, %v4362
  %v4427 = vpack.c.b16 %v4367, %v4363
  %v4428 = vpack.c.b16 %v4368, %v4364
  %v4429 = vpack.c.b16 %v4373, %v4369
  %v4430 = vpack.c.b16 %v4374, %v4370
  %v4431 = vpack.c.b16 %v4375, %v4371
  %v4432 = vpack.c.b16 %v4376, %v4372
  %v4433 = vpack.c.b16 %v4381, %v4377
  %v4434 = vpack.c.b16 %v4382, %v4378
  %v4435 = vpack.c.b16 %v4383, %v4379
  %v4436 = vpack.c.b16 %v4384, %v4380
  %v4437 = vpack.c.b16 %v4389, %v4385
  %v4438 = vpack.c.b16 %v4390, %v4386
  %v4439 = vpack.c.b16 %v4391, %v4387
  %v4440 = vpack.c.b16 %v4392, %v4388
  %v4441 = vpack.c.b16 %v4397, %v4393
  %v4442 = vpack.c.b16 %v4398, %v4394
  %v4443 = vpack.c.b16 %v4399, %v4395
  %v4444 = vpack.c.b16 %v4400, %v4396
  %v4445 = vpack.c.b16 %v4405, %v4401
  %v4446 = vpack.c.b16 %v4406, %v4402
  %v4447 = vpack.c.b16 %v4407, %v4403
  %v4448 = vpack.c.b16 %v4408, %v4404
  %v4449 = vpack.c.b16 %v4413, %v4409
  %v4450 = vpack.c.b16 %v4414, %v4410
  %v4451 = vpack.c.b16 %v4415, %v4411
  %v4452 = vpack.c.b16 %v4416, %v4412
  %v4453 = vpack.c.b16 %v4421, %v4417
  %v4454 = vpack.c.b16 %v4422, %v4418
  %v4455 = vpack.c.b16 %v4423, %v4419
  %v4456 = vpack.c.b16 %v4424, %v4420
  %4489 = vmatpush.bf16.msra.mxu0 %v4453
  %4490 = vmatpush.bf16.msra.mxu0 %v4449
  %4491 = vmatpush.bf16.msra.mxu0 %v4445
  %4492 = vmatpush.bf16.msra.mxu0 %v4441
  %4493 = vmatpush.bf16.msra.mxu0 %v4437
  %4494 = vmatpush.bf16.msra.mxu0 %v4433
  %4495 = vmatpush.bf16.msra.mxu0 %v4429
  %4496 = vmatpush.bf16.msra.mxu0 %v4425
  %4497 = vmatmul.bf16.gmra.mxu0 %v4030
  %v4498 = vpop.f32.mrf.mxu0
  %v4499 = vadd.f32 0.0, %v4498
  %v4500 = vpop.f32.mrf.mxu0
  %4501 = vdwg.mxu0
  %4502 = vmatpush.bf16.msra.mxu0 %v4454
  %4503 = vmatpush.bf16.msra.mxu0 %v4450
  %4504 = vmatpush.bf16.msra.mxu0 %v4446
  %4505 = vmatpush.bf16.msra.mxu0 %v4442
  %4506 = vmatpush.bf16.msra.mxu0 %v4438
  %4507 = vmatpush.bf16.msra.mxu0 %v4434
  %4508 = vmatpush.bf16.msra.mxu0 %v4430
  %4509 = vmatpush.bf16.msra.mxu0 %v4426
  %4510 = vmatmul.bf16.gmra.mxu0 %v4030
  %v4511 = vpop.f32.mrf.mxu0
  %v4512 = vadd.f32 0.0, %v4511
  %v4513 = vpop.f32.mrf.mxu0
  %4514 = vdwg.mxu0
  %4515 = vmatpush.bf16.msra.mxu0 %v4455
  %4516 = vmatpush.bf16.msra.mxu0 %v4451
  %4517 = vmatpush.bf16.msra.mxu0 %v4447
  %4518 = vmatpush.bf16.msra.mxu0 %v4443
  %4519 = vmatpush.bf16.msra.mxu0 %v4439
  %4520 = vmatpush.bf16.msra.mxu0 %v4435
  %4521 = vmatpush.bf16.msra.mxu0 %v4431
  %4522 = vmatpush.bf16.msra.mxu0 %v4427
  %4523 = vmatmul.bf16.gmra.mxu0 %v4030
  %v4524 = vpop.f32.mrf.mxu0
  %v4525 = vadd.f32 0.0, %v4524
  %v4526 = vpop.f32.mrf.mxu0
  %4527 = vdwg.mxu0
  %4528 = vmatpush.bf16.msra.mxu0 %v4456
  %4529 = vmatpush.bf16.msra.mxu0 %v4452
  %4530 = vmatpush.bf16.msra.mxu0 %v4448
  %4531 = vmatpush.bf16.msra.mxu0 %v4444
  %4532 = vmatpush.bf16.msra.mxu0 %v4440
  %4533 = vmatpush.bf16.msra.mxu0 %v4436
  %4534 = vmatpush.bf16.msra.mxu0 %v4432
  %4535 = vmatpush.bf16.msra.mxu0 %v4428
  %4536 = vmatmul.bf16.gmra.mxu0 %v4030
  %v4537 = vpop.f32.mrf.mxu0
  %v4538 = vadd.f32 0.0, %v4537
  %v4539 = vpop.f32.mrf.mxu0
  %4540 = vdwg.mxu0
  %v4541 = vadd.f32 %v4293, %v4499
  %v4542 = vadd.f32 %v4294, %v4512
  %v4543 = vadd.f32 %v4295, %v4525
  %v4544 = vadd.f32 %v4296, %v4538
  %v4545 = vadd.f32 %v4541, %v762
  %v4546 = vadd.f32 %v4542, %v763
  %v4547 = vadd.f32 %v4543, %v764
  %v4548 = vadd.f32 %v4544, %v765
  %v4549 = vxor.u32 %v4286, 2147483648
  %v4550 = vmul.f32 %v4549, 1.442695
  %v4551 = vpow.pop %v4550
  %v4552 = vadd.f32 %v4551, 1.0
  %v4553 = vrcp.pop %v4552
  %v4554 = vmul.f32 %v4552, %v4553
  %v4555 = vsub.f32 1.0, %v4554
  %v4556 = vmul.f32 %v4553, %v4555
  %v4557 = vadd.f32 %v4553, %v4556
  %vm4558 = vweird.f32 %v4552
  %vm4559 = vweird.f32 %v4553
  %vm4560 = vmor %vm4558, %vm4559
  %v4561 = vsel %vm4560, %v4553, %v4557
  %v4562 = vand.u32 2147483647, %v4552
  %vm4563 = vcmp.eq.f32.partialorder %v4562, 8.507059e+37
  %v4564 = vand.u32 %v4552, 2147483648
  %v4565 = vor.u32 1.1754944e-38, %v4564
  %v4566 = vsel %vm4563, %v4565, %v4561
  %v4567 = vmul.f32 1.0, %v4566
  %v4568 = vxor.u32 %v4287, 2147483648
  %v4569 = vmul.f32 %v4568, 1.442695
  %v4570 = vpow.pop %v4569
  %v4571 = vadd.f32 %v4570, 1.0
  %v4572 = vrcp.pop %v4571
  %v4573 = vmul.f32 %v4571, %v4572
  %v4574 = vsub.f32 1.0, %v4573
  %v4575 = vmul.f32 %v4572, %v4574
  %v4576 = vadd.f32 %v4572, %v4575
  %vm4577 = vweird.f32 %v4571
  %vm4578 = vweird.f32 %v4572
  %vm4579 = vmor %vm4577, %vm4578
  %v4580 = vsel %vm4579, %v4572, %v4576
  %v4581 = vand.u32 2147483647, %v4571
  %vm4582 = vcmp.eq.f32.partialorder %v4581, 8.507059e+37
  %v4583 = vand.u32 %v4571, 2147483648
  %v4584 = vor.u32 1.1754944e-38, %v4583
  %v4585 = vsel %vm4582, %v4584, %v4580
  %v4586 = vmul.f32 1.0, %v4585
  %v4587 = vtanh.pop %v4288
  %v4588 = vxor.u32 %v4289, 2147483648
  %v4589 = vmul.f32 %v4588, 1.442695
  %v4590 = vpow.pop %v4589
  %v4591 = vadd.f32 %v4590, 1.0
  %v4592 = vrcp.pop %v4591
  %v4593 = vmul.f32 %v4591, %v4592
  %v4594 = vsub.f32 1.0, %v4593
  %v4595 = vmul.f32 %v4592, %v4594
  %v4596 = vadd.f32 %v4592, %v4595
  %vm4597 = vweird.f32 %v4591
  %vm4598 = vweird.f32 %v4592
  %vm4599 = vmor %vm4597, %vm4598
  %v4600 = vsel %vm4599, %v4592, %v4596
  %v4601 = vand.u32 2147483647, %v4591
  %vm4602 = vcmp.eq.f32.partialorder %v4601, 8.507059e+37
  %v4603 = vand.u32 %v4591, 2147483648
  %v4604 = vor.u32 1.1754944e-38, %v4603
  %v4605 = vsel %vm4602, %v4604, %v4600
  %v4606 = vmul.f32 1.0, %v4605
  %v4607 = vmul.f32 %v4586, %v3957
  %v4608 = vmul.f32 %v4567, %v4587
  %v4609 = vadd.f32 %v4607, %v4608
  %v4610 = vtanh.pop %v4609
  %v4611 = vmul.f32 %v4606, %v4610
  %v4612 = vxor.u32 %v4545, 2147483648
  %v4613 = vmul.f32 %v4612, 1.442695
  %v4614 = vpow.pop %v4613
  %v4615 = vadd.f32 %v4614, 1.0
  %v4616 = vrcp.pop %v4615
  %v4617 = vmul.f32 %v4615, %v4616
  %v4618 = vsub.f32 1.0, %v4617
  %v4619 = vmul.f32 %v4616, %v4618
  %v4620 = vadd.f32 %v4616, %v4619
  %vm4621 = vweird.f32 %v4615
  %vm4622 = vweird.f32 %v4616
  %vm4623 = vmor %vm4621, %vm4622
  %v4624 = vsel %vm4623, %v4616, %v4620
  %v4625 = vand.u32 2147483647, %v4615
  %vm4626 = vcmp.eq.f32.partialorder %v4625, 8.507059e+37
  %v4627 = vand.u32 %v4615, 2147483648
  %v4628 = vor.u32 1.1754944e-38, %v4627
  %v4629 = vsel %vm4626, %v4628, %v4624
  %v4630 = vmul.f32 1.0, %v4629
  %v4631 = vxor.u32 %v4546, 2147483648
  %v4632 = vmul.f32 %v4631, 1.442695
  %v4633 = vpow.pop %v4632
  %v4634 = vadd.f32 %v4633, 1.0
  %v4635 = vrcp.pop %v4634
  %v4636 = vmul.f32 %v4634, %v4635
  %v4637 = vsub.f32 1.0, %v4636
  %v4638 = vmul.f32 %v4635, %v4637
  %v4639 = vadd.f32 %v4635, %v4638
  %vm4640 = vweird.f32 %v4634
  %vm4641 = vweird.f32 %v4635
  %vm4642 = vmor %vm4640, %vm4641
  %v4643 = vsel %vm4642, %v4635, %v4639
  %v4644 = vand.u32 2147483647, %v4634
  %vm4645 = vcmp.eq.f32.partialorder %v4644, 8.507059e+37
  %v4646 = vand.u32 %v4634, 2147483648
  %v4647 = vor.u32 1.1754944e-38, %v4646
  %v4648 = vsel %vm4645, %v4647, %v4643
  %v4649 = vmul.f32 1.0, %v4648
  %v4650 = vtanh.pop %v4547
  %v4651 = vxor.u32 %v4548, 2147483648
  %v4652 = vmul.f32 %v4651, 1.442695
  %v4653 = vpow.pop %v4652
  %v4654 = vadd.f32 %v4653, 1.0
  %v4655 = vrcp.pop %v4654
  %v4656 = vmul.f32 %v4654, %v4655
  %v4657 = vsub.f32 1.0, %v4656
  %v4658 = vmul.f32 %v4655, %v4657
  %v4659 = vadd.f32 %v4655, %v4658
  %vm4660 = vweird.f32 %v4654
  %vm4661 = vweird.f32 %v4655
  %vm4662 = vmor %vm4660, %vm4661
  %v4663 = vsel %vm4662, %v4655, %v4659
  %v4664 = vand.u32 2147483647, %v4654
  %vm4665 = vcmp.eq.f32.partialorder %v4664, 8.507059e+37
  %v4666 = vand.u32 %v4654, 2147483648
  %v4667 = vor.u32 1.1754944e-38, %v4666
  %v4668 = vsel %vm4665, %v4667, %v4663
  %v4669 = vmul.f32 1.0, %v4668
  %v4670 = vmul.f32 %v4649, %v4020
  %v4671 = vmul.f32 %v4630, %v4650
  %v4672 = vadd.f32 %v4670, %v4671
  %v4673 = vtanh.pop %v4672
  %v4674 = vmul.f32 %v4669, %v4673
  %v4675 = vld [vmem:[#allocation4] sm:$0xff]
  %v4676 = vadd.f32 %v4675, %v4611
  %4677 = vst [vmem:[#allocation4] sm:$0xff] %v4676
  %v4678 = vld [vmem:[#allocation5] sm:$0xff]
  %v4679 = vadd.f32 %v4678, %v4674
  %4680 = vst [vmem:[#allocation5] sm:$0xff] %v4679
  %v4681 = vpack.c.bf16 %v4611, %v4611
  %v4682 = vpack.c.bf16 %v4674, %v4674
  %s4683 = scalar_lea.vmem [#allocation2], 96
  %v4684 = vld [vmem:[%s4683] sm:$0xff]
  %v4685 = vld [vmem:[%s4683 + $0x8] sm:$0xff]
  %v4686 = vunpack.c.l.bf16 %v4684
  %v4687 = vunpack.c.h.bf16 %v4684
  %v4688 = vunpack.c.l.bf16 %v4685
  %v4689 = vunpack.c.h.bf16 %v4685
  %v4690 = vld [vmem:[%s3] sm:$0xff]
  %v4691 = vld [vmem:[%s3 + $0x8] sm:$0xff]
  %v4692 = vld [vmem:[%s3 + $0x10] sm:$0xff]
  %v4693 = vld [vmem:[%s3 + $0x18] sm:$0xff]
  %v4694 = vld [vmem:[%s3 + $0x20] sm:$0xff]
  %v4695 = vld [vmem:[%s3 + $0x28] sm:$0xff]
  %v4696 = vld [vmem:[%s3 + $0x30] sm:$0xff]
  %v4697 = vld [vmem:[%s3 + $0x38] sm:$0xff]
  %v4698 = vld [vmem:[%s3 + $0x40] sm:$0xff]
  %v4699 = vld [vmem:[%s3 + $0x48] sm:$0xff]
  %v4700 = vld [vmem:[%s3 + $0x50] sm:$0xff]
  %v4701 = vld [vmem:[%s3 + $0x58] sm:$0xff]
  %v4702 = vld [vmem:[%s3 + $0x60] sm:$0xff]
  %v4703 = vld [vmem:[%s3 + $0x68] sm:$0xff]
  %v4704 = vld [vmem:[%s3 + $0x70] sm:$0xff]
  %v4705 = vld [vmem:[%s3 + $0x78] sm:$0xff]
  %v4706 = vld [vmem:[%s3 + $0x80] sm:$0xff]
  %v4707 = vld [vmem:[%s3 + $0x88] sm:$0xff]
  %v4708 = vld [vmem:[%s3 + $0x90] sm:$0xff]
  %v4709 = vld [vmem:[%s3 + $0x98] sm:$0xff]
  %v4710 = vld [vmem:[%s3 + $0xa0] sm:$0xff]
  %v4711 = vld [vmem:[%s3 + $0xa8] sm:$0xff]
  %v4712 = vld [vmem:[%s3 + $0xb0] sm:$0xff]
  %v4713 = vld [vmem:[%s3 + $0xb8] sm:$0xff]
  %v4714 = vld [vmem:[%s3 + $0xc0] sm:$0xff]
  %v4715 = vld [vmem:[%s3 + $0xc8] sm:$0xff]
  %v4716 = vld [vmem:[%s3 + $0xd0] sm:$0xff]
  %v4717 = vld [vmem:[%s3 + $0xd8] sm:$0xff]
  %v4718 = vld [vmem:[%s3 + $0xe0] sm:$0xff]
  %v4719 = vld [vmem:[%s3 + $0xe8] sm:$0xff]
  %v4720 = vld [vmem:[%s3 + $0xf0] sm:$0xff]
  %v4721 = vld [vmem:[%s3 + $0xf8] sm:$0xff]
  %v4754 = vunpack.c.l.b16 %v4690
  %v4755 = vunpack.c.h.b16 %v4690
  %v4756 = vunpack.c.l.b16 %v4691
  %v4757 = vunpack.c.h.b16 %v4691
  %v4758 = vunpack.c.l.b16 %v4692
  %v4759 = vunpack.c.h.b16 %v4692
  %v4760 = vunpack.c.l.b16 %v4693
  %v4761 = vunpack.c.h.b16 %v4693
  %v4762 = vunpack.c.l.b16 %v4694
  %v4763 = vunpack.c.h.b16 %v4694
  %v4764 = vunpack.c.l.b16 %v4695
  %v4765 = vunpack.c.h.b16 %v4695
  %v4766 = vunpack.c.l.b16 %v4696
  %v4767 = vunpack.c.h.b16 %v4696
  %v4768 = vunpack.c.l.b16 %v4697
  %v4769 = vunpack.c.h.b16 %v4697
  %v4770 = vunpack.c.l.b16 %v4698
  %v4771 = vunpack.c.h.b16 %v4698
  %v4772 = vunpack.c.l.b16 %v4699
  %v4773 = vunpack.c.h.b16 %v4699
  %v4774 = vunpack.c.l.b16 %v4700
  %v4775 = vunpack.c.h.b16 %v4700
  %v4776 = vunpack.c.l.b16 %v4701
  %v4777 = vunpack.c.h.b16 %v4701
  %v4778 = vunpack.c.l.b16 %v4702
  %v4779 = vunpack.c.h.b16 %v4702
  %v4780 = vunpack.c.l.b16 %v4703
  %v4781 = vunpack.c.h.b16 %v4703
  %v4782 = vunpack.c.l.b16 %v4704
  %v4783 = vunpack.c.h.b16 %v4704
  %v4784 = vunpack.c.l.b16 %v4705
  %v4785 = vunpack.c.h.b16 %v4705
  %v4786 = vunpack.c.l.b16 %v4706
  %v4787 = vunpack.c.h.b16 %v4706
  %v4788 = vunpack.c.l.b16 %v4707
  %v4789 = vunpack.c.h.b16 %v4707
  %v4790 = vunpack.c.l.b16 %v4708
  %v4791 = vunpack.c.h.b16 %v4708
  %v4792 = vunpack.c.l.b16 %v4709
  %v4793 = vunpack.c.h.b16 %v4709
  %v4794 = vunpack.c.l.b16 %v4710
  %v4795 = vunpack.c.h.b16 %v4710
  %v4796 = vunpack.c.l.b16 %v4711
  %v4797 = vunpack.c.h.b16 %v4711
  %v4798 = vunpack.c.l.b16 %v4712
  %v4799 = vunpack.c.h.b16 %v4712
  %v4800 = vunpack.c.l.b16 %v4713
  %v4801 = vunpack.c.h.b16 %v4713
  %v4802 = vunpack.c.l.b16 %v4714
  %v4803 = vunpack.c.h.b16 %v4714
  %v4804 = vunpack.c.l.b16 %v4715
  %v4805 = vunpack.c.h.b16 %v4715
  %v4806 = vunpack.c.l.b16 %v4716
  %v4807 = vunpack.c.h.b16 %v4716
  %v4808 = vunpack.c.l.b16 %v4717
  %v4809 = vunpack.c.h.b16 %v4717
  %v4810 = vunpack.c.l.b16 %v4718
  %v4811 = vunpack.c.h.b16 %v4718
  %v4812 = vunpack.c.l.b16 %v4719
  %v4813 = vunpack.c.h.b16 %v4719
  %v4814 = vunpack.c.l.b16 %v4720
  %v4815 = vunpack.c.h.b16 %v4720
  %v4816 = vunpack.c.l.b16 %v4721
  %v4817 = vunpack.c.h.b16 %v4721
  %v4818 = vpack.c.b16 %v4758, %v4754
  %v4819 = vpack.c.b16 %v4759, %v4755
  %v4820 = vpack.c.b16 %v4760, %v4756
  %v4821 = vpack.c.b16 %v4761, %v4757
  %v4822 = vpack.c.b16 %v4766, %v4762
  %v4823 = vpack.c.b16 %v4767, %v4763
  %v4824 = vpack.c.b16 %v4768, %v4764
  %v4825 = vpack.c.b16 %v4769, %v4765
  %v4826 = vpack.c.b16 %v4774, %v4770
  %v4827 = vpack.c.b16 %v4775, %v4771
  %v4828 = vpack.c.b16 %v4776, %v4772
  %v4829 = vpack.c.b16 %v4777, %v4773
  %v4830 = vpack.c.b16 %v4782, %v4778
  %v4831 = vpack.c.b16 %v4783, %v4779
  %v4832 = vpack.c.b16 %v4784, %v4780
  %v4833 = vpack.c.b16 %v4785, %v4781
  %v4834 = vpack.c.b16 %v4790, %v4786
  %v4835 = vpack.c.b16 %v4791, %v4787
  %v4836 = vpack.c.b16 %v4792, %v4788
  %v4837 = vpack.c.b16 %v4793, %v4789
  %v4838 = vpack.c.b16 %v4798, %v4794
  %v4839 = vpack.c.b16 %v4799, %v4795
  %v4840 = vpack.c.b16 %v4800, %v4796
  %v4841 = vpack.c.b16 %v4801, %v4797
  %v4842 = vpack.c.b16 %v4806, %v4802
  %v4843 = vpack.c.b16 %v4807, %v4803
  %v4844 = vpack.c.b16 %v4808, %v4804
  %v4845 = vpack.c.b16 %v4809, %v4805
  %v4846 = vpack.c.b16 %v4814, %v4810
  %v4847 = vpack.c.b16 %v4815, %v4811
  %v4848 = vpack.c.b16 %v4816, %v4812
  %v4849 = vpack.c.b16 %v4817, %v4813
  %4882 = vmatpush.bf16.msra.mxu0 %v4846
  %4883 = vmatpush.bf16.msra.mxu0 %v4842
  %4884 = vmatpush.bf16.msra.mxu0 %v4838
  %4885 = vmatpush.bf16.msra.mxu0 %v4834
  %4886 = vmatpush.bf16.msra.mxu0 %v4830
  %4887 = vmatpush.bf16.msra.mxu0 %v4826
  %4888 = vmatpush.bf16.msra.mxu0 %v4822
  %4889 = vmatpush.bf16.msra.mxu0 %v4818
  %4890 = vmatmul.bf16.gmra.mxu0 %v4681
  %v4891 = vpop.f32.mrf.mxu0
  %v4892 = vadd.f32 0.0, %v4891
  %v4893 = vpop.f32.mrf.mxu0
  %4894 = vdwg.mxu0
  %4895 = vmatpush.bf16.msra.mxu0 %v4847
  %4896 = vmatpush.bf16.msra.mxu0 %v4843
  %4897 = vmatpush.bf16.msra.mxu0 %v4839
  %4898 = vmatpush.bf16.msra.mxu0 %v4835
  %4899 = vmatpush.bf16.msra.mxu0 %v4831
  %4900 = vmatpush.bf16.msra.mxu0 %v4827
  %4901 = vmatpush.bf16.msra.mxu0 %v4823
  %4902 = vmatpush.bf16.msra.mxu0 %v4819
  %4903 = vmatmul.bf16.gmra.mxu0 %v4681
  %v4904 = vpop.f32.mrf.mxu0
  %v4905 = vadd.f32 0.0, %v4904
  %v4906 = vpop.f32.mrf.mxu0
  %4907 = vdwg.mxu0
  %4908 = vmatpush.bf16.msra.mxu0 %v4848
  %4909 = vmatpush.bf16.msra.mxu0 %v4844
  %4910 = vmatpush.bf16.msra.mxu0 %v4840
  %4911 = vmatpush.bf16.msra.mxu0 %v4836
  %4912 = vmatpush.bf16.msra.mxu0 %v4832
  %4913 = vmatpush.bf16.msra.mxu0 %v4828
  %4914 = vmatpush.bf16.msra.mxu0 %v4824
  %4915 = vmatpush.bf16.msra.mxu0 %v4820
  %4916 = vmatmul.bf16.gmra.mxu0 %v4681
  %v4917 = vpop.f32.mrf.mxu0
  %v4918 = vadd.f32 0.0, %v4917
  %v4919 = vpop.f32.mrf.mxu0
  %4920 = vdwg.mxu0
  %4921 = vmatpush.bf16.msra.mxu0 %v4849
  %4922 = vmatpush.bf16.msra.mxu0 %v4845
  %4923 = vmatpush.bf16.msra.mxu0 %v4841
  %4924 = vmatpush.bf16.msra.mxu0 %v4837
  %4925 = vmatpush.bf16.msra.mxu0 %v4833
  %4926 = vmatpush.bf16.msra.mxu0 %v4829
  %4927 = vmatpush.bf16.msra.mxu0 %v4825
  %4928 = vmatpush.bf16.msra.mxu0 %v4821
  %4929 = vmatmul.bf16.gmra.mxu0 %v4681
  %v4930 = vpop.f32.mrf.mxu0
  %v4931 = vadd.f32 0.0, %v4930
  %v4932 = vpop.f32.mrf.mxu0
  %4933 = vdwg.mxu0
  %v4934 = vadd.f32 %v4686, %v4892
  %v4935 = vadd.f32 %v4687, %v4905
  %v4936 = vadd.f32 %v4688, %v4918
  %v4937 = vadd.f32 %v4689, %v4931
  %v4938 = vadd.f32 %v4934, %v752
  %v4939 = vadd.f32 %v4935, %v753
  %v4940 = vadd.f32 %v4936, %v754
  %v4941 = vadd.f32 %v4937, %v755
  %s4942 = scalar_lea.vmem [#allocation3], 16
  %v4943 = vld [vmem:[%s4942] sm:$0xff]
  %v4944 = vld [vmem:[%s4942 + $0x8] sm:$0xff]
  %v4945 = vunpack.c.l.bf16 %v4943
  %v4946 = vunpack.c.h.bf16 %v4943
  %v4947 = vunpack.c.l.bf16 %v4944
  %v4948 = vunpack.c.h.bf16 %v4944
  %v4949 = vld [vmem:[%s4] sm:$0xff]
  %v4950 = vld [vmem:[%s4 + $0x8] sm:$0xff]
  %v4951 = vld [vmem:[%s4 + $0x10] sm:$0xff]
  %v4952 = vld [vmem:[%s4 + $0x18] sm:$0xff]
  %v4953 = vld [vmem:[%s4 + $0x20] sm:$0xff]
  %v4954 = vld [vmem:[%s4 + $0x28] sm:$0xff]
  %v4955 = vld [vmem:[%s4 + $0x30] sm:$0xff]
  %v4956 = vld [vmem:[%s4 + $0x38] sm:$0xff]
  %v4957 = vld [vmem:[%s4 + $0x40] sm:$0xff]
  %v4958 = vld [vmem:[%s4 + $0x48] sm:$0xff]
  %v4959 = vld [vmem:[%s4 + $0x50] sm:$0xff]
  %v4960 = vld [vmem:[%s4 + $0x58] sm:$0xff]
  %v4961 = vld [vmem:[%s4 + $0x60] sm:$0xff]
  %v4962 = vld [vmem:[%s4 + $0x68] sm:$0xff]
  %v4963 = vld [vmem:[%s4 + $0x70] sm:$0xff]
  %v4964 = vld [vmem:[%s4 + $0x78] sm:$0xff]
  %v4965 = vld [vmem:[%s4 + $0x80] sm:$0xff]
  %v4966 = vld [vmem:[%s4 + $0x88] sm:$0xff]
  %v4967 = vld [vmem:[%s4 + $0x90] sm:$0xff]
  %v4968 = vld [vmem:[%s4 + $0x98] sm:$0xff]
  %v4969 = vld [vmem:[%s4 + $0xa0] sm:$0xff]
  %v4970 = vld [vmem:[%s4 + $0xa8] sm:$0xff]
  %v4971 = vld [vmem:[%s4 + $0xb0] sm:$0xff]
  %v4972 = vld [vmem:[%s4 + $0xb8] sm:$0xff]
  %v4973 = vld [vmem:[%s4 + $0xc0] sm:$0xff]
  %v4974 = vld [vmem:[%s4 + $0xc8] sm:$0xff]
  %v4975 = vld [vmem:[%s4 + $0xd0] sm:$0xff]
  %v4976 = vld [vmem:[%s4 + $0xd8] sm:$0xff]
  %v4977 = vld [vmem:[%s4 + $0xe0] sm:$0xff]
  %v4978 = vld [vmem:[%s4 + $0xe8] sm:$0xff]
  %v4979 = vld [vmem:[%s4 + $0xf0] sm:$0xff]
  %v4980 = vld [vmem:[%s4 + $0xf8] sm:$0xff]
  %v5013 = vunpack.c.l.b16 %v4949
  %v5014 = vunpack.c.h.b16 %v4949
  %v5015 = vunpack.c.l.b16 %v4950
  %v5016 = vunpack.c.h.b16 %v4950
  %v5017 = vunpack.c.l.b16 %v4951
  %v5018 = vunpack.c.h.b16 %v4951
  %v5019 = vunpack.c.l.b16 %v4952
  %v5020 = vunpack.c.h.b16 %v4952
  %v5021 = vunpack.c.l.b16 %v4953
  %v5022 = vunpack.c.h.b16 %v4953
  %v5023 = vunpack.c.l.b16 %v4954
  %v5024 = vunpack.c.h.b16 %v4954
  %v5025 = vunpack.c.l.b16 %v4955
  %v5026 = vunpack.c.h.b16 %v4955
  %v5027 = vunpack.c.l.b16 %v4956
  %v5028 = vunpack.c.h.b16 %v4956
  %v5029 = vunpack.c.l.b16 %v4957
  %v5030 = vunpack.c.h.b16 %v4957
  %v5031 = vunpack.c.l.b16 %v4958
  %v5032 = vunpack.c.h.b16 %v4958
  %v5033 = vunpack.c.l.b16 %v4959
  %v5034 = vunpack.c.h.b16 %v4959
  %v5035 = vunpack.c.l.b16 %v4960
  %v5036 = vunpack.c.h.b16 %v4960
  %v5037 = vunpack.c.l.b16 %v4961
  %v5038 = vunpack.c.h.b16 %v4961
  %v5039 = vunpack.c.l.b16 %v4962
  %v5040 = vunpack.c.h.b16 %v4962
  %v5041 = vunpack.c.l.b16 %v4963
  %v5042 = vunpack.c.h.b16 %v4963
  %v5043 = vunpack.c.l.b16 %v4964
  %v5044 = vunpack.c.h.b16 %v4964
  %v5045 = vunpack.c.l.b16 %v4965
  %v5046 = vunpack.c.h.b16 %v4965
  %v5047 = vunpack.c.l.b16 %v4966
  %v5048 = vunpack.c.h.b16 %v4966
  %v5049 = vunpack.c.l.b16 %v4967
  %v5050 = vunpack.c.h.b16 %v4967
  %v5051 = vunpack.c.l.b16 %v4968
  %v5052 = vunpack.c.h.b16 %v4968
  %v5053 = vunpack.c.l.b16 %v4969
  %v5054 = vunpack.c.h.b16 %v4969
  %v5055 = vunpack.c.l.b16 %v4970
  %v5056 = vunpack.c.h.b16 %v4970
  %v5057 = vunpack.c.l.b16 %v4971
  %v5058 = vunpack.c.h.b16 %v4971
  %v5059 = vunpack.c.l.b16 %v4972
  %v5060 = vunpack.c.h.b16 %v4972
  %v5061 = vunpack.c.l.b16 %v4973
  %v5062 = vunpack.c.h.b16 %v4973
  %v5063 = vunpack.c.l.b16 %v4974
  %v5064 = vunpack.c.h.b16 %v4974
  %v5065 = vunpack.c.l.b16 %v4975
  %v5066 = vunpack.c.h.b16 %v4975
  %v5067 = vunpack.c.l.b16 %v4976
  %v5068 = vunpack.c.h.b16 %v4976
  %v5069 = vunpack.c.l.b16 %v4977
  %v5070 = vunpack.c.h.b16 %v4977
  %v5071 = vunpack.c.l.b16 %v4978
  %v5072 = vunpack.c.h.b16 %v4978
  %v5073 = vunpack.c.l.b16 %v4979
  %v5074 = vunpack.c.h.b16 %v4979
  %v5075 = vunpack.c.l.b16 %v4980
  %v5076 = vunpack.c.h.b16 %v4980
  %v5077 = vpack.c.b16 %v5017, %v5013
  %v5078 = vpack.c.b16 %v5018, %v5014
  %v5079 = vpack.c.b16 %v5019, %v5015
  %v5080 = vpack.c.b16 %v5020, %v5016
  %v5081 = vpack.c.b16 %v5025, %v5021
  %v5082 = vpack.c.b16 %v5026, %v5022
  %v5083 = vpack.c.b16 %v5027, %v5023
  %v5084 = vpack.c.b16 %v5028, %v5024
  %v5085 = vpack.c.b16 %v5033, %v5029
  %v5086 = vpack.c.b16 %v5034, %v5030
  %v5087 = vpack.c.b16 %v5035, %v5031
  %v5088 = vpack.c.b16 %v5036, %v5032
  %v5089 = vpack.c.b16 %v5041, %v5037
  %v5090 = vpack.c.b16 %v5042, %v5038
  %v5091 = vpack.c.b16 %v5043, %v5039
  %v5092 = vpack.c.b16 %v5044, %v5040
  %v5093 = vpack.c.b16 %v5049, %v5045
  %v5094 = vpack.c.b16 %v5050, %v5046
  %v5095 = vpack.c.b16 %v5051, %v5047
  %v5096 = vpack.c.b16 %v5052, %v5048
  %v5097 = vpack.c.b16 %v5057, %v5053
  %v5098 = vpack.c.b16 %v5058, %v5054
  %v5099 = vpack.c.b16 %v5059, %v5055
  %v5100 = vpack.c.b16 %v5060, %v5056
  %v5101 = vpack.c.b16 %v5065, %v5061
  %v5102 = vpack.c.b16 %v5066, %v5062
  %v5103 = vpack.c.b16 %v5067, %v5063
  %v5104 = vpack.c.b16 %v5068, %v5064
  %v5105 = vpack.c.b16 %v5073, %v5069
  %v5106 = vpack.c.b16 %v5074, %v5070
  %v5107 = vpack.c.b16 %v5075, %v5071
  %v5108 = vpack.c.b16 %v5076, %v5072
  %5141 = vmatpush.bf16.msra.mxu0 %v5105
  %5142 = vmatpush.bf16.msra.mxu0 %v5101
  %5143 = vmatpush.bf16.msra.mxu0 %v5097
  %5144 = vmatpush.bf16.msra.mxu0 %v5093
  %5145 = vmatpush.bf16.msra.mxu0 %v5089
  %5146 = vmatpush.bf16.msra.mxu0 %v5085
  %5147 = vmatpush.bf16.msra.mxu0 %v5081
  %5148 = vmatpush.bf16.msra.mxu0 %v5077
  %5149 = vmatmul.bf16.gmra.mxu0 %v4682
  %v5150 = vpop.f32.mrf.mxu0
  %v5151 = vadd.f32 0.0, %v5150
  %v5152 = vpop.f32.mrf.mxu0
  %5153 = vdwg.mxu0
  %5154 = vmatpush.bf16.msra.mxu0 %v5106
  %5155 = vmatpush.bf16.msra.mxu0 %v5102
  %5156 = vmatpush.bf16.msra.mxu0 %v5098
  %5157 = vmatpush.bf16.msra.mxu0 %v5094
  %5158 = vmatpush.bf16.msra.mxu0 %v5090
  %5159 = vmatpush.bf16.msra.mxu0 %v5086
  %5160 = vmatpush.bf16.msra.mxu0 %v5082
  %5161 = vmatpush.bf16.msra.mxu0 %v5078
  %5162 = vmatmul.bf16.gmra.mxu0 %v4682
  %v5163 = vpop.f32.mrf.mxu0
  %v5164 = vadd.f32 0.0, %v5163
  %v5165 = vpop.f32.mrf.mxu0
  %5166 = vdwg.mxu0
  %5167 = vmatpush.bf16.msra.mxu0 %v5107
  %5168 = vmatpush.bf16.msra.mxu0 %v5103
  %5169 = vmatpush.bf16.msra.mxu0 %v5099
  %5170 = vmatpush.bf16.msra.mxu0 %v5095
  %5171 = vmatpush.bf16.msra.mxu0 %v5091
  %5172 = vmatpush.bf16.msra.mxu0 %v5087
  %5173 = vmatpush.bf16.msra.mxu0 %v5083
  %5174 = vmatpush.bf16.msra.mxu0 %v5079
  %5175 = vmatmul.bf16.gmra.mxu0 %v4682
  %v5176 = vpop.f32.mrf.mxu0
  %v5177 = vadd.f32 0.0, %v5176
  %v5178 = vpop.f32.mrf.mxu0
  %5179 = vdwg.mxu0
  %5180 = vmatpush.bf16.msra.mxu0 %v5108
  %5181 = vmatpush.bf16.msra.mxu0 %v5104
  %5182 = vmatpush.bf16.msra.mxu0 %v5100
  %5183 = vmatpush.bf16.msra.mxu0 %v5096
  %5184 = vmatpush.bf16.msra.mxu0 %v5092
  %5185 = vmatpush.bf16.msra.mxu0 %v5088
  %5186 = vmatpush.bf16.msra.mxu0 %v5084
  %5187 = vmatpush.bf16.msra.mxu0 %v5080
  %5188 = vmatmul.bf16.gmra.mxu0 %v4682
  %v5189 = vpop.f32.mrf.mxu0
  %v5190 = vadd.f32 0.0, %v5189
  %v5191 = vpop.f32.mrf.mxu0
  %5192 = vdwg.mxu0
  %v5193 = vadd.f32 %v4945, %v5151
  %v5194 = vadd.f32 %v4946, %v5164
  %v5195 = vadd.f32 %v4947, %v5177
  %v5196 = vadd.f32 %v4948, %v5190
  %v5197 = vadd.f32 %v5193, %v762
  %v5198 = vadd.f32 %v5194, %v763
  %v5199 = vadd.f32 %v5195, %v764
  %v5200 = vadd.f32 %v5196, %v765
  %v5201 = vxor.u32 %v4938, 2147483648
  %v5202 = vmul.f32 %v5201, 1.442695
  %v5203 = vpow.pop %v5202
  %v5204 = vadd.f32 %v5203, 1.0
  %v5205 = vrcp.pop %v5204
  %v5206 = vmul.f32 %v5204, %v5205
  %v5207 = vsub.f32 1.0, %v5206
  %v5208 = vmul.f32 %v5205, %v5207
  %v5209 = vadd.f32 %v5205, %v5208
  %vm5210 = vweird.f32 %v5204
  %vm5211 = vweird.f32 %v5205
  %vm5212 = vmor %vm5210, %vm5211
  %v5213 = vsel %vm5212, %v5205, %v5209
  %v5214 = vand.u32 2147483647, %v5204
  %vm5215 = vcmp.eq.f32.partialorder %v5214, 8.507059e+37
  %v5216 = vand.u32 %v5204, 2147483648
  %v5217 = vor.u32 1.1754944e-38, %v5216
  %v5218 = vsel %vm5215, %v5217, %v5213
  %v5219 = vmul.f32 1.0, %v5218
  %v5220 = vxor.u32 %v4939, 2147483648
  %v5221 = vmul.f32 %v5220, 1.442695
  %v5222 = vpow.pop %v5221
  %v5223 = vadd.f32 %v5222, 1.0
  %v5224 = vrcp.pop %v5223
  %v5225 = vmul.f32 %v5223, %v5224
  %v5226 = vsub.f32 1.0, %v5225
  %v5227 = vmul.f32 %v5224, %v5226
  %v5228 = vadd.f32 %v5224, %v5227
  %vm5229 = vweird.f32 %v5223
  %vm5230 = vweird.f32 %v5224
  %vm5231 = vmor %vm5229, %vm5230
  %v5232 = vsel %vm5231, %v5224, %v5228
  %v5233 = vand.u32 2147483647, %v5223
  %vm5234 = vcmp.eq.f32.partialorder %v5233, 8.507059e+37
  %v5235 = vand.u32 %v5223, 2147483648
  %v5236 = vor.u32 1.1754944e-38, %v5235
  %v5237 = vsel %vm5234, %v5236, %v5232
  %v5238 = vmul.f32 1.0, %v5237
  %v5239 = vtanh.pop %v4940
  %v5240 = vxor.u32 %v4941, 2147483648
  %v5241 = vmul.f32 %v5240, 1.442695
  %v5242 = vpow.pop %v5241
  %v5243 = vadd.f32 %v5242, 1.0
  %v5244 = vrcp.pop %v5243
  %v5245 = vmul.f32 %v5243, %v5244
  %v5246 = vsub.f32 1.0, %v5245
  %v5247 = vmul.f32 %v5244, %v5246
  %v5248 = vadd.f32 %v5244, %v5247
  %vm5249 = vweird.f32 %v5243
  %vm5250 = vweird.f32 %v5244
  %vm5251 = vmor %vm5249, %vm5250
  %v5252 = vsel %vm5251, %v5244, %v5248
  %v5253 = vand.u32 2147483647, %v5243
  %vm5254 = vcmp.eq.f32.partialorder %v5253, 8.507059e+37
  %v5255 = vand.u32 %v5243, 2147483648
  %v5256 = vor.u32 1.1754944e-38, %v5255
  %v5257 = vsel %vm5254, %v5256, %v5252
  %v5258 = vmul.f32 1.0, %v5257
  %v5259 = vmul.f32 %v5238, %v4609
  %v5260 = vmul.f32 %v5219, %v5239
  %v5261 = vadd.f32 %v5259, %v5260
  %v5262 = vtanh.pop %v5261
  %v5263 = vmul.f32 %v5258, %v5262
  %v5264 = vxor.u32 %v5197, 2147483648
  %v5265 = vmul.f32 %v5264, 1.442695
  %v5266 = vpow.pop %v5265
  %v5267 = vadd.f32 %v5266, 1.0
  %v5268 = vrcp.pop %v5267
  %v5269 = vmul.f32 %v5267, %v5268
  %v5270 = vsub.f32 1.0, %v5269
  %v5271 = vmul.f32 %v5268, %v5270
  %v5272 = vadd.f32 %v5268, %v5271
  %vm5273 = vweird.f32 %v5267
  %vm5274 = vweird.f32 %v5268
  %vm5275 = vmor %vm5273, %vm5274
  %v5276 = vsel %vm5275, %v5268, %v5272
  %v5277 = vand.u32 2147483647, %v5267
  %vm5278 = vcmp.eq.f32.partialorder %v5277, 8.507059e+37
  %v5279 = vand.u32 %v5267, 2147483648
  %v5280 = vor.u32 1.1754944e-38, %v5279
  %v5281 = vsel %vm5278, %v5280, %v5276
  %v5282 = vmul.f32 1.0, %v5281
  %v5283 = vxor.u32 %v5198, 2147483648
  %v5284 = vmul.f32 %v5283, 1.442695
  %v5285 = vpow.pop %v5284
  %v5286 = vadd.f32 %v5285, 1.0
  %v5287 = vrcp.pop %v5286
  %v5288 = vmul.f32 %v5286, %v5287
  %v5289 = vsub.f32 1.0, %v5288
  %v5290 = vmul.f32 %v5287, %v5289
  %v5291 = vadd.f32 %v5287, %v5290
  %vm5292 = vweird.f32 %v5286
  %vm5293 = vweird.f32 %v5287
  %vm5294 = vmor %vm5292, %vm5293
  %v5295 = vsel %vm5294, %v5287, %v5291
  %v5296 = vand.u32 2147483647, %v5286
  %vm5297 = vcmp.eq.f32.partialorder %v5296, 8.507059e+37
  %v5298 = vand.u32 %v5286, 2147483648
  %v5299 = vor.u32 1.1754944e-38, %v5298
  %v5300 = vsel %vm5297, %v5299, %v5295
  %v5301 = vmul.f32 1.0, %v5300
  %v5302 = vtanh.pop %v5199
  %v5303 = vxor.u32 %v5200, 2147483648
  %v5304 = vmul.f32 %v5303, 1.442695
  %v5305 = vpow.pop %v5304
  %v5306 = vadd.f32 %v5305, 1.0
  %v5307 = vrcp.pop %v5306
  %v5308 = vmul.f32 %v5306, %v5307
  %v5309 = vsub.f32 1.0, %v5308
  %v5310 = vmul.f32 %v5307, %v5309
  %v5311 = vadd.f32 %v5307, %v5310
  %vm5312 = vweird.f32 %v5306
  %vm5313 = vweird.f32 %v5307
  %vm5314 = vmor %vm5312, %vm5313
  %v5315 = vsel %vm5314, %v5307, %v5311
  %v5316 = vand.u32 2147483647, %v5306
  %vm5317 = vcmp.eq.f32.partialorder %v5316, 8.507059e+37
  %v5318 = vand.u32 %v5306, 2147483648
  %v5319 = vor.u32 1.1754944e-38, %v5318
  %v5320 = vsel %vm5317, %v5319, %v5315
  %v5321 = vmul.f32 1.0, %v5320
  %v5322 = vmul.f32 %v5301, %v4672
  %v5323 = vmul.f32 %v5282, %v5302
  %v5324 = vadd.f32 %v5322, %v5323
  %v5325 = vtanh.pop %v5324
  %v5326 = vmul.f32 %v5321, %v5325
  %v5327 = vld [vmem:[#allocation4] sm:$0xff]
  %v5328 = vadd.f32 %v5327, %v5263
  %5329 = vst [vmem:[#allocation4] sm:$0xff] %v5328
  %v5330 = vld [vmem:[#allocation5] sm:$0xff]
  %v5331 = vadd.f32 %v5330, %v5326
  %5332 = vst [vmem:[#allocation5] sm:$0xff] %v5331
  %v5333 = vpack.c.bf16 %v5263, %v5263
  %v5334 = vpack.c.bf16 %v5326, %v5326
  %s5335 = scalar_lea.vmem [#allocation2], 112
  %v5336 = vld [vmem:[%s5335] sm:$0xff]
  %v5337 = vld [vmem:[%s5335 + $0x8] sm:$0xff]
  %v5338 = vunpack.c.l.bf16 %v5336
  %v5339 = vunpack.c.h.bf16 %v5336
  %v5340 = vunpack.c.l.bf16 %v5337
  %v5341 = vunpack.c.h.bf16 %v5337
  %v5342 = vld [vmem:[%s3] sm:$0xff]
  %v5343 = vld [vmem:[%s3 + $0x8] sm:$0xff]
  %v5344 = vld [vmem:[%s3 + $0x10] sm:$0xff]
  %v5345 = vld [vmem:[%s3 + $0x18] sm:$0xff]
  %v5346 = vld [vmem:[%s3 + $0x20] sm:$0xff]
  %v5347 = vld [vmem:[%s3 + $0x28] sm:$0xff]
  %v5348 = vld [vmem:[%s3 + $0x30] sm:$0xff]
  %v5349 = vld [vmem:[%s3 + $0x38] sm:$0xff]
  %v5350 = vld [vmem:[%s3 + $0x40] sm:$0xff]
  %v5351 = vld [vmem:[%s3 + $0x48] sm:$0xff]
  %v5352 = vld [vmem:[%s3 + $0x50] sm:$0xff]
  %v5353 = vld [vmem:[%s3 + $0x58] sm:$0xff]
  %v5354 = vld [vmem:[%s3 + $0x60] sm:$0xff]
  %v5355 = vld [vmem:[%s3 + $0x68] sm:$0xff]
  %v5356 = vld [vmem:[%s3 + $0x70] sm:$0xff]
  %v5357 = vld [vmem:[%s3 + $0x78] sm:$0xff]
  %v5358 = vld [vmem:[%s3 + $0x80] sm:$0xff]
  %v5359 = vld [vmem:[%s3 + $0x88] sm:$0xff]
  %v5360 = vld [vmem:[%s3 + $0x90] sm:$0xff]
  %v5361 = vld [vmem:[%s3 + $0x98] sm:$0xff]
  %v5362 = vld [vmem:[%s3 + $0xa0] sm:$0xff]
  %v5363 = vld [vmem:[%s3 + $0xa8] sm:$0xff]
  %v5364 = vld [vmem:[%s3 + $0xb0] sm:$0xff]
  %v5365 = vld [vmem:[%s3 + $0xb8] sm:$0xff]
  %v5366 = vld [vmem:[%s3 + $0xc0] sm:$0xff]
  %v5367 = vld [vmem:[%s3 + $0xc8] sm:$0xff]
  %v5368 = vld [vmem:[%s3 + $0xd0] sm:$0xff]
  %v5369 = vld [vmem:[%s3 + $0xd8] sm:$0xff]
  %v5370 = vld [vmem:[%s3 + $0xe0] sm:$0xff]
  %v5371 = vld [vmem:[%s3 + $0xe8] sm:$0xff]
  %v5372 = vld [vmem:[%s3 + $0xf0] sm:$0xff]
  %v5373 = vld [vmem:[%s3 + $0xf8] sm:$0xff]
  %v5406 = vunpack.c.l.b16 %v5342
  %v5407 = vunpack.c.h.b16 %v5342
  %v5408 = vunpack.c.l.b16 %v5343
  %v5409 = vunpack.c.h.b16 %v5343
  %v5410 = vunpack.c.l.b16 %v5344
  %v5411 = vunpack.c.h.b16 %v5344
  %v5412 = vunpack.c.l.b16 %v5345
  %v5413 = vunpack.c.h.b16 %v5345
  %v5414 = vunpack.c.l.b16 %v5346
  %v5415 = vunpack.c.h.b16 %v5346
  %v5416 = vunpack.c.l.b16 %v5347
  %v5417 = vunpack.c.h.b16 %v5347
  %v5418 = vunpack.c.l.b16 %v5348
  %v5419 = vunpack.c.h.b16 %v5348
  %v5420 = vunpack.c.l.b16 %v5349
  %v5421 = vunpack.c.h.b16 %v5349
  %v5422 = vunpack.c.l.b16 %v5350
  %v5423 = vunpack.c.h.b16 %v5350
  %v5424 = vunpack.c.l.b16 %v5351
  %v5425 = vunpack.c.h.b16 %v5351
  %v5426 = vunpack.c.l.b16 %v5352
  %v5427 = vunpack.c.h.b16 %v5352
  %v5428 = vunpack.c.l.b16 %v5353
  %v5429 = vunpack.c.h.b16 %v5353
  %v5430 = vunpack.c.l.b16 %v5354
  %v5431 = vunpack.c.h.b16 %v5354
  %v5432 = vunpack.c.l.b16 %v5355
  %v5433 = vunpack.c.h.b16 %v5355
  %v5434 = vunpack.c.l.b16 %v5356
  %v5435 = vunpack.c.h.b16 %v5356
  %v5436 = vunpack.c.l.b16 %v5357
  %v5437 = vunpack.c.h.b16 %v5357
  %v5438 = vunpack.c.l.b16 %v5358
  %v5439 = vunpack.c.h.b16 %v5358
  %v5440 = vunpack.c.l.b16 %v5359
  %v5441 = vunpack.c.h.b16 %v5359
  %v5442 = vunpack.c.l.b16 %v5360
  %v5443 = vunpack.c.h.b16 %v5360
  %v5444 = vunpack.c.l.b16 %v5361
  %v5445 = vunpack.c.h.b16 %v5361
  %v5446 = vunpack.c.l.b16 %v5362
  %v5447 = vunpack.c.h.b16 %v5362
  %v5448 = vunpack.c.l.b16 %v5363
  %v5449 = vunpack.c.h.b16 %v5363
  %v5450 = vunpack.c.l.b16 %v5364
  %v5451 = vunpack.c.h.b16 %v5364
  %v5452 = vunpack.c.l.b16 %v5365
  %v5453 = vunpack.c.h.b16 %v5365
  %v5454 = vunpack.c.l.b16 %v5366
  %v5455 = vunpack.c.h.b16 %v5366
  %v5456 = vunpack.c.l.b16 %v5367
  %v5457 = vunpack.c.h.b16 %v5367
  %v5458 = vunpack.c.l.b16 %v5368
  %v5459 = vunpack.c.h.b16 %v5368
  %v5460 = vunpack.c.l.b16 %v5369
  %v5461 = vunpack.c.h.b16 %v5369
  %v5462 = vunpack.c.l.b16 %v5370
  %v5463 = vunpack.c.h.b16 %v5370
  %v5464 = vunpack.c.l.b16 %v5371
  %v5465 = vunpack.c.h.b16 %v5371
  %v5466 = vunpack.c.l.b16 %v5372
  %v5467 = vunpack.c.h.b16 %v5372
  %v5468 = vunpack.c.l.b16 %v5373
  %v5469 = vunpack.c.h.b16 %v5373
  %v5470 = vpack.c.b16 %v5410, %v5406
  %v5471 = vpack.c.b16 %v5411, %v5407
  %v5472 = vpack.c.b16 %v5412, %v5408
  %v5473 = vpack.c.b16 %v5413, %v5409
  %v5474 = vpack.c.b16 %v5418, %v5414
  %v5475 = vpack.c.b16 %v5419, %v5415
  %v5476 = vpack.c.b16 %v5420, %v5416
  %v5477 = vpack.c.b16 %v5421, %v5417
  %v5478 = vpack.c.b16 %v5426, %v5422
  %v5479 = vpack.c.b16 %v5427, %v5423
  %v5480 = vpack.c.b16 %v5428, %v5424
  %v5481 = vpack.c.b16 %v5429, %v5425
  %v5482 = vpack.c.b16 %v5434, %v5430
  %v5483 = vpack.c.b16 %v5435, %v5431
  %v5484 = vpack.c.b16 %v5436, %v5432
  %v5485 = vpack.c.b16 %v5437, %v5433
  %v5486 = vpack.c.b16 %v5442, %v5438
  %v5487 = vpack.c.b16 %v5443, %v5439
  %v5488 = vpack.c.b16 %v5444, %v5440
  %v5489 = vpack.c.b16 %v5445, %v5441
  %v5490 = vpack.c.b16 %v5450, %v5446
  %v5491 = vpack.c.b16 %v5451, %v5447
  %v5492 = vpack.c.b16 %v5452, %v5448
  %v5493 = vpack.c.b16 %v5453, %v5449
  %v5494 = vpack.c.b16 %v5458, %v5454
  %v5495 = vpack.c.b16 %v5459, %v5455
  %v5496 = vpack.c.b16 %v5460, %v5456
  %v5497 = vpack.c.b16 %v5461, %v5457
  %v5498 = vpack.c.b16 %v5466, %v5462
  %v5499 = vpack.c.b16 %v5467, %v5463
  %v5500 = vpack.c.b16 %v5468, %v5464
  %v5501 = vpack.c.b16 %v5469, %v5465
  %5534 = vmatpush.bf16.msra.mxu0 %v5498
  %5535 = vmatpush.bf16.msra.mxu0 %v5494
  %5536 = vmatpush.bf16.msra.mxu0 %v5490
  %5537 = vmatpush.bf16.msra.mxu0 %v5486
  %5538 = vmatpush.bf16.msra.mxu0 %v5482
  %5539 = vmatpush.bf16.msra.mxu0 %v5478
  %5540 = vmatpush.bf16.msra.mxu0 %v5474
  %5541 = vmatpush.bf16.msra.mxu0 %v5470
  %5542 = vmatmul.bf16.gmra.mxu0 %v5333
  %v5543 = vpop.f32.mrf.mxu0
  %v5544 = vadd.f32 0.0, %v5543
  %v5545 = vpop.f32.mrf.mxu0
  %5546 = vdwg.mxu0
  %5547 = vmatpush.bf16.msra.mxu0 %v5499
  %5548 = vmatpush.bf16.msra.mxu0 %v5495
  %5549 = vmatpush.bf16.msra.mxu0 %v5491
  %5550 = vmatpush.bf16.msra.mxu0 %v5487
  %5551 = vmatpush.bf16.msra.mxu0 %v5483
  %5552 = vmatpush.bf16.msra.mxu0 %v5479
  %5553 = vmatpush.bf16.msra.mxu0 %v5475
  %5554 = vmatpush.bf16.msra.mxu0 %v5471
  %5555 = vmatmul.bf16.gmra.mxu0 %v5333
  %v5556 = vpop.f32.mrf.mxu0
  %v5557 = vadd.f32 0.0, %v5556
  %v5558 = vpop.f32.mrf.mxu0
  %5559 = vdwg.mxu0
  %5560 = vmatpush.bf16.msra.mxu0 %v5500
  %5561 = vmatpush.bf16.msra.mxu0 %v5496
  %5562 = vmatpush.bf16.msra.mxu0 %v5492
  %5563 = vmatpush.bf16.msra.mxu0 %v5488
  %5564 = vmatpush.bf16.msra.mxu0 %v5484
  %5565 = vmatpush.bf16.msra.mxu0 %v5480
  %5566 = vmatpush.bf16.msra.mxu0 %v5476
  %5567 = vmatpush.bf16.msra.mxu0 %v5472
  %5568 = vmatmul.bf16.gmra.mxu0 %v5333
  %v5569 = vpop.f32.mrf.mxu0
  %v5570 = vadd.f32 0.0, %v5569
  %v5571 = vpop.f32.mrf.mxu0
  %5572 = vdwg.mxu0
  %5573 = vmatpush.bf16.msra.mxu0 %v5501
  %5574 = vmatpush.bf16.msra.mxu0 %v5497
  %5575 = vmatpush.bf16.msra.mxu0 %v5493
  %5576 = vmatpush.bf16.msra.mxu0 %v5489
  %5577 = vmatpush.bf16.msra.mxu0 %v5485
  %5578 = vmatpush.bf16.msra.mxu0 %v5481
  %5579 = vmatpush.bf16.msra.mxu0 %v5477
  %5580 = vmatpush.bf16.msra.mxu0 %v5473
  %5581 = vmatmul.bf16.gmra.mxu0 %v5333
  %v5582 = vpop.f32.mrf.mxu0
  %v5583 = vadd.f32 0.0, %v5582
  %v5584 = vpop.f32.mrf.mxu0
  %5585 = vdwg.mxu0
  %v5586 = vadd.f32 %v5338, %v5544
  %v5587 = vadd.f32 %v5339, %v5557
  %v5588 = vadd.f32 %v5340, %v5570
  %v5589 = vadd.f32 %v5341, %v5583
  %v5590 = vadd.f32 %v5586, %v752
  %v5591 = vadd.f32 %v5587, %v753
  %v5592 = vadd.f32 %v5588, %v754
  %v5593 = vadd.f32 %v5589, %v755
  %v5594 = vld [vmem:[#allocation3] sm:$0xff]
  %v5595 = vld [vmem:[#allocation3 + $0x8] sm:$0xff]
  %v5596 = vunpack.c.l.bf16 %v5594
  %v5597 = vunpack.c.h.bf16 %v5594
  %v5598 = vunpack.c.l.bf16 %v5595
  %v5599 = vunpack.c.h.bf16 %v5595
  %v5600 = vld [vmem:[%s4] sm:$0xff]
  %v5601 = vld [vmem:[%s4 + $0x8] sm:$0xff]
  %v5602 = vld [vmem:[%s4 + $0x10] sm:$0xff]
  %v5603 = vld [vmem:[%s4 + $0x18] sm:$0xff]
  %v5604 = vld [vmem:[%s4 + $0x20] sm:$0xff]
  %v5605 = vld [vmem:[%s4 + $0x28] sm:$0xff]
  %v5606 = vld [vmem:[%s4 + $0x30] sm:$0xff]
  %v5607 = vld [vmem:[%s4 + $0x38] sm:$0xff]
  %v5608 = vld [vmem:[%s4 + $0x40] sm:$0xff]
  %v5609 = vld [vmem:[%s4 + $0x48] sm:$0xff]
  %v5610 = vld [vmem:[%s4 + $0x50] sm:$0xff]
  %v5611 = vld [vmem:[%s4 + $0x58] sm:$0xff]
  %v5612 = vld [vmem:[%s4 + $0x60] sm:$0xff]
  %v5613 = vld [vmem:[%s4 + $0x68] sm:$0xff]
  %v5614 = vld [vmem:[%s4 + $0x70] sm:$0xff]
  %v5615 = vld [vmem:[%s4 + $0x78] sm:$0xff]
  %v5616 = vld [vmem:[%s4 + $0x80] sm:$0xff]
  %v5617 = vld [vmem:[%s4 + $0x88] sm:$0xff]
  %v5618 = vld [vmem:[%s4 + $0x90] sm:$0xff]
  %v5619 = vld [vmem:[%s4 + $0x98] sm:$0xff]
  %v5620 = vld [vmem:[%s4 + $0xa0] sm:$0xff]
  %v5621 = vld [vmem:[%s4 + $0xa8] sm:$0xff]
  %v5622 = vld [vmem:[%s4 + $0xb0] sm:$0xff]
  %v5623 = vld [vmem:[%s4 + $0xb8] sm:$0xff]
  %v5624 = vld [vmem:[%s4 + $0xc0] sm:$0xff]
  %v5625 = vld [vmem:[%s4 + $0xc8] sm:$0xff]
  %v5626 = vld [vmem:[%s4 + $0xd0] sm:$0xff]
  %v5627 = vld [vmem:[%s4 + $0xd8] sm:$0xff]
  %v5628 = vld [vmem:[%s4 + $0xe0] sm:$0xff]
  %v5629 = vld [vmem:[%s4 + $0xe8] sm:$0xff]
  %v5630 = vld [vmem:[%s4 + $0xf0] sm:$0xff]
  %v5631 = vld [vmem:[%s4 + $0xf8] sm:$0xff]
  %v5664 = vunpack.c.l.b16 %v5600
  %v5665 = vunpack.c.h.b16 %v5600
  %v5666 = vunpack.c.l.b16 %v5601
  %v5667 = vunpack.c.h.b16 %v5601
  %v5668 = vunpack.c.l.b16 %v5602
  %v5669 = vunpack.c.h.b16 %v5602
  %v5670 = vunpack.c.l.b16 %v5603
  %v5671 = vunpack.c.h.b16 %v5603
  %v5672 = vunpack.c.l.b16 %v5604
  %v5673 = vunpack.c.h.b16 %v5604
  %v5674 = vunpack.c.l.b16 %v5605
  %v5675 = vunpack.c.h.b16 %v5605
  %v5676 = vunpack.c.l.b16 %v5606
  %v5677 = vunpack.c.h.b16 %v5606
  %v5678 = vunpack.c.l.b16 %v5607
  %v5679 = vunpack.c.h.b16 %v5607
  %v5680 = vunpack.c.l.b16 %v5608
  %v5681 = vunpack.c.h.b16 %v5608
  %v5682 = vunpack.c.l.b16 %v5609
  %v5683 = vunpack.c.h.b16 %v5609
  %v5684 = vunpack.c.l.b16 %v5610
  %v5685 = vunpack.c.h.b16 %v5610
  %v5686 = vunpack.c.l.b16 %v5611
  %v5687 = vunpack.c.h.b16 %v5611
  %v5688 = vunpack.c.l.b16 %v5612
  %v5689 = vunpack.c.h.b16 %v5612
  %v5690 = vunpack.c.l.b16 %v5613
  %v5691 = vunpack.c.h.b16 %v5613
  %v5692 = vunpack.c.l.b16 %v5614
  %v5693 = vunpack.c.h.b16 %v5614
  %v5694 = vunpack.c.l.b16 %v5615
  %v5695 = vunpack.c.h.b16 %v5615
  %v5696 = vunpack.c.l.b16 %v5616
  %v5697 = vunpack.c.h.b16 %v5616
  %v5698 = vunpack.c.l.b16 %v5617
  %v5699 = vunpack.c.h.b16 %v5617
  %v5700 = vunpack.c.l.b16 %v5618
  %v5701 = vunpack.c.h.b16 %v5618
  %v5702 = vunpack.c.l.b16 %v5619
  %v5703 = vunpack.c.h.b16 %v5619
  %v5704 = vunpack.c.l.b16 %v5620
  %v5705 = vunpack.c.h.b16 %v5620
  %v5706 = vunpack.c.l.b16 %v5621
  %v5707 = vunpack.c.h.b16 %v5621
  %v5708 = vunpack.c.l.b16 %v5622
  %v5709 = vunpack.c.h.b16 %v5622
  %v5710 = vunpack.c.l.b16 %v5623
  %v5711 = vunpack.c.h.b16 %v5623
  %v5712 = vunpack.c.l.b16 %v5624
  %v5713 = vunpack.c.h.b16 %v5624
  %v5714 = vunpack.c.l.b16 %v5625
  %v5715 = vunpack.c.h.b16 %v5625
  %v5716 = vunpack.c.l.b16 %v5626
  %v5717 = vunpack.c.h.b16 %v5626
  %v5718 = vunpack.c.l.b16 %v5627
  %v5719 = vunpack.c.h.b16 %v5627
  %v5720 = vunpack.c.l.b16 %v5628
  %v5721 = vunpack.c.h.b16 %v5628
  %v5722 = vunpack.c.l.b16 %v5629
  %v5723 = vunpack.c.h.b16 %v5629
  %v5724 = vunpack.c.l.b16 %v5630
  %v5725 = vunpack.c.h.b16 %v5630
  %v5726 = vunpack.c.l.b16 %v5631
  %v5727 = vunpack.c.h.b16 %v5631
  %v5728 = vpack.c.b16 %v5668, %v5664
  %v5729 = vpack.c.b16 %v5669, %v5665
  %v5730 = vpack.c.b16 %v5670, %v5666
  %v5731 = vpack.c.b16 %v5671, %v5667
  %v5732 = vpack.c.b16 %v5676, %v5672
  %v5733 = vpack.c.b16 %v5677, %v5673
  %v5734 = vpack.c.b16 %v5678, %v5674
  %v5735 = vpack.c.b16 %v5679, %v5675
  %v5736 = vpack.c.b16 %v5684, %v5680
  %v5737 = vpack.c.b16 %v5685, %v5681
  %v5738 = vpack.c.b16 %v5686, %v5682
  %v5739 = vpack.c.b16 %v5687, %v5683
  %v5740 = vpack.c.b16 %v5692, %v5688
  %v5741 = vpack.c.b16 %v5693, %v5689
  %v5742 = vpack.c.b16 %v5694, %v5690
  %v5743 = vpack.c.b16 %v5695, %v5691
  %v5744 = vpack.c.b16 %v5700, %v5696
  %v5745 = vpack.c.b16 %v5701, %v5697
  %v5746 = vpack.c.b16 %v5702, %v5698
  %v5747 = vpack.c.b16 %v5703, %v5699
  %v5748 = vpack.c.b16 %v5708, %v5704
  %v5749 = vpack.c.b16 %v5709, %v5705
  %v5750 = vpack.c.b16 %v5710, %v5706
  %v5751 = vpack.c.b16 %v5711, %v5707
  %v5752 = vpack.c.b16 %v5716, %v5712
  %v5753 = vpack.c.b16 %v5717, %v5713
  %v5754 = vpack.c.b16 %v5718, %v5714
  %v5755 = vpack.c.b16 %v5719, %v5715
  %v5756 = vpack.c.b16 %v5724, %v5720
  %v5757 = vpack.c.b16 %v5725, %v5721
  %v5758 = vpack.c.b16 %v5726, %v5722
  %v5759 = vpack.c.b16 %v5727, %v5723
  %5792 = vmatpush.bf16.msra.mxu0 %v5756
  %5793 = vmatpush.bf16.msra.mxu0 %v5752
  %5794 = vmatpush.bf16.msra.mxu0 %v5748
  %5795 = vmatpush.bf16.msra.mxu0 %v5744
  %5796 = vmatpush.bf16.msra.mxu0 %v5740
  %5797 = vmatpush.bf16.msra.mxu0 %v5736
  %5798 = vmatpush.bf16.msra.mxu0 %v5732
  %5799 = vmatpush.bf16.msra.mxu0 %v5728
  %5800 = vmatmul.bf16.gmra.mxu0 %v5334
  %v5801 = vpop.f32.mrf.mxu0
  %v5802 = vadd.f32 0.0, %v5801
  %v5803 = vpop.f32.mrf.mxu0
  %5804 = vdwg.mxu0
  %5805 = vmatpush.bf16.msra.mxu0 %v5757
  %5806 = vmatpush.bf16.msra.mxu0 %v5753
  %5807 = vmatpush.bf16.msra.mxu0 %v5749
  %5808 = vmatpush.bf16.msra.mxu0 %v5745
  %5809 = vmatpush.bf16.msra.mxu0 %v5741
  %5810 = vmatpush.bf16.msra.mxu0 %v5737
  %5811 = vmatpush.bf16.msra.mxu0 %v5733
  %5812 = vmatpush.bf16.msra.mxu0 %v5729
  %5813 = vmatmul.bf16.gmra.mxu0 %v5334
  %v5814 = vpop.f32.mrf.mxu0
  %v5815 = vadd.f32 0.0, %v5814
  %v5816 = vpop.f32.mrf.mxu0
  %5817 = vdwg.mxu0
  %5818 = vmatpush.bf16.msra.mxu0 %v5758
  %5819 = vmatpush.bf16.msra.mxu0 %v5754
  %5820 = vmatpush.bf16.msra.mxu0 %v5750
  %5821 = vmatpush.bf16.msra.mxu0 %v5746
  %5822 = vmatpush.bf16.msra.mxu0 %v5742
  %5823 = vmatpush.bf16.msra.mxu0 %v5738
  %5824 = vmatpush.bf16.msra.mxu0 %v5734
  %5825 = vmatpush.bf16.msra.mxu0 %v5730
  %5826 = vmatmul.bf16.gmra.mxu0 %v5334
  %v5827 = vpop.f32.mrf.mxu0
  %v5828 = vadd.f32 0.0, %v5827
  %v5829 = vpop.f32.mrf.mxu0
  %5830 = vdwg.mxu0
  %5831 = vmatpush.bf16.msra.mxu0 %v5759
  %5832 = vmatpush.bf16.msra.mxu0 %v5755
  %5833 = vmatpush.bf16.msra.mxu0 %v5751
  %5834 = vmatpush.bf16.msra.mxu0 %v5747
  %5835 = vmatpush.bf16.msra.mxu0 %v5743
  %5836 = vmatpush.bf16.msra.mxu0 %v5739
  %5837 = vmatpush.bf16.msra.mxu0 %v5735
  %5838 = vmatpush.bf16.msra.mxu0 %v5731
  %5839 = vmatmul.bf16.gmra.mxu0 %v5334
  %v5840 = vpop.f32.mrf.mxu0
  %v5841 = vadd.f32 0.0, %v5840
  %v5842 = vpop.f32.mrf.mxu0
  %5843 = vdwg.mxu0
  %v5844 = vadd.f32 %v5596, %v5802
  %v5845 = vadd.f32 %v5597, %v5815
  %v5846 = vadd.f32 %v5598, %v5828
  %v5847 = vadd.f32 %v5599, %v5841
  %v5848 = vadd.f32 %v5844, %v762
  %v5849 = vadd.f32 %v5845, %v763
  %v5850 = vadd.f32 %v5846, %v764
  %v5851 = vadd.f32 %v5847, %v765
  %v5852 = vxor.u32 %v5590, 2147483648
  %v5853 = vmul.f32 %v5852, 1.442695
  %v5854 = vpow.pop %v5853
  %v5855 = vadd.f32 %v5854, 1.0
  %v5856 = vrcp.pop %v5855
  %v5857 = vmul.f32 %v5855, %v5856
  %v5858 = vsub.f32 1.0, %v5857
  %v5859 = vmul.f32 %v5856, %v5858
  %v5860 = vadd.f32 %v5856, %v5859
  %vm5861 = vweird.f32 %v5855
  %vm5862 = vweird.f32 %v5856
  %vm5863 = vmor %vm5861, %vm5862
  %v5864 = vsel %vm5863, %v5856, %v5860
  %v5865 = vand.u32 2147483647, %v5855
  %vm5866 = vcmp.eq.f32.partialorder %v5865, 8.507059e+37
  %v5867 = vand.u32 %v5855, 2147483648
  %v5868 = vor.u32 1.1754944e-38, %v5867
  %v5869 = vsel %vm5866, %v5868, %v5864
  %v5870 = vmul.f32 1.0, %v5869
  %v5871 = vxor.u32 %v5591, 2147483648
  %v5872 = vmul.f32 %v5871, 1.442695
  %v5873 = vpow.pop %v5872
  %v5874 = vadd.f32 %v5873, 1.0
  %v5875 = vrcp.pop %v5874
  %v5876 = vmul.f32 %v5874, %v5875
  %v5877 = vsub.f32 1.0, %v5876
  %v5878 = vmul.f32 %v5875, %v5877
  %v5879 = vadd.f32 %v5875, %v5878
  %vm5880 = vweird.f32 %v5874
  %vm5881 = vweird.f32 %v5875
  %vm5882 = vmor %vm5880, %vm5881
  %v5883 = vsel %vm5882, %v5875, %v5879
  %v5884 = vand.u32 2147483647, %v5874
  %vm5885 = vcmp.eq.f32.partialorder %v5884, 8.507059e+37
  %v5886 = vand.u32 %v5874, 2147483648
  %v5887 = vor.u32 1.1754944e-38, %v5886
  %v5888 = vsel %vm5885, %v5887, %v5883
  %v5889 = vmul.f32 1.0, %v5888
  %v5890 = vtanh.pop %v5592
  %v5891 = vxor.u32 %v5593, 2147483648
  %v5892 = vmul.f32 %v5891, 1.442695
  %v5893 = vpow.pop %v5892
  %v5894 = vadd.f32 %v5893, 1.0
  %v5895 = vrcp.pop %v5894
  %v5896 = vmul.f32 %v5894, %v5895
  %v5897 = vsub.f32 1.0, %v5896
  %v5898 = vmul.f32 %v5895, %v5897
  %v5899 = vadd.f32 %v5895, %v5898
  %vm5900 = vweird.f32 %v5894
  %vm5901 = vweird.f32 %v5895
  %vm5902 = vmor %vm5900, %vm5901
  %v5903 = vsel %vm5902, %v5895, %v5899
  %v5904 = vand.u32 2147483647, %v5894
  %vm5905 = vcmp.eq.f32.partialorder %v5904, 8.507059e+37
  %v5906 = vand.u32 %v5894, 2147483648
  %v5907 = vor.u32 1.1754944e-38, %v5906
  %v5908 = vsel %vm5905, %v5907, %v5903
  %v5909 = vmul.f32 1.0, %v5908
  %v5910 = vmul.f32 %v5889, %v5261
  %v5911 = vmul.f32 %v5870, %v5890
  %v5912 = vadd.f32 %v5910, %v5911
  %v5913 = vtanh.pop %v5912
  %v5914 = vmul.f32 %v5909, %v5913
  %v5915 = vxor.u32 %v5848, 2147483648
  %v5916 = vmul.f32 %v5915, 1.442695
  %v5917 = vpow.pop %v5916
  %v5918 = vadd.f32 %v5917, 1.0
  %v5919 = vrcp.pop %v5918
  %v5920 = vmul.f32 %v5918, %v5919
  %v5921 = vsub.f32 1.0, %v5920
  %v5922 = vmul.f32 %v5919, %v5921
  %v5923 = vadd.f32 %v5919, %v5922
  %vm5924 = vweird.f32 %v5918
  %vm5925 = vweird.f32 %v5919
  %vm5926 = vmor %vm5924, %vm5925
  %v5927 = vsel %vm5926, %v5919, %v5923
  %v5928 = vand.u32 2147483647, %v5918
  %vm5929 = vcmp.eq.f32.partialorder %v5928, 8.507059e+37
  %v5930 = vand.u32 %v5918, 2147483648
  %v5931 = vor.u32 1.1754944e-38, %v5930
  %v5932 = vsel %vm5929, %v5931, %v5927
  %v5933 = vmul.f32 1.0, %v5932
  %v5934 = vxor.u32 %v5849, 2147483648
  %v5935 = vmul.f32 %v5934, 1.442695
  %v5936 = vpow.pop %v5935
  %v5937 = vadd.f32 %v5936, 1.0
  %v5938 = vrcp.pop %v5937
  %v5939 = vmul.f32 %v5937, %v5938
  %v5940 = vsub.f32 1.0, %v5939
  %v5941 = vmul.f32 %v5938, %v5940
  %v5942 = vadd.f32 %v5938, %v5941
  %vm5943 = vweird.f32 %v5937
  %vm5944 = vweird.f32 %v5938
  %vm5945 = vmor %vm5943, %vm5944
  %v5946 = vsel %vm5945, %v5938, %v5942
  %v5947 = vand.u32 2147483647, %v5937
  %vm5948 = vcmp.eq.f32.partialorder %v5947, 8.507059e+37
  %v5949 = vand.u32 %v5937, 2147483648
  %v5950 = vor.u32 1.1754944e-38, %v5949
  %v5951 = vsel %vm5948, %v5950, %v5946
  %v5952 = vmul.f32 1.0, %v5951
  %v5953 = vtanh.pop %v5850
  %v5954 = vxor.u32 %v5851, 2147483648
  %v5955 = vmul.f32 %v5954, 1.442695
  %v5956 = vpow.pop %v5955
  %v5957 = vadd.f32 %v5956, 1.0
  %v5958 = vrcp.pop %v5957
  %v5959 = vmul.f32 %v5957, %v5958
  %v5960 = vsub.f32 1.0, %v5959
  %v5961 = vmul.f32 %v5958, %v5960
  %v5962 = vadd.f32 %v5958, %v5961
  %vm5963 = vweird.f32 %v5957
  %vm5964 = vweird.f32 %v5958
  %vm5965 = vmor %vm5963, %vm5964
  %v5966 = vsel %vm5965, %v5958, %v5962
  %v5967 = vand.u32 2147483647, %v5957
  %vm5968 = vcmp.eq.f32.partialorder %v5967, 8.507059e+37
  %v5969 = vand.u32 %v5957, 2147483648
  %v5970 = vor.u32 1.1754944e-38, %v5969
  %v5971 = vsel %vm5968, %v5970, %v5966
  %v5972 = vmul.f32 1.0, %v5971
  %v5973 = vmul.f32 %v5952, %v5324
  %v5974 = vmul.f32 %v5933, %v5953
  %v5975 = vadd.f32 %v5973, %v5974
  %v5976 = vtanh.pop %v5975
  %v5977 = vmul.f32 %v5972, %v5976
  %v5978 = vld [vmem:[#allocation4] sm:$0xff]
  %v5979 = vadd.f32 %v5978, %v5914
  %5980 = vst [vmem:[#allocation4] sm:$0xff] %v5979
  %v5981 = vld [vmem:[#allocation5] sm:$0xff]
  %v5982 = vadd.f32 %v5981, %v5977
  %5983 = vst [vmem:[#allocation5] sm:$0xff] %v5982
  %v5984 = vld [vmem:[#allocation4] sm:$0xff]
  %v5985 = vmul.f32 %v5984, 0.125
  %v5986 = vpack.c.bf16 %v5985, %v5985
  %v5987 = vld [vmem:[#allocation5] sm:$0xff]
  %v5988 = vmul.f32 %v5987, 0.125
  %v5989 = vpack.c.bf16 %v5988, %v5988
  %v5990 = vld [vmem:[%s6] sm:$0xf]
  %v5991 = vld [vmem:[%s6 + $0x4] sm:$0xf]
  %v5992 = vld [vmem:[%s6 + $0x8] sm:$0xf]
  %v5993 = vld [vmem:[%s6 + $0xc] sm:$0xf]
  %v5994 = vld [vmem:[%s6 + $0x10] sm:$0xf]
  %v5995 = vld [vmem:[%s6 + $0x14] sm:$0xf]
  %v5996 = vld [vmem:[%s6 + $0x18] sm:$0xf]
  %v5997 = vld [vmem:[%s6 + $0x1c] sm:$0xf]
  %v5998 = vld [vmem:[%s6 + $0x20] sm:$0xf]
  %v5999 = vld [vmem:[%s6 + $0x24] sm:$0xf]
  %v6000 = vld [vmem:[%s6 + $0x28] sm:$0xf]
  %v6001 = vld [vmem:[%s6 + $0x2c] sm:$0xf]
  %v6002 = vld [vmem:[%s6 + $0x30] sm:$0xf]
  %v6003 = vld [vmem:[%s6 + $0x34] sm:$0xf]
  %v6004 = vld [vmem:[%s6 + $0x38] sm:$0xf]
  %v6005 = vld [vmem:[%s6 + $0x3c] sm:$0xf]
  %v6006 = vld [vmem:[%s6 + $0x40] sm:$0xf]
  %v6007 = vld [vmem:[%s6 + $0x44] sm:$0xf]
  %v6008 = vld [vmem:[%s6 + $0x48] sm:$0xf]
  %v6009 = vld [vmem:[%s6 + $0x4c] sm:$0xf]
  %v6010 = vld [vmem:[%s6 + $0x50] sm:$0xf]
  %v6011 = vld [vmem:[%s6 + $0x54] sm:$0xf]
  %v6012 = vld [vmem:[%s6 + $0x58] sm:$0xf]
  %v6013 = vld [vmem:[%s6 + $0x5c] sm:$0xf]
  %v6014 = vld [vmem:[%s6 + $0x60] sm:$0xf]
  %v6015 = vld [vmem:[%s6 + $0x64] sm:$0xf]
  %v6016 = vld [vmem:[%s6 + $0x68] sm:$0xf]
  %v6017 = vld [vmem:[%s6 + $0x6c] sm:$0xf]
  %v6018 = vld [vmem:[%s6 + $0x70] sm:$0xf]
  %v6019 = vld [vmem:[%s6 + $0x74] sm:$0xf]
  %v6020 = vld [vmem:[%s6 + $0x78] sm:$0xf]
  %v6021 = vld [vmem:[%s6 + $0x7c] sm:$0xf]
  %v6022 = vld [vmem:[%s5] sm:$0xf]
  %v6023 = vld [vmem:[%s7] sm:$0xf]
  %v6024 = vld [vmem:[%s7 + $0x4] sm:$0xf]
  %v6025 = vld [vmem:[%s7 + $0x8] sm:$0xf]
  %v6026 = vld [vmem:[%s7 + $0xc] sm:$0xf]
  %v6027 = vld [vmem:[%s7 + $0x10] sm:$0xf]
  %v6028 = vld [vmem:[%s7 + $0x14] sm:$0xf]
  %v6029 = vld [vmem:[%s7 + $0x18] sm:$0xf]
  %v6030 = vld [vmem:[%s7 + $0x1c] sm:$0xf]
  %v6031 = vld [vmem:[%s7 + $0x20] sm:$0xf]
  %v6032 = vld [vmem:[%s7 + $0x24] sm:$0xf]
  %v6033 = vld [vmem:[%s7 + $0x28] sm:$0xf]
  %v6034 = vld [vmem:[%s7 + $0x2c] sm:$0xf]
  %v6035 = vld [vmem:[%s7 + $0x30] sm:$0xf]
  %v6036 = vld [vmem:[%s7 + $0x34] sm:$0xf]
  %v6037 = vld [vmem:[%s7 + $0x38] sm:$0xf]
  %v6038 = vld [vmem:[%s7 + $0x3c] sm:$0xf]
  %v6055 = vunpack.c.l.b16 %v6023
  %v6056 = vunpack.c.l.b16 %v6024
  %v6057 = vunpack.c.l.b16 %v6025
  %v6058 = vunpack.c.l.b16 %v6026
  %v6059 = vunpack.c.l.b16 %v6027
  %v6060 = vunpack.c.l.b16 %v6028
  %v6061 = vunpack.c.l.b16 %v6029
  %v6062 = vunpack.c.l.b16 %v6030
  %v6063 = vunpack.c.l.b16 %v6031
  %v6064 = vunpack.c.l.b16 %v6032
  %v6065 = vunpack.c.l.b16 %v6033
  %v6066 = vunpack.c.l.b16 %v6034
  %v6067 = vunpack.c.l.b16 %v6035
  %v6068 = vunpack.c.l.b16 %v6036
  %v6069 = vunpack.c.l.b16 %v6037
  %v6070 = vunpack.c.l.b16 %v6038
  %v6071 = vpack.c.b16 %v6056, %v6055
  %v6072 = vpack.c.b16 %v6058, %v6057
  %v6073 = vpack.c.b16 %v6060, %v6059
  %v6074 = vpack.c.b16 %v6062, %v6061
  %v6075 = vpack.c.b16 %v6064, %v6063
  %v6076 = vpack.c.b16 %v6066, %v6065
  %v6077 = vpack.c.b16 %v6068, %v6067
  %v6078 = vpack.c.b16 %v6070, %v6069
  %6087 = vmatpush.bf16.msra.mxu0 %v6078
  %6088 = vmatpush.bf16.msra.mxu0 %v6077
  %6089 = vmatpush.bf16.msra.mxu0 %v6076
  %6090 = vmatpush.bf16.msra.mxu0 %v6075
  %6091 = vmatpush.bf16.msra.mxu0 %v6074
  %6092 = vmatpush.bf16.msra.mxu0 %v6073
  %6093 = vmatpush.bf16.msra.mxu0 %v6072
  %6094 = vmatpush.bf16.msra.mxu0 %v6071
  %6095 = vmatmul.bf16.gmra.mxu0 %v6022
  %v6096 = vpop.f32.mrf.mxu0
  %v6097 = vadd.f32 0.0, %v6096
  %v6098 = vpop.f32.mrf.mxu0
  %6099 = vdwg.mxu0
  %v6132 = vunpack.c.l.b16 %v5990
  %v6133 = vunpack.c.l.b16 %v5991
  %v6134 = vunpack.c.l.b16 %v5992
  %v6135 = vunpack.c.l.b16 %v5993
  %v6136 = vunpack.c.l.b16 %v5994
  %v6137 = vunpack.c.l.b16 %v5995
  %v6138 = vunpack.c.l.b16 %v5996
  %v6139 = vunpack.c.l.b16 %v5997
  %v6140 = vunpack.c.l.b16 %v5998
  %v6141 = vunpack.c.l.b16 %v5999
  %v6142 = vunpack.c.l.b16 %v6000
  %v6143 = vunpack.c.l.b16 %v6001
  %v6144 = vunpack.c.l.b16 %v6002
  %v6145 = vunpack.c.l.b16 %v6003
  %v6146 = vunpack.c.l.b16 %v6004
  %v6147 = vunpack.c.l.b16 %v6005
  %v6148 = vunpack.c.l.b16 %v6006
  %v6149 = vunpack.c.l.b16 %v6007
  %v6150 = vunpack.c.l.b16 %v6008
  %v6151 = vunpack.c.l.b16 %v6009
  %v6152 = vunpack.c.l.b16 %v6010
  %v6153 = vunpack.c.l.b16 %v6011
  %v6154 = vunpack.c.l.b16 %v6012
  %v6155 = vunpack.c.l.b16 %v6013
  %v6156 = vunpack.c.l.b16 %v6014
  %v6157 = vunpack.c.l.b16 %v6015
  %v6158 = vunpack.c.l.b16 %v6016
  %v6159 = vunpack.c.l.b16 %v6017
  %v6160 = vunpack.c.l.b16 %v6018
  %v6161 = vunpack.c.l.b16 %v6019
  %v6162 = vunpack.c.l.b16 %v6020
  %v6163 = vunpack.c.l.b16 %v6021
  %v6164 = vpack.c.b16 %v6133, %v6132
  %v6165 = vpack.c.b16 %v6135, %v6134
  %v6166 = vpack.c.b16 %v6137, %v6136
  %v6167 = vpack.c.b16 %v6139, %v6138
  %v6168 = vpack.c.b16 %v6141, %v6140
  %v6169 = vpack.c.b16 %v6143, %v6142
  %v6170 = vpack.c.b16 %v6145, %v6144
  %v6171 = vpack.c.b16 %v6147, %v6146
  %v6172 = vpack.c.b16 %v6149, %v6148
  %v6173 = vpack.c.b16 %v6151, %v6150
  %v6174 = vpack.c.b16 %v6153, %v6152
  %v6175 = vpack.c.b16 %v6155, %v6154
  %v6176 = vpack.c.b16 %v6157, %v6156
  %v6177 = vpack.c.b16 %v6159, %v6158
  %v6178 = vpack.c.b16 %v6161, %v6160
  %v6179 = vpack.c.b16 %v6163, %v6162
  %6196 = vmatpush.bf16.msra.mxu0 %v6171
  %6197 = vmatpush.bf16.msra.mxu0 %v6170
  %6198 = vmatpush.bf16.msra.mxu0 %v6169
  %6199 = vmatpush.bf16.msra.mxu0 %v6168
  %6200 = vmatpush.bf16.msra.mxu0 %v6167
  %6201 = vmatpush.bf16.msra.mxu0 %v6166
  %6202 = vmatpush.bf16.msra.mxu0 %v6165
  %6203 = vmatpush.bf16.msra.mxu0 %v6164
  %6204 = vmatmul.bf16.gmra.mxu0 %v5986
  %v6205 = vpop.f32.mrf.mxu0
  %v6206 = vadd.f32 %v6097, %v6205
  %v6207 = vpop.f32.mrf.mxu0
  %6208 = vdwg.mxu0
  %6209 = vmatpush.bf16.msra.mxu0 %v6179
  %6210 = vmatpush.bf16.msra.mxu0 %v6178
  %6211 = vmatpush.bf16.msra.mxu0 %v6177
  %6212 = vmatpush.bf16.msra.mxu0 %v6176
  %6213 = vmatpush.bf16.msra.mxu0 %v6175
  %6214 = vmatpush.bf16.msra.mxu0 %v6174
  %6215 = vmatpush.bf16.msra.mxu0 %v6173
  %6216 = vmatpush.bf16.msra.mxu0 %v6172
  %6217 = vmatmul.bf16.gmra.mxu0 %v5989
  %v6218 = vpop.f32.mrf.mxu0
  %v6219 = vadd.f32 %v6206, %v6218
  %v6220 = vpop.f32.mrf.mxu0
  %6221 = vdwg.mxu0
  %v6222 = vld [vmem:[%s8] sm:$0x1]
  %v6224 = vperm.slane %v6222, 0
  %v6226 = vadd.f32 %v6219, %v6224
  %6227 = vst [vmem:[%s9] sm:$0xff] %v6226
  // Predicated region
  $region38: #{text_lstm_forward.1} parent=0 // pred_check
    _
  $region39: #{text_lstm_forward.1} parent=0 // pred_check_branch
    %6229 = sbr.rel (0) target = $region41
  $region40: #{text_lstm_forward.1} parent=0 // pred_region
    _
  $region41: #{text_lstm_forward.1} parent=0 // pred_fallthru
    _
  // Predicated region
  $region42: #{text_lstm_forward.1} parent=0 // pred_check
    _
  $region43: #{text_lstm_forward.1} parent=0 // pred_check_branch
    %6231 = sbr.rel (0) target = $region45
  $region44: #{text_lstm_forward.1} parent=0 // pred_region
    _
  $region45: #{text_lstm_forward.1} parent=0 // pred_fallthru
    _

</llo_original>
